<compile_context>
chip_gen: v5e
topology: v5e:2x2
jax: 0.10.0
libtpu: 0.0.40
codegen_flags: <defaults>
</compile_context>

<pallas_src>
import functools

import jax
import jax.numpy as jnp
from jax import lax
from jax.experimental import pallas as pl
from jax.experimental.pallas import tpu as pltpu


_NEG_BIAS = 4096.0   # bias-lane sentinel; valid correlations are in [-1, 1]


# ----------------------------------------------------------------------------
# Pass 1: tiled correlation + online max / argmax
# ----------------------------------------------------------------------------
def _corr_argmax_kernel(refsr_ref, lrsr_ref, smax_ref, sarg_ref):
    k = pl.program_id(2)
    a = refsr_ref[0]                      # (TK, C9p)  bf16 normalized refsr rows
    b = lrsr_ref[0]                       # (C9p, TN)  bf16 normalized lrsr cols
    tk = a.shape[0]

    # Correlation tile on the MXU (f32 accumulate).  Padded reference rows are
    # already masked by the -4096 bias lane baked into the operands.
    r = jnp.dot(a, b, preferred_element_type=jnp.float32)        # (TK, TN)

    # Lean epilogue: tiny (TK,1) iota, one max + one min cross-sublane
    # reduction; first-occurrence tie-break (lowest index) within the tile.
    row = lax.broadcasted_iota(jnp.int32, (tk, 1), 0)
    tile_max = jnp.max(r, axis=0, keepdims=True)                 # (1, TN)
    tile_arg = jnp.min(jnp.where(r == tile_max, row, tk),
                       axis=0, keepdims=True) + k * tk           # (1, TN) int32

    @pl.when(k == 0)
    def _():
        smax_ref[0] = tile_max
        sarg_ref[0] = tile_arg

    @pl.when(k > 0)
    def _():
        prev_m = smax_ref[0]
        take = tile_max > prev_m          # strict ">" keeps the earlier index
        smax_ref[0] = jnp.where(take, tile_max, prev_m)
        sarg_ref[0] = jnp.where(take, tile_arg, sarg_ref[0])


def _corr_argmax(refsr_p, lrsr_p, *, tk, tn):
    n, p_ref_pad, c9p = refsr_p.shape
    p_lr_pad = lrsr_p.shape[2]
    grid = (n, p_lr_pad // tn, p_ref_pad // tk)
    # VMEM working set (bf16, TK=128, TN=512, c9p<=~2.5k) is only a few MiB,
    # well inside every generation's scoped-VMEM default -> no vmem_limit_bytes.
    return pl.pallas_call(
        _corr_argmax_kernel,
        out_shape=(
            jax.ShapeDtypeStruct((n, 1, p_lr_pad), jnp.float32),
            jax.ShapeDtypeStruct((n, 1, p_lr_pad), jnp.int32),
        ),
        grid_spec=pltpu.PrefetchScalarGridSpec(
            num_scalar_prefetch=0,
            grid=grid,
            in_specs=[
                pl.BlockSpec((1, tk, c9p), lambda b, j, k: (b, k, 0)),
                pl.BlockSpec((1, c9p, tn), lambda b, j, k: (b, 0, j)),
            ],
            out_specs=(
                pl.BlockSpec((1, 1, tn), lambda b, j, k: (b, 0, j)),
                pl.BlockSpec((1, 1, tn), lambda b, j, k: (b, 0, j)),
            ),
        ),
        compiler_params=pltpu.CompilerParams(
            dimension_semantics=("parallel", "parallel", "arbitrary")),
    )(refsr_p, lrsr_p)


# ----------------------------------------------------------------------------
# Pass 2: grouped hard-attention gather, direct HBM -> HBM DMAs
# ----------------------------------------------------------------------------
def _gather_kernel(idx_ref, r3_ref, r2_ref, r1_ref, t3_ref, t2_ref, t1_ref,
                   sems, *, group):
    base = pl.program_id(0) * group
    copies = []
    # Issue 3*group DMAs (all in flight), then wait for all of them.  All
    # copies of a given level share one DMA semaphore (identical byte counts),
    # so wait/signal accounting balances regardless of completion order.
    for j in range(group):
        dst = base + j
        src = idx_ref[dst]
        c3 = pltpu.make_async_copy(r3_ref.at[src], t3_ref.at[dst], sems.at[0])
        c2 = pltpu.make_async_copy(r2_ref.at[src], t2_ref.at[dst], sems.at[1])
        c1 = pltpu.make_async_copy(r1_ref.at[src], t1_ref.at[dst], sems.at[2])
        c3.start(); c2.start(); c1.start()
        copies.append((c3, c2, c1))
    for c3, c2, c1 in copies:
        c3.wait(); c2.wait(); c1.wait()


def _hard_gather(flat_idx, ref3_rows, ref2_rows, ref1_rows, *, group=16):
    """Gather rows ref*_rows[flat_idx[i]] -> out[i] with grouped HBM->HBM DMAs."""
    n_out = flat_idx.shape[0]
    n_pad = _round_up(n_out, group)
    idx = jnp.pad(flat_idx, (0, n_pad - n_out)).astype(jnp.int32)

    d3, d2, d1 = ref3_rows.shape[-1], ref2_rows.shape[-1], ref1_rows.shape[-1]
    dt3, dt2, dt1 = ref3_rows.dtype, ref2_rows.dtype, ref1_rows.dtype

    kernel = functools.partial(_gather_kernel, group=group)
    t3, t2, t1 = pl.pallas_call(
        kernel,
        out_shape=(
            jax.ShapeDtypeStruct((n_pad, d3), dt3),
            jax.ShapeDtypeStruct((n_pad, d2), dt2),
            jax.ShapeDtypeStruct((n_pad, d1), dt1),
        ),
        grid_spec=pltpu.PrefetchScalarGridSpec(
            num_scalar_prefetch=1,
            grid=(n_pad // group,),
            in_specs=[pl.BlockSpec(memory_space=pl.ANY),
                      pl.BlockSpec(memory_space=pl.ANY),
                      pl.BlockSpec(memory_space=pl.ANY)],
            out_specs=(pl.BlockSpec(memory_space=pl.ANY),
                       pl.BlockSpec(memory_space=pl.ANY),
                       pl.BlockSpec(memory_space=pl.ANY)),
            scratch_shapes=[pltpu.SemaphoreType.DMA((3,))],
        ),
        compiler_params=pltpu.CompilerParams(
            dimension_semantics=("parallel",)),   # 2x on v7x (2 TCs), free elsewhere
    )(idx, ref3_rows, ref2_rows, ref1_rows)
    return t3[:n_out], t2[:n_out], t1[:n_out]


# ----------------------------- JAX glue: im2col / col2im ----------------------
def unfold(x, k, pad, stride):
    # x: (N, C, H, W) -> (N, C*k*k, L), matching F.unfold channel order (c, kh, kw)
    n, c, h, w = x.shape
    xp = jnp.pad(x, ((0, 0), (0, 0), (pad, pad), (pad, pad)))
    hp = (h + 2 * pad - k) // stride + 1
    wp = (w + 2 * pad - k) // stride + 1
    cols = []
    for i in range(k):
        for j in range(k):
            cols.append(xp[:, :, i:i + stride * hp:stride, j:j + stride * wp:stride])
    col = jnp.stack(cols, axis=2)               # (N, C, k*k, Hp, Wp)
    return col.reshape(n, c * k * k, hp * wp)


def fold_patch_major(cols, output_size, k, pad, stride):
    # cols: (N, L, C*k*k) patch-major (what the gather produces) -> (N, C, Hout, Wout)
    # Overlap-add identical to F.fold; avoids the big (N,L,d)->(N,d,L) transpose.
    n, l, d = cols.shape
    hout, wout = output_size
    hp = (hout + 2 * pad - k) // stride + 1
    wp = (wout + 2 * pad - k) // stride + 1
    c = d // (k * k)
    cols = cols.reshape(n, hp, wp, c, k, k)
    out = jnp.zeros((n, hout + 2 * pad, wout + 2 * pad, c), cols.dtype)
    for i in range(k):
        for j in range(k):
            out = out.at[:, i:i + stride * hp:stride,
                         j:j + stride * wp:stride, :].add(cols[:, :, :, :, i, j])
    out = out[:, pad:pad + hout, pad:pad + wout, :]
    return out.transpose(0, 3, 1, 2)            # NHWC -> NCHW (single transpose)


def _round_up(x, m):
    return ((x + m - 1) // m) * m


# ----------------------------- forward ---------------------------------------
def search_transfer(lrsr_lv3, refsr_lv3, ref_lv1, ref_lv2, ref_lv3,
                    *, tile_ref=128, tile_lr=512, gather_group=16,
                    compute_dtype=jnp.bfloat16):
    n, _, h, w = lrsr_lv3.shape
    hr, wr = refsr_lv3.shape[2], refsr_lv3.shape[3]
    p_lr = h * w
    p_ref = hr * wr
    eps = 1e-12

    # ---- im2col + F.normalize (x * rsqrt(max(||x||^2, eps^2))) --------------
    lrsr_u = unfold(lrsr_lv3, 3, 1, 1)                        # (N, C9, P_lr)
    refsr_u = unfold(refsr_lv3, 3, 1, 1).transpose(0, 2, 1)   # (N, P_ref, C9)
    c9 = lrsr_u.shape[1]

    refsr_n = refsr_u * lax.rsqrt(
        jnp.maximum(jnp.sum(refsr_u * refsr_u, axis=2, keepdims=True), eps * eps))
    lrsr_n = lrsr_u * lax.rsqrt(
        jnp.maximum(jnp.sum(lrsr_u * lrsr_u, axis=1, keepdims=True), eps * eps))

    # ---- tile selection (asymmetric: small TK, large TN) --------------------
    tk = min(tile_ref, _round_up(p_ref, 8))           # reduction-axis tile
    tn = min(tile_lr, _round_up(p_lr, 128))           # lane-dense lr tile
    p_ref_pad = _round_up(p_ref, tk)
    p_lr_pad = _round_up(p_lr, tn)
    c9p = _round_up(c9 + 1, 128)                       # +1 bias lane, lane-dense

    # ---- bf16 operands with a bias lane doing the pad-row masking -----------
    refsr_p = jnp.zeros((n, p_ref_pad, c9p), compute_dtype)
    refsr_p = refsr_p.at[:, :p_ref, :c9].set(refsr_n.astype(compute_dtype))
    refsr_p = refsr_p.at[:, p_ref:, c9].set(compute_dtype(-_NEG_BIAS))
    lrsr_p = jnp.zeros((n, c9p, p_lr_pad), compute_dtype)
    lrsr_p = lrsr_p.at[:, :c9, :p_lr].set(lrsr_n.astype(compute_dtype))
    lrsr_p = lrsr_p.at[:, c9, :].set(compute_dtype(1.0))

    smax, sarg = _corr_argmax(refsr_p, lrsr_p, tk=tk, tn=tn)
    r_star = smax[:, 0, :p_lr]                                # (N, P_lr) f32
    r_arg = sarg[:, 0, :p_lr]                                 # (N, P_lr) int32

    # ---- reference pyramid rows (contiguous gather rows, full precision) ----
    ref3_rows = unfold(ref_lv3, 3, 1, 1).transpose(0, 2, 1)   # (N, P_ref, D3)
    ref2_rows = unfold(ref_lv2, 6, 2, 2).transpose(0, 2, 1)   # (N, P_ref, D2)
    ref1_rows = unfold(ref_lv1, 12, 4, 4).transpose(0, 2, 1)  # (N, P_ref, D1)
    d3, d2, d1 = ref3_rows.shape[-1], ref2_rows.shape[-1], ref1_rows.shape[-1]

    flat_idx = (r_arg + jnp.arange(n, dtype=jnp.int32)[:, None] * p_ref
                ).reshape(n * p_lr).astype(jnp.int32)

    t3, t2, t1 = _hard_gather(
        flat_idx,
        ref3_rows.reshape(n * p_ref, d3),
        ref2_rows.reshape(n * p_ref, d2),
        ref1_rows.reshape(n * p_ref, d1),
        group=gather_group)

    # patch-major fold (no post-gather transposes), /9 as in the reference
    t_lv3 = fold_patch_major(t3.reshape(n, p_lr, d3), (h, w), 3, 1, 1) / 9.0
    t_lv2 = fold_patch_major(t2.reshape(n, p_lr, d2), (2 * h, 2 * w), 6, 2, 2) / 9.0
    t_lv1 = fold_patch_major(t1.reshape(n, p_lr, d1), (4 * h, 4 * w), 12, 4, 4) / 9.0
    s = r_star.reshape(n, 1, h, w)
    return s, t_lv3, t_lv2, t_lv1


if __name__ == "__main__":
    # SearchTransfer has no learnable parameters, so nothing to initialize.
    key = jax.random.PRNGKey(0)
    k1, k2, k3, k4, k5, k6, k7 = jax.random.split(key, 7)
    N, C, H, W = 2, 4, 16, 16
    lrsr_lv3 = jax.random.normal(k1, (N, C, H, W), jnp.float32)
    refsr_lv3 = jax.random.normal(k2, (N, C, H, W), jnp.float32)
    ref_lv3 = jax.random.normal(k3, (N, C, H, W), jnp.float32)
    ref_lv2 = jax.random.normal(k4, (N, C, 2 * H, 2 * W), jnp.float32)
    ref_lv1 = jax.random.normal(k5, (N, C, 4 * H, 4 * W), jnp.float32)

    S, T3, T2, T1 = jax.jit(search_transfer)(
        lrsr_lv3, refsr_lv3, ref_lv1, ref_lv2, ref_lv3)
    jax.block_until_ready((S, T3, T2, T1))

    assert S.shape == (N, 1, H, W)
    assert T3.shape == (N, C, H, W)
    assert T2.shape == (N, C, 2 * H, 2 * W)
    assert T1.shape == (N, C, 4 * H, 4 * W)
    assert all(bool(jnp.all(jnp.isfinite(x))) for x in (S, T3, T2, T1))

    # --- pass-1 sanity check: S against a pure-JAX reference using the same
    #     bf16-quantized normalized inputs (f32 accumulation) ------------------
    lr_u = unfold(lrsr_lv3, 3, 1, 1)
    rf_u = unfold(refsr_lv3, 3, 1, 1).transpose(0, 2, 1)
    rf_n = rf_u * lax.rsqrt(
        jnp.maximum(jnp.sum(rf_u * rf_u, axis=2, keepdims=True), 1e-24))
    lr_n = lr_u * lax.rsqrt(
        jnp.maximum(jnp.sum(lr_u * lr_u, axis=1, keepdims=True), 1e-24))
    rf_q = rf_n.astype(jnp.bfloat16).astype(jnp.float32)
    lr_q = lr_n.astype(jnp.bfloat16).astype(jnp.float32)
    R = jnp.einsum("npc,ncq->npq", rf_q, lr_q)
    S_ref = jnp.max(R, axis=1).reshape(N, 1, H, W)
    assert bool(jnp.allclose(S, S_ref, atol=2e-3, rtol=2e-3))

    # --- pass-2 sanity check: standalone grouped DMA gather vs jnp.take ------
    tab3 = jax.random.normal(k6, (96, 36), jnp.float32)
    tab2 = jax.random.normal(k7, (96, 144), jnp.float32)
    tab1 = jax.random.normal(k6, (96, 576), jnp.float32)
    gidx = jax.random.randint(k7, (50,), 0, 96, jnp.int32)
    g3, g2, g1 = _hard_gather(gidx, tab3, tab2, tab1, group=16)
    jax.block_until_ready((g3, g2, g1))
    assert bool(jnp.array_equal(g3, jnp.take(tab3, gidx, axis=0)))
    assert bool(jnp.array_equal(g2, jnp.take(tab2, gidx, axis=0)))
    assert bool(jnp.array_equal(g1, jnp.take(tab1, gidx, axis=0)))

    print("KERNEL_OK")
</pallas_src>

<mosaic_0001>
module attributes {stable_mosaic.version = 11 : i64} {
  func.func @_corr_argmax_kernel(%arg0: i32, %arg1: i32, %arg2: i32, %arg3: memref<1x128x128xbf16, #tpu.memory_space<vmem>>, %arg4: memref<1x128x256xbf16, #tpu.memory_space<vmem>>, %arg5: memref<1x1x256xf32, #tpu.memory_space<vmem>>, %arg6: memref<1x1x256xi32, #tpu.memory_space<vmem>>) attributes {dimension_semantics = [#tpu.dimension_semantics<parallel>, #tpu.dimension_semantics<parallel>, #tpu.dimension_semantics<arbitrary>], iteration_bounds = array<i64: 2, 1, 2>, scalar_prefetch = 0 : i64, scratch_operands = 0 : i64, tpu.core_type = #tpu.core_type<tc>, window_params = [{transform_indices = @transform_0, window_bounds = array<i64: 1, 128, 128>}, {transform_indices = @transform_1, window_bounds = array<i64: 1, 128, 256>}, {transform_indices = @transform_2, window_bounds = array<i64: 1, 1, 256>}, {transform_indices = @transform_3, window_bounds = array<i64: 1, 1, 256>}]} {
    %c0 = arith.constant 0 : index
    %c0_0 = arith.constant 0 : index
    %c0_1 = arith.constant 0 : index
    %0 = vector.load %arg3[%c0, %c0_0, %c0_1] : memref<1x128x128xbf16, #tpu.memory_space<vmem>>, vector<1x128x128xbf16>
    %1 = vector.shape_cast %0 : vector<1x128x128xbf16> to vector<128x128xbf16>
    %c0_2 = arith.constant 0 : index
    %c0_3 = arith.constant 0 : index
    %c0_4 = arith.constant 0 : index
    %2 = vector.load %arg4[%c0_2, %c0_3, %c0_4] : memref<1x128x256xbf16, #tpu.memory_space<vmem>>, vector<1x128x256xbf16>
    %3 = vector.shape_cast %2 : vector<1x128x256xbf16> to vector<128x256xbf16>
    %cst = arith.constant dense<0.000000e+00> : vector<128x256xf32>
    %4 = tpu.matmul %1, %3, %cst {dimension_numbers = #tpu.dot_dimension_numbers<[1], [0], [0], [1], [0, 0, 1, 1], [], []>} : vector<128x128xbf16>, vector<128x256xbf16>, vector<128x256xf32> -> vector<128x256xf32>
    %5 = tpu.iota {dimensions = array<i32: 0>} : vector<128x1xi32>
    %cst_5 = arith.constant dense<0xFF800000> : vector<256xf32>
    %6 = vector.multi_reduction <maximumf>, %4, %cst_5 [0] : vector<128x256xf32> to vector<256xf32>
    %7 = vector.shape_cast %6 : vector<256xf32> to vector<1x256xf32>
    %8 = vector.broadcast %7 : vector<1x256xf32> to vector<128x256xf32>
    %9 = arith.cmpf oeq, %4, %8 : vector<128x256xf32>
    %c128_i32 = arith.constant 128 : i32
    %10 = vector.shape_cast %5 : vector<128x1xi32> to vector<128x1xi32>
    %11 = vector.broadcast %10 : vector<128x1xi32> to vector<128x256xi32>
    %12 = vector.broadcast %c128_i32 : i32 to vector<128x256xi32>
    %13 = arith.select %9, %11, %12 : vector<128x256xi1>, vector<128x256xi32>
    %cst_6 = arith.constant dense<2147483647> : vector<256xi32>
    %14 = vector.multi_reduction <minsi>, %13, %cst_6 [0] : vector<128x256xi32> to vector<256xi32>
    %15 = vector.shape_cast %14 : vector<256xi32> to vector<1x256xi32>
    %c128_i32_7 = arith.constant 128 : i32
    %16 = arith.muli %arg2, %c128_i32_7 : i32
    %17 = vector.broadcast %16 : i32 to vector<1x256xi32>
    %18 = arith.addi %15, %17 : vector<1x256xi32>
    %c0_i32 = arith.constant 0 : i32
    %19 = arith.cmpi eq, %arg2, %c0_i32 : i32
    %20 = arith.extui %19 : i1 to i32
    %c0_i32_8 = arith.constant 0 : i32
    %21 = arith.cmpi ne, %20, %c0_i32_8 : i32
    scf.if %21 {
      %c0_11 = arith.constant 0 : index
      %c0_12 = arith.constant 0 : index
      %c0_13 = arith.constant 0 : index
      %25 = vector.load %arg5[%c0_11, %c0_12, %c0_13] : memref<1x1x256xf32, #tpu.memory_space<vmem>>, vector<1x1x256xf32>
      %26 = vector.shape_cast %25 : vector<1x1x256xf32> to vector<1x256xf32>
      %27 = vector.shape_cast %7 : vector<1x256xf32> to vector<1x1x256xf32>
      tpu.vector_store %arg5[%c0_11, %c0_12, %c0_13], %27 {strides = array<i32>} : memref<1x1x256xf32, #tpu.memory_space<vmem>>, vector<1x1x256xf32>,
      %c0_14 = arith.constant 0 : index
      %c0_15 = arith.constant 0 : index
      %c0_16 = arith.constant 0 : index
      %28 = vector.load %arg6[%c0_14, %c0_15, %c0_16] : memref<1x1x256xi32, #tpu.memory_space<vmem>>, vector<1x1x256xi32>
      %29 = vector.shape_cast %28 : vector<1x1x256xi32> to vector<1x256xi32>
      %30 = vector.shape_cast %18 : vector<1x256xi32> to vector<1x1x256xi32>
      tpu.vector_store %arg6[%c0_14, %c0_15, %c0_16], %30 {strides = array<i32>} : memref<1x1x256xi32, #tpu.memory_space<vmem>>, vector<1x1x256xi32>,
    } else {
    }
    %c0_i32_9 = arith.constant 0 : i32
    %22 = arith.cmpi sgt, %arg2, %c0_i32_9 : i32
    %23 = arith.extui %22 : i1 to i32
    %c0_i32_10 = arith.constant 0 : i32
    %24 = arith.cmpi ne, %23, %c0_i32_10 : i32
    scf.if %24 {
      %c0_11 = arith.constant 0 : index
      %c0_12 = arith.constant 0 : index
      %c0_13 = arith.constant 0 : index
      %25 = vector.load %arg5[%c0_11, %c0_12, %c0_13] : memref<1x1x256xf32, #tpu.memory_space<vmem>>, vector<1x1x256xf32>
      %26 = vector.shape_cast %25 : vector<1x1x256xf32> to vector<1x256xf32>
      %27 = arith.cmpf ogt, %7, %26 : vector<1x256xf32>
      %28 = arith.select %27, %7, %26 : vector<1x256xi1>, vector<1x256xf32>
      %c0_14 = arith.constant 0 : index
      %c0_15 = arith.constant 0 : index
      %c0_16 = arith.constant 0 : index
      %29 = vector.load %arg5[%c0_14, %c0_15, %c0_16] : memref<1x1x256xf32, #tpu.memory_space<vmem>>, vector<1x1x256xf32>
      %30 = vector.shape_cast %29 : vector<1x1x256xf32> to vector<1x256xf32>
      %31 = vector.shape_cast %28 : vector<1x256xf32> to vector<1x1x256xf32>
      tpu.vector_store %arg5[%c0_14, %c0_15, %c0_16], %31 {strides = array<i32>} : memref<1x1x256xf32, #tpu.memory_space<vmem>>, vector<1x1x256xf32>,
      %c0_17 = arith.constant 0 : index
      %c0_18 = arith.constant 0 : index
      %c0_19 = arith.constant 0 : index
      %32 = vector.load %arg6[%c0_17, %c0_18, %c0_19] : memref<1x1x256xi32, #tpu.memory_space<vmem>>, vector<1x1x256xi32>
      %33 = vector.shape_cast %32 : vector<1x1x256xi32> to vector<1x256xi32>
      %34 = arith.select %27, %18, %33 : vector<1x256xi1>, vector<1x256xi32>
      %c0_20 = arith.constant 0 : index
      %c0_21 = arith.constant 0 : index
      %c0_22 = arith.constant 0 : index
      %35 = vector.load %arg6[%c0_20, %c0_21, %c0_22] : memref<1x1x256xi32, #tpu.memory_space<vmem>>, vector<1x1x256xi32>
      %36 = vector.shape_cast %35 : vector<1x1x256xi32> to vector<1x256xi32>
      %37 = vector.shape_cast %34 : vector<1x256xi32> to vector<1x1x256xi32>
      tpu.vector_store %arg6[%c0_20, %c0_21, %c0_22], %37 {strides = array<i32>} : memref<1x1x256xi32, #tpu.memory_space<vmem>>, vector<1x1x256xi32>,
    } else {
    }
    return
  }
  func.func @transform_0(%arg0: i32, %arg1: i32, %arg2: i32) -> (i32, i32, i32) {
    %c0_i32 = arith.constant 0 : i32
    %c0_i32_0 = arith.constant 0 : i32
    return %arg0, %arg2, %c0_i32 : i32, i32, i32
  }
  func.func @transform_1(%arg0: i32, %arg1: i32, %arg2: i32) -> (i32, i32, i32) {
    %c0_i32 = arith.constant 0 : i32
    %c0_i32_0 = arith.constant 0 : i32
    return %arg0, %c0_i32, %arg1 : i32, i32, i32
  }
  func.func @transform_2(%arg0: i32, %arg1: i32, %arg2: i32) -> (i32, i32, i32) {
    %c0_i32 = arith.constant 0 : i32
    %c0_i32_0 = arith.constant 0 : i32
    return %arg0, %c0_i32, %arg1 : i32, i32, i32
  }
  func.func @transform_3(%arg0: i32, %arg1: i32, %arg2: i32) -> (i32, i32, i32) {
    %c0_i32 = arith.constant 0 : i32
    %c0_i32_0 = arith.constant 0 : i32
    return %arg0, %c0_i32, %arg1 : i32, i32, i32
  }
}

module attributes {stable_mosaic.version = 11 : i64} {
  func.func @_gather_kernel(%arg0: i32, %arg1: memref<512xi32, #tpu.memory_space<smem>>, %arg2: memref<512x36xf32, #tpu.memory_space<any>>, %arg3: memref<512x144xf32, #tpu.memory_space<any>>, %arg4: memref<512x576xf32, #tpu.memory_space<any>>, %arg5: memref<512x36xf32, #tpu.memory_space<any>>, %arg6: memref<512x144xf32, #tpu.memory_space<any>>, %arg7: memref<512x576xf32, #tpu.memory_space<any>>, %arg8: memref<3x!tpu.dma_semaphore, #tpu.memory_space<semaphore_mem>>) attributes {dimension_semantics = [#tpu.dimension_semantics<parallel>], iteration_bounds = array<i64: 32>, scalar_prefetch = 1 : i64, scratch_operands = 1 : i64, tpu.core_type = #tpu.core_type<tc>, window_params = [{}, {}, {}, {}, {}, {}]} {
    %c16_i32 = arith.constant 16 : i32
    %0 = arith.muli %arg0, %c16_i32 : i32
    %c0_i32 = arith.constant 0 : i32
    %1 = arith.addi %0, %c0_i32 : i32
    %2 = arith.index_cast %1 : i32 to index
    %3 = memref.load %arg1[%2] : memref<512xi32, #tpu.memory_space<smem>>
    %c0_i32_0 = arith.constant 0 : i32
    %c0_i32_1 = arith.constant 0 : i32
    %4 = tpu.memref_slice %arg2[%3, %c0_i32_1] : memref<512x36xf32, #tpu.memory_space<any>> -> memref<1x36xf32, #tpu.memory_space<any>>
    %5 = tpu.memref_squeeze %4 : memref<1x36xf32, #tpu.memory_space<any>> -> memref<36xf32, #tpu.memory_space<any>>
    %c0_i32_2 = arith.constant 0 : i32
    %6 = tpu.memref_slice %arg5[%1, %c0_i32_2] : memref<512x36xf32, #tpu.memory_space<any>> -> memref<1x36xf32, #tpu.memory_space<any>>
    %7 = tpu.memref_squeeze %6 : memref<1x36xf32, #tpu.memory_space<any>> -> memref<36xf32, #tpu.memory_space<any>>
    %8 = tpu.memref_slice %arg8[%c0_i32_0] : memref<3x!tpu.dma_semaphore, #tpu.memory_space<semaphore_mem>> -> memref<1x!tpu.dma_semaphore, #tpu.memory_space<semaphore_mem>>
    %9 = tpu.memref_squeeze %8 : memref<1x!tpu.dma_semaphore, #tpu.memory_space<semaphore_mem>> -> memref<!tpu.dma_semaphore, #tpu.memory_space<semaphore_mem>>
    tpu.enqueue_dma source(%5 : memref<36xf32, #tpu.memory_space<any>>) target(%7 : memref<36xf32, #tpu.memory_space<any>>) target_semaphore(%9 : memref<!tpu.dma_semaphore, #tpu.memory_space<semaphore_mem>>)
    %c1_i32 = arith.constant 1 : i32
    %c0_i32_3 = arith.constant 0 : i32
    %10 = tpu.memref_slice %arg3[%3, %c0_i32_3] : memref<512x144xf32, #tpu.memory_space<any>> -> memref<1x144xf32, #tpu.memory_space<any>>
    %11 = tpu.memref_squeeze %10 : memref<1x144xf32, #tpu.memory_space<any>> -> memref<144xf32, #tpu.memory_space<any>>
    %c0_i32_4 = arith.constant 0 : i32
    %12 = tpu.memref_slice %arg6[%1, %c0_i32_4] : memref<512x144xf32, #tpu.memory_space<any>> -> memref<1x144xf32, #tpu.memory_space<any>>
    %13 = tpu.memref_squeeze %12 : memref<1x144xf32, #tpu.memory_space<any>> -> memref<144xf32, #tpu.memory_space<any>>
    %14 = tpu.memref_slice %arg8[%c1_i32] : memref<3x!tpu.dma_semaphore, #tpu.memory_space<semaphore_mem>> -> memref<1x!tpu.dma_semaphore, #tpu.memory_space<semaphore_mem>>
    %15 = tpu.memref_squeeze %14 : memref<1x!tpu.dma_semaphore, #tpu.memory_space<semaphore_mem>> -> memref<!tpu.dma_semaphore, #tpu.memory_space<semaphore_mem>>
    tpu.enqueue_dma source(%11 : memref<144xf32, #tpu.memory_space<any>>) target(%13 : memref<144xf32, #tpu.memory_space<any>>) target_semaphore(%15 : memref<!tpu.dma_semaphore, #tpu.memory_space<semaphore_mem>>)
    %c2_i32 = arith.constant 2 : i32
    %c0_i32_5 = arith.constant 0 : i32
    %16 = tpu.memref_slice %arg4[%3, %c0_i32_5] : memref<512x576xf32, #tpu.memory_space<any>> -> memref<1x576xf32, #tpu.memory_space<any>>
    %17 = tpu.memref_squeeze %16 : memref<1x576xf32, #tpu.memory_space<any>> -> memref<576xf32, #tpu.memory_space<any>>
    %c0_i32_6 = arith.constant 0 : i32
    %18 = tpu.memref_slice %arg7[%1, %c0_i32_6] : memref<512x576xf32, #tpu.memory_space<any>> -> memref<1x576xf32, #tpu.memory_space<any>>
    %19 = tpu.memref_squeeze %18 : memref<1x576xf32, #tpu.memory_space<any>> -> memref<576xf32, #tpu.memory_space<any>>
    %20 = tpu.memref_slice %arg8[%c2_i32] : memref<3x!tpu.dma_semaphore, #tpu.memory_space<semaphore_mem>> -> memref<1x!tpu.dma_semaphore, #tpu.memory_space<semaphore_mem>>
    %21 = tpu.memref_squeeze %20 : memref<1x!tpu.dma_semaphore, #tpu.memory_space<semaphore_mem>> -> memref<!tpu.dma_semaphore, #tpu.memory_space<semaphore_mem>>
    tpu.enqueue_dma source(%17 : memref<576xf32, #tpu.memory_space<any>>) target(%19 : memref<576xf32, #tpu.memory_space<any>>) target_semaphore(%21 : memref<!tpu.dma_semaphore, #tpu.memory_space<semaphore_mem>>)
    %c1_i32_7 = arith.constant 1 : i32
    %22 = arith.addi %0, %c1_i32_7 : i32
    %23 = arith.index_cast %22 : i32 to index
    %24 = memref.load %arg1[%23] : memref<512xi32, #tpu.memory_space<smem>>
    %c0_i32_8 = arith.constant 0 : i32
    %c0_i32_9 = arith.constant 0 : i32
    %25 = tpu.memref_slice %arg2[%24, %c0_i32_9] : memref<512x36xf32, #tpu.memory_space<any>> -> memref<1x36xf32, #tpu.memory_space<any>>
    %26 = tpu.memref_squeeze %25 : memref<1x36xf32, #tpu.memory_space<any>> -> memref<36xf32, #tpu.memory_space<any>>
    %c0_i32_10 = arith.constant 0 : i32
    %27 = tpu.memref_slice %arg5[%22, %c0_i32_10] : memref<512x36xf32, #tpu.memory_space<any>> -> memref<1x36xf32, #tpu.memory_space<any>>
    %28 = tpu.memref_squeeze %27 : memref<1x36xf32, #tpu.memory_space<any>> -> memref<36xf32, #tpu.memory_space<any>>
    %29 = tpu.memref_slice %arg8[%c0_i32_8] : memref<3x!tpu.dma_semaphore, #tpu.memory_space<semaphore_mem>> -> memref<1x!tpu.dma_semaphore, #tpu.memory_space<semaphore_mem>>
    %30 = tpu.memref_squeeze %29 : memref<1x!tpu.dma_semaphore, #tpu.memory_space<semaphore_mem>> -> memref<!tpu.dma_semaphore, #tpu.memory_space<semaphore_mem>>
    tpu.enqueue_dma source(%26 : memref<36xf32, #tpu.memory_space<any>>) target(%28 : memref<36xf32, #tpu.memory_space<any>>) target_semaphore(%30 : memref<!tpu.dma_semaphore, #tpu.memory_space<semaphore_mem>>)
    %c1_i32_11 = arith.constant 1 : i32
    %c0_i32_12 = arith.constant 0 : i32
    %31 = tpu.memref_slice %arg3[%24, %c0_i32_12] : memref<512x144xf32, #tpu.memory_space<any>> -> memref<1x144xf32, #tpu.memory_space<any>>
    %32 = tpu.memref_squeeze %31 : memref<1x144xf32, #tpu.memory_space<any>> -> memref<144xf32, #tpu.memory_space<any>>
    %c0_i32_13 = arith.constant 0 : i32
    %33 = tpu.memref_slice %arg6[%22, %c0_i32_13] : memref<512x144xf32, #tpu.memory_space<any>> -> memref<1x144xf32, #tpu.memory_space<any>>
    %34 = tpu.memref_squeeze %33 : memref<1x144xf32, #tpu.memory_space<any>> -> memref<144xf32, #tpu.memory_space<any>>
    %35 = tpu.memref_slice %arg8[%c1_i32_11] : memref<3x!tpu.dma_semaphore, #tpu.memory_space<semaphore_mem>> -> memref<1x!tpu.dma_semaphore, #tpu.memory_space<semaphore_mem>>
    %36 = tpu.memref_squeeze %35 : memref<1x!tpu.dma_semaphore, #tpu.memory_space<semaphore_mem>> -> memref<!tpu.dma_semaphore, #tpu.memory_space<semaphore_mem>>
    tpu.enqueue_dma source(%32 : memref<144xf32, #tpu.memory_space<any>>) target(%34 : memref<144xf32, #tpu.memory_space<any>>) target_semaphore(%36 : memref<!tpu.dma_semaphore, #tpu.memory_space<semaphore_mem>>)
    %c2_i32_14 = arith.constant 2 : i32
    %c0_i32_15 = arith.constant 0 : i32
    %37 = tpu.memref_slice %arg4[%24, %c0_i32_15] : memref<512x576xf32, #tpu.memory_space<any>> -> memref<1x576xf32, #tpu.memory_space<any>>
    %38 = tpu.memref_squeeze %37 : memref<1x576xf32, #tpu.memory_space<any>> -> memref<576xf32, #tpu.memory_space<any>>
    %c0_i32_16 = arith.constant 0 : i32
    %39 = tpu.memref_slice %arg7[%22, %c0_i32_16] : memref<512x576xf32, #tpu.memory_space<any>> -> memref<1x576xf32, #tpu.memory_space<any>>
    %40 = tpu.memref_squeeze %39 : memref<1x576xf32, #tpu.memory_space<any>> -> memref<576xf32, #tpu.memory_space<any>>
    %41 = tpu.memref_slice %arg8[%c2_i32_14] : memref<3x!tpu.dma_semaphore, #tpu.memory_space<semaphore_mem>> -> memref<1x!tpu.dma_semaphore, #tpu.memory_space<semaphore_mem>>
    %42 = tpu.memref_squeeze %41 : memref<1x!tpu.dma_semaphore, #tpu.memory_space<semaphore_mem>> -> memref<!tpu.dma_semaphore, #tpu.memory_space<semaphore_mem>>
    tpu.enqueue_dma source(%38 : memref<576xf32, #tpu.memory_space<any>>) target(%40 : memref<576xf32, #tpu.memory_space<any>>) target_semaphore(%42 : memref<!tpu.dma_semaphore, #tpu.memory_space<semaphore_mem>>)
    %c2_i32_17 = arith.constant 2 : i32
    %43 = arith.addi %0, %c2_i32_17 : i32
    %44 = arith.index_cast %43 : i32 to index
    %45 = memref.load %arg1[%44] : memref<512xi32, #tpu.memory_space<smem>>
    %c0_i32_18 = arith.constant 0 : i32
    %c0_i32_19 = arith.constant 0 : i32
    %46 = tpu.memref_slice %arg2[%45, %c0_i32_19] : memref<512x36xf32, #tpu.memory_space<any>> -> memref<1x36xf32, #tpu.memory_space<any>>
    %47 = tpu.memref_squeeze %46 : memref<1x36xf32, #tpu.memory_space<any>> -> memref<36xf32, #tpu.memory_space<any>>
    %c0_i32_20 = arith.constant 0 : i32
    %48 = tpu.memref_slice %arg5[%43, %c0_i32_20] : memref<512x36xf32, #tpu.memory_space<any>> -> memref<1x36xf32, #tpu.memory_space<any>>
    %49 = tpu.memref_squeeze %48 : memref<1x36xf32, #tpu.memory_space<any>> -> memref<36xf32, #tpu.memory_space<any>>
    %50 = tpu.memref_slice %arg8[%c0_i32_18] : memref<3x!tpu.dma_semaphore, #tpu.memory_space<semaphore_mem>> -> memref<1x!tpu.dma_semaphore, #tpu.memory_space<semaphore_mem>>
    %51 = tpu.memref_squeeze %50 : memref<1x!tpu.dma_semaphore, #tpu.memory_space<semaphore_mem>> -> memref<!tpu.dma_semaphore, #tpu.memory_space<semaphore_mem>>
    tpu.enqueue_dma source(%47 : memref<36xf32, #tpu.memory_space<any>>) target(%49 : memref<36xf32, #tpu.memory_space<any>>) target_semaphore(%51 : memref<!tpu.dma_semaphore, #tpu.memory_space<semaphore_mem>>)
    %c1_i32_21 = arith.constant 1 : i32
    %c0_i32_22 = arith.constant 0 : i32
    %52 = tpu.memref_slice %arg3[%45, %c0_i32_22] : memref<512x144xf32, #tpu.memory_space<any>> -> memref<1x144xf32, #tpu.memory_space<any>>
    %53 = tpu.memref_squeeze %52 : memref<1x144xf32, #tpu.memory_space<any>> -> memref<144xf32, #tpu.memory_space<any>>
    %c0_i32_23 = arith.constant 0 : i32
    %54 = tpu.memref_slice %arg6[%43, %c0_i32_23] : memref<512x144xf32, #tpu.memory_space<any>> -> memref<1x144xf32, #tpu.memory_space<any>>
    %55 = tpu.memref_squeeze %54 : memref<1x144xf32, #tpu.memory_space<any>> -> memref<144xf32, #tpu.memory_space<any>>
    %56 = tpu.memref_slice %arg8[%c1_i32_21] : memref<3x!tpu.dma_semaphore, #tpu.memory_space<semaphore_mem>> -> memref<1x!tpu.dma_semaphore, #tpu.memory_space<semaphore_mem>>
    %57 = tpu.memref_squeeze %56 : memref<1x!tpu.dma_semaphore, #tpu.memory_space<semaphore_mem>> -> memref<!tpu.dma_semaphore, #tpu.memory_space<semaphore_mem>>
    tpu.enqueue_dma source(%53 : memref<144xf32, #tpu.memory_space<any>>) target(%55 : memref<144xf32, #tpu.memory_space<any>>) target_semaphore(%57 : memref<!tpu.dma_semaphore, #tpu.memory_space<semaphore_mem>>)
    %c2_i32_24 = arith.constant 2 : i32
    %c0_i32_25 = arith.constant 0 : i32
    %58 = tpu.memref_slice %arg4[%45, %c0_i32_25] : memref<512x576xf32, #tpu.memory_space<any>> -> memref<1x576xf32, #tpu.memory_space<any>>
    %59 = tpu.memref_squeeze %58 : memref<1x576xf32, #tpu.memory_space<any>> -> memref<576xf32, #tpu.memory_space<any>>
    %c0_i32_26 = arith.constant 0 : i32
    %60 = tpu.memref_slice %arg7[%43, %c0_i32_26] : memref<512x576xf32, #tpu.memory_space<any>> -> memref<1x576xf32, #tpu.memory_space<any>>
    %61 = tpu.memref_squeeze %60 : memref<1x576xf32, #tpu.memory_space<any>> -> memref<576xf32, #tpu.memory_space<any>>
    %62 = tpu.memref_slice %arg8[%c2_i32_24] : memref<3x!tpu.dma_semaphore, #tpu.memory_space<semaphore_mem>> -> memref<1x!tpu.dma_semaphore, #tpu.memory_space<semaphore_mem>>
    %63 = tpu.memref_squeeze %62 : memref<1x!tpu.dma_semaphore, #tpu.memory_space<semaphore_mem>> -> memref<!tpu.dma_semaphore, #tpu.memory_space<semaphore_mem>>
    tpu.enqueue_dma source(%59 : memref<576xf32, #tpu.memory_space<any>>) target(%61 : memref<576xf32, #tpu.memory_space<any>>) target_semaphore(%63 : memref<!tpu.dma_semaphore, #tpu.memory_space<semaphore_mem>>)
    %c3_i32 = arith.constant 3 : i32
    %64 = arith.addi %0, %c3_i32 : i32
    %65 = arith.index_cast %64 : i32 to index
    %66 = memref.load %arg1[%65] : memref<512xi32, #tpu.memory_space<smem>>
    %c0_i32_27 = arith.constant 0 : i32
    %c0_i32_28 = arith.constant 0 : i32
    %67 = tpu.memref_slice %arg2[%66, %c0_i32_28] : memref<512x36xf32, #tpu.memory_space<any>> -> memref<1x36xf32, #tpu.memory_space<any>>
    %68 = tpu.memref_squeeze %67 : memref<1x36xf32, #tpu.memory_space<any>> -> memref<36xf32, #tpu.memory_space<any>>
    %c0_i32_29 = arith.constant 0 : i32
    %69 = tpu.memref_slice %arg5[%64, %c0_i32_29] : memref<512x36xf32, #tpu.memory_space<any>> -> memref<1x36xf32, #tpu.memory_space<any>>
    %70 = tpu.memref_squeeze %69 : memref<1x36xf32, #tpu.memory_space<any>> -> memref<36xf32, #tpu.memory_space<any>>
    %71 = tpu.memref_slice %arg8[%c0_i32_27] : memref<3x!tpu.dma_semaphore, #tpu.memory_space<semaphore_mem>> -> memref<1x!tpu.dma_semaphore, #tpu.memory_space<semaphore_mem>>
    %72 = tpu.memref_squeeze %71 : memref<1x!tpu.dma_semaphore, #tpu.memory_space<semaphore_mem>> -> memref<!tpu.dma_semaphore, #tpu.memory_space<semaphore_mem>>
    tpu.enqueue_dma source(%68 : memref<36xf32, #tpu.memory_space<any>>) target(%70 : memref<36xf32, #tpu.memory_space<any>>) target_semaphore(%72 : memref<!tpu.dma_semaphore, #tpu.memory_space<semaphore_mem>>)
    %c1_i32_30 = arith.constant 1 : i32
    %c0_i32_31 = arith.constant 0 : i32
    %73 = tpu.memref_slice %arg3[%66, %c0_i32_31] : memref<512x144xf32, #tpu.memory_space<any>> -> memref<1x144xf32, #tpu.memory_space<any>>
    %74 = tpu.memref_squeeze %73 : memref<1x144xf32, #tpu.memory_space<any>> -> memref<144xf32, #tpu.memory_space<any>>
    %c0_i32_32 = arith.constant 0 : i32
    %75 = tpu.memref_slice %arg6[%64, %c0_i32_32] : memref<512x144xf32, #tpu.memory_space<any>> -> memref<1x144xf32, #tpu.memory_space<any>>
    %76 = tpu.memref_squeeze %75 : memref<1x144xf32, #tpu.memory_space<any>> -> memref<144xf32, #tpu.memory_space<any>>
    %77 = tpu.memref_slice %arg8[%c1_i32_30] : memref<3x!tpu.dma_semaphore, #tpu.memory_space<semaphore_mem>> -> memref<1x!tpu.dma_semaphore, #tpu.memory_space<semaphore_mem>>
    %78 = tpu.memref_squeeze %77 : memref<1x!tpu.dma_semaphore, #tpu.memory_space<semaphore_mem>> -> memref<!tpu.dma_semaphore, #tpu.memory_space<semaphore_mem>>
    tpu.enqueue_dma source(%74 : memref<144xf32, #tpu.memory_space<any>>) target(%76 : memref<144xf32, #tpu.memory_space<any>>) target_semaphore(%78 : memref<!tpu.dma_semaphore, #tpu.memory_space<semaphore_mem>>)
    %c2_i32_33 = arith.constant 2 : i32
    %c0_i32_34 = arith.constant 0 : i32
    %79 = tpu.memref_slice %arg4[%66, %c0_i32_34] : memref<512x576xf32, #tpu.memory_space<any>> -> memref<1x576xf32, #tpu.memory_space<any>>
    %80 = tpu.memref_squeeze %79 : memref<1x576xf32, #tpu.memory_space<any>> -> memref<576xf32, #tpu.memory_space<any>>
    %c0_i32_35 = arith.constant 0 : i32
    %81 = tpu.memref_slice %arg7[%64, %c0_i32_35] : memref<512x576xf32, #tpu.memory_space<any>> -> memref<1x576xf32, #tpu.memory_space<any>>
    %82 = tpu.memref_squeeze %81 : memref<1x576xf32, #tpu.memory_space<any>> -> memref<576xf32, #tpu.memory_space<any>>
    %83 = tpu.memref_slice %arg8[%c2_i32_33] : memref<3x!tpu.dma_semaphore, #tpu.memory_space<semaphore_mem>> -> memref<1x!tpu.dma_semaphore, #tpu.memory_space<semaphore_mem>>
    %84 = tpu.memref_squeeze %83 : memref<1x!tpu.dma_semaphore, #tpu.memory_space<semaphore_mem>> -> memref<!tpu.dma_semaphore, #tpu.memory_space<semaphore_mem>>
    tpu.enqueue_dma source(%80 : memref<576xf32, #tpu.memory_space<any>>) target(%82 : memref<576xf32, #tpu.memory_space<any>>) target_semaphore(%84 : memref<!tpu.dma_semaphore, #tpu.memory_space<semaphore_mem>>)
    %c4_i32 = arith.constant 4 : i32
    %85 = arith.addi %0, %c4_i32 : i32
    %86 = arith.index_cast %85 : i32 to index
    %87 = memref.load %arg1[%86] : memref<512xi32, #tpu.memory_space<smem>>
    %c0_i32_36 = arith.constant 0 : i32
    %c0_i32_37 = arith.constant 0 : i32
    %88 = tpu.memref_slice %arg2[%87, %c0_i32_37] : memref<512x36xf32, #tpu.memory_space<any>> -> memref<1x36xf32, #tpu.memory_space<any>>
    %89 = tpu.memref_squeeze %88 : memref<1x36xf32, #tpu.memory_space<any>> -> memref<36xf32, #tpu.memory_space<any>>
    %c0_i32_38 = arith.constant 0 : i32
    %90 = tpu.memref_slice %arg5[%85, %c0_i32_38] : memref<512x36xf32, #tpu.memory_space<any>> -> memref<1x36xf32, #tpu.memory_space<any>>
    %91 = tpu.memref_squeeze %90 : memref<1x36xf32, #tpu.memory_space<any>> -> memref<36xf32, #tpu.memory_space<any>>
    %92 = tpu.memref_slice %arg8[%c0_i32_36] : memref<3x!tpu.dma_semaphore, #tpu.memory_space<semaphore_mem>> -> memref<1x!tpu.dma_semaphore, #tpu.memory_space<semaphore_mem>>
    %93 = tpu.memref_squeeze %92 : memref<1x!tpu.dma_semaphore, #tpu.memory_space<semaphore_mem>> -> memref<!tpu.dma_semaphore, #tpu.memory_space<semaphore_mem>>
    tpu.enqueue_dma source(%89 : memref<36xf32, #tpu.memory_space<any>>) target(%91 : memref<36xf32, #tpu.memory_space<any>>) target_semaphore(%93 : memref<!tpu.dma_semaphore, #tpu.memory_space<semaphore_mem>>)
    %c1_i32_39 = arith.constant 1 : i32
    %c0_i32_40 = arith.constant 0 : i32
    %94 = tpu.memref_slice %arg3[%87, %c0_i32_40] : memref<512x144xf32, #tpu.memory_space<any>> -> memref<1x144xf32, #tpu.memory_space<any>>
    %95 = tpu.memref_squeeze %94 : memref<1x144xf32, #tpu.memory_space<any>> -> memref<144xf32, #tpu.memory_space<any>>
    %c0_i32_41 = arith.constant 0 : i32
    %96 = tpu.memref_slice %arg6[%85, %c0_i32_41] : memref<512x144xf32, #tpu.memory_space<any>> -> memref<1x144xf32, #tpu.memory_space<any>>
    %97 = tpu.memref_squeeze %96 : memref<1x144xf32, #tpu.memory_space<any>> -> memref<144xf32, #tpu.memory_space<any>>
    %98 = tpu.memref_slice %arg8[%c1_i32_39] : memref<3x!tpu.dma_semaphore, #tpu.memory_space<semaphore_mem>> -> memref<1x!tpu.dma_semaphore, #tpu.memory_space<semaphore_mem>>
    %99 = tpu.memref_squeeze %98 : memref<1x!tpu.dma_semaphore, #tpu.memory_space<semaphore_mem>> -> memref<!tpu.dma_semaphore, #tpu.memory_space<semaphore_mem>>
    tpu.enqueue_dma source(%95 : memref<144xf32, #tpu.memory_space<any>>) target(%97 : memref<144xf32, #tpu.memory_space<any>>) target_semaphore(%99 : memref<!tpu.dma_semaphore, #tpu.memory_space<semaphore_mem>>)
    %c2_i32_42 = arith.constant 2 : i32
    %c0_i32_43 = arith.constant 0 : i32
    %100 = tpu.memref_slice %arg4[%87, %c0_i32_43] : memref<512x576xf32, #tpu.memory_space<any>> -> memref<1x576xf32, #tpu.memory_space<any>>
    %101 = tpu.memref_squeeze %100 : memref<1x576xf32, #tpu.memory_space<any>> -> memref<576xf32, #tpu.memory_space<any>>
    %c0_i32_44 = arith.constant 0 : i32
    %102 = tpu.memref_slice %arg7[%85, %c0_i32_44] : memref<512x576xf32, #tpu.memory_space<any>> -> memref<1x576xf32, #tpu.memory_space<any>>
    %103 = tpu.memref_squeeze %102 : memref<1x576xf32, #tpu.memory_space<any>> -> memref<576xf32, #tpu.memory_space<any>>
    %104 = tpu.memref_slice %arg8[%c2_i32_42] : memref<3x!tpu.dma_semaphore, #tpu.memory_space<semaphore_mem>> -> memref<1x!tpu.dma_semaphore, #tpu.memory_space<semaphore_mem>>
    %105 = tpu.memref_squeeze %104 : memref<1x!tpu.dma_semaphore, #tpu.memory_space<semaphore_mem>> -> memref<!tpu.dma_semaphore, #tpu.memory_space<semaphore_mem>>
    tpu.enqueue_dma source(%101 : memref<576xf32, #tpu.memory_space<any>>) target(%103 : memref<576xf32, #tpu.memory_space<any>>) target_semaphore(%105 : memref<!tpu.dma_semaphore, #tpu.memory_space<semaphore_mem>>)
    %c5_i32 = arith.constant 5 : i32
    %106 = arith.addi %0, %c5_i32 : i32
    %107 = arith.index_cast %106 : i32 to index
    %108 = memref.load %arg1[%107] : memref<512xi32, #tpu.memory_space<smem>>
    %c0_i32_45 = arith.constant 0 : i32
    %c0_i32_46 = arith.constant 0 : i32
    %109 = tpu.memref_slice %arg2[%108, %c0_i32_46] : memref<512x36xf32, #tpu.memory_space<any>> -> memref<1x36xf32, #tpu.memory_space<any>>
    %110 = tpu.memref_squeeze %109 : memref<1x36xf32, #tpu.memory_space<any>> -> memref<36xf32, #tpu.memory_space<any>>
    %c0_i32_47 = arith.constant 0 : i32
    %111 = tpu.memref_slice %arg5[%106, %c0_i32_47] : memref<512x36xf32, #tpu.memory_space<any>> -> memref<1x36xf32, #tpu.memory_space<any>>
    %112 = tpu.memref_squeeze %111 : memref<1x36xf32, #tpu.memory_space<any>> -> memref<36xf32, #tpu.memory_space<any>>
    %113 = tpu.memref_slice %arg8[%c0_i32_45] : memref<3x!tpu.dma_semaphore, #tpu.memory_space<semaphore_mem>> -> memref<1x!tpu.dma_semaphore, #tpu.memory_space<semaphore_mem>>
    %114 = tpu.memref_squeeze %113 : memref<1x!tpu.dma_semaphore, #tpu.memory_space<semaphore_mem>> -> memref<!tpu.dma_semaphore, #tpu.memory_space<semaphore_mem>>
    tpu.enqueue_dma source(%110 : memref<36xf32, #tpu.memory_space<any>>) target(%112 : memref<36xf32, #tpu.memory_space<any>>) target_semaphore(%114 : memref<!tpu.dma_semaphore, #tpu.memory_space<semaphore_mem>>)
    %c1_i32_48 = arith.constant 1 : i32
    %c0_i32_49 = arith.constant 0 : i32
    %115 = tpu.memref_slice %arg3[%108, %c0_i32_49] : memref<512x144xf32, #tpu.memory_space<any>> -> memref<1x144xf32, #tpu.memory_space<any>>
    %116 = tpu.memref_squeeze %115 : memref<1x144xf32, #tpu.memory_space<any>> -> memref<144xf32, #tpu.memory_space<any>>
    %c0_i32_50 = arith.constant 0 : i32
    %117 = tpu.memref_slice %arg6[%106, %c0_i32_50] : memref<512x144xf32, #tpu.memory_space<any>> -> memref<1x144xf32, #tpu.memory_space<any>>
    %118 = tpu.memref_squeeze %117 : memref<1x144xf32, #tpu.memory_space<any>> -> memref<144xf32, #tpu.memory_space<any>>
    %119 = tpu.memref_slice %arg8[%c1_i32_48] : memref<3x!tpu.dma_semaphore, #tpu.memory_space<semaphore_mem>> -> memref<1x!tpu.dma_semaphore, #tpu.memory_space<semaphore_mem>>
    %120 = tpu.memref_squeeze %119 : memref<1x!tpu.dma_semaphore, #tpu.memory_space<semaphore_mem>> -> memref<!tpu.dma_semaphore, #tpu.memory_space<semaphore_mem>>
    tpu.enqueue_dma source(%116 : memref<144xf32, #tpu.memory_space<any>>) target(%118 : memref<144xf32, #tpu.memory_space<any>>) target_semaphore(%120 : memref<!tpu.dma_semaphore, #tpu.memory_space<semaphore_mem>>)
    %c2_i32_51 = arith.constant 2 : i32
    %c0_i32_52 = arith.constant 0 : i32
    %121 = tpu.memref_slice %arg4[%108, %c0_i32_52] : memref<512x576xf32, #tpu.memory_space<any>> -> memref<1x576xf32, #tpu.memory_space<any>>
    %122 = tpu.memref_squeeze %121 : memref<1x576xf32, #tpu.memory_space<any>> -> memref<576xf32, #tpu.memory_space<any>>
    %c0_i32_53 = arith.constant 0 : i32
    %123 = tpu.memref_slice %arg7[%106, %c0_i32_53] : memref<512x576xf32, #tpu.memory_space<any>> -> memref<1x576xf32, #tpu.memory_space<any>>
    %124 = tpu.memref_squeeze %123 : memref<1x576xf32, #tpu.memory_space<any>> -> memref<576xf32, #tpu.memory_space<any>>
    %125 = tpu.memref_slice %arg8[%c2_i32_51] : memref<3x!tpu.dma_semaphore, #tpu.memory_space<semaphore_mem>> -> memref<1x!tpu.dma_semaphore, #tpu.memory_space<semaphore_mem>>
    %126 = tpu.memref_squeeze %125 : memref<1x!tpu.dma_semaphore, #tpu.memory_space<semaphore_mem>> -> memref<!tpu.dma_semaphore, #tpu.memory_space<semaphore_mem>>
    tpu.enqueue_dma source(%122 : memref<576xf32, #tpu.memory_space<any>>) target(%124 : memref<576xf32, #tpu.memory_space<any>>) target_semaphore(%126 : memref<!tpu.dma_semaphore, #tpu.memory_space<semaphore_mem>>)
    %c6_i32 = arith.constant 6 : i32
    %127 = arith.addi %0, %c6_i32 : i32
    %128 = arith.index_cast %127 : i32 to index
    %129 = memref.load %arg1[%128] : memref<512xi32, #tpu.memory_space<smem>>
    %c0_i32_54 = arith.constant 0 : i32
    %c0_i32_55 = arith.constant 0 : i32
    %130 = tpu.memref_slice %arg2[%129, %c0_i32_55] : memref<512x36xf32, #tpu.memory_space<any>> -> memref<1x36xf32, #tpu.memory_space<any>>
    %131 = tpu.memref_squeeze %130 : memref<1x36xf32, #tpu.memory_space<any>> -> memref<36xf32, #tpu.memory_space<any>>
    %c0_i32_56 = arith.constant 0 : i32
    %132 = tpu.memref_slice %arg5[%127, %c0_i32_56] : memref<512x36xf32, #tpu.memory_space<any>> -> memref<1x36xf32, #tpu.memory_space<any>>
    %133 = tpu.memref_squeeze %132 : memref<1x36xf32, #tpu.memory_space<any>> -> memref<36xf32, #tpu.memory_space<any>>
    %134 = tpu.memref_slice %arg8[%c0_i32_54] : memref<3x!tpu.dma_semaphore, #tpu.memory_space<semaphore_mem>> -> memref<1x!tpu.dma_semaphore, #tpu.memory_space<semaphore_mem>>
    %135 = tpu.memref_squeeze %134 : memref<1x!tpu.dma_semaphore, #tpu.memory_space<semaphore_mem>> -> memref<!tpu.dma_semaphore, #tpu.memory_space<semaphore_mem>>
    tpu.enqueue_dma source(%131 : memref<36xf32, #tpu.memory_space<any>>) target(%133 : memref<36xf32, #tpu.memory_space<any>>) target_semaphore(%135 : memref<!tpu.dma_semaphore, #tpu.memory_space<semaphore_mem>>)
    %c1_i32_57 = arith.constant 1 : i32
    %c0_i32_58 = arith.constant 0 : i32
    %136 = tpu.memref_slice %arg3[%129, %c0_i32_58] : memref<512x144xf32, #tpu.memory_space<any>> -> memref<1x144xf32, #tpu.memory_space<any>>
    %137 = tpu.memref_squeeze %136 : memref<1x144xf32, #tpu.memory_space<any>> -> memref<144xf32, #tpu.memory_space<any>>
    %c0_i32_59 = arith.constant 0 : i32
    %138 = tpu.memref_slice %arg6[%127, %c0_i32_59] : memref<512x144xf32, #tpu.memory_space<any>> -> memref<1x144xf32, #tpu.memory_space<any>>
    %139 = tpu.memref_squeeze %138 : memref<1x144xf32, #tpu.memory_space<any>> -> memref<144xf32, #tpu.memory_space<any>>
    %140 = tpu.memref_slice %arg8[%c1_i32_57] : memref<3x!tpu.dma_semaphore, #tpu.memory_space<semaphore_mem>> -> memref<1x!tpu.dma_semaphore, #tpu.memory_space<semaphore_mem>>
    %141 = tpu.memref_squeeze %140 : memref<1x!tpu.dma_semaphore, #tpu.memory_space<semaphore_mem>> -> memref<!tpu.dma_semaphore, #tpu.memory_space<semaphore_mem>>
    tpu.enqueue_dma source(%137 : memref<144xf32, #tpu.memory_space<any>>) target(%139 : memref<144xf32, #tpu.memory_space<any>>) target_semaphore(%141 : memref<!tpu.dma_semaphore, #tpu.memory_space<semaphore_mem>>)
    %c2_i32_60 = arith.constant 2 : i32
    %c0_i32_61 = arith.constant 0 : i32
    %142 = tpu.memref_slice %arg4[%129, %c0_i32_61] : memref<512x576xf32, #tpu.memory_space<any>> -> memref<1x576xf32, #tpu.memory_space<any>>
    %143 = tpu.memref_squeeze %142 : memref<1x576xf32, #tpu.memory_space<any>> -> memref<576xf32, #tpu.memory_space<any>>
    %c0_i32_62 = arith.constant 0 : i32
    %144 = tpu.memref_slice %arg7[%127, %c0_i32_62] : memref<512x576xf32, #tpu.memory_space<any>> -> memref<1x576xf32, #tpu.memory_space<any>>
    %145 = tpu.memref_squeeze %144 : memref<1x576xf32, #tpu.memory_space<any>> -> memref<576xf32, #tpu.memory_space<any>>
    %146 = tpu.memref_slice %arg8[%c2_i32_60] : memref<3x!tpu.dma_semaphore, #tpu.memory_space<semaphore_mem>> -> memref<1x!tpu.dma_semaphore, #tpu.memory_space<semaphore_mem>>
    %147 = tpu.memref_squeeze %146 : memref<1x!tpu.dma_semaphore, #tpu.memory_space<semaphore_mem>> -> memref<!tpu.dma_semaphore, #tpu.memory_space<semaphore_mem>>
    tpu.enqueue_dma source(%143 : memref<576xf32, #tpu.memory_space<any>>) target(%145 : memref<576xf32, #tpu.memory_space<any>>) target_semaphore(%147 : memref<!tpu.dma_semaphore, #tpu.memory_space<semaphore_mem>>)
    %c7_i32 = arith.constant 7 : i32
    %148 = arith.addi %0, %c7_i32 : i32
    %149 = arith.index_cast %148 : i32 to index
    %150 = memref.load %arg1[%149] : memref<512xi32, #tpu.memory_space<smem>>
    %c0_i32_63 = arith.constant 0 : i32
    %c0_i32_64 = arith.constant 0 : i32
    %151 = tpu.memref_slice %arg2[%150, %c0_i32_64] : memref<512x36xf32, #tpu.memory_space<any>> -> memref<1x36xf32, #tpu.memory_space<any>>
    %152 = tpu.memref_squeeze %151 : memref<1x36xf32, #tpu.memory_space<any>> -> memref<36xf32, #tpu.memory_space<any>>
    %c0_i32_65 = arith.constant 0 : i32
    %153 = tpu.memref_slice %arg5[%148, %c0_i32_65] : memref<512x36xf32, #tpu.memory_space<any>> -> memref<1x36xf32, #tpu.memory_space<any>>
    %154 = tpu.memref_squeeze %153 : memref<1x36xf32, #tpu.memory_space<any>> -> memref<36xf32, #tpu.memory_space<any>>
    %155 = tpu.memref_slice %arg8[%c0_i32_63] : memref<3x!tpu.dma_semaphore, #tpu.memory_space<semaphore_mem>> -> memref<1x!tpu.dma_semaphore, #tpu.memory_space<semaphore_mem>>
    %156 = tpu.memref_squeeze %155 : memref<1x!tpu.dma_semaphore, #tpu.memory_space<semaphore_mem>> -> memref<!tpu.dma_semaphore, #tpu.memory_space<semaphore_mem>>
    tpu.enqueue_dma source(%152 : memref<36xf32, #tpu.memory_space<any>>) target(%154 : memref<36xf32, #tpu.memory_space<any>>) target_semaphore(%156 : memref<!tpu.dma_semaphore, #tpu.memory_space<semaphore_mem>>)
    %c1_i32_66 = arith.constant 1 : i32
    %c0_i32_67 = arith.constant 0 : i32
    %157 = tpu.memref_slice %arg3[%150, %c0_i32_67] : memref<512x144xf32, #tpu.memory_space<any>> -> memref<1x144xf32, #tpu.memory_space<any>>
    %158 = tpu.memref_squeeze %157 : memref<1x144xf32, #tpu.memory_space<any>> -> memref<144xf32, #tpu.memory_space<any>>
    %c0_i32_68 = arith.constant 0 : i32
    %159 = tpu.memref_slice %arg6[%148, %c0_i32_68] : memref<512x144xf32, #tpu.memory_space<any>> -> memref<1x144xf32, #tpu.memory_space<any>>
    %160 = tpu.memref_squeeze %159 : memref<1x144xf32, #tpu.memory_space<any>> -> memref<144xf32, #tpu.memory_space<any>>
    %161 = tpu.memref_slice %arg8[%c1_i32_66] : memref<3x!tpu.dma_semaphore, #tpu.memory_space<semaphore_mem>> -> memref<1x!tpu.dma_semaphore, #tpu.memory_space<semaphore_mem>>
    %162 = tpu.memref_squeeze %161 : memref<1x!tpu.dma_semaphore, #tpu.memory_space<semaphore_mem>> -> memref<!tpu.dma_semaphore, #tpu.memory_space<semaphore_mem>>
    tpu.enqueue_dma source(%158 : memref<144xf32, #tpu.memory_space<any>>) target(%160 : memref<144xf32, #tpu.memory_space<any>>) target_semaphore(%162 : memref<!tpu.dma_semaphore, #tpu.memory_space<semaphore_mem>>)
    %c2_i32_69 = arith.constant 2 : i32
    %c0_i32_70 = arith.constant 0 : i32
    %163 = tpu.memref_slice %arg4[%150, %c0_i32_70] : memref<512x576xf32, #tpu.memory_space<any>> -> memref<1x576xf32, #tpu.memory_space<any>>
    %164 = tpu.memref_squeeze %163 : memref<1x576xf32, #tpu.memory_space<any>> -> memref<576xf32, #tpu.memory_space<any>>
    %c0_i32_71 = arith.constant 0 : i32
    %165 = tpu.memref_slice %arg7[%148, %c0_i32_71] : memref<512x576xf32, #tpu.memory_space<any>> -> memref<1x576xf32, #tpu.memory_space<any>>
    %166 = tpu.memref_squeeze %165 : memref<1x576xf32, #tpu.memory_space<any>> -> memref<576xf32, #tpu.memory_space<any>>
    %167 = tpu.memref_slice %arg8[%c2_i32_69] : memref<3x!tpu.dma_semaphore, #tpu.memory_space<semaphore_mem>> -> memref<1x!tpu.dma_semaphore, #tpu.memory_space<semaphore_mem>>
    %168 = tpu.memref_squeeze %167 : memref<1x!tpu.dma_semaphore, #tpu.memory_space<semaphore_mem>> -> memref<!tpu.dma_semaphore, #tpu.memory_space<semaphore_mem>>
    tpu.enqueue_dma source(%164 : memref<576xf32, #tpu.memory_space<any>>) target(%166 : memref<576xf32, #tpu.memory_space<any>>) target_semaphore(%168 : memref<!tpu.dma_semaphore, #tpu.memory_space<semaphore_mem>>)
    %c8_i32 = arith.constant 8 : i32
    %169 = arith.addi %0, %c8_i32 : i32
    %170 = arith.index_cast %169 : i32 to index
    %171 = memref.load %arg1[%170] : memref<512xi32, #tpu.memory_space<smem>>
    %c0_i32_72 = arith.constant 0 : i32
    %c0_i32_73 = arith.constant 0 : i32
    %172 = tpu.memref_slice %arg2[%171, %c0_i32_73] : memref<512x36xf32, #tpu.memory_space<any>> -> memref<1x36xf32, #tpu.memory_space<any>>
    %173 = tpu.memref_squeeze %172 : memref<1x36xf32, #tpu.memory_space<any>> -> memref<36xf32, #tpu.memory_space<any>>
    %c0_i32_74 = arith.constant 0 : i32
    %174 = tpu.memref_slice %arg5[%169, %c0_i32_74] : memref<512x36xf32, #tpu.memory_space<any>> -> memref<1x36xf32, #tpu.memory_space<any>>
    %175 = tpu.memref_squeeze %174 : memref<1x36xf32, #tpu.memory_space<any>> -> memref<36xf32, #tpu.memory_space<any>>
    %176 = tpu.memref_slice %arg8[%c0_i32_72] : memref<3x!tpu.dma_semaphore, #tpu.memory_space<semaphore_mem>> -> memref<1x!tpu.dma_semaphore, #tpu.memory_space<semaphore_mem>>
    %177 = tpu.memref_squeeze %176 : memref<1x!tpu.dma_semaphore, #tpu.memory_space<semaphore_mem>> -> memref<!tpu.dma_semaphore, #tpu.memory_space<semaphore_mem>>
    tpu.enqueue_dma source(%173 : memref<36xf32, #tpu.memory_space<any>>) target(%175 : memref<36xf32, #tpu.memory_space<any>>) target_semaphore(%177 : memref<!tpu.dma_semaphore, #tpu.memory_space<semaphore_mem>>)
    %c1_i32_75 = arith.constant 1 : i32
    %c0_i32_76 = arith.constant 0 : i32
    %178 = tpu.memref_slice %arg3[%171, %c0_i32_76] : memref<512x144xf32, #tpu.memory_space<any>> -> memref<1x144xf32, #tpu.memory_space<any>>
    %179 = tpu.memref_squeeze %178 : memref<1x144xf32, #tpu.memory_space<any>> -> memref<144xf32, #tpu.memory_space<any>>
    %c0_i32_77 = arith.constant 0 : i32
    %180 = tpu.memref_slice %arg6[%169, %c0_i32_77] : memref<512x144xf32, #tpu.memory_space<any>> -> memref<1x144xf32, #tpu.memory_space<any>>
    %181 = tpu.memref_squeeze %180 : memref<1x144xf32, #tpu.memory_space<any>> -> memref<144xf32, #tpu.memory_space<any>>
    %182 = tpu.memref_slice %arg8[%c1_i32_75] : memref<3x!tpu.dma_semaphore, #tpu.memory_space<semaphore_mem>> -> memref<1x!tpu.dma_semaphore, #tpu.memory_space<semaphore_mem>>
    %183 = tpu.memref_squeeze %182 : memref<1x!tpu.dma_semaphore, #tpu.memory_space<semaphore_mem>> -> memref<!tpu.dma_semaphore, #tpu.memory_space<semaphore_mem>>
    tpu.enqueue_dma source(%179 : memref<144xf32, #tpu.memory_space<any>>) target(%181 : memref<144xf32, #tpu.memory_space<any>>) target_semaphore(%183 : memref<!tpu.dma_semaphore, #tpu.memory_space<semaphore_mem>>)
    %c2_i32_78 = arith.constant 2 : i32
    %c0_i32_79 = arith.constant 0 : i32
    %184 = tpu.memref_slice %arg4[%171, %c0_i32_79] : memref<512x576xf32, #tpu.memory_space<any>> -> memref<1x576xf32, #tpu.memory_space<any>>
    %185 = tpu.memref_squeeze %184 : memref<1x576xf32, #tpu.memory_space<any>> -> memref<576xf32, #tpu.memory_space<any>>
    %c0_i32_80 = arith.constant 0 : i32
    %186 = tpu.memref_slice %arg7[%169, %c0_i32_80] : memref<512x576xf32, #tpu.memory_space<any>> -> memref<1x576xf32, #tpu.memory_space<any>>
    %187 = tpu.memref_squeeze %186 : memref<1x576xf32, #tpu.memory_space<any>> -> memref<576xf32, #tpu.memory_space<any>>
    %188 = tpu.memref_slice %arg8[%c2_i32_78] : memref<3x!tpu.dma_semaphore, #tpu.memory_space<semaphore_mem>> -> memref<1x!tpu.dma_semaphore, #tpu.memory_space<semaphore_mem>>
    %189 = tpu.memref_squeeze %188 : memref<1x!tpu.dma_semaphore, #tpu.memory_space<semaphore_mem>> -> memref<!tpu.dma_semaphore, #tpu.memory_space<semaphore_mem>>
    tpu.enqueue_dma source(%185 : memref<576xf32, #tpu.memory_space<any>>) target(%187 : memref<576xf32, #tpu.memory_space<any>>) target_semaphore(%189 : memref<!tpu.dma_semaphore, #tpu.memory_space<semaphore_mem>>)
    %c9_i32 = arith.constant 9 : i32
    %190 = arith.addi %0, %c9_i32 : i32
    %191 = arith.index_cast %190 : i32 to index
    %192 = memref.load %arg1[%191] : memref<512xi32, #tpu.memory_space<smem>>
    %c0_i32_81 = arith.constant 0 : i32
    %c0_i32_82 = arith.constant 0 : i32
    %193 = tpu.memref_slice %arg2[%192, %c0_i32_82] : memref<512x36xf32, #tpu.memory_space<any>> -> memref<1x36xf32, #tpu.memory_space<any>>
    %194 = tpu.memref_squeeze %193 : memref<1x36xf32, #tpu.memory_space<any>> -> memref<36xf32, #tpu.memory_space<any>>
    %c0_i32_83 = arith.constant 0 : i32
    %195 = tpu.memref_slice %arg5[%190, %c0_i32_83] : memref<512x36xf32, #tpu.memory_space<any>> -> memref<1x36xf32, #tpu.memory_space<any>>
    %196 = tpu.memref_squeeze %195 : memref<1x36xf32, #tpu.memory_space<any>> -> memref<36xf32, #tpu.memory_space<any>>
    %197 = tpu.memref_slice %arg8[%c0_i32_81] : memref<3x!tpu.dma_semaphore, #tpu.memory_space<semaphore_mem>> -> memref<1x!tpu.dma_semaphore, #tpu.memory_space<semaphore_mem>>
    %198 = tpu.memref_squeeze %197 : memref<1x!tpu.dma_semaphore, #tpu.memory_space<semaphore_mem>> -> memref<!tpu.dma_semaphore, #tpu.memory_space<semaphore_mem>>
    tpu.enqueue_dma source(%194 : memref<36xf32, #tpu.memory_space<any>>) target(%196 : memref<36xf32, #tpu.memory_space<any>>) target_semaphore(%198 : memref<!tpu.dma_semaphore, #tpu.memory_space<semaphore_mem>>)
    %c1_i32_84 = arith.constant 1 : i32
    %c0_i32_85 = arith.constant 0 : i32
    %199 = tpu.memref_slice %arg3[%192, %c0_i32_85] : memref<512x144xf32, #tpu.memory_space<any>> -> memref<1x144xf32, #tpu.memory_space<any>>
    %200 = tpu.memref_squeeze %199 : memref<1x144xf32, #tpu.memory_space<any>> -> memref<144xf32, #tpu.memory_space<any>>
    %c0_i32_86 = arith.constant 0 : i32
    %201 = tpu.memref_slice %arg6[%190, %c0_i32_86] : memref<512x144xf32, #tpu.memory_space<any>> -> memref<1x144xf32, #tpu.memory_space<any>>
    %202 = tpu.memref_squeeze %201 : memref<1x144xf32, #tpu.memory_space<any>> -> memref<144xf32, #tpu.memory_space<any>>
    %203 = tpu.memref_slice %arg8[%c1_i32_84] : memref<3x!tpu.dma_semaphore, #tpu.memory_space<semaphore_mem>> -> memref<1x!tpu.dma_semaphore, #tpu.memory_space<semaphore_mem>>
    %204 = tpu.memref_squeeze %203 : memref<1x!tpu.dma_semaphore, #tpu.memory_space<semaphore_mem>> -> memref<!tpu.dma_semaphore, #tpu.memory_space<semaphore_mem>>
    tpu.enqueue_dma source(%200 : memref<144xf32, #tpu.memory_space<any>>) target(%202 : memref<144xf32, #tpu.memory_space<any>>) target_semaphore(%204 : memref<!tpu.dma_semaphore, #tpu.memory_space<semaphore_mem>>)
    %c2_i32_87 = arith.constant 2 : i32
    %c0_i32_88 = arith.constant 0 : i32
    %205 = tpu.memref_slice %arg4[%192, %c0_i32_88] : memref<512x576xf32, #tpu.memory_space<any>> -> memref<1x576xf32, #tpu.memory_space<any>>
    %206 = tpu.memref_squeeze %205 : memref<1x576xf32, #tpu.memory_space<any>> -> memref<576xf32, #tpu.memory_space<any>>
    %c0_i32_89 = arith.constant 0 : i32
    %207 = tpu.memref_slice %arg7[%190, %c0_i32_89] : memref<512x576xf32, #tpu.memory_space<any>> -> memref<1x576xf32, #tpu.memory_space<any>>
    %208 = tpu.memref_squeeze %207 : memref<1x576xf32, #tpu.memory_space<any>> -> memref<576xf32, #tpu.memory_space<any>>
    %209 = tpu.memref_slice %arg8[%c2_i32_87] : memref<3x!tpu.dma_semaphore, #tpu.memory_space<semaphore_mem>> -> memref<1x!tpu.dma_semaphore, #tpu.memory_space<semaphore_mem>>
    %210 = tpu.memref_squeeze %209 : memref<1x!tpu.dma_semaphore, #tpu.memory_space<semaphore_mem>> -> memref<!tpu.dma_semaphore, #tpu.memory_space<semaphore_mem>>
    tpu.enqueue_dma source(%206 : memref<576xf32, #tpu.memory_space<any>>) target(%208 : memref<576xf32, #tpu.memory_space<any>>) target_semaphore(%210 : memref<!tpu.dma_semaphore, #tpu.memory_space<semaphore_mem>>)
    %c10_i32 = arith.constant 10 : i32
    %211 = arith.addi %0, %c10_i32 : i32
    %212 = arith.index_cast %211 : i32 to index
    %213 = memref.load %arg1[%212] : memref<512xi32, #tpu.memory_space<smem>>
    %c0_i32_90 = arith.constant 0 : i32
    %c0_i32_91 = arith.constant 0 : i32
    %214 = tpu.memref_slice %arg2[%213, %c0_i32_91] : memref<512x36xf32, #tpu.memory_space<any>> -> memref<1x36xf32, #tpu.memory_space<any>>
    %215 = tpu.memref_squeeze %214 : memref<1x36xf32, #tpu.memory_space<any>> -> memref<36xf32, #tpu.memory_space<any>>
    %c0_i32_92 = arith.constant 0 : i32
    %216 = tpu.memref_slice %arg5[%211, %c0_i32_92] : memref<512x36xf32, #tpu.memory_space<any>> -> memref<1x36xf32, #tpu.memory_space<any>>
    %217 = tpu.memref_squeeze %216 : memref<1x36xf32, #tpu.memory_space<any>> -> memref<36xf32, #tpu.memory_space<any>>
    %218 = tpu.memref_slice %arg8[%c0_i32_90] : memref<3x!tpu.dma_semaphore, #tpu.memory_space<semaphore_mem>> -> memref<1x!tpu.dma_semaphore, #tpu.memory_space<semaphore_mem>>
    %219 = tpu.memref_squeeze %218 : memref<1x!tpu.dma_semaphore, #tpu.memory_space<semaphore_mem>> -> memref<!tpu.dma_semaphore, #tpu.memory_space<semaphore_mem>>
    tpu.enqueue_dma source(%215 : memref<36xf32, #tpu.memory_space<any>>) target(%217 : memref<36xf32, #tpu.memory_space<any>>) target_semaphore(%219 : memref<!tpu.dma_semaphore, #tpu.memory_space<semaphore_mem>>)
    %c1_i32_93 = arith.constant 1 : i32
    %c0_i32_94 = arith.constant 0 : i32
    %220 = tpu.memref_slice %arg3[%213, %c0_i32_94] : memref<512x144xf32, #tpu.memory_space<any>> -> memref<1x144xf32, #tpu.memory_space<any>>
    %221 = tpu.memref_squeeze %220 : memref<1x144xf32, #tpu.memory_space<any>> -> memref<144xf32, #tpu.memory_space<any>>
    %c0_i32_95 = arith.constant 0 : i32
    %222 = tpu.memref_slice %arg6[%211, %c0_i32_95] : memref<512x144xf32, #tpu.memory_space<any>> -> memref<1x144xf32, #tpu.memory_space<any>>
    %223 = tpu.memref_squeeze %222 : memref<1x144xf32, #tpu.memory_space<any>> -> memref<144xf32, #tpu.memory_space<any>>
    %224 = tpu.memref_slice %arg8[%c1_i32_93] : memref<3x!tpu.dma_semaphore, #tpu.memory_space<semaphore_mem>> -> memref<1x!tpu.dma_semaphore, #tpu.memory_space<semaphore_mem>>
    %225 = tpu.memref_squeeze %224 : memref<1x!tpu.dma_semaphore, #tpu.memory_space<semaphore_mem>> -> memref<!tpu.dma_semaphore, #tpu.memory_space<semaphore_mem>>
    tpu.enqueue_dma source(%221 : memref<144xf32, #tpu.memory_space<any>>) target(%223 : memref<144xf32, #tpu.memory_space<any>>) target_semaphore(%225 : memref<!tpu.dma_semaphore, #tpu.memory_space<semaphore_mem>>)
    %c2_i32_96 = arith.constant 2 : i32
    %c0_i32_97 = arith.constant 0 : i32
    %226 = tpu.memref_slice %arg4[%213, %c0_i32_97] : memref<512x576xf32, #tpu.memory_space<any>> -> memref<1x576xf32, #tpu.memory_space<any>>
    %227 = tpu.memref_squeeze %226 : memref<1x576xf32, #tpu.memory_space<any>> -> memref<576xf32, #tpu.memory_space<any>>
    %c0_i32_98 = arith.constant 0 : i32
    %228 = tpu.memref_slice %arg7[%211, %c0_i32_98] : memref<512x576xf32, #tpu.memory_space<any>> -> memref<1x576xf32, #tpu.memory_space<any>>
    %229 = tpu.memref_squeeze %228 : memref<1x576xf32, #tpu.memory_space<any>> -> memref<576xf32, #tpu.memory_space<any>>
    %230 = tpu.memref_slice %arg8[%c2_i32_96] : memref<3x!tpu.dma_semaphore, #tpu.memory_space<semaphore_mem>> -> memref<1x!tpu.dma_semaphore, #tpu.memory_space<semaphore_mem>>
    %231 = tpu.memref_squeeze %230 : memref<1x!tpu.dma_semaphore, #tpu.memory_space<semaphore_mem>> -> memref<!tpu.dma_semaphore, #tpu.memory_space<semaphore_mem>>
    tpu.enqueue_dma source(%227 : memref<576xf32, #tpu.memory_space<any>>) target(%229 : memref<576xf32, #tpu.memory_space<any>>) target_semaphore(%231 : memref<!tpu.dma_semaphore, #tpu.memory_space<semaphore_mem>>)
    %c11_i32 = arith.constant 11 : i32
    %232 = arith.addi %0, %c11_i32 : i32
    %233 = arith.index_cast %232 : i32 to index
    %234 = memref.load %arg1[%233] : memref<512xi32, #tpu.memory_space<smem>>
    %c0_i32_99 = arith.constant 0 : i32
    %c0_i32_100 = arith.constant 0 : i32
    %235 = tpu.memref_slice %arg2[%234, %c0_i32_100] : memref<512x36xf32, #tpu.memory_space<any>> -> memref<1x36xf32, #tpu.memory_space<any>>
    %236 = tpu.memref_squeeze %235 : memref<1x36xf32, #tpu.memory_space<any>> -> memref<36xf32, #tpu.memory_space<any>>
    %c0_i32_101 = arith.constant 0 : i32
    %237 = tpu.memref_slice %arg5[%232, %c0_i32_101] : memref<512x36xf32, #tpu.memory_space<any>> -> memref<1x36xf32, #tpu.memory_space<any>>
    %238 = tpu.memref_squeeze %237 : memref<1x36xf32, #tpu.memory_space<any>> -> memref<36xf32, #tpu.memory_space<any>>
    %239 = tpu.memref_slice %arg8[%c0_i32_99] : memref<3x!tpu.dma_semaphore, #tpu.memory_space<semaphore_mem>> -> memref<1x!tpu.dma_semaphore, #tpu.memory_space<semaphore_mem>>
    %240 = tpu.memref_squeeze %239 : memref<1x!tpu.dma_semaphore, #tpu.memory_space<semaphore_mem>> -> memref<!tpu.dma_semaphore, #tpu.memory_space<semaphore_mem>>
    tpu.enqueue_dma source(%236 : memref<36xf32, #tpu.memory_space<any>>) target(%238 : memref<36xf32, #tpu.memory_space<any>>) target_semaphore(%240 : memref<!tpu.dma_semaphore, #tpu.memory_space<semaphore_mem>>)
    %c1_i32_102 = arith.constant 1 : i32
    %c0_i32_103 = arith.constant 0 : i32
    %241 = tpu.memref_slice %arg3[%234, %c0_i32_103] : memref<512x144xf32, #tpu.memory_space<any>> -> memref<1x144xf32, #tpu.memory_space<any>>
    %242 = tpu.memref_squeeze %241 : memref<1x144xf32, #tpu.memory_space<any>> -> memref<144xf32, #tpu.memory_space<any>>
    %c0_i32_104 = arith.constant 0 : i32
    %243 = tpu.memref_slice %arg6[%232, %c0_i32_104] : memref<512x144xf32, #tpu.memory_space<any>> -> memref<1x144xf32, #tpu.memory_space<any>>
    %244 = tpu.memref_squeeze %243 : memref<1x144xf32, #tpu.memory_space<any>> -> memref<144xf32, #tpu.memory_space<any>>
    %245 = tpu.memref_slice %arg8[%c1_i32_102] : memref<3x!tpu.dma_semaphore, #tpu.memory_space<semaphore_mem>> -> memref<1x!tpu.dma_semaphore, #tpu.memory_space<semaphore_mem>>
    %246 = tpu.memref_squeeze %245 : memref<1x!tpu.dma_semaphore, #tpu.memory_space<semaphore_mem>> -> memref<!tpu.dma_semaphore, #tpu.memory_space<semaphore_mem>>
    tpu.enqueue_dma source(%242 : memref<144xf32, #tpu.memory_space<any>>) target(%244 : memref<144xf32, #tpu.memory_space<any>>) target_semaphore(%246 : memref<!tpu.dma_semaphore, #tpu.memory_space<semaphore_mem>>)
    %c2_i32_105 = arith.constant 2 : i32
    %c0_i32_106 = arith.constant 0 : i32
    %247 = tpu.memref_slice %arg4[%234, %c0_i32_106] : memref<512x576xf32, #tpu.memory_space<any>> -> memref<1x576xf32, #tpu.memory_space<any>>
    %248 = tpu.memref_squeeze %247 : memref<1x576xf32, #tpu.memory_space<any>> -> memref<576xf32, #tpu.memory_space<any>>
    %c0_i32_107 = arith.constant 0 : i32
    %249 = tpu.memref_slice %arg7[%232, %c0_i32_107] : memref<512x576xf32, #tpu.memory_space<any>> -> memref<1x576xf32, #tpu.memory_space<any>>
    %250 = tpu.memref_squeeze %249 : memref<1x576xf32, #tpu.memory_space<any>> -> memref<576xf32, #tpu.memory_space<any>>
    %251 = tpu.memref_slice %arg8[%c2_i32_105] : memref<3x!tpu.dma_semaphore, #tpu.memory_space<semaphore_mem>> -> memref<1x!tpu.dma_semaphore, #tpu.memory_space<semaphore_mem>>
    %252 = tpu.memref_squeeze %251 : memref<1x!tpu.dma_semaphore, #tpu.memory_space<semaphore_mem>> -> memref<!tpu.dma_semaphore, #tpu.memory_space<semaphore_mem>>
    tpu.enqueue_dma source(%248 : memref<576xf32, #tpu.memory_space<any>>) target(%250 : memref<576xf32, #tpu.memory_space<any>>) target_semaphore(%252 : memref<!tpu.dma_semaphore, #tpu.memory_space<semaphore_mem>>)
    %c12_i32 = arith.constant 12 : i32
    %253 = arith.addi %0, %c12_i32 : i32
    %254 = arith.index_cast %253 : i32 to index
    %255 = memref.load %arg1[%254] : memref<512xi32, #tpu.memory_space<smem>>
    %c0_i32_108 = arith.constant 0 : i32
    %c0_i32_109 = arith.constant 0 : i32
    %256 = tpu.memref_slice %arg2[%255, %c0_i32_109] : memref<512x36xf32, #tpu.memory_space<any>> -> memref<1x36xf32, #tpu.memory_space<any>>
    %257 = tpu.memref_squeeze %256 : memref<1x36xf32, #tpu.memory_space<any>> -> memref<36xf32, #tpu.memory_space<any>>
    %c0_i32_110 = arith.constant 0 : i32
    %258 = tpu.memref_slice %arg5[%253, %c0_i32_110] : memref<512x36xf32, #tpu.memory_space<any>> -> memref<1x36xf32, #tpu.memory_space<any>>
    %259 = tpu.memref_squeeze %258 : memref<1x36xf32, #tpu.memory_space<any>> -> memref<36xf32, #tpu.memory_space<any>>
    %260 = tpu.memref_slice %arg8[%c0_i32_108] : memref<3x!tpu.dma_semaphore, #tpu.memory_space<semaphore_mem>> -> memref<1x!tpu.dma_semaphore, #tpu.memory_space<semaphore_mem>>
    %261 = tpu.memref_squeeze %260 : memref<1x!tpu.dma_semaphore, #tpu.memory_space<semaphore_mem>> -> memref<!tpu.dma_semaphore, #tpu.memory_space<semaphore_mem>>
    tpu.enqueue_dma source(%257 : memref<36xf32, #tpu.memory_space<any>>) target(%259 : memref<36xf32, #tpu.memory_space<any>>) target_semaphore(%261 : memref<!tpu.dma_semaphore, #tpu.memory_space<semaphore_mem>>)
    %c1_i32_111 = arith.constant 1 : i32
    %c0_i32_112 = arith.constant 0 : i32
    %262 = tpu.memref_slice %arg3[%255, %c0_i32_112] : memref<512x144xf32, #tpu.memory_space<any>> -> memref<1x144xf32, #tpu.memory_space<any>>
    %263 = tpu.memref_squeeze %262 : memref<1x144xf32, #tpu.memory_space<any>> -> memref<144xf32, #tpu.memory_space<any>>
    %c0_i32_113 = arith.constant 0 : i32
    %264 = tpu.memref_slice %arg6[%253, %c0_i32_113] : memref<512x144xf32, #tpu.memory_space<any>> -> memref<1x144xf32, #tpu.memory_space<any>>
    %265 = tpu.memref_squeeze %264 : memref<1x144xf32, #tpu.memory_space<any>> -> memref<144xf32, #tpu.memory_space<any>>
    %266 = tpu.memref_slice %arg8[%c1_i32_111] : memref<3x!tpu.dma_semaphore, #tpu.memory_space<semaphore_mem>> -> memref<1x!tpu.dma_semaphore, #tpu.memory_space<semaphore_mem>>
    %267 = tpu.memref_squeeze %266 : memref<1x!tpu.dma_semaphore, #tpu.memory_space<semaphore_mem>> -> memref<!tpu.dma_semaphore, #tpu.memory_space<semaphore_mem>>
    tpu.enqueue_dma source(%263 : memref<144xf32, #tpu.memory_space<any>>) target(%265 : memref<144xf32, #tpu.memory_space<any>>) target_semaphore(%267 : memref<!tpu.dma_semaphore, #tpu.memory_space<semaphore_mem>>)
    %c2_i32_114 = arith.constant 2 : i32
    %c0_i32_115 = arith.constant 0 : i32
    %268 = tpu.memref_slice %arg4[%255, %c0_i32_115] : memref<512x576xf32, #tpu.memory_space<any>> -> memref<1x576xf32, #tpu.memory_space<any>>
    %269 = tpu.memref_squeeze %268 : memref<1x576xf32, #tpu.memory_space<any>> -> memref<576xf32, #tpu.memory_space<any>>
    %c0_i32_116 = arith.constant 0 : i32
    %270 = tpu.memref_slice %arg7[%253, %c0_i32_116] : memref<512x576xf32, #tpu.memory_space<any>> -> memref<1x576xf32, #tpu.memory_space<any>>
    %271 = tpu.memref_squeeze %270 : memref<1x576xf32, #tpu.memory_space<any>> -> memref<576xf32, #tpu.memory_space<any>>
    %272 = tpu.memref_slice %arg8[%c2_i32_114] : memref<3x!tpu.dma_semaphore, #tpu.memory_space<semaphore_mem>> -> memref<1x!tpu.dma_semaphore, #tpu.memory_space<semaphore_mem>>
    %273 = tpu.memref_squeeze %272 : memref<1x!tpu.dma_semaphore, #tpu.memory_space<semaphore_mem>> -> memref<!tpu.dma_semaphore, #tpu.memory_space<semaphore_mem>>
    tpu.enqueue_dma source(%269 : memref<576xf32, #tpu.memory_space<any>>) target(%271 : memref<576xf32, #tpu.memory_space<any>>) target_semaphore(%273 : memref<!tpu.dma_semaphore, #tpu.memory_space<semaphore_mem>>)
    %c13_i32 = arith.constant 13 : i32
    %274 = arith.addi %0, %c13_i32 : i32
    %275 = arith.index_cast %274 : i32 to index
    %276 = memref.load %arg1[%275] : memref<512xi32, #tpu.memory_space<smem>>
    %c0_i32_117 = arith.constant 0 : i32
    %c0_i32_118 = arith.constant 0 : i32
    %277 = tpu.memref_slice %arg2[%276, %c0_i32_118] : memref<512x36xf32, #tpu.memory_space<any>> -> memref<1x36xf32, #tpu.memory_space<any>>
    %278 = tpu.memref_squeeze %277 : memref<1x36xf32, #tpu.memory_space<any>> -> memref<36xf32, #tpu.memory_space<any>>
    %c0_i32_119 = arith.constant 0 : i32
    %279 = tpu.memref_slice %arg5[%274, %c0_i32_119] : memref<512x36xf32, #tpu.memory_space<any>> -> memref<1x36xf32, #tpu.memory_space<any>>
    %280 = tpu.memref_squeeze %279 : memref<1x36xf32, #tpu.memory_space<any>> -> memref<36xf32, #tpu.memory_space<any>>
    %281 = tpu.memref_slice %arg8[%c0_i32_117] : memref<3x!tpu.dma_semaphore, #tpu.memory_space<semaphore_mem>> -> memref<1x!tpu.dma_semaphore, #tpu.memory_space<semaphore_mem>>
    %282 = tpu.memref_squeeze %281 : memref<1x!tpu.dma_semaphore, #tpu.memory_space<semaphore_mem>> -> memref<!tpu.dma_semaphore, #tpu.memory_space<semaphore_mem>>
    tpu.enqueue_dma source(%278 : memref<36xf32, #tpu.memory_space<any>>) target(%280 : memref<36xf32, #tpu.memory_space<any>>) target_semaphore(%282 : memref<!tpu.dma_semaphore, #tpu.memory_space<semaphore_mem>>)
    %c1_i32_120 = arith.constant 1 : i32
    %c0_i32_121 = arith.constant 0 : i32
    %283 = tpu.memref_slice %arg3[%276, %c0_i32_121] : memref<512x144xf32, #tpu.memory_space<any>> -> memref<1x144xf32, #tpu.memory_space<any>>
    %284 = tpu.memref_squeeze %283 : memref<1x144xf32, #tpu.memory_space<any>> -> memref<144xf32, #tpu.memory_space<any>>
    %c0_i32_122 = arith.constant 0 : i32
    %285 = tpu.memref_slice %arg6[%274, %c0_i32_122] : memref<512x144xf32, #tpu.memory_space<any>> -> memref<1x144xf32, #tpu.memory_space<any>>
    %286 = tpu.memref_squeeze %285 : memref<1x144xf32, #tpu.memory_space<any>> -> memref<144xf32, #tpu.memory_space<any>>
    %287 = tpu.memref_slice %arg8[%c1_i32_120] : memref<3x!tpu.dma_semaphore, #tpu.memory_space<semaphore_mem>> -> memref<1x!tpu.dma_semaphore, #tpu.memory_space<semaphore_mem>>
    %288 = tpu.memref_squeeze %287 : memref<1x!tpu.dma_semaphore, #tpu.memory_space<semaphore_mem>> -> memref<!tpu.dma_semaphore, #tpu.memory_space<semaphore_mem>>
    tpu.enqueue_dma source(%284 : memref<144xf32, #tpu.memory_space<any>>) target(%286 : memref<144xf32, #tpu.memory_space<any>>) target_semaphore(%288 : memref<!tpu.dma_semaphore, #tpu.memory_space<semaphore_mem>>)
    %c2_i32_123 = arith.constant 2 : i32
    %c0_i32_124 = arith.constant 0 : i32
    %289 = tpu.memref_slice %arg4[%276, %c0_i32_124] : memref<512x576xf32, #tpu.memory_space<any>> -> memref<1x576xf32, #tpu.memory_space<any>>
    %290 = tpu.memref_squeeze %289 : memref<1x576xf32, #tpu.memory_space<any>> -> memref<576xf32, #tpu.memory_space<any>>
    %c0_i32_125 = arith.constant 0 : i32
    %291 = tpu.memref_slice %arg7[%274, %c0_i32_125] : memref<512x576xf32, #tpu.memory_space<any>> -> memref<1x576xf32, #tpu.memory_space<any>>
    %292 = tpu.memref_squeeze %291 : memref<1x576xf32, #tpu.memory_space<any>> -> memref<576xf32, #tpu.memory_space<any>>
    %293 = tpu.memref_slice %arg8[%c2_i32_123] : memref<3x!tpu.dma_semaphore, #tpu.memory_space<semaphore_mem>> -> memref<1x!tpu.dma_semaphore, #tpu.memory_space<semaphore_mem>>
    %294 = tpu.memref_squeeze %293 : memref<1x!tpu.dma_semaphore, #tpu.memory_space<semaphore_mem>> -> memref<!tpu.dma_semaphore, #tpu.memory_space<semaphore_mem>>
    tpu.enqueue_dma source(%290 : memref<576xf32, #tpu.memory_space<any>>) target(%292 : memref<576xf32, #tpu.memory_space<any>>) target_semaphore(%294 : memref<!tpu.dma_semaphore, #tpu.memory_space<semaphore_mem>>)
    %c14_i32 = arith.constant 14 : i32
    %295 = arith.addi %0, %c14_i32 : i32
    %296 = arith.index_cast %295 : i32 to index
    %297 = memref.load %arg1[%296] : memref<512xi32, #tpu.memory_space<smem>>
    %c0_i32_126 = arith.constant 0 : i32
    %c0_i32_127 = arith.constant 0 : i32
    %298 = tpu.memref_slice %arg2[%297, %c0_i32_127] : memref<512x36xf32, #tpu.memory_space<any>> -> memref<1x36xf32, #tpu.memory_space<any>>
    %299 = tpu.memref_squeeze %298 : memref<1x36xf32, #tpu.memory_space<any>> -> memref<36xf32, #tpu.memory_space<any>>
    %c0_i32_128 = arith.constant 0 : i32
    %300 = tpu.memref_slice %arg5[%295, %c0_i32_128] : memref<512x36xf32, #tpu.memory_space<any>> -> memref<1x36xf32, #tpu.memory_space<any>>
    %301 = tpu.memref_squeeze %300 : memref<1x36xf32, #tpu.memory_space<any>> -> memref<36xf32, #tpu.memory_space<any>>
    %302 = tpu.memref_slice %arg8[%c0_i32_126] : memref<3x!tpu.dma_semaphore, #tpu.memory_space<semaphore_mem>> -> memref<1x!tpu.dma_semaphore, #tpu.memory_space<semaphore_mem>>
    %303 = tpu.memref_squeeze %302 : memref<1x!tpu.dma_semaphore, #tpu.memory_space<semaphore_mem>> -> memref<!tpu.dma_semaphore, #tpu.memory_space<semaphore_mem>>
    tpu.enqueue_dma source(%299 : memref<36xf32, #tpu.memory_space<any>>) target(%301 : memref<36xf32, #tpu.memory_space<any>>) target_semaphore(%303 : memref<!tpu.dma_semaphore, #tpu.memory_space<semaphore_mem>>)
    %c1_i32_129 = arith.constant 1 : i32
    %c0_i32_130 = arith.constant 0 : i32
    %304 = tpu.memref_slice %arg3[%297, %c0_i32_130] : memref<512x144xf32, #tpu.memory_space<any>> -> memref<1x144xf32, #tpu.memory_space<any>>
    %305 = tpu.memref_squeeze %304 : memref<1x144xf32, #tpu.memory_space<any>> -> memref<144xf32, #tpu.memory_space<any>>
    %c0_i32_131 = arith.constant 0 : i32
    %306 = tpu.memref_slice %arg6[%295, %c0_i32_131] : memref<512x144xf32, #tpu.memory_space<any>> -> memref<1x144xf32, #tpu.memory_space<any>>
    %307 = tpu.memref_squeeze %306 : memref<1x144xf32, #tpu.memory_space<any>> -> memref<144xf32, #tpu.memory_space<any>>
    %308 = tpu.memref_slice %arg8[%c1_i32_129] : memref<3x!tpu.dma_semaphore, #tpu.memory_space<semaphore_mem>> -> memref<1x!tpu.dma_semaphore, #tpu.memory_space<semaphore_mem>>
    %309 = tpu.memref_squeeze %308 : memref<1x!tpu.dma_semaphore, #tpu.memory_space<semaphore_mem>> -> memref<!tpu.dma_semaphore, #tpu.memory_space<semaphore_mem>>
    tpu.enqueue_dma source(%305 : memref<144xf32, #tpu.memory_space<any>>) target(%307 : memref<144xf32, #tpu.memory_space<any>>) target_semaphore(%309 : memref<!tpu.dma_semaphore, #tpu.memory_space<semaphore_mem>>)
    %c2_i32_132 = arith.constant 2 : i32
    %c0_i32_133 = arith.constant 0 : i32
    %310 = tpu.memref_slice %arg4[%297, %c0_i32_133] : memref<512x576xf32, #tpu.memory_space<any>> -> memref<1x576xf32, #tpu.memory_space<any>>
    %311 = tpu.memref_squeeze %310 : memref<1x576xf32, #tpu.memory_space<any>> -> memref<576xf32, #tpu.memory_space<any>>
    %c0_i32_134 = arith.constant 0 : i32
    %312 = tpu.memref_slice %arg7[%295, %c0_i32_134] : memref<512x576xf32, #tpu.memory_space<any>> -> memref<1x576xf32, #tpu.memory_space<any>>
    %313 = tpu.memref_squeeze %312 : memref<1x576xf32, #tpu.memory_space<any>> -> memref<576xf32, #tpu.memory_space<any>>
    %314 = tpu.memref_slice %arg8[%c2_i32_132] : memref<3x!tpu.dma_semaphore, #tpu.memory_space<semaphore_mem>> -> memref<1x!tpu.dma_semaphore, #tpu.memory_space<semaphore_mem>>
    %315 = tpu.memref_squeeze %314 : memref<1x!tpu.dma_semaphore, #tpu.memory_space<semaphore_mem>> -> memref<!tpu.dma_semaphore, #tpu.memory_space<semaphore_mem>>
    tpu.enqueue_dma source(%311 : memref<576xf32, #tpu.memory_space<any>>) target(%313 : memref<576xf32, #tpu.memory_space<any>>) target_semaphore(%315 : memref<!tpu.dma_semaphore, #tpu.memory_space<semaphore_mem>>)
    %c15_i32 = arith.constant 15 : i32
    %316 = arith.addi %0, %c15_i32 : i32
    %317 = arith.index_cast %316 : i32 to index
    %318 = memref.load %arg1[%317] : memref<512xi32, #tpu.memory_space<smem>>
    %c0_i32_135 = arith.constant 0 : i32
    %c0_i32_136 = arith.constant 0 : i32
    %319 = tpu.memref_slice %arg2[%318, %c0_i32_136] : memref<512x36xf32, #tpu.memory_space<any>> -> memref<1x36xf32, #tpu.memory_space<any>>
    %320 = tpu.memref_squeeze %319 : memref<1x36xf32, #tpu.memory_space<any>> -> memref<36xf32, #tpu.memory_space<any>>
    %c0_i32_137 = arith.constant 0 : i32
    %321 = tpu.memref_slice %arg5[%316, %c0_i32_137] : memref<512x36xf32, #tpu.memory_space<any>> -> memref<1x36xf32, #tpu.memory_space<any>>
    %322 = tpu.memref_squeeze %321 : memref<1x36xf32, #tpu.memory_space<any>> -> memref<36xf32, #tpu.memory_space<any>>
    %323 = tpu.memref_slice %arg8[%c0_i32_135] : memref<3x!tpu.dma_semaphore, #tpu.memory_space<semaphore_mem>> -> memref<1x!tpu.dma_semaphore, #tpu.memory_space<semaphore_mem>>
    %324 = tpu.memref_squeeze %323 : memref<1x!tpu.dma_semaphore, #tpu.memory_space<semaphore_mem>> -> memref<!tpu.dma_semaphore, #tpu.memory_space<semaphore_mem>>
    tpu.enqueue_dma source(%320 : memref<36xf32, #tpu.memory_space<any>>) target(%322 : memref<36xf32, #tpu.memory_space<any>>) target_semaphore(%324 : memref<!tpu.dma_semaphore, #tpu.memory_space<semaphore_mem>>)
    %c1_i32_138 = arith.constant 1 : i32
    %c0_i32_139 = arith.constant 0 : i32
    %325 = tpu.memref_slice %arg3[%318, %c0_i32_139] : memref<512x144xf32, #tpu.memory_space<any>> -> memref<1x144xf32, #tpu.memory_space<any>>
    %326 = tpu.memref_squeeze %325 : memref<1x144xf32, #tpu.memory_space<any>> -> memref<144xf32, #tpu.memory_space<any>>
    %c0_i32_140 = arith.constant 0 : i32
    %327 = tpu.memref_slice %arg6[%316, %c0_i32_140] : memref<512x144xf32, #tpu.memory_space<any>> -> memref<1x144xf32, #tpu.memory_space<any>>
    %328 = tpu.memref_squeeze %327 : memref<1x144xf32, #tpu.memory_space<any>> -> memref<144xf32, #tpu.memory_space<any>>
    %329 = tpu.memref_slice %arg8[%c1_i32_138] : memref<3x!tpu.dma_semaphore, #tpu.memory_space<semaphore_mem>> -> memref<1x!tpu.dma_semaphore, #tpu.memory_space<semaphore_mem>>
    %330 = tpu.memref_squeeze %329 : memref<1x!tpu.dma_semaphore, #tpu.memory_space<semaphore_mem>> -> memref<!tpu.dma_semaphore, #tpu.memory_space<semaphore_mem>>
    tpu.enqueue_dma source(%326 : memref<144xf32, #tpu.memory_space<any>>) target(%328 : memref<144xf32, #tpu.memory_space<any>>) target_semaphore(%330 : memref<!tpu.dma_semaphore, #tpu.memory_space<semaphore_mem>>)
    %c2_i32_141 = arith.constant 2 : i32
    %c0_i32_142 = arith.constant 0 : i32
    %331 = tpu.memref_slice %arg4[%318, %c0_i32_142] : memref<512x576xf32, #tpu.memory_space<any>> -> memref<1x576xf32, #tpu.memory_space<any>>
    %332 = tpu.memref_squeeze %331 : memref<1x576xf32, #tpu.memory_space<any>> -> memref<576xf32, #tpu.memory_space<any>>
    %c0_i32_143 = arith.constant 0 : i32
    %333 = tpu.memref_slice %arg7[%316, %c0_i32_143] : memref<512x576xf32, #tpu.memory_space<any>> -> memref<1x576xf32, #tpu.memory_space<any>>
    %334 = tpu.memref_squeeze %333 : memref<1x576xf32, #tpu.memory_space<any>> -> memref<576xf32, #tpu.memory_space<any>>
    %335 = tpu.memref_slice %arg8[%c2_i32_141] : memref<3x!tpu.dma_semaphore, #tpu.memory_space<semaphore_mem>> -> memref<1x!tpu.dma_semaphore, #tpu.memory_space<semaphore_mem>>
    %336 = tpu.memref_squeeze %335 : memref<1x!tpu.dma_semaphore, #tpu.memory_space<semaphore_mem>> -> memref<!tpu.dma_semaphore, #tpu.memory_space<semaphore_mem>>
    tpu.enqueue_dma source(%332 : memref<576xf32, #tpu.memory_space<any>>) target(%334 : memref<576xf32, #tpu.memory_space<any>>) target_semaphore(%336 : memref<!tpu.dma_semaphore, #tpu.memory_space<semaphore_mem>>)
    %c0_i32_144 = arith.constant 0 : i32
    %c0_i32_145 = arith.constant 0 : i32
    %337 = tpu.memref_slice %arg2[%3, %c0_i32_145] : memref<512x36xf32, #tpu.memory_space<any>> -> memref<1x36xf32, #tpu.memory_space<any>>
    %338 = tpu.memref_squeeze %337 : memref<1x36xf32, #tpu.memory_space<any>> -> memref<36xf32, #tpu.memory_space<any>>
    %c0_i32_146 = arith.constant 0 : i32
    %339 = tpu.memref_slice %arg5[%1, %c0_i32_146] : memref<512x36xf32, #tpu.memory_space<any>> -> memref<1x36xf32, #tpu.memory_space<any>>
    %340 = tpu.memref_squeeze %339 : memref<1x36xf32, #tpu.memory_space<any>> -> memref<36xf32, #tpu.memory_space<any>>
    %341 = tpu.memref_slice %arg8[%c0_i32_144] : memref<3x!tpu.dma_semaphore, #tpu.memory_space<semaphore_mem>> -> memref<1x!tpu.dma_semaphore, #tpu.memory_space<semaphore_mem>>
    %342 = tpu.memref_squeeze %341 : memref<1x!tpu.dma_semaphore, #tpu.memory_space<semaphore_mem>> -> memref<!tpu.dma_semaphore, #tpu.memory_space<semaphore_mem>>
    tpu.wait_dma2 semaphore(%342 : memref<!tpu.dma_semaphore, #tpu.memory_space<semaphore_mem>>) src(%338 : memref<36xf32, #tpu.memory_space<any>>) dst(%340 : memref<36xf32, #tpu.memory_space<any>>)
    %c1_i32_147 = arith.constant 1 : i32
    %c0_i32_148 = arith.constant 0 : i32
    %343 = tpu.memref_slice %arg3[%3, %c0_i32_148] : memref<512x144xf32, #tpu.memory_space<any>> -> memref<1x144xf32, #tpu.memory_space<any>>
    %344 = tpu.memref_squeeze %343 : memref<1x144xf32, #tpu.memory_space<any>> -> memref<144xf32, #tpu.memory_space<any>>
    %c0_i32_149 = arith.constant 0 : i32
    %345 = tpu.memref_slice %arg6[%1, %c0_i32_149] : memref<512x144xf32, #tpu.memory_space<any>> -> memref<1x144xf32, #tpu.memory_space<any>>
    %346 = tpu.memref_squeeze %345 : memref<1x144xf32, #tpu.memory_space<any>> -> memref<144xf32, #tpu.memory_space<any>>
    %347 = tpu.memref_slice %arg8[%c1_i32_147] : memref<3x!tpu.dma_semaphore, #tpu.memory_space<semaphore_mem>> -> memref<1x!tpu.dma_semaphore, #tpu.memory_space<semaphore_mem>>
    %348 = tpu.memref_squeeze %347 : memref<1x!tpu.dma_semaphore, #tpu.memory_space<semaphore_mem>> -> memref<!tpu.dma_semaphore, #tpu.memory_space<semaphore_mem>>
    tpu.wait_dma2 semaphore(%348 : memref<!tpu.dma_semaphore, #tpu.memory_space<semaphore_mem>>) src(%344 : memref<144xf32, #tpu.memory_space<any>>) dst(%346 : memref<144xf32, #tpu.memory_space<any>>)
    %c2_i32_150 = arith.constant 2 : i32
    %c0_i32_151 = arith.constant 0 : i32
    %349 = tpu.memref_slice %arg4[%3, %c0_i32_151] : memref<512x576xf32, #tpu.memory_space<any>> -> memref<1x576xf32, #tpu.memory_space<any>>
    %350 = tpu.memref_squeeze %349 : memref<1x576xf32, #tpu.memory_space<any>> -> memref<576xf32, #tpu.memory_space<any>>
    %c0_i32_152 = arith.constant 0 : i32
    %351 = tpu.memref_slice %arg7[%1, %c0_i32_152] : memref<512x576xf32, #tpu.memory_space<any>> -> memref<1x576xf32, #tpu.memory_space<any>>
    %352 = tpu.memref_squeeze %351 : memref<1x576xf32, #tpu.memory_space<any>> -> memref<576xf32, #tpu.memory_space<any>>
    %353 = tpu.memref_slice %arg8[%c2_i32_150] : memref<3x!tpu.dma_semaphore, #tpu.memory_space<semaphore_mem>> -> memref<1x!tpu.dma_semaphore, #tpu.memory_space<semaphore_mem>>
    %354 = tpu.memref_squeeze %353 : memref<1x!tpu.dma_semaphore, #tpu.memory_space<semaphore_mem>> -> memref<!tpu.dma_semaphore, #tpu.memory_space<semaphore_mem>>
    tpu.wait_dma2 semaphore(%354 : memref<!tpu.dma_semaphore, #tpu.memory_space<semaphore_mem>>) src(%350 : memref<576xf32, #tpu.memory_space<any>>) dst(%352 : memref<576xf32, #tpu.memory_space<any>>)
    %c0_i32_153 = arith.constant 0 : i32
    %c0_i32_154 = arith.constant 0 : i32
    %355 = tpu.memref_slice %arg2[%24, %c0_i32_154] : memref<512x36xf32, #tpu.memory_space<any>> -> memref<1x36xf32, #tpu.memory_space<any>>
    %356 = tpu.memref_squeeze %355 : memref<1x36xf32, #tpu.memory_space<any>> -> memref<36xf32, #tpu.memory_space<any>>
    %c0_i32_155 = arith.constant 0 : i32
    %357 = tpu.memref_slice %arg5[%22, %c0_i32_155] : memref<512x36xf32, #tpu.memory_space<any>> -> memref<1x36xf32, #tpu.memory_space<any>>
    %358 = tpu.memref_squeeze %357 : memref<1x36xf32, #tpu.memory_space<any>> -> memref<36xf32, #tpu.memory_space<any>>
    %359 = tpu.memref_slice %arg8[%c0_i32_153] : memref<3x!tpu.dma_semaphore, #tpu.memory_space<semaphore_mem>> -> memref<1x!tpu.dma_semaphore, #tpu.memory_space<semaphore_mem>>
    %360 = tpu.memref_squeeze %359 : memref<1x!tpu.dma_semaphore, #tpu.memory_space<semaphore_mem>> -> memref<!tpu.dma_semaphore, #tpu.memory_space<semaphore_mem>>
    tpu.wait_dma2 semaphore(%360 : memref<!tpu.dma_semaphore, #tpu.memory_space<semaphore_mem>>) src(%356 : memref<36xf32, #tpu.memory_space<any>>) dst(%358 : memref<36xf32, #tpu.memory_space<any>>)
    %c1_i32_156 = arith.constant 1 : i32
    %c0_i32_157 = arith.constant 0 : i32
    %361 = tpu.memref_slice %arg3[%24, %c0_i32_157] : memref<512x144xf32, #tpu.memory_space<any>> -> memref<1x144xf32, #tpu.memory_space<any>>
    %362 = tpu.memref_squeeze %361 : memref<1x144xf32, #tpu.memory_space<any>> -> memref<144xf32, #tpu.memory_space<any>>
    %c0_i32_158 = arith.constant 0 : i32
    %363 = tpu.memref_slice %arg6[%22, %c0_i32_158] : memref<512x144xf32, #tpu.memory_space<any>> -> memref<1x144xf32, #tpu.memory_space<any>>
    %364 = tpu.memref_squeeze %363 : memref<1x144xf32, #tpu.memory_space<any>> -> memref<144xf32, #tpu.memory_space<any>>
    %365 = tpu.memref_slice %arg8[%c1_i32_156] : memref<3x!tpu.dma_semaphore, #tpu.memory_space<semaphore_mem>> -> memref<1x!tpu.dma_semaphore, #tpu.memory_space<semaphore_mem>>
    %366 = tpu.memref_squeeze %365 : memref<1x!tpu.dma_semaphore, #tpu.memory_space<semaphore_mem>> -> memref<!tpu.dma_semaphore, #tpu.memory_space<semaphore_mem>>
    tpu.wait_dma2 semaphore(%366 : memref<!tpu.dma_semaphore, #tpu.memory_space<semaphore_mem>>) src(%362 : memref<144xf32, #tpu.memory_space<any>>) dst(%364 : memref<144xf32, #tpu.memory_space<any>>)
    %c2_i32_159 = arith.constant 2 : i32
    %c0_i32_160 = arith.constant 0 : i32
    %367 = tpu.memref_slice %arg4[%24, %c0_i32_160] : memref<512x576xf32, #tpu.memory_space<any>> -> memref<1x576xf32, #tpu.memory_space<any>>
    %368 = tpu.memref_squeeze %367 : memref<1x576xf32, #tpu.memory_space<any>> -> memref<576xf32, #tpu.memory_space<any>>
    %c0_i32_161 = arith.constant 0 : i32
    %369 = tpu.memref_slice %arg7[%22, %c0_i32_161] : memref<512x576xf32, #tpu.memory_space<any>> -> memref<1x576xf32, #tpu.memory_space<any>>
    %370 = tpu.memref_squeeze %369 : memref<1x576xf32, #tpu.memory_space<any>> -> memref<576xf32, #tpu.memory_space<any>>
    %371 = tpu.memref_slice %arg8[%c2_i32_159] : memref<3x!tpu.dma_semaphore, #tpu.memory_space<semaphore_mem>> -> memref<1x!tpu.dma_semaphore, #tpu.memory_space<semaphore_mem>>
    %372 = tpu.memref_squeeze %371 : memref<1x!tpu.dma_semaphore, #tpu.memory_space<semaphore_mem>> -> memref<!tpu.dma_semaphore, #tpu.memory_space<semaphore_mem>>
    tpu.wait_dma2 semaphore(%372 : memref<!tpu.dma_semaphore, #tpu.memory_space<semaphore_mem>>) src(%368 : memref<576xf32, #tpu.memory_space<any>>) dst(%370 : memref<576xf32, #tpu.memory_space<any>>)
    %c0_i32_162 = arith.constant 0 : i32
    %c0_i32_163 = arith.constant 0 : i32
    %373 = tpu.memref_slice %arg2[%45, %c0_i32_163] : memref<512x36xf32, #tpu.memory_space<any>> -> memref<1x36xf32, #tpu.memory_space<any>>
    %374 = tpu.memref_squeeze %373 : memref<1x36xf32, #tpu.memory_space<any>> -> memref<36xf32, #tpu.memory_space<any>>
    %c0_i32_164 = arith.constant 0 : i32
    %375 = tpu.memref_slice %arg5[%43, %c0_i32_164] : memref<512x36xf32, #tpu.memory_space<any>> -> memref<1x36xf32, #tpu.memory_space<any>>
    %376 = tpu.memref_squeeze %375 : memref<1x36xf32, #tpu.memory_space<any>> -> memref<36xf32, #tpu.memory_space<any>>
    %377 = tpu.memref_slice %arg8[%c0_i32_162] : memref<3x!tpu.dma_semaphore, #tpu.memory_space<semaphore_mem>> -> memref<1x!tpu.dma_semaphore, #tpu.memory_space<semaphore_mem>>
    %378 = tpu.memref_squeeze %377 : memref<1x!tpu.dma_semaphore, #tpu.memory_space<semaphore_mem>> -> memref<!tpu.dma_semaphore, #tpu.memory_space<semaphore_mem>>
    tpu.wait_dma2 semaphore(%378 : memref<!tpu.dma_semaphore, #tpu.memory_space<semaphore_mem>>) src(%374 : memref<36xf32, #tpu.memory_space<any>>) dst(%376 : memref<36xf32, #tpu.memory_space<any>>)
    %c1_i32_165 = arith.constant 1 : i32
    %c0_i32_166 = arith.constant 0 : i32
    %379 = tpu.memref_slice %arg3[%45, %c0_i32_166] : memref<512x144xf32, #tpu.memory_space<any>> -> memref<1x144xf32, #tpu.memory_space<any>>
    %380 = tpu.memref_squeeze %379 : memref<1x144xf32, #tpu.memory_space<any>> -> memref<144xf32, #tpu.memory_space<any>>
    %c0_i32_167 = arith.constant 0 : i32
    %381 = tpu.memref_slice %arg6[%43, %c0_i32_167] : memref<512x144xf32, #tpu.memory_space<any>> -> memref<1x144xf32, #tpu.memory_space<any>>
    %382 = tpu.memref_squeeze %381 : memref<1x144xf32, #tpu.memory_space<any>> -> memref<144xf32, #tpu.memory_space<any>>
    %383 = tpu.memref_slice %arg8[%c1_i32_165] : memref<3x!tpu.dma_semaphore, #tpu.memory_space<semaphore_mem>> -> memref<1x!tpu.dma_semaphore, #tpu.memory_space<semaphore_mem>>
    %384 = tpu.memref_squeeze %383 : memref<1x!tpu.dma_semaphore, #tpu.memory_space<semaphore_mem>> -> memref<!tpu.dma_semaphore, #tpu.memory_space<semaphore_mem>>
    tpu.wait_dma2 semaphore(%384 : memref<!tpu.dma_semaphore, #tpu.memory_space<semaphore_mem>>) src(%380 : memref<144xf32, #tpu.memory_space<any>>) dst(%382 : memref<144xf32, #tpu.memory_space<any>>)
    %c2_i32_168 = arith.constant 2 : i32
    %c0_i32_169 = arith.constant 0 : i32
    %385 = tpu.memref_slice %arg4[%45, %c0_i32_169] : memref<512x576xf32, #tpu.memory_space<any>> -> memref<1x576xf32, #tpu.memory_space<any>>
    %386 = tpu.memref_squeeze %385 : memref<1x576xf32, #tpu.memory_space<any>> -> memref<576xf32, #tpu.memory_space<any>>
    %c0_i32_170 = arith.constant 0 : i32
    %387 = tpu.memref_slice %arg7[%43, %c0_i32_170] : memref<512x576xf32, #tpu.memory_space<any>> -> memref<1x576xf32, #tpu.memory_space<any>>
    %388 = tpu.memref_squeeze %387 : memref<1x576xf32, #tpu.memory_space<any>> -> memref<576xf32, #tpu.memory_space<any>>
    %389 = tpu.memref_slice %arg8[%c2_i32_168] : memref<3x!tpu.dma_semaphore, #tpu.memory_space<semaphore_mem>> -> memref<1x!tpu.dma_semaphore, #tpu.memory_space<semaphore_mem>>
    %390 = tpu.memref_squeeze %389 : memref<1x!tpu.dma_semaphore, #tpu.memory_space<semaphore_mem>> -> memref<!tpu.dma_semaphore, #tpu.memory_space<semaphore_mem>>
    tpu.wait_dma2 semaphore(%390 : memref<!tpu.dma_semaphore, #tpu.memory_space<semaphore_mem>>) src(%386 : memref<576xf32, #tpu.memory_space<any>>) dst(%388 : memref<576xf32, #tpu.memory_space<any>>)
    %c0_i32_171 = arith.constant 0 : i32
    %c0_i32_172 = arith.constant 0 : i32
    %391 = tpu.memref_slice %arg2[%66, %c0_i32_172] : memref<512x36xf32, #tpu.memory_space<any>> -> memref<1x36xf32, #tpu.memory_space<any>>
    %392 = tpu.memref_squeeze %391 : memref<1x36xf32, #tpu.memory_space<any>> -> memref<36xf32, #tpu.memory_space<any>>
    %c0_i32_173 = arith.constant 0 : i32
    %393 = tpu.memref_slice %arg5[%64, %c0_i32_173] : memref<512x36xf32, #tpu.memory_space<any>> -> memref<1x36xf32, #tpu.memory_space<any>>
    %394 = tpu.memref_squeeze %393 : memref<1x36xf32, #tpu.memory_space<any>> -> memref<36xf32, #tpu.memory_space<any>>
    %395 = tpu.memref_slice %arg8[%c0_i32_171] : memref<3x!tpu.dma_semaphore, #tpu.memory_space<semaphore_mem>> -> memref<1x!tpu.dma_semaphore, #tpu.memory_space<semaphore_mem>>
    %396 = tpu.memref_squeeze %395 : memref<1x!tpu.dma_semaphore, #tpu.memory_space<semaphore_mem>> -> memref<!tpu.dma_semaphore, #tpu.memory_space<semaphore_mem>>
    tpu.wait_dma2 semaphore(%396 : memref<!tpu.dma_semaphore, #tpu.memory_space<semaphore_mem>>) src(%392 : memref<36xf32, #tpu.memory_space<any>>) dst(%394 : memref<36xf32, #tpu.memory_space<any>>)
    %c1_i32_174 = arith.constant 1 : i32
    %c0_i32_175 = arith.constant 0 : i32
    %397 = tpu.memref_slice %arg3[%66, %c0_i32_175] : memref<512x144xf32, #tpu.memory_space<any>> -> memref<1x144xf32, #tpu.memory_space<any>>
    %398 = tpu.memref_squeeze %397 : memref<1x144xf32, #tpu.memory_space<any>> -> memref<144xf32, #tpu.memory_space<any>>
    %c0_i32_176 = arith.constant 0 : i32
    %399 = tpu.memref_slice %arg6[%64, %c0_i32_176] : memref<512x144xf32, #tpu.memory_space<any>> -> memref<1x144xf32, #tpu.memory_space<any>>
    %400 = tpu.memref_squeeze %399 : memref<1x144xf32, #tpu.memory_space<any>> -> memref<144xf32, #tpu.memory_space<any>>
    %401 = tpu.memref_slice %arg8[%c1_i32_174] : memref<3x!tpu.dma_semaphore, #tpu.memory_space<semaphore_mem>> -> memref<1x!tpu.dma_semaphore, #tpu.memory_space<semaphore_mem>>
    %402 = tpu.memref_squeeze %401 : memref<1x!tpu.dma_semaphore, #tpu.memory_space<semaphore_mem>> -> memref<!tpu.dma_semaphore, #tpu.memory_space<semaphore_mem>>
    tpu.wait_dma2 semaphore(%402 : memref<!tpu.dma_semaphore, #tpu.memory_space<semaphore_mem>>) src(%398 : memref<144xf32, #tpu.memory_space<any>>) dst(%400 : memref<144xf32, #tpu.memory_space<any>>)
    %c2_i32_177 = arith.constant 2 : i32
    %c0_i32_178 = arith.constant 0 : i32
    %403 = tpu.memref_slice %arg4[%66, %c0_i32_178] : memref<512x576xf32, #tpu.memory_space<any>> -> memref<1x576xf32, #tpu.memory_space<any>>
    %404 = tpu.memref_squeeze %403 : memref<1x576xf32, #tpu.memory_space<any>> -> memref<576xf32, #tpu.memory_space<any>>
    %c0_i32_179 = arith.constant 0 : i32
    %405 = tpu.memref_slice %arg7[%64, %c0_i32_179] : memref<512x576xf32, #tpu.memory_space<any>> -> memref<1x576xf32, #tpu.memory_space<any>>
    %406 = tpu.memref_squeeze %405 : memref<1x576xf32, #tpu.memory_space<any>> -> memref<576xf32, #tpu.memory_space<any>>
    %407 = tpu.memref_slice %arg8[%c2_i32_177] : memref<3x!tpu.dma_semaphore, #tpu.memory_space<semaphore_mem>> -> memref<1x!tpu.dma_semaphore, #tpu.memory_space<semaphore_mem>>
    %408 = tpu.memref_squeeze %407 : memref<1x!tpu.dma_semaphore, #tpu.memory_space<semaphore_mem>> -> memref<!tpu.dma_semaphore, #tpu.memory_space<semaphore_mem>>
    tpu.wait_dma2 semaphore(%408 : memref<!tpu.dma_semaphore, #tpu.memory_space<semaphore_mem>>) src(%404 : memref<576xf32, #tpu.memory_space<any>>) dst(%406 : memref<576xf32, #tpu.memory_space<any>>)
    %c0_i32_180 = arith.constant 0 : i32
    %c0_i32_181 = arith.constant 0 : i32
    %409 = tpu.memref_slice %arg2[%87, %c0_i32_181] : memref<512x36xf32, #tpu.memory_space<any>> -> memref<1x36xf32, #tpu.memory_space<any>>
    %410 = tpu.memref_squeeze %409 : memref<1x36xf32, #tpu.memory_space<any>> -> memref<36xf32, #tpu.memory_space<any>>
    %c0_i32_182 = arith.constant 0 : i32
    %411 = tpu.memref_slice %arg5[%85, %c0_i32_182] : memref<512x36xf32, #tpu.memory_space<any>> -> memref<1x36xf32, #tpu.memory_space<any>>
    %412 = tpu.memref_squeeze %411 : memref<1x36xf32, #tpu.memory_space<any>> -> memref<36xf32, #tpu.memory_space<any>>
    %413 = tpu.memref_slice %arg8[%c0_i32_180] : memref<3x!tpu.dma_semaphore, #tpu.memory_space<semaphore_mem>> -> memref<1x!tpu.dma_semaphore, #tpu.memory_space<semaphore_mem>>
    %414 = tpu.memref_squeeze %413 : memref<1x!tpu.dma_semaphore, #tpu.memory_space<semaphore_mem>> -> memref<!tpu.dma_semaphore, #tpu.memory_space<semaphore_mem>>
    tpu.wait_dma2 semaphore(%414 : memref<!tpu.dma_semaphore, #tpu.memory_space<semaphore_mem>>) src(%410 : memref<36xf32, #tpu.memory_space<any>>) dst(%412 : memref<36xf32, #tpu.memory_space<any>>)
    %c1_i32_183 = arith.constant 1 : i32
    %c0_i32_184 = arith.constant 0 : i32
    %415 = tpu.memref_slice %arg3[%87, %c0_i32_184] : memref<512x144xf32, #tpu.memory_space<any>> -> memref<1x144xf32, #tpu.memory_space<any>>
    %416 = tpu.memref_squeeze %415 : memref<1x144xf32, #tpu.memory_space<any>> -> memref<144xf32, #tpu.memory_space<any>>
    %c0_i32_185 = arith.constant 0 : i32
    %417 = tpu.memref_slice %arg6[%85, %c0_i32_185] : memref<512x144xf32, #tpu.memory_space<any>> -> memref<1x144xf32, #tpu.memory_space<any>>
    %418 = tpu.memref_squeeze %417 : memref<1x144xf32, #tpu.memory_space<any>> -> memref<144xf32, #tpu.memory_space<any>>
    %419 = tpu.memref_slice %arg8[%c1_i32_183] : memref<3x!tpu.dma_semaphore, #tpu.memory_space<semaphore_mem>> -> memref<1x!tpu.dma_semaphore, #tpu.memory_space<semaphore_mem>>
    %420 = tpu.memref_squeeze %419 : memref<1x!tpu.dma_semaphore, #tpu.memory_space<semaphore_mem>> -> memref<!tpu.dma_semaphore, #tpu.memory_space<semaphore_mem>>
    tpu.wait_dma2 semaphore(%420 : memref<!tpu.dma_semaphore, #tpu.memory_space<semaphore_mem>>) src(%416 : memref<144xf32, #tpu.memory_space<any>>) dst(%418 : memref<144xf32, #tpu.memory_space<any>>)
    %c2_i32_186 = arith.constant 2 : i32
    %c0_i32_187 = arith.constant 0 : i32
    %421 = tpu.memref_slice %arg4[%87, %c0_i32_187] : memref<512x576xf32, #tpu.memory_space<any>> -> memref<1x576xf32, #tpu.memory_space<any>>
    %422 = tpu.memref_squeeze %421 : memref<1x576xf32, #tpu.memory_space<any>> -> memref<576xf32, #tpu.memory_space<any>>
    %c0_i32_188 = arith.constant 0 : i32
    %423 = tpu.memref_slice %arg7[%85, %c0_i32_188] : memref<512x576xf32, #tpu.memory_space<any>> -> memref<1x576xf32, #tpu.memory_space<any>>
    %424 = tpu.memref_squeeze %423 : memref<1x576xf32, #tpu.memory_space<any>> -> memref<576xf32, #tpu.memory_space<any>>
    %425 = tpu.memref_slice %arg8[%c2_i32_186] : memref<3x!tpu.dma_semaphore, #tpu.memory_space<semaphore_mem>> -> memref<1x!tpu.dma_semaphore, #tpu.memory_space<semaphore_mem>>
    %426 = tpu.memref_squeeze %425 : memref<1x!tpu.dma_semaphore, #tpu.memory_space<semaphore_mem>> -> memref<!tpu.dma_semaphore, #tpu.memory_space<semaphore_mem>>
    tpu.wait_dma2 semaphore(%426 : memref<!tpu.dma_semaphore, #tpu.memory_space<semaphore_mem>>) src(%422 : memref<576xf32, #tpu.memory_space<any>>) dst(%424 : memref<576xf32, #tpu.memory_space<any>>)
    %c0_i32_189 = arith.constant 0 : i32
    %c0_i32_190 = arith.constant 0 : i32
    %427 = tpu.memref_slice %arg2[%108, %c0_i32_190] : memref<512x36xf32, #tpu.memory_space<any>> -> memref<1x36xf32, #tpu.memory_space<any>>
    %428 = tpu.memref_squeeze %427 : memref<1x36xf32, #tpu.memory_space<any>> -> memref<36xf32, #tpu.memory_space<any>>
    %c0_i32_191 = arith.constant 0 : i32
    %429 = tpu.memref_slice %arg5[%106, %c0_i32_191] : memref<512x36xf32, #tpu.memory_space<any>> -> memref<1x36xf32, #tpu.memory_space<any>>
    %430 = tpu.memref_squeeze %429 : memref<1x36xf32, #tpu.memory_space<any>> -> memref<36xf32, #tpu.memory_space<any>>
    %431 = tpu.memref_slice %arg8[%c0_i32_189] : memref<3x!tpu.dma_semaphore, #tpu.memory_space<semaphore_mem>> -> memref<1x!tpu.dma_semaphore, #tpu.memory_space<semaphore_mem>>
    %432 = tpu.memref_squeeze %431 : memref<1x!tpu.dma_semaphore, #tpu.memory_space<semaphore_mem>> -> memref<!tpu.dma_semaphore, #tpu.memory_space<semaphore_mem>>
    tpu.wait_dma2 semaphore(%432 : memref<!tpu.dma_semaphore, #tpu.memory_space<semaphore_mem>>) src(%428 : memref<36xf32, #tpu.memory_space<any>>) dst(%430 : memref<36xf32, #tpu.memory_space<any>>)
    %c1_i32_192 = arith.constant 1 : i32
    %c0_i32_193 = arith.constant 0 : i32
    %433 = tpu.memref_slice %arg3[%108, %c0_i32_193] : memref<512x144xf32, #tpu.memory_space<any>> -> memref<1x144xf32, #tpu.memory_space<any>>
    %434 = tpu.memref_squeeze %433 : memref<1x144xf32, #tpu.memory_space<any>> -> memref<144xf32, #tpu.memory_space<any>>
    %c0_i32_194 = arith.constant 0 : i32
    %435 = tpu.memref_slice %arg6[%106, %c0_i32_194] : memref<512x144xf32, #tpu.memory_space<any>> -> memref<1x144xf32, #tpu.memory_space<any>>
    %436 = tpu.memref_squeeze %435 : memref<1x144xf32, #tpu.memory_space<any>> -> memref<144xf32, #tpu.memory_space<any>>
    %437 = tpu.memref_slice %arg8[%c1_i32_192] : memref<3x!tpu.dma_semaphore, #tpu.memory_space<semaphore_mem>> -> memref<1x!tpu.dma_semaphore, #tpu.memory_space<semaphore_mem>>
    %438 = tpu.memref_squeeze %437 : memref<1x!tpu.dma_semaphore, #tpu.memory_space<semaphore_mem>> -> memref<!tpu.dma_semaphore, #tpu.memory_space<semaphore_mem>>
    tpu.wait_dma2 semaphore(%438 : memref<!tpu.dma_semaphore, #tpu.memory_space<semaphore_mem>>) src(%434 : memref<144xf32, #tpu.memory_space<any>>) dst(%436 : memref<144xf32, #tpu.memory_space<any>>)
    %c2_i32_195 = arith.constant 2 : i32
    %c0_i32_196 = arith.constant 0 : i32
    %439 = tpu.memref_slice %arg4[%108, %c0_i32_196] : memref<512x576xf32, #tpu.memory_space<any>> -> memref<1x576xf32, #tpu.memory_space<any>>
    %440 = tpu.memref_squeeze %439 : memref<1x576xf32, #tpu.memory_space<any>> -> memref<576xf32, #tpu.memory_space<any>>
    %c0_i32_197 = arith.constant 0 : i32
    %441 = tpu.memref_slice %arg7[%106, %c0_i32_197] : memref<512x576xf32, #tpu.memory_space<any>> -> memref<1x576xf32, #tpu.memory_space<any>>
    %442 = tpu.memref_squeeze %441 : memref<1x576xf32, #tpu.memory_space<any>> -> memref<576xf32, #tpu.memory_space<any>>
    %443 = tpu.memref_slice %arg8[%c2_i32_195] : memref<3x!tpu.dma_semaphore, #tpu.memory_space<semaphore_mem>> -> memref<1x!tpu.dma_semaphore, #tpu.memory_space<semaphore_mem>>
    %444 = tpu.memref_squeeze %443 : memref<1x!tpu.dma_semaphore, #tpu.memory_space<semaphore_mem>> -> memref<!tpu.dma_semaphore, #tpu.memory_space<semaphore_mem>>
    tpu.wait_dma2 semaphore(%444 : memref<!tpu.dma_semaphore, #tpu.memory_space<semaphore_mem>>) src(%440 : memref<576xf32, #tpu.memory_space<any>>) dst(%442 : memref<576xf32, #tpu.memory_space<any>>)
    %c0_i32_198 = arith.constant 0 : i32
    %c0_i32_199 = arith.constant 0 : i32
    %445 = tpu.memref_slice %arg2[%129, %c0_i32_199] : memref<512x36xf32, #tpu.memory_space<any>> -> memref<1x36xf32, #tpu.memory_space<any>>
    %446 = tpu.memref_squeeze %445 : memref<1x36xf32, #tpu.memory_space<any>> -> memref<36xf32, #tpu.memory_space<any>>
    %c0_i32_200 = arith.constant 0 : i32
    %447 = tpu.memref_slice %arg5[%127, %c0_i32_200] : memref<512x36xf32, #tpu.memory_space<any>> -> memref<1x36xf32, #tpu.memory_space<any>>
    %448 = tpu.memref_squeeze %447 : memref<1x36xf32, #tpu.memory_space<any>> -> memref<36xf32, #tpu.memory_space<any>>
    %449 = tpu.memref_slice %arg8[%c0_i32_198] : memref<3x!tpu.dma_semaphore, #tpu.memory_space<semaphore_mem>> -> memref<1x!tpu.dma_semaphore, #tpu.memory_space<semaphore_mem>>
    %450 = tpu.memref_squeeze %449 : memref<1x!tpu.dma_semaphore, #tpu.memory_space<semaphore_mem>> -> memref<!tpu.dma_semaphore, #tpu.memory_space<semaphore_mem>>
    tpu.wait_dma2 semaphore(%450 : memref<!tpu.dma_semaphore, #tpu.memory_space<semaphore_mem>>) src(%446 : memref<36xf32, #tpu.memory_space<any>>) dst(%448 : memref<36xf32, #tpu.memory_space<any>>)
    %c1_i32_201 = arith.constant 1 : i32
    %c0_i32_202 = arith.constant 0 : i32
    %451 = tpu.memref_slice %arg3[%129, %c0_i32_202] : memref<512x144xf32, #tpu.memory_space<any>> -> memref<1x144xf32, #tpu.memory_space<any>>
    %452 = tpu.memref_squeeze %451 : memref<1x144xf32, #tpu.memory_space<any>> -> memref<144xf32, #tpu.memory_space<any>>
    %c0_i32_203 = arith.constant 0 : i32
    %453 = tpu.memref_slice %arg6[%127, %c0_i32_203] : memref<512x144xf32, #tpu.memory_space<any>> -> memref<1x144xf32, #tpu.memory_space<any>>
    %454 = tpu.memref_squeeze %453 : memref<1x144xf32, #tpu.memory_space<any>> -> memref<144xf32, #tpu.memory_space<any>>
    %455 = tpu.memref_slice %arg8[%c1_i32_201] : memref<3x!tpu.dma_semaphore, #tpu.memory_space<semaphore_mem>> -> memref<1x!tpu.dma_semaphore, #tpu.memory_space<semaphore_mem>>
    %456 = tpu.memref_squeeze %455 : memref<1x!tpu.dma_semaphore, #tpu.memory_space<semaphore_mem>> -> memref<!tpu.dma_semaphore, #tpu.memory_space<semaphore_mem>>
    tpu.wait_dma2 semaphore(%456 : memref<!tpu.dma_semaphore, #tpu.memory_space<semaphore_mem>>) src(%452 : memref<144xf32, #tpu.memory_space<any>>) dst(%454 : memref<144xf32, #tpu.memory_space<any>>)
    %c2_i32_204 = arith.constant 2 : i32
    %c0_i32_205 = arith.constant 0 : i32
    %457 = tpu.memref_slice %arg4[%129, %c0_i32_205] : memref<512x576xf32, #tpu.memory_space<any>> -> memref<1x576xf32, #tpu.memory_space<any>>
    %458 = tpu.memref_squeeze %457 : memref<1x576xf32, #tpu.memory_space<any>> -> memref<576xf32, #tpu.memory_space<any>>
    %c0_i32_206 = arith.constant 0 : i32
    %459 = tpu.memref_slice %arg7[%127, %c0_i32_206] : memref<512x576xf32, #tpu.memory_space<any>> -> memref<1x576xf32, #tpu.memory_space<any>>
    %460 = tpu.memref_squeeze %459 : memref<1x576xf32, #tpu.memory_space<any>> -> memref<576xf32, #tpu.memory_space<any>>
    %461 = tpu.memref_slice %arg8[%c2_i32_204] : memref<3x!tpu.dma_semaphore, #tpu.memory_space<semaphore_mem>> -> memref<1x!tpu.dma_semaphore, #tpu.memory_space<semaphore_mem>>
    %462 = tpu.memref_squeeze %461 : memref<1x!tpu.dma_semaphore, #tpu.memory_space<semaphore_mem>> -> memref<!tpu.dma_semaphore, #tpu.memory_space<semaphore_mem>>
    tpu.wait_dma2 semaphore(%462 : memref<!tpu.dma_semaphore, #tpu.memory_space<semaphore_mem>>) src(%458 : memref<576xf32, #tpu.memory_space<any>>) dst(%460 : memref<576xf32, #tpu.memory_space<any>>)
    %c0_i32_207 = arith.constant 0 : i32
    %c0_i32_208 = arith.constant 0 : i32
    %463 = tpu.memref_slice %arg2[%150, %c0_i32_208] : memref<512x36xf32, #tpu.memory_space<any>> -> memref<1x36xf32, #tpu.memory_space<any>>
    %464 = tpu.memref_squeeze %463 : memref<1x36xf32, #tpu.memory_space<any>> -> memref<36xf32, #tpu.memory_space<any>>
    %c0_i32_209 = arith.constant 0 : i32
    %465 = tpu.memref_slice %arg5[%148, %c0_i32_209] : memref<512x36xf32, #tpu.memory_space<any>> -> memref<1x36xf32, #tpu.memory_space<any>>
    %466 = tpu.memref_squeeze %465 : memref<1x36xf32, #tpu.memory_space<any>> -> memref<36xf32, #tpu.memory_space<any>>
    %467 = tpu.memref_slice %arg8[%c0_i32_207] : memref<3x!tpu.dma_semaphore, #tpu.memory_space<semaphore_mem>> -> memref<1x!tpu.dma_semaphore, #tpu.memory_space<semaphore_mem>>
    %468 = tpu.memref_squeeze %467 : memref<1x!tpu.dma_semaphore, #tpu.memory_space<semaphore_mem>> -> memref<!tpu.dma_semaphore, #tpu.memory_space<semaphore_mem>>
    tpu.wait_dma2 semaphore(%468 : memref<!tpu.dma_semaphore, #tpu.memory_space<semaphore_mem>>) src(%464 : memref<36xf32, #tpu.memory_space<any>>) dst(%466 : memref<36xf32, #tpu.memory_space<any>>)
    %c1_i32_210 = arith.constant 1 : i32
    %c0_i32_211 = arith.constant 0 : i32
    %469 = tpu.memref_slice %arg3[%150, %c0_i32_211] : memref<512x144xf32, #tpu.memory_space<any>> -> memref<1x144xf32, #tpu.memory_space<any>>
    %470 = tpu.memref_squeeze %469 : memref<1x144xf32, #tpu.memory_space<any>> -> memref<144xf32, #tpu.memory_space<any>>
    %c0_i32_212 = arith.constant 0 : i32
    %471 = tpu.memref_slice %arg6[%148, %c0_i32_212] : memref<512x144xf32, #tpu.memory_space<any>> -> memref<1x144xf32, #tpu.memory_space<any>>
    %472 = tpu.memref_squeeze %471 : memref<1x144xf32, #tpu.memory_space<any>> -> memref<144xf32, #tpu.memory_space<any>>
    %473 = tpu.memref_slice %arg8[%c1_i32_210] : memref<3x!tpu.dma_semaphore, #tpu.memory_space<semaphore_mem>> -> memref<1x!tpu.dma_semaphore, #tpu.memory_space<semaphore_mem>>
    %474 = tpu.memref_squeeze %473 : memref<1x!tpu.dma_semaphore, #tpu.memory_space<semaphore_mem>> -> memref<!tpu.dma_semaphore, #tpu.memory_space<semaphore_mem>>
    tpu.wait_dma2 semaphore(%474 : memref<!tpu.dma_semaphore, #tpu.memory_space<semaphore_mem>>) src(%470 : memref<144xf32, #tpu.memory_space<any>>) dst(%472 : memref<144xf32, #tpu.memory_space<any>>)
    %c2_i32_213 = arith.constant 2 : i32
    %c0_i32_214 = arith.constant 0 : i32
    %475 = tpu.memref_slice %arg4[%150, %c0_i32_214] : memref<512x576xf32, #tpu.memory_space<any>> -> memref<1x576xf32, #tpu.memory_space<any>>
    %476 = tpu.memref_squeeze %475 : memref<1x576xf32, #tpu.memory_space<any>> -> memref<576xf32, #tpu.memory_space<any>>
    %c0_i32_215 = arith.constant 0 : i32
    %477 = tpu.memref_slice %arg7[%148, %c0_i32_215] : memref<512x576xf32, #tpu.memory_space<any>> -> memref<1x576xf32, #tpu.memory_space<any>>
    %478 = tpu.memref_squeeze %477 : memref<1x576xf32, #tpu.memory_space<any>> -> memref<576xf32, #tpu.memory_space<any>>
    %479 = tpu.memref_slice %arg8[%c2_i32_213] : memref<3x!tpu.dma_semaphore, #tpu.memory_space<semaphore_mem>> -> memref<1x!tpu.dma_semaphore, #tpu.memory_space<semaphore_mem>>
    %480 = tpu.memref_squeeze %479 : memref<1x!tpu.dma_semaphore, #tpu.memory_space<semaphore_mem>> -> memref<!tpu.dma_semaphore, #tpu.memory_space<semaphore_mem>>
    tpu.wait_dma2 semaphore(%480 : memref<!tpu.dma_semaphore, #tpu.memory_space<semaphore_mem>>) src(%476 : memref<576xf32, #tpu.memory_space<any>>) dst(%478 : memref<576xf32, #tpu.memory_space<any>>)
    %c0_i32_216 = arith.constant 0 : i32
    %c0_i32_217 = arith.constant 0 : i32
    %481 = tpu.memref_slice %arg2[%171, %c0_i32_217] : memref<512x36xf32, #tpu.memory_space<any>> -> memref<1x36xf32, #tpu.memory_space<any>>
    %482 = tpu.memref_squeeze %481 : memref<1x36xf32, #tpu.memory_space<any>> -> memref<36xf32, #tpu.memory_space<any>>
    %c0_i32_218 = arith.constant 0 : i32
    %483 = tpu.memref_slice %arg5[%169, %c0_i32_218] : memref<512x36xf32, #tpu.memory_space<any>> -> memref<1x36xf32, #tpu.memory_space<any>>
    %484 = tpu.memref_squeeze %483 : memref<1x36xf32, #tpu.memory_space<any>> -> memref<36xf32, #tpu.memory_space<any>>
    %485 = tpu.memref_slice %arg8[%c0_i32_216] : memref<3x!tpu.dma_semaphore, #tpu.memory_space<semaphore_mem>> -> memref<1x!tpu.dma_semaphore, #tpu.memory_space<semaphore_mem>>
    %486 = tpu.memref_squeeze %485 : memref<1x!tpu.dma_semaphore, #tpu.memory_space<semaphore_mem>> -> memref<!tpu.dma_semaphore, #tpu.memory_space<semaphore_mem>>
    tpu.wait_dma2 semaphore(%486 : memref<!tpu.dma_semaphore, #tpu.memory_space<semaphore_mem>>) src(%482 : memref<36xf32, #tpu.memory_space<any>>) dst(%484 : memref<36xf32, #tpu.memory_space<any>>)
    %c1_i32_219 = arith.constant 1 : i32
    %c0_i32_220 = arith.constant 0 : i32
    %487 = tpu.memref_slice %arg3[%171, %c0_i32_220] : memref<512x144xf32, #tpu.memory_space<any>> -> memref<1x144xf32, #tpu.memory_space<any>>
    %488 = tpu.memref_squeeze %487 : memref<1x144xf32, #tpu.memory_space<any>> -> memref<144xf32, #tpu.memory_space<any>>
    %c0_i32_221 = arith.constant 0 : i32
    %489 = tpu.memref_slice %arg6[%169, %c0_i32_221] : memref<512x144xf32, #tpu.memory_space<any>> -> memref<1x144xf32, #tpu.memory_space<any>>
    %490 = tpu.memref_squeeze %489 : memref<1x144xf32, #tpu.memory_space<any>> -> memref<144xf32, #tpu.memory_space<any>>
    %491 = tpu.memref_slice %arg8[%c1_i32_219] : memref<3x!tpu.dma_semaphore, #tpu.memory_space<semaphore_mem>> -> memref<1x!tpu.dma_semaphore, #tpu.memory_space<semaphore_mem>>
    %492 = tpu.memref_squeeze %491 : memref<1x!tpu.dma_semaphore, #tpu.memory_space<semaphore_mem>> -> memref<!tpu.dma_semaphore, #tpu.memory_space<semaphore_mem>>
    tpu.wait_dma2 semaphore(%492 : memref<!tpu.dma_semaphore, #tpu.memory_space<semaphore_mem>>) src(%488 : memref<144xf32, #tpu.memory_space<any>>) dst(%490 : memref<144xf32, #tpu.memory_space<any>>)
    %c2_i32_222 = arith.constant 2 : i32
    %c0_i32_223 = arith.constant 0 : i32
    %493 = tpu.memref_slice %arg4[%171, %c0_i32_223] : memref<512x576xf32, #tpu.memory_space<any>> -> memref<1x576xf32, #tpu.memory_space<any>>
    %494 = tpu.memref_squeeze %493 : memref<1x576xf32, #tpu.memory_space<any>> -> memref<576xf32, #tpu.memory_space<any>>
    %c0_i32_224 = arith.constant 0 : i32
    %495 = tpu.memref_slice %arg7[%169, %c0_i32_224] : memref<512x576xf32, #tpu.memory_space<any>> -> memref<1x576xf32, #tpu.memory_space<any>>
    %496 = tpu.memref_squeeze %495 : memref<1x576xf32, #tpu.memory_space<any>> -> memref<576xf32, #tpu.memory_space<any>>
    %497 = tpu.memref_slice %arg8[%c2_i32_222] : memref<3x!tpu.dma_semaphore, #tpu.memory_space<semaphore_mem>> -> memref<1x!tpu.dma_semaphore, #tpu.memory_space<semaphore_mem>>
    %498 = tpu.memref_squeeze %497 : memref<1x!tpu.dma_semaphore, #tpu.memory_space<semaphore_mem>> -> memref<!tpu.dma_semaphore, #tpu.memory_space<semaphore_mem>>
    tpu.wait_dma2 semaphore(%498 : memref<!tpu.dma_semaphore, #tpu.memory_space<semaphore_mem>>) src(%494 : memref<576xf32, #tpu.memory_space<any>>) dst(%496 : memref<576xf32, #tpu.memory_space<any>>)
    %c0_i32_225 = arith.constant 0 : i32
    %c0_i32_226 = arith.constant 0 : i32
    %499 = tpu.memref_slice %arg2[%192, %c0_i32_226] : memref<512x36xf32, #tpu.memory_space<any>> -> memref<1x36xf32, #tpu.memory_space<any>>
    %500 = tpu.memref_squeeze %499 : memref<1x36xf32, #tpu.memory_space<any>> -> memref<36xf32, #tpu.memory_space<any>>
    %c0_i32_227 = arith.constant 0 : i32
    %501 = tpu.memref_slice %arg5[%190, %c0_i32_227] : memref<512x36xf32, #tpu.memory_space<any>> -> memref<1x36xf32, #tpu.memory_space<any>>
    %502 = tpu.memref_squeeze %501 : memref<1x36xf32, #tpu.memory_space<any>> -> memref<36xf32, #tpu.memory_space<any>>
    %503 = tpu.memref_slice %arg8[%c0_i32_225] : memref<3x!tpu.dma_semaphore, #tpu.memory_space<semaphore_mem>> -> memref<1x!tpu.dma_semaphore, #tpu.memory_space<semaphore_mem>>
    %504 = tpu.memref_squeeze %503 : memref<1x!tpu.dma_semaphore, #tpu.memory_space<semaphore_mem>> -> memref<!tpu.dma_semaphore, #tpu.memory_space<semaphore_mem>>
    tpu.wait_dma2 semaphore(%504 : memref<!tpu.dma_semaphore, #tpu.memory_space<semaphore_mem>>) src(%500 : memref<36xf32, #tpu.memory_space<any>>) dst(%502 : memref<36xf32, #tpu.memory_space<any>>)
    %c1_i32_228 = arith.constant 1 : i32
    %c0_i32_229 = arith.constant 0 : i32
    %505 = tpu.memref_slice %arg3[%192, %c0_i32_229] : memref<512x144xf32, #tpu.memory_space<any>> -> memref<1x144xf32, #tpu.memory_space<any>>
    %506 = tpu.memref_squeeze %505 : memref<1x144xf32, #tpu.memory_space<any>> -> memref<144xf32, #tpu.memory_space<any>>
    %c0_i32_230 = arith.constant 0 : i32
    %507 = tpu.memref_slice %arg6[%190, %c0_i32_230] : memref<512x144xf32, #tpu.memory_space<any>> -> memref<1x144xf32, #tpu.memory_space<any>>
    %508 = tpu.memref_squeeze %507 : memref<1x144xf32, #tpu.memory_space<any>> -> memref<144xf32, #tpu.memory_space<any>>
    %509 = tpu.memref_slice %arg8[%c1_i32_228] : memref<3x!tpu.dma_semaphore, #tpu.memory_space<semaphore_mem>> -> memref<1x!tpu.dma_semaphore, #tpu.memory_space<semaphore_mem>>
    %510 = tpu.memref_squeeze %509 : memref<1x!tpu.dma_semaphore, #tpu.memory_space<semaphore_mem>> -> memref<!tpu.dma_semaphore, #tpu.memory_space<semaphore_mem>>
    tpu.wait_dma2 semaphore(%510 : memref<!tpu.dma_semaphore, #tpu.memory_space<semaphore_mem>>) src(%506 : memref<144xf32, #tpu.memory_space<any>>) dst(%508 : memref<144xf32, #tpu.memory_space<any>>)
    %c2_i32_231 = arith.constant 2 : i32
    %c0_i32_232 = arith.constant 0 : i32
    %511 = tpu.memref_slice %arg4[%192, %c0_i32_232] : memref<512x576xf32, #tpu.memory_space<any>> -> memref<1x576xf32, #tpu.memory_space<any>>
    %512 = tpu.memref_squeeze %511 : memref<1x576xf32, #tpu.memory_space<any>> -> memref<576xf32, #tpu.memory_space<any>>
    %c0_i32_233 = arith.constant 0 : i32
    %513 = tpu.memref_slice %arg7[%190, %c0_i32_233] : memref<512x576xf32, #tpu.memory_space<any>> -> memref<1x576xf32, #tpu.memory_space<any>>
    %514 = tpu.memref_squeeze %513 : memref<1x576xf32, #tpu.memory_space<any>> -> memref<576xf32, #tpu.memory_space<any>>
    %515 = tpu.memref_slice %arg8[%c2_i32_231] : memref<3x!tpu.dma_semaphore, #tpu.memory_space<semaphore_mem>> -> memref<1x!tpu.dma_semaphore, #tpu.memory_space<semaphore_mem>>
    %516 = tpu.memref_squeeze %515 : memref<1x!tpu.dma_semaphore, #tpu.memory_space<semaphore_mem>> -> memref<!tpu.dma_semaphore, #tpu.memory_space<semaphore_mem>>
    tpu.wait_dma2 semaphore(%516 : memref<!tpu.dma_semaphore, #tpu.memory_space<semaphore_mem>>) src(%512 : memref<576xf32, #tpu.memory_space<any>>) dst(%514 : memref<576xf32, #tpu.memory_space<any>>)
    %c0_i32_234 = arith.constant 0 : i32
    %c0_i32_235 = arith.constant 0 : i32
    %517 = tpu.memref_slice %arg2[%213, %c0_i32_235] : memref<512x36xf32, #tpu.memory_space<any>> -> memref<1x36xf32, #tpu.memory_space<any>>
    %518 = tpu.memref_squeeze %517 : memref<1x36xf32, #tpu.memory_space<any>> -> memref<36xf32, #tpu.memory_space<any>>
    %c0_i32_236 = arith.constant 0 : i32
    %519 = tpu.memref_slice %arg5[%211, %c0_i32_236] : memref<512x36xf32, #tpu.memory_space<any>> -> memref<1x36xf32, #tpu.memory_space<any>>
    %520 = tpu.memref_squeeze %519 : memref<1x36xf32, #tpu.memory_space<any>> -> memref<36xf32, #tpu.memory_space<any>>
    %521 = tpu.memref_slice %arg8[%c0_i32_234] : memref<3x!tpu.dma_semaphore, #tpu.memory_space<semaphore_mem>> -> memref<1x!tpu.dma_semaphore, #tpu.memory_space<semaphore_mem>>
    %522 = tpu.memref_squeeze %521 : memref<1x!tpu.dma_semaphore, #tpu.memory_space<semaphore_mem>> -> memref<!tpu.dma_semaphore, #tpu.memory_space<semaphore_mem>>
    tpu.wait_dma2 semaphore(%522 : memref<!tpu.dma_semaphore, #tpu.memory_space<semaphore_mem>>) src(%518 : memref<36xf32, #tpu.memory_space<any>>) dst(%520 : memref<36xf32, #tpu.memory_space<any>>)
    %c1_i32_237 = arith.constant 1 : i32
    %c0_i32_238 = arith.constant 0 : i32
    %523 = tpu.memref_slice %arg3[%213, %c0_i32_238] : memref<512x144xf32, #tpu.memory_space<any>> -> memref<1x144xf32, #tpu.memory_space<any>>
    %524 = tpu.memref_squeeze %523 : memref<1x144xf32, #tpu.memory_space<any>> -> memref<144xf32, #tpu.memory_space<any>>
    %c0_i32_239 = arith.constant 0 : i32
    %525 = tpu.memref_slice %arg6[%211, %c0_i32_239] : memref<512x144xf32, #tpu.memory_space<any>> -> memref<1x144xf32, #tpu.memory_space<any>>
    %526 = tpu.memref_squeeze %525 : memref<1x144xf32, #tpu.memory_space<any>> -> memref<144xf32, #tpu.memory_space<any>>
    %527 = tpu.memref_slice %arg8[%c1_i32_237] : memref<3x!tpu.dma_semaphore, #tpu.memory_space<semaphore_mem>> -> memref<1x!tpu.dma_semaphore, #tpu.memory_space<semaphore_mem>>
    %528 = tpu.memref_squeeze %527 : memref<1x!tpu.dma_semaphore, #tpu.memory_space<semaphore_mem>> -> memref<!tpu.dma_semaphore, #tpu.memory_space<semaphore_mem>>
    tpu.wait_dma2 semaphore(%528 : memref<!tpu.dma_semaphore, #tpu.memory_space<semaphore_mem>>) src(%524 : memref<144xf32, #tpu.memory_space<any>>) dst(%526 : memref<144xf32, #tpu.memory_space<any>>)
    %c2_i32_240 = arith.constant 2 : i32
    %c0_i32_241 = arith.constant 0 : i32
    %529 = tpu.memref_slice %arg4[%213, %c0_i32_241] : memref<512x576xf32, #tpu.memory_space<any>> -> memref<1x576xf32, #tpu.memory_space<any>>
    %530 = tpu.memref_squeeze %529 : memref<1x576xf32, #tpu.memory_space<any>> -> memref<576xf32, #tpu.memory_space<any>>
    %c0_i32_242 = arith.constant 0 : i32
    %531 = tpu.memref_slice %arg7[%211, %c0_i32_242] : memref<512x576xf32, #tpu.memory_space<any>> -> memref<1x576xf32, #tpu.memory_space<any>>
    %532 = tpu.memref_squeeze %531 : memref<1x576xf32, #tpu.memory_space<any>> -> memref<576xf32, #tpu.memory_space<any>>
    %533 = tpu.memref_slice %arg8[%c2_i32_240] : memref<3x!tpu.dma_semaphore, #tpu.memory_space<semaphore_mem>> -> memref<1x!tpu.dma_semaphore, #tpu.memory_space<semaphore_mem>>
    %534 = tpu.memref_squeeze %533 : memref<1x!tpu.dma_semaphore, #tpu.memory_space<semaphore_mem>> -> memref<!tpu.dma_semaphore, #tpu.memory_space<semaphore_mem>>
    tpu.wait_dma2 semaphore(%534 : memref<!tpu.dma_semaphore, #tpu.memory_space<semaphore_mem>>) src(%530 : memref<576xf32, #tpu.memory_space<any>>) dst(%532 : memref<576xf32, #tpu.memory_space<any>>)
    %c0_i32_243 = arith.constant 0 : i32
    %c0_i32_244 = arith.constant 0 : i32
    %535 = tpu.memref_slice %arg2[%234, %c0_i32_244] : memref<512x36xf32, #tpu.memory_space<any>> -> memref<1x36xf32, #tpu.memory_space<any>>
    %536 = tpu.memref_squeeze %535 : memref<1x36xf32, #tpu.memory_space<any>> -> memref<36xf32, #tpu.memory_space<any>>
    %c0_i32_245 = arith.constant 0 : i32
    %537 = tpu.memref_slice %arg5[%232, %c0_i32_245] : memref<512x36xf32, #tpu.memory_space<any>> -> memref<1x36xf32, #tpu.memory_space<any>>
    %538 = tpu.memref_squeeze %537 : memref<1x36xf32, #tpu.memory_space<any>> -> memref<36xf32, #tpu.memory_space<any>>
    %539 = tpu.memref_slice %arg8[%c0_i32_243] : memref<3x!tpu.dma_semaphore, #tpu.memory_space<semaphore_mem>> -> memref<1x!tpu.dma_semaphore, #tpu.memory_space<semaphore_mem>>
    %540 = tpu.memref_squeeze %539 : memref<1x!tpu.dma_semaphore, #tpu.memory_space<semaphore_mem>> -> memref<!tpu.dma_semaphore, #tpu.memory_space<semaphore_mem>>
    tpu.wait_dma2 semaphore(%540 : memref<!tpu.dma_semaphore, #tpu.memory_space<semaphore_mem>>) src(%536 : memref<36xf32, #tpu.memory_space<any>>) dst(%538 : memref<36xf32, #tpu.memory_space<any>>)
    %c1_i32_246 = arith.constant 1 : i32
    %c0_i32_247 = arith.constant 0 : i32
    %541 = tpu.memref_slice %arg3[%234, %c0_i32_247] : memref<512x144xf32, #tpu.memory_space<any>> -> memref<1x144xf32, #tpu.memory_space<any>>
    %542 = tpu.memref_squeeze %541 : memref<1x144xf32, #tpu.memory_space<any>> -> memref<144xf32, #tpu.memory_space<any>>
    %c0_i32_248 = arith.constant 0 : i32
    %543 = tpu.memref_slice %arg6[%232, %c0_i32_248] : memref<512x144xf32, #tpu.memory_space<any>> -> memref<1x144xf32, #tpu.memory_space<any>>
    %544 = tpu.memref_squeeze %543 : memref<1x144xf32, #tpu.memory_space<any>> -> memref<144xf32, #tpu.memory_space<any>>
    %545 = tpu.memref_slice %arg8[%c1_i32_246] : memref<3x!tpu.dma_semaphore, #tpu.memory_space<semaphore_mem>> -> memref<1x!tpu.dma_semaphore, #tpu.memory_space<semaphore_mem>>
    %546 = tpu.memref_squeeze %545 : memref<1x!tpu.dma_semaphore, #tpu.memory_space<semaphore_mem>> -> memref<!tpu.dma_semaphore, #tpu.memory_space<semaphore_mem>>
    tpu.wait_dma2 semaphore(%546 : memref<!tpu.dma_semaphore, #tpu.memory_space<semaphore_mem>>) src(%542 : memref<144xf32, #tpu.memory_space<any>>) dst(%544 : memref<144xf32, #tpu.memory_space<any>>)
    %c2_i32_249 = arith.constant 2 : i32
    %c0_i32_250 = arith.constant 0 : i32
    %547 = tpu.memref_slice %arg4[%234, %c0_i32_250] : memref<512x576xf32, #tpu.memory_space<any>> -> memref<1x576xf32, #tpu.memory_space<any>>
    %548 = tpu.memref_squeeze %547 : memref<1x576xf32, #tpu.memory_space<any>> -> memref<576xf32, #tpu.memory_space<any>>
    %c0_i32_251 = arith.constant 0 : i32
    %549 = tpu.memref_slice %arg7[%232, %c0_i32_251] : memref<512x576xf32, #tpu.memory_space<any>> -> memref<1x576xf32, #tpu.memory_space<any>>
    %550 = tpu.memref_squeeze %549 : memref<1x576xf32, #tpu.memory_space<any>> -> memref<576xf32, #tpu.memory_space<any>>
    %551 = tpu.memref_slice %arg8[%c2_i32_249] : memref<3x!tpu.dma_semaphore, #tpu.memory_space<semaphore_mem>> -> memref<1x!tpu.dma_semaphore, #tpu.memory_space<semaphore_mem>>
    %552 = tpu.memref_squeeze %551 : memref<1x!tpu.dma_semaphore, #tpu.memory_space<semaphore_mem>> -> memref<!tpu.dma_semaphore, #tpu.memory_space<semaphore_mem>>
    tpu.wait_dma2 semaphore(%552 : memref<!tpu.dma_semaphore, #tpu.memory_space<semaphore_mem>>) src(%548 : memref<576xf32, #tpu.memory_space<any>>) dst(%550 : memref<576xf32, #tpu.memory_space<any>>)
    %c0_i32_252 = arith.constant 0 : i32
    %c0_i32_253 = arith.constant 0 : i32
    %553 = tpu.memref_slice %arg2[%255, %c0_i32_253] : memref<512x36xf32, #tpu.memory_space<any>> -> memref<1x36xf32, #tpu.memory_space<any>>
    %554 = tpu.memref_squeeze %553 : memref<1x36xf32, #tpu.memory_space<any>> -> memref<36xf32, #tpu.memory_space<any>>
    %c0_i32_254 = arith.constant 0 : i32
    %555 = tpu.memref_slice %arg5[%253, %c0_i32_254] : memref<512x36xf32, #tpu.memory_space<any>> -> memref<1x36xf32, #tpu.memory_space<any>>
    %556 = tpu.memref_squeeze %555 : memref<1x36xf32, #tpu.memory_space<any>> -> memref<36xf32, #tpu.memory_space<any>>
    %557 = tpu.memref_slice %arg8[%c0_i32_252] : memref<3x!tpu.dma_semaphore, #tpu.memory_space<semaphore_mem>> -> memref<1x!tpu.dma_semaphore, #tpu.memory_space<semaphore_mem>>
    %558 = tpu.memref_squeeze %557 : memref<1x!tpu.dma_semaphore, #tpu.memory_space<semaphore_mem>> -> memref<!tpu.dma_semaphore, #tpu.memory_space<semaphore_mem>>
    tpu.wait_dma2 semaphore(%558 : memref<!tpu.dma_semaphore, #tpu.memory_space<semaphore_mem>>) src(%554 : memref<36xf32, #tpu.memory_space<any>>) dst(%556 : memref<36xf32, #tpu.memory_space<any>>)
    %c1_i32_255 = arith.constant 1 : i32
    %c0_i32_256 = arith.constant 0 : i32
    %559 = tpu.memref_slice %arg3[%255, %c0_i32_256] : memref<512x144xf32, #tpu.memory_space<any>> -> memref<1x144xf32, #tpu.memory_space<any>>
    %560 = tpu.memref_squeeze %559 : memref<1x144xf32, #tpu.memory_space<any>> -> memref<144xf32, #tpu.memory_space<any>>
    %c0_i32_257 = arith.constant 0 : i32
    %561 = tpu.memref_slice %arg6[%253, %c0_i32_257] : memref<512x144xf32, #tpu.memory_space<any>> -> memref<1x144xf32, #tpu.memory_space<any>>
    %562 = tpu.memref_squeeze %561 : memref<1x144xf32, #tpu.memory_space<any>> -> memref<144xf32, #tpu.memory_space<any>>
    %563 = tpu.memref_slice %arg8[%c1_i32_255] : memref<3x!tpu.dma_semaphore, #tpu.memory_space<semaphore_mem>> -> memref<1x!tpu.dma_semaphore, #tpu.memory_space<semaphore_mem>>
    %564 = tpu.memref_squeeze %563 : memref<1x!tpu.dma_semaphore, #tpu.memory_space<semaphore_mem>> -> memref<!tpu.dma_semaphore, #tpu.memory_space<semaphore_mem>>
    tpu.wait_dma2 semaphore(%564 : memref<!tpu.dma_semaphore, #tpu.memory_space<semaphore_mem>>) src(%560 : memref<144xf32, #tpu.memory_space<any>>) dst(%562 : memref<144xf32, #tpu.memory_space<any>>)
    %c2_i32_258 = arith.constant 2 : i32
    %c0_i32_259 = arith.constant 0 : i32
    %565 = tpu.memref_slice %arg4[%255, %c0_i32_259] : memref<512x576xf32, #tpu.memory_space<any>> -> memref<1x576xf32, #tpu.memory_space<any>>
    %566 = tpu.memref_squeeze %565 : memref<1x576xf32, #tpu.memory_space<any>> -> memref<576xf32, #tpu.memory_space<any>>
    %c0_i32_260 = arith.constant 0 : i32
    %567 = tpu.memref_slice %arg7[%253, %c0_i32_260] : memref<512x576xf32, #tpu.memory_space<any>> -> memref<1x576xf32, #tpu.memory_space<any>>
    %568 = tpu.memref_squeeze %567 : memref<1x576xf32, #tpu.memory_space<any>> -> memref<576xf32, #tpu.memory_space<any>>
    %569 = tpu.memref_slice %arg8[%c2_i32_258] : memref<3x!tpu.dma_semaphore, #tpu.memory_space<semaphore_mem>> -> memref<1x!tpu.dma_semaphore, #tpu.memory_space<semaphore_mem>>
    %570 = tpu.memref_squeeze %569 : memref<1x!tpu.dma_semaphore, #tpu.memory_space<semaphore_mem>> -> memref<!tpu.dma_semaphore, #tpu.memory_space<semaphore_mem>>
    tpu.wait_dma2 semaphore(%570 : memref<!tpu.dma_semaphore, #tpu.memory_space<semaphore_mem>>) src(%566 : memref<576xf32, #tpu.memory_space<any>>) dst(%568 : memref<576xf32, #tpu.memory_space<any>>)
    %c0_i32_261 = arith.constant 0 : i32
    %c0_i32_262 = arith.constant 0 : i32
    %571 = tpu.memref_slice %arg2[%276, %c0_i32_262] : memref<512x36xf32, #tpu.memory_space<any>> -> memref<1x36xf32, #tpu.memory_space<any>>
    %572 = tpu.memref_squeeze %571 : memref<1x36xf32, #tpu.memory_space<any>> -> memref<36xf32, #tpu.memory_space<any>>
    %c0_i32_263 = arith.constant 0 : i32
    %573 = tpu.memref_slice %arg5[%274, %c0_i32_263] : memref<512x36xf32, #tpu.memory_space<any>> -> memref<1x36xf32, #tpu.memory_space<any>>
    %574 = tpu.memref_squeeze %573 : memref<1x36xf32, #tpu.memory_space<any>> -> memref<36xf32, #tpu.memory_space<any>>
    %575 = tpu.memref_slice %arg8[%c0_i32_261] : memref<3x!tpu.dma_semaphore, #tpu.memory_space<semaphore_mem>> -> memref<1x!tpu.dma_semaphore, #tpu.memory_space<semaphore_mem>>
    %576 = tpu.memref_squeeze %575 : memref<1x!tpu.dma_semaphore, #tpu.memory_space<semaphore_mem>> -> memref<!tpu.dma_semaphore, #tpu.memory_space<semaphore_mem>>
    tpu.wait_dma2 semaphore(%576 : memref<!tpu.dma_semaphore, #tpu.memory_space<semaphore_mem>>) src(%572 : memref<36xf32, #tpu.memory_space<any>>) dst(%574 : memref<36xf32, #tpu.memory_space<any>>)
    %c1_i32_264 = arith.constant 1 : i32
    %c0_i32_265 = arith.constant 0 : i32
    %577 = tpu.memref_slice %arg3[%276, %c0_i32_265] : memref<512x144xf32, #tpu.memory_space<any>> -> memref<1x144xf32, #tpu.memory_space<any>>
    %578 = tpu.memref_squeeze %577 : memref<1x144xf32, #tpu.memory_space<any>> -> memref<144xf32, #tpu.memory_space<any>>
    %c0_i32_266 = arith.constant 0 : i32
    %579 = tpu.memref_slice %arg6[%274, %c0_i32_266] : memref<512x144xf32, #tpu.memory_space<any>> -> memref<1x144xf32, #tpu.memory_space<any>>
    %580 = tpu.memref_squeeze %579 : memref<1x144xf32, #tpu.memory_space<any>> -> memref<144xf32, #tpu.memory_space<any>>
    %581 = tpu.memref_slice %arg8[%c1_i32_264] : memref<3x!tpu.dma_semaphore, #tpu.memory_space<semaphore_mem>> -> memref<1x!tpu.dma_semaphore, #tpu.memory_space<semaphore_mem>>
    %582 = tpu.memref_squeeze %581 : memref<1x!tpu.dma_semaphore, #tpu.memory_space<semaphore_mem>> -> memref<!tpu.dma_semaphore, #tpu.memory_space<semaphore_mem>>
    tpu.wait_dma2 semaphore(%582 : memref<!tpu.dma_semaphore, #tpu.memory_space<semaphore_mem>>) src(%578 : memref<144xf32, #tpu.memory_space<any>>) dst(%580 : memref<144xf32, #tpu.memory_space<any>>)
    %c2_i32_267 = arith.constant 2 : i32
    %c0_i32_268 = arith.constant 0 : i32
    %583 = tpu.memref_slice %arg4[%276, %c0_i32_268] : memref<512x576xf32, #tpu.memory_space<any>> -> memref<1x576xf32, #tpu.memory_space<any>>
    %584 = tpu.memref_squeeze %583 : memref<1x576xf32, #tpu.memory_space<any>> -> memref<576xf32, #tpu.memory_space<any>>
    %c0_i32_269 = arith.constant 0 : i32
    %585 = tpu.memref_slice %arg7[%274, %c0_i32_269] : memref<512x576xf32, #tpu.memory_space<any>> -> memref<1x576xf32, #tpu.memory_space<any>>
    %586 = tpu.memref_squeeze %585 : memref<1x576xf32, #tpu.memory_space<any>> -> memref<576xf32, #tpu.memory_space<any>>
    %587 = tpu.memref_slice %arg8[%c2_i32_267] : memref<3x!tpu.dma_semaphore, #tpu.memory_space<semaphore_mem>> -> memref<1x!tpu.dma_semaphore, #tpu.memory_space<semaphore_mem>>
    %588 = tpu.memref_squeeze %587 : memref<1x!tpu.dma_semaphore, #tpu.memory_space<semaphore_mem>> -> memref<!tpu.dma_semaphore, #tpu.memory_space<semaphore_mem>>
    tpu.wait_dma2 semaphore(%588 : memref<!tpu.dma_semaphore, #tpu.memory_space<semaphore_mem>>) src(%584 : memref<576xf32, #tpu.memory_space<any>>) dst(%586 : memref<576xf32, #tpu.memory_space<any>>)
    %c0_i32_270 = arith.constant 0 : i32
    %c0_i32_271 = arith.constant 0 : i32
    %589 = tpu.memref_slice %arg2[%297, %c0_i32_271] : memref<512x36xf32, #tpu.memory_space<any>> -> memref<1x36xf32, #tpu.memory_space<any>>
    %590 = tpu.memref_squeeze %589 : memref<1x36xf32, #tpu.memory_space<any>> -> memref<36xf32, #tpu.memory_space<any>>
    %c0_i32_272 = arith.constant 0 : i32
    %591 = tpu.memref_slice %arg5[%295, %c0_i32_272] : memref<512x36xf32, #tpu.memory_space<any>> -> memref<1x36xf32, #tpu.memory_space<any>>
    %592 = tpu.memref_squeeze %591 : memref<1x36xf32, #tpu.memory_space<any>> -> memref<36xf32, #tpu.memory_space<any>>
    %593 = tpu.memref_slice %arg8[%c0_i32_270] : memref<3x!tpu.dma_semaphore, #tpu.memory_space<semaphore_mem>> -> memref<1x!tpu.dma_semaphore, #tpu.memory_space<semaphore_mem>>
    %594 = tpu.memref_squeeze %593 : memref<1x!tpu.dma_semaphore, #tpu.memory_space<semaphore_mem>> -> memref<!tpu.dma_semaphore, #tpu.memory_space<semaphore_mem>>
    tpu.wait_dma2 semaphore(%594 : memref<!tpu.dma_semaphore, #tpu.memory_space<semaphore_mem>>) src(%590 : memref<36xf32, #tpu.memory_space<any>>) dst(%592 : memref<36xf32, #tpu.memory_space<any>>)
    %c1_i32_273 = arith.constant 1 : i32
    %c0_i32_274 = arith.constant 0 : i32
    %595 = tpu.memref_slice %arg3[%297, %c0_i32_274] : memref<512x144xf32, #tpu.memory_space<any>> -> memref<1x144xf32, #tpu.memory_space<any>>
    %596 = tpu.memref_squeeze %595 : memref<1x144xf32, #tpu.memory_space<any>> -> memref<144xf32, #tpu.memory_space<any>>
    %c0_i32_275 = arith.constant 0 : i32
    %597 = tpu.memref_slice %arg6[%295, %c0_i32_275] : memref<512x144xf32, #tpu.memory_space<any>> -> memref<1x144xf32, #tpu.memory_space<any>>
    %598 = tpu.memref_squeeze %597 : memref<1x144xf32, #tpu.memory_space<any>> -> memref<144xf32, #tpu.memory_space<any>>
    %599 = tpu.memref_slice %arg8[%c1_i32_273] : memref<3x!tpu.dma_semaphore, #tpu.memory_space<semaphore_mem>> -> memref<1x!tpu.dma_semaphore, #tpu.memory_space<semaphore_mem>>
    %600 = tpu.memref_squeeze %599 : memref<1x!tpu.dma_semaphore, #tpu.memory_space<semaphore_mem>> -> memref<!tpu.dma_semaphore, #tpu.memory_space<semaphore_mem>>
    tpu.wait_dma2 semaphore(%600 : memref<!tpu.dma_semaphore, #tpu.memory_space<semaphore_mem>>) src(%596 : memref<144xf32, #tpu.memory_space<any>>) dst(%598 : memref<144xf32, #tpu.memory_space<any>>)
    %c2_i32_276 = arith.constant 2 : i32
    %c0_i32_277 = arith.constant 0 : i32
    %601 = tpu.memref_slice %arg4[%297, %c0_i32_277] : memref<512x576xf32, #tpu.memory_space<any>> -> memref<1x576xf32, #tpu.memory_space<any>>
    %602 = tpu.memref_squeeze %601 : memref<1x576xf32, #tpu.memory_space<any>> -> memref<576xf32, #tpu.memory_space<any>>
    %c0_i32_278 = arith.constant 0 : i32
    %603 = tpu.memref_slice %arg7[%295, %c0_i32_278] : memref<512x576xf32, #tpu.memory_space<any>> -> memref<1x576xf32, #tpu.memory_space<any>>
    %604 = tpu.memref_squeeze %603 : memref<1x576xf32, #tpu.memory_space<any>> -> memref<576xf32, #tpu.memory_space<any>>
    %605 = tpu.memref_slice %arg8[%c2_i32_276] : memref<3x!tpu.dma_semaphore, #tpu.memory_space<semaphore_mem>> -> memref<1x!tpu.dma_semaphore, #tpu.memory_space<semaphore_mem>>
    %606 = tpu.memref_squeeze %605 : memref<1x!tpu.dma_semaphore, #tpu.memory_space<semaphore_mem>> -> memref<!tpu.dma_semaphore, #tpu.memory_space<semaphore_mem>>
    tpu.wait_dma2 semaphore(%606 : memref<!tpu.dma_semaphore, #tpu.memory_space<semaphore_mem>>) src(%602 : memref<576xf32, #tpu.memory_space<any>>) dst(%604 : memref<576xf32, #tpu.memory_space<any>>)
    %c0_i32_279 = arith.constant 0 : i32
    %c0_i32_280 = arith.constant 0 : i32
    %607 = tpu.memref_slice %arg2[%318, %c0_i32_280] : memref<512x36xf32, #tpu.memory_space<any>> -> memref<1x36xf32, #tpu.memory_space<any>>
    %608 = tpu.memref_squeeze %607 : memref<1x36xf32, #tpu.memory_space<any>> -> memref<36xf32, #tpu.memory_space<any>>
    %c0_i32_281 = arith.constant 0 : i32
    %609 = tpu.memref_slice %arg5[%316, %c0_i32_281] : memref<512x36xf32, #tpu.memory_space<any>> -> memref<1x36xf32, #tpu.memory_space<any>>
    %610 = tpu.memref_squeeze %609 : memref<1x36xf32, #tpu.memory_space<any>> -> memref<36xf32, #tpu.memory_space<any>>
    %611 = tpu.memref_slice %arg8[%c0_i32_279] : memref<3x!tpu.dma_semaphore, #tpu.memory_space<semaphore_mem>> -> memref<1x!tpu.dma_semaphore, #tpu.memory_space<semaphore_mem>>
    %612 = tpu.memref_squeeze %611 : memref<1x!tpu.dma_semaphore, #tpu.memory_space<semaphore_mem>> -> memref<!tpu.dma_semaphore, #tpu.memory_space<semaphore_mem>>
    tpu.wait_dma2 semaphore(%612 : memref<!tpu.dma_semaphore, #tpu.memory_space<semaphore_mem>>) src(%608 : memref<36xf32, #tpu.memory_space<any>>) dst(%610 : memref<36xf32, #tpu.memory_space<any>>)
    %c1_i32_282 = arith.constant 1 : i32
    %c0_i32_283 = arith.constant 0 : i32
    %613 = tpu.memref_slice %arg3[%318, %c0_i32_283] : memref<512x144xf32, #tpu.memory_space<any>> -> memref<1x144xf32, #tpu.memory_space<any>>
    %614 = tpu.memref_squeeze %613 : memref<1x144xf32, #tpu.memory_space<any>> -> memref<144xf32, #tpu.memory_space<any>>
    %c0_i32_284 = arith.constant 0 : i32
    %615 = tpu.memref_slice %arg6[%316, %c0_i32_284] : memref<512x144xf32, #tpu.memory_space<any>> -> memref<1x144xf32, #tpu.memory_space<any>>
    %616 = tpu.memref_squeeze %615 : memref<1x144xf32, #tpu.memory_space<any>> -> memref<144xf32, #tpu.memory_space<any>>
    %617 = tpu.memref_slice %arg8[%c1_i32_282] : memref<3x!tpu.dma_semaphore, #tpu.memory_space<semaphore_mem>> -> memref<1x!tpu.dma_semaphore, #tpu.memory_space<semaphore_mem>>
    %618 = tpu.memref_squeeze %617 : memref<1x!tpu.dma_semaphore, #tpu.memory_space<semaphore_mem>> -> memref<!tpu.dma_semaphore, #tpu.memory_space<semaphore_mem>>
    tpu.wait_dma2 semaphore(%618 : memref<!tpu.dma_semaphore, #tpu.memory_space<semaphore_mem>>) src(%614 : memref<144xf32, #tpu.memory_space<any>>) dst(%616 : memref<144xf32, #tpu.memory_space<any>>)
    %c2_i32_285 = arith.constant 2 : i32
    %c0_i32_286 = arith.constant 0 : i32
    %619 = tpu.memref_slice %arg4[%318, %c0_i32_286] : memref<512x576xf32, #tpu.memory_space<any>> -> memref<1x576xf32, #tpu.memory_space<any>>
    %620 = tpu.memref_squeeze %619 : memref<1x576xf32, #tpu.memory_space<any>> -> memref<576xf32, #tpu.memory_space<any>>
    %c0_i32_287 = arith.constant 0 : i32
    %621 = tpu.memref_slice %arg7[%316, %c0_i32_287] : memref<512x576xf32, #tpu.memory_space<any>> -> memref<1x576xf32, #tpu.memory_space<any>>
    %622 = tpu.memref_squeeze %621 : memref<1x576xf32, #tpu.memory_space<any>> -> memref<576xf32, #tpu.memory_space<any>>
    %623 = tpu.memref_slice %arg8[%c2_i32_285] : memref<3x!tpu.dma_semaphore, #tpu.memory_space<semaphore_mem>> -> memref<1x!tpu.dma_semaphore, #tpu.memory_space<semaphore_mem>>
    %624 = tpu.memref_squeeze %623 : memref<1x!tpu.dma_semaphore, #tpu.memory_space<semaphore_mem>> -> memref<!tpu.dma_semaphore, #tpu.memory_space<semaphore_mem>>
    tpu.wait_dma2 semaphore(%624 : memref<!tpu.dma_semaphore, #tpu.memory_space<semaphore_mem>>) src(%620 : memref<576xf32, #tpu.memory_space<any>>) dst(%622 : memref<576xf32, #tpu.memory_space<any>>)
    return
  }
}

</mosaic_0001>

<llo_original>
// kernel: squeeze.381
$region0: #{squeeze.381}
  %s0 = inlined_call_operand.vmem [shape: f32[2,256], index: 0, kind: input, shape index: {}]
  %s1 = inlined_call_operand.hbm [shape: f32[2,1,16,16], index: 1, kind: output, shape index: {}]
  $region1: #{squeeze.381} parent=0
    #allocation0 [shape = 'u8[16384]{0}', space=vmem, size = 0x4000, scoped, tag = 'operand span for operand 1']
    #allocation1 [shape = 's32[1]{0}', space=sflag, size = 0x4, scoped, tag = 'scoped memory for squeeze.381']
    #allocation2 [shape = 'u8[8192]{0}', space=vmem, size = 0x2000, scoped, tag = 'scoped mem for input reshape']
    %2 = vsyncpa [#allocation1], 0
    %s4 = ssub.s32 4, 1
    %s5 = scalar_lea.vmem %s0, 2
    %v6 = vld [vmem:[%s5] sm:%s4]
    %s7 = scalar_lea.vmem [#allocation2], 8
    %8 = vst [vmem:[%s7] sm:%s4] %v6
    %v9 = vld [vmem:[%s0] sm:%s4]
    %10 = vst [vmem:[#allocation2] sm:%s4] %v9
    %v11 = vld [vmem:[#allocation2] sm:$0x3]
    %vm12 = vcmask 130048
    %13 = vst.msk [vmem:[#allocation0] ss:$16 sm:$0x3] %vm12, %v11
    %s14 = scalar_lea.vmem [#allocation2], 8
    %v15 = vld [vmem:[%s14] sm:$0x3]
    %vm16 = vcmask 130048
    %s17 = scalar_lea.vmem [#allocation0], 8
    %18 = vst.msk [vmem:[%s17] ss:$16 sm:$0x3] %vm16, %v15
    %v19 = vld.sshfl [vmem:[#allocation2] sm:$0xff pattern:$0x99999180]
    %20 = vrot.lane.b32.xlu0 %v19, 112
    %v21 = vpop.permute.xlu0 %20
    %vm22 = vcmask 130048
    %s23 = scalar_lea.vmem [#allocation0], 1
    %24 = vst.msk [vmem:[%s23] ss:$8 sm:$0xf] %vm22, %v21
    %v25 = vld.sshfl [vmem:[#allocation2] sm:$0xff pattern:$0x99999180]
    %26 = vrot.lane.b32.xlu0 %v25, 96
    %v27 = vpop.permute.xlu0 %26
    %vm28 = vcmask 130048
    %s29 = scalar_lea.vmem [#allocation0], 2
    %30 = vst.msk [vmem:[%s29] ss:$8 sm:$0xf] %vm28, %v27
    %v31 = vld.sshfl [vmem:[#allocation2] sm:$0xff pattern:$0x99999180]
    %32 = vrot.lane.b32.xlu0 %v31, 80
    %v33 = vpop.permute.xlu0 %32
    %vm34 = vcmask 130048
    %s35 = scalar_lea.vmem [#allocation0], 3
    %36 = vst.msk [vmem:[%s35] ss:$8 sm:$0xf] %vm34, %v33
    %v37 = vld.sshfl [vmem:[#allocation2] sm:$0xff pattern:$0x99999180]
    %38 = vrot.lane.b32.xlu0 %v37, 64
    %v39 = vpop.permute.xlu0 %38
    %vm40 = vcmask 130048
    %s41 = scalar_lea.vmem [#allocation0], 4
    %42 = vst.msk [vmem:[%s41] ss:$8 sm:$0xf] %vm40, %v39
    %v43 = vld.sshfl [vmem:[#allocation2] sm:$0xff pattern:$0x99999180]
    %44 = vrot.lane.b32.xlu0 %v43, 48
    %v45 = vpop.permute.xlu0 %44
    %vm46 = vcmask 130048
    %s47 = scalar_lea.vmem [#allocation0], 5
    %48 = vst.msk [vmem:[%s47] ss:$8 sm:$0xf] %vm46, %v45
    %v49 = vld.sshfl [vmem:[#allocation2] sm:$0xff pattern:$0x99999180]
    %50 = vrot.lane.b32.xlu0 %v49, 32
    %v51 = vpop.permute.xlu0 %50
    %vm52 = vcmask 130048
    %s53 = scalar_lea.vmem [#allocation0], 6
    %54 = vst.msk [vmem:[%s53] ss:$8 sm:$0xf] %vm52, %v51
    %v55 = vld.sshfl [vmem:[#allocation2] sm:$0xff pattern:$0x99999180]
    %56 = vrot.lane.b32.xlu0 %v55, 16
    %v57 = vpop.permute.xlu0 %56
    %vm58 = vcmask 130048
    %s59 = scalar_lea.vmem [#allocation0], 7
    %60 = vst.msk [vmem:[%s59] ss:$8 sm:$0xf] %vm58, %v57
    %62 = vsyncadd [#allocation1], 0
    %s64 = sshll.u32 [#allocation0], 4
    %s65 = int_to_ptr.vmem [resolvable:$true] %s64
    %s66 = sshll.u32 %s1, 4
    %s67 = int_to_ptr.hbm [resolvable:$true] %s66
    %69 = dma.vmem_to_hbm [thread:$0]  %s65, 512, %s67, [#allocation1]
    %71 = dma.done [#allocation1], 512
    %72 = vsyncpa [#allocation1], 1

// kernel: search_transfer.2
$region0: #{search_transfer.2}
  #allocation0 [shape = 'u32[]', space=smem, size = 0x4, offset = 0x4, fixed_abs, tag = 'smem constant byte address 0x4 - core index']
  #allocation1 [shape = 'u32[72,128]{1,0:T(1,128)}', space=vmem, size = 0x9000, scoped, tag = 'internal scratch']
  %s0 = inlined_call_operand.vmem [shape: bf16[2,256,128], index: 0, kind: input, shape index: {}]
  %s1 = inlined_call_operand.vmem [shape: bf16[2,128,256], index: 1, kind: input, shape index: {}]
  %s2 = inlined_call_operand.vmem [shape: f32[2,1,256], index: 2, kind: output, shape index: {0}]
  %s3 = inlined_call_operand.vmem [shape: s32[2,1,256], index: 3, kind: output, shape index: {1}]
  %4 = xla_tuple %s2, %s3
  %s5 = sld [smem:[#allocation0]]
  $region57: #{search_transfer.2} parent=0
    _
  %s7 = ssub.s32 1, %s5
  %s8 = scalar_select 0, %s7, %s5
  loop: start=0, step=1, limit=6
  $region2: #{search_transfer.2} parent=0 // loop_pre_header
    _
  $region3: #{search_transfer.2} parent=0 // loop_header
    %s10 = sphi 0, %s14
    %p11 = scmp.ge.s32.totalorder %s10, 6
    %s17 = sphi 0, %s36
    %s18 = sphi 0, %s32
    %s19 = sphi 0, %s28
    %s20 = sphi 0, %s17
    %s21 = sphi 0, %s18
    %s22 = sphi 0, %s19
    %s23 = sphi 0, %s20
    %s24 = sphi 0, %s21
    %s25 = sphi 0, %s22
    %s41 = sphi 0, %s43
    %s44 = sphi 0, %s41
    %s45 = sphi 0, %s44
    %s61 = sphi 0, %s45
    %s69 = sphi 0, %s71
    %s72 = sphi 0, %s69
    %s73 = sphi 0, %s72
    %s89 = sphi 0, %s73
    %s97 = sphi 0, %s99
    %s100 = sphi 0, %s97
    %s101 = sphi 0, %s100
    %s117 = sphi 0, %s101
    %s125 = sphi 0, %s127
    %s128 = sphi 0, %s125
    %s129 = sphi 0, %s128
    %s145 = sphi 0, %s129
  $region4: #{search_transfer.2} parent=0 // loop_header_branch
    %13 = sbr.rel (%p11) target = $region8
  $region5: #{search_transfer.2} parent=0 // loop_body
    %s15 = ssub.s32 %s10, 1
    %s16 = ssub.s32 %s10, 2
    %s26 = sadd.s32 1, %s19
    %p27 = scmp.ge.s32.totalorder %s26, 2
    %s28 = scalar_select %p27, 0, %s26
    %s29 = sadd.s32 1, %s18
    %s30 = scalar_select %p27, %s29, %s18
    %p31 = scmp.ge.s32.totalorder %s30, 1
    %s32 = scalar_select %p31, 0, %s30
    %s33 = sadd.s32 1, %s17
    %s34 = scalar_select %p31, %s33, %s17
    %p35 = scmp.ge.s32.totalorder %s34, 2
    %s36 = scalar_select %p35, 0, %s34
    %s37 = ssub.s32 %s17, %s36
    %s38 = ssub.s32 %s19, %s28
    %s39 = sor.u32 %s37, %s38
    %p40 = scmp.eq.s32.totalorder %s39, 0
    %s42 = sadd.s32 %s41, 1
    %s43 = scalar_select %p40, %s41, %s42
    %p46 = pneg %p40
    %p47 = scmp.eq.s32.totalorder %s10, 3
    %p48 = por %p46, %p47
    %p49 = scmp.ne.s32.totalorder %s41, %s44
    %p50 = scmp.eq.s32.totalorder %s10, 0
    %p51 = por %p49, %p50
    %p52 = scmp.ne.s32.totalorder %s41, %s44
    %p53 = scmp.eq.s32.totalorder %s15, 3
    %p54 = por %p52, %p53
    %p55 = scmp.ne.s32.totalorder %s44, %s45
    %p56 = scmp.eq.s32.totalorder %s15, 0
    %p57 = por %p55, %p56
    %p58 = scmp.ne.s32.totalorder %s44, %s45
    %p59 = scmp.eq.s32.totalorder %s16, 3
    %p60 = por %p58, %p59
    %p62 = scmp.ne.s32.totalorder %s45, %s61
    %p63 = scmp.eq.s32.totalorder %s16, 0
    %p64 = por %p62, %p63
    %s65 = ssub.s32 %s17, %s36
    %s66 = ssub.s32 %s18, %s32
    %s67 = sor.u32 %s65, %s66
    %p68 = scmp.eq.s32.totalorder %s67, 0
    %s70 = sadd.s32 %s69, 1
    %s71 = scalar_select %p68, %s69, %s70
    %p74 = pneg %p68
    %p75 = scmp.eq.s32.totalorder %s10, 3
    %p76 = por %p74, %p75
    %p77 = scmp.ne.s32.totalorder %s69, %s72
    %p78 = scmp.eq.s32.totalorder %s10, 0
    %p79 = por %p77, %p78
    %p80 = scmp.ne.s32.totalorder %s69, %s72
    %p81 = scmp.eq.s32.totalorder %s15, 3
    %p82 = por %p80, %p81
    %p83 = scmp.ne.s32.totalorder %s72, %s73
    %p84 = scmp.eq.s32.totalorder %s15, 0
    %p85 = por %p83, %p84
    %p86 = scmp.ne.s32.totalorder %s72, %s73
    %p87 = scmp.eq.s32.totalorder %s16, 3
    %p88 = por %p86, %p87
    %p90 = scmp.ne.s32.totalorder %s73, %s89
    %p91 = scmp.eq.s32.totalorder %s16, 0
    %p92 = por %p90, %p91
    %s93 = ssub.s32 %s17, %s36
    %s94 = ssub.s32 %s18, %s32
    %s95 = sor.u32 %s93, %s94
    %p96 = scmp.eq.s32.totalorder %s95, 0
    %s98 = sadd.s32 %s97, 1
    %s99 = scalar_select %p96, %s97, %s98
    %p102 = pneg %p96
    %p103 = scmp.eq.s32.totalorder %s10, 3
    %p104 = por %p102, %p103
    %p105 = scmp.ne.s32.totalorder %s97, %s100
    %p106 = scmp.eq.s32.totalorder %s10, 0
    %p107 = por %p105, %p106
    %p108 = scmp.ne.s32.totalorder %s97, %s100
    %p109 = scmp.eq.s32.totalorder %s15, 3
    %p110 = por %p108, %p109
    %p111 = scmp.ne.s32.totalorder %s100, %s101
    %p112 = scmp.eq.s32.totalorder %s15, 0
    %p113 = por %p111, %p112
    %p114 = scmp.ne.s32.totalorder %s100, %s101
    %p115 = scmp.eq.s32.totalorder %s16, 3
    %p116 = por %p114, %p115
    %p118 = scmp.ne.s32.totalorder %s101, %s117
    %p119 = scmp.eq.s32.totalorder %s16, 0
    %p120 = por %p118, %p119
    %s121 = ssub.s32 %s17, %s36
    %s122 = ssub.s32 %s18, %s32
    %s123 = sor.u32 %s121, %s122
    %p124 = scmp.eq.s32.totalorder %s123, 0
    %s126 = sadd.s32 %s125, 1
    %s127 = scalar_select %p124, %s125, %s126
    %p130 = pneg %p124
    %p131 = scmp.eq.s32.totalorder %s10, 3
    %p132 = por %p130, %p131
    %p133 = scmp.ne.s32.totalorder %s125, %s128
    %p134 = scmp.eq.s32.totalorder %s10, 0
    %p135 = por %p133, %p134
    %p136 = scmp.ne.s32.totalorder %s125, %s128
    %p137 = scmp.eq.s32.totalorder %s15, 3
    %p138 = por %p136, %p137
    %p139 = scmp.ne.s32.totalorder %s128, %s129
    %p140 = scmp.eq.s32.totalorder %s15, 0
    %p141 = por %p139, %p140
    %p142 = scmp.ne.s32.totalorder %s128, %s129
    %p143 = scmp.eq.s32.totalorder %s16, 3
    %p144 = por %p142, %p143
    %p146 = scmp.ne.s32.totalorder %s129, %s145
    %p147 = scmp.eq.s32.totalorder %s16, 0
    %p148 = por %p146, %p147
    %p149 = scmp.le.s32.totalorder 1, %s10
    %p150 = scmp.lt.s32.totalorder %s10, 5
    %p151 = pnand %p149, %p150
    %p152 = pneg %p151
    // Predicated region
    $region9: #{search_transfer.2} parent=5 // pred_check
      _
    $region10: #{search_transfer.2} parent=5 // pred_check_branch
      %154 = sbr.rel (%p151) target = $region12
    $region11: #{search_transfer.2} parent=5 // pred_region
      %s155 = ssub.s32 %s10, 1
    $region12: #{search_transfer.2} parent=5 // pred_fallthru
      _
    %p156 = scmp.lt.s32.totalorder %s10, 4
    // Predicated region
    $region13: #{search_transfer.2} parent=5 // pred_check
      %p157 = pneg %p156
    $region14: #{search_transfer.2} parent=5 // pred_check_branch
      %159 = sbr.rel (%p157) target = $region16
    $region15: #{search_transfer.2} parent=5 // pred_region
      // Predicated region
      $region17: #{search_transfer.2} parent=15 // pred_check
        %p160 = pneg %p51
      $region18: #{search_transfer.2} parent=15 // pred_check_branch
        %162 = sbr.rel (%p160) target = $region20
      $region19: #{search_transfer.2} parent=15 // pred_region
        %s163 = smul.u32 16, %s19
        %p164 = scmp.lt.s32.totalorder %s17, 1
        %s165 = scalar_select %p164, %s17, 1
        %p166 = scmp.lt.s32.totalorder %s163, 31
        %s167 = scalar_select %p166, %s163, 31
        %s168 = smul.addr %s165, 32
        %s169 = sadd.s32 %s167, %s168
        %s170 = smul.addr %s169, 4
        %s171 = scalar_lea.vmem %s0, %s170
        %s172 = smul.u32 16, %s19
      $region20: #{search_transfer.2} parent=15 // pred_fallthru
        _
      // Predicated region
      $region21: #{search_transfer.2} parent=15 // pred_check
        %p173 = pneg %p79
      $region22: #{search_transfer.2} parent=15 // pred_check_branch
        %175 = sbr.rel (%p173) target = $region24
      $region23: #{search_transfer.2} parent=15 // pred_region
        %s176 = smul.u32 2, %s18
        %p177 = scmp.lt.s32.totalorder %s17, 1
        %s178 = scalar_select %p177, %s17, 1
        %p179 = scmp.lt.s32.totalorder %s176, 1
        %s180 = scalar_select %p179, %s176, 1
        %s181 = smul.addr %s178, 32
        %s182 = sadd.s32 %s180, %s181
        %s183 = smul.addr %s182, 4
        %s184 = scalar_lea.vmem %s1, %s183
        %s185 = smul.u32 2, %s18
      $region24: #{search_transfer.2} parent=15 // pred_fallthru
        _
    $region16: #{search_transfer.2} parent=5 // pred_fallthru
      _
    %p186 = scmp.le.s32.totalorder 1, %s10
    %p187 = scmp.lt.s32.totalorder %s10, 5
    %p188 = pnand %p186, %p187
    %p189 = pneg %p188
    // Predicated region
    $region25: #{search_transfer.2} parent=5 // pred_check
      _
    $region26: #{search_transfer.2} parent=5 // pred_check_branch
      %191 = sbr.rel (%p188) target = $region28
    $region27: #{search_transfer.2} parent=5 // pred_region
      %s192 = ssub.s32 %s10, 1
      %s193 = smul.u32 16, %s22
      %p194 = scmp.lt.s32.totalorder %s20, 1
      %s195 = scalar_select %p194, %s20, 1
      %p196 = scmp.lt.s32.totalorder %s193, 31
      %s197 = scalar_select %p196, %s193, 31
      %s198 = smul.addr %s195, 32
      %s199 = sadd.s32 %s197, %s198
      %s200 = smul.addr %s199, 4
      %s201 = scalar_lea.vmem %s0, %s200
      %p202 = pneg %p57
      %p203 = pneg %p54
      %s204 = smul.u32 2, %s21
      %p205 = scmp.lt.s32.totalorder %s20, 1
      %s206 = scalar_select %p205, %s20, 1
      %p207 = scmp.lt.s32.totalorder %s204, 1
      %s208 = scalar_select %p207, %s204, 1
      %s209 = smul.addr %s206, 32
      %s210 = sadd.s32 %s208, %s209
      %s211 = smul.addr %s210, 4
      %s212 = scalar_lea.vmem %s1, %s211
      %p213 = pneg %p85
      %p214 = pneg %p82
      %p215 = pneg %p113
      %p216 = pneg %p110
      %s217 = smul.u32 2, %s21
      %p218 = scmp.lt.s32.totalorder %s20, 1
      %s219 = scalar_select %p218, %s20, 1
      %p220 = scmp.lt.s32.totalorder %s217, 1
      %s221 = scalar_select %p220, %s217, 1
      %s222 = smul.addr %s219, 2
      %s223 = sadd.s32 %s221, %s222
      %s224 = scalar_lea.vmem %s2, %s223
      %p225 = pneg %p141
      %p226 = pneg %p138
      %s227 = smul.u32 2, %s21
      %p228 = scmp.lt.s32.totalorder %s20, 1
      %s229 = scalar_select %p228, %s20, 1
      %p230 = scmp.lt.s32.totalorder %s227, 1
      %s231 = scalar_select %p230, %s227, 1
      %s232 = smul.addr %s229, 2
      %s233 = sadd.s32 %s231, %s232
      %s234 = scalar_lea.vmem %s3, %s233
      %s235 = smul.u32 16, %s22
      %p236 = scmp.lt.s32.totalorder %s20, 1
      %s237 = scalar_select %p236, %s20, 1
      %p238 = scmp.lt.s32.totalorder %s235, 31
      %s239 = scalar_select %p238, %s235, 31
      %s240 = smul.addr %s237, 32
      %s241 = sadd.s32 %s239, %s240
      %s242 = smul.addr %s241, 4
      %s243 = scalar_lea.vmem %s0, %s242
      %s244 = smul.u32 16, %s22
      %s245 = smul.u32 2, %s21
      %p246 = scmp.lt.s32.totalorder %s20, 1
      %s247 = scalar_select %p246, %s20, 1
      %p248 = scmp.lt.s32.totalorder %s245, 1
      %s249 = scalar_select %p248, %s245, 1
      %s250 = smul.addr %s247, 32
      %s251 = sadd.s32 %s249, %s250
      %s252 = smul.addr %s251, 4
      %s253 = scalar_lea.vmem %s1, %s252
      %s254 = smul.u32 2, %s21
      %s255 = smul.u32 2, %s21
      %p256 = scmp.lt.s32.totalorder %s20, 1
      %s257 = scalar_select %p256, %s20, 1
      %p258 = scmp.lt.s32.totalorder %s255, 1
      %s259 = scalar_select %p258, %s255, 1
      %s260 = smul.addr %s257, 2
      %s261 = sadd.s32 %s259, %s260
      %s262 = scalar_lea.vmem %s2, %s261
      %s263 = smul.u32 2, %s21
      %s264 = smul.u32 2, %s21
      %p265 = scmp.lt.s32.totalorder %s20, 1
      %s266 = scalar_select %p265, %s20, 1
      %p267 = scmp.lt.s32.totalorder %s264, 1
      %s268 = scalar_select %p267, %s264, 1
      %s269 = smul.addr %s266, 2
      %s270 = sadd.s32 %s268, %s269
      %s271 = scalar_lea.vmem %s3, %s270
      %s272 = smul.u32 2, %s21
      %v273 = vld [vmem:[%s243] sm:$0xf]
      %v274 = vld [vmem:[%s243 + $0x4] sm:$0xf]
      %v275 = vld [vmem:[%s243 + $0x8] sm:$0xf]
      %v276 = vld [vmem:[%s243 + $0xc] sm:$0xf]
      %v277 = vld [vmem:[%s243 + $0x10] sm:$0xf]
      %v278 = vld [vmem:[%s243 + $0x14] sm:$0xf]
      %v279 = vld [vmem:[%s243 + $0x18] sm:$0xf]
      %v280 = vld [vmem:[%s243 + $0x1c] sm:$0xf]
      %v281 = vld [vmem:[%s243 + $0x20] sm:$0xf]
      %v282 = vld [vmem:[%s243 + $0x24] sm:$0xf]
      %v283 = vld [vmem:[%s243 + $0x28] sm:$0xf]
      %v284 = vld [vmem:[%s243 + $0x2c] sm:$0xf]
      %v285 = vld [vmem:[%s243 + $0x30] sm:$0xf]
      %v286 = vld [vmem:[%s243 + $0x34] sm:$0xf]
      %v287 = vld [vmem:[%s243 + $0x38] sm:$0xf]
      %v288 = vld [vmem:[%s243 + $0x3c] sm:$0xf]
      %v289 = vld [vmem:[%s253] sm:$0xff]
      %v290 = vld [vmem:[%s253 + $0x8] sm:$0xff]
      %v291 = vld [vmem:[%s253 + $0x10] sm:$0xff]
      %v292 = vld [vmem:[%s253 + $0x18] sm:$0xff]
      %v293 = vld [vmem:[%s253 + $0x20] sm:$0xff]
      %v294 = vld [vmem:[%s253 + $0x28] sm:$0xff]
      %v295 = vld [vmem:[%s253 + $0x30] sm:$0xff]
      %v296 = vld [vmem:[%s253 + $0x38] sm:$0xff]
      %v297 = vld [vmem:[%s253 + $0x40] sm:$0xff]
      %v298 = vld [vmem:[%s253 + $0x48] sm:$0xff]
      %v299 = vld [vmem:[%s253 + $0x50] sm:$0xff]
      %v300 = vld [vmem:[%s253 + $0x58] sm:$0xff]
      %v301 = vld [vmem:[%s253 + $0x60] sm:$0xff]
      %v302 = vld [vmem:[%s253 + $0x68] sm:$0xff]
      %v303 = vld [vmem:[%s253 + $0x70] sm:$0xff]
      %v304 = vld [vmem:[%s253 + $0x78] sm:$0xff]
      %v321 = vunpack.c.l.b16 %v273
      %v322 = vunpack.c.l.b16 %v274
      %v323 = vunpack.c.l.b16 %v275
      %v324 = vunpack.c.l.b16 %v276
      %v325 = vunpack.c.l.b16 %v277
      %v326 = vunpack.c.l.b16 %v278
      %v327 = vunpack.c.l.b16 %v279
      %v328 = vunpack.c.l.b16 %v280
      %v329 = vunpack.c.l.b16 %v281
      %v330 = vunpack.c.l.b16 %v282
      %v331 = vunpack.c.l.b16 %v283
      %v332 = vunpack.c.l.b16 %v284
      %v333 = vunpack.c.l.b16 %v285
      %v334 = vunpack.c.l.b16 %v286
      %v335 = vunpack.c.l.b16 %v287
      %v336 = vunpack.c.l.b16 %v288
      %v337 = vpack.c.b16 %v322, %v321
      %v338 = vpack.c.b16 %v324, %v323
      %v339 = vpack.c.b16 %v326, %v325
      %v340 = vpack.c.b16 %v328, %v327
      %v341 = vpack.c.b16 %v330, %v329
      %v342 = vpack.c.b16 %v332, %v331
      %v343 = vpack.c.b16 %v334, %v333
      %v344 = vpack.c.b16 %v336, %v335
      %v369 = vunpack.c.l.b16 %v289
      %v370 = vunpack.c.h.b16 %v289
      %v371 = vunpack.c.l.b16 %v290
      %v372 = vunpack.c.h.b16 %v290
      %v373 = vunpack.c.l.b16 %v291
      %v374 = vunpack.c.h.b16 %v291
      %v375 = vunpack.c.l.b16 %v292
      %v376 = vunpack.c.h.b16 %v292
      %v377 = vunpack.c.l.b16 %v293
      %v378 = vunpack.c.h.b16 %v293
      %v379 = vunpack.c.l.b16 %v294
      %v380 = vunpack.c.h.b16 %v294
      %v381 = vunpack.c.l.b16 %v295
      %v382 = vunpack.c.h.b16 %v295
      %v383 = vunpack.c.l.b16 %v296
      %v384 = vunpack.c.h.b16 %v296
      %v385 = vunpack.c.l.b16 %v297
      %v386 = vunpack.c.h.b16 %v297
      %v387 = vunpack.c.l.b16 %v298
      %v388 = vunpack.c.h.b16 %v298
      %v389 = vunpack.c.l.b16 %v299
      %v390 = vunpack.c.h.b16 %v299
      %v391 = vunpack.c.l.b16 %v300
      %v392 = vunpack.c.h.b16 %v300
      %v393 = vunpack.c.l.b16 %v301
      %v394 = vunpack.c.h.b16 %v301
      %v395 = vunpack.c.l.b16 %v302
      %v396 = vunpack.c.h.b16 %v302
      %v397 = vunpack.c.l.b16 %v303
      %v398 = vunpack.c.h.b16 %v303
      %v399 = vunpack.c.l.b16 %v304
      %v400 = vunpack.c.h.b16 %v304
      %v401 = vpack.c.b16 %v371, %v369
      %v402 = vpack.c.b16 %v372, %v370
      %v403 = vpack.c.b16 %v375, %v373
      %v404 = vpack.c.b16 %v376, %v374
      %v405 = vpack.c.b16 %v379, %v377
      %v406 = vpack.c.b16 %v380, %v378
      %v407 = vpack.c.b16 %v383, %v381
      %v408 = vpack.c.b16 %v384, %v382
      %v409 = vpack.c.b16 %v387, %v385
      %v410 = vpack.c.b16 %v388, %v386
      %v411 = vpack.c.b16 %v391, %v389
      %v412 = vpack.c.b16 %v392, %v390
      %v413 = vpack.c.b16 %v395, %v393
      %v414 = vpack.c.b16 %v396, %v394
      %v415 = vpack.c.b16 %v399, %v397
      %v416 = vpack.c.b16 %v400, %v398
      %433 = vmatpush.bf16.msra.mxu0 %v415
      %434 = vmatpush.bf16.msra.mxu0 %v413
      %435 = vmatpush.bf16.msra.mxu0 %v411
      %436 = vmatpush.bf16.msra.mxu0 %v409
      %437 = vmatpush.bf16.msra.mxu0 %v407
      %438 = vmatpush.bf16.msra.mxu0 %v405
      %439 = vmatpush.bf16.msra.mxu0 %v403
      %440 = vmatpush.bf16.msra.mxu0 %v401
      %441 = vmatmul.bf16.gmra.mxu0 %v337
      %v442 = vpop.f32.mrf.mxu0
      %v443 = vadd.f32 0.0, %v442
      %v444 = vpop.f32.mrf.mxu0
      %v445 = vadd.f32 0.0, %v444
      %446 = vmatmul.bf16.gmra.mxu0 %v338
      %v447 = vpop.f32.mrf.mxu0
      %v448 = vadd.f32 0.0, %v447
      %v449 = vpop.f32.mrf.mxu0
      %v450 = vadd.f32 0.0, %v449
      %451 = vmatmul.bf16.gmra.mxu0 %v339
      %v452 = vpop.f32.mrf.mxu0
      %v453 = vadd.f32 0.0, %v452
      %v454 = vpop.f32.mrf.mxu0
      %v455 = vadd.f32 0.0, %v454
      %456 = vmatmul.bf16.gmra.mxu0 %v340
      %v457 = vpop.f32.mrf.mxu0
      %v458 = vadd.f32 0.0, %v457
      %v459 = vpop.f32.mrf.mxu0
      %v460 = vadd.f32 0.0, %v459
      %461 = vmatmul.bf16.gmra.mxu0 %v341
      %v462 = vpop.f32.mrf.mxu0
      %v463 = vadd.f32 0.0, %v462
      %v464 = vpop.f32.mrf.mxu0
      %v465 = vadd.f32 0.0, %v464
      %466 = vmatmul.bf16.gmra.mxu0 %v342
      %v467 = vpop.f32.mrf.mxu0
      %v468 = vadd.f32 0.0, %v467
      %v469 = vpop.f32.mrf.mxu0
      %v470 = vadd.f32 0.0, %v469
      %471 = vmatmul.bf16.gmra.mxu0 %v343
      %v472 = vpop.f32.mrf.mxu0
      %v473 = vadd.f32 0.0, %v472
      %v474 = vpop.f32.mrf.mxu0
      %v475 = vadd.f32 0.0, %v474
      %476 = vmatmul.bf16.gmra.mxu0 %v344
      %v477 = vpop.f32.mrf.mxu0
      %v478 = vadd.f32 0.0, %v477
      %v479 = vpop.f32.mrf.mxu0
      %v480 = vadd.f32 0.0, %v479
      %481 = vdwg.mxu0
      %482 = vmatpush.bf16.msra.mxu0 %v416
      %483 = vmatpush.bf16.msra.mxu0 %v414
      %484 = vmatpush.bf16.msra.mxu0 %v412
      %485 = vmatpush.bf16.msra.mxu0 %v410
      %486 = vmatpush.bf16.msra.mxu0 %v408
      %487 = vmatpush.bf16.msra.mxu0 %v406
      %488 = vmatpush.bf16.msra.mxu0 %v404
      %489 = vmatpush.bf16.msra.mxu0 %v402
      %490 = vmatmul.bf16.gmra.mxu0 %v337
      %v491 = vpop.f32.mrf.mxu0
      %v492 = vadd.f32 0.0, %v491
      %v493 = vpop.f32.mrf.mxu0
      %v494 = vadd.f32 0.0, %v493
      %495 = vmatmul.bf16.gmra.mxu0 %v338
      %v496 = vpop.f32.mrf.mxu0
      %v497 = vadd.f32 0.0, %v496
      %v498 = vpop.f32.mrf.mxu0
      %v499 = vadd.f32 0.0, %v498
      %500 = vmatmul.bf16.gmra.mxu0 %v339
      %v501 = vpop.f32.mrf.mxu0
      %v502 = vadd.f32 0.0, %v501
      %v503 = vpop.f32.mrf.mxu0
      %v504 = vadd.f32 0.0, %v503
      %505 = vmatmul.bf16.gmra.mxu0 %v340
      %v506 = vpop.f32.mrf.mxu0
      %v507 = vadd.f32 0.0, %v506
      %v508 = vpop.f32.mrf.mxu0
      %v509 = vadd.f32 0.0, %v508
      %510 = vmatmul.bf16.gmra.mxu0 %v341
      %v511 = vpop.f32.mrf.mxu0
      %v512 = vadd.f32 0.0, %v511
      %v513 = vpop.f32.mrf.mxu0
      %v514 = vadd.f32 0.0, %v513
      %515 = vmatmul.bf16.gmra.mxu0 %v342
      %v516 = vpop.f32.mrf.mxu0
      %v517 = vadd.f32 0.0, %v516
      %v518 = vpop.f32.mrf.mxu0
      %v519 = vadd.f32 0.0, %v518
      %520 = vmatmul.bf16.gmra.mxu0 %v343
      %v521 = vpop.f32.mrf.mxu0
      %v522 = vadd.f32 0.0, %v521
      %v523 = vpop.f32.mrf.mxu0
      %v524 = vadd.f32 0.0, %v523
      %525 = vmatmul.bf16.gmra.mxu0 %v344
      %v526 = vpop.f32.mrf.mxu0
      %v527 = vadd.f32 0.0, %v526
      %v528 = vpop.f32.mrf.mxu0
      %v529 = vadd.f32 0.0, %v528
      %530 = vdwg.mxu0
      %v531 = vlaneseq
      %v532 = vshrl.u32 %v531, 7
      %v533 = vadd.s32 %v532, 8
      %v534 = vadd.s32 %v532, 16
      %v535 = vadd.s32 %v532, 24
      %v536 = vadd.s32 %v532, 32
      %v537 = vadd.s32 %v532, 40
      %v538 = vadd.s32 %v532, 48
      %v539 = vadd.s32 %v532, 56
      %v540 = vadd.s32 %v532, 64
      %v541 = vadd.s32 %v532, 72
      %v542 = vadd.s32 %v532, 80
      %v543 = vadd.s32 %v532, 88
      %v544 = vadd.s32 %v532, 96
      %v545 = vadd.s32 %v532, 104
      %v546 = vadd.s32 %v532, 112
      %v547 = vadd.s32 %v532, 120
      %v548 = vmax.f32 %v443, %v448
      %v549 = vmax.f32 %v445, %v450
      %v550 = vmax.f32 %v548, %v453
      %v551 = vmax.f32 %v549, %v455
      %v552 = vmax.f32 %v550, %v458
      %v553 = vmax.f32 %v551, %v460
      %v554 = vmax.f32 %v552, %v463
      %v555 = vmax.f32 %v553, %v465
      %v556 = vmax.f32 %v554, %v468
      %v557 = vmax.f32 %v555, %v470
      %v558 = vmax.f32 %v556, %v473
      %v559 = vmax.f32 %v557, %v475
      %v560 = vmax.f32 %v558, %v478
      %v561 = vmax.f32 %v559, %v480
      %v562 = vmax.f32 %v560, %v561
      %v563 = vrot.slane %v562, 4
      %v564 = vmax.f32 %v562, %v563
      %v565 = vrot.slane %v564, 2
      %v566 = vmax.f32 %v564, %v565
      %v567 = vrot.slane %v566, 1
      %v568 = vmax.f32 %v566, %v567
      %v569 = vmax.f32 %v492, %v497
      %v570 = vmax.f32 %v494, %v499
      %v571 = vmax.f32 %v569, %v502
      %v572 = vmax.f32 %v570, %v504
      %v573 = vmax.f32 %v571, %v507
      %v574 = vmax.f32 %v572, %v509
      %v575 = vmax.f32 %v573, %v512
      %v576 = vmax.f32 %v574, %v514
      %v577 = vmax.f32 %v575, %v517
      %v578 = vmax.f32 %v576, %v519
      %v579 = vmax.f32 %v577, %v522
      %v580 = vmax.f32 %v578, %v524
      %v581 = vmax.f32 %v579, %v527
      %v582 = vmax.f32 %v580, %v529
      %v583 = vmax.f32 %v581, %v582
      %v584 = vrot.slane %v583, 4
      %v585 = vmax.f32 %v583, %v584
      %v586 = vrot.slane %v585, 2
      %v587 = vmax.f32 %v585, %v586
      %v588 = vrot.slane %v587, 1
      %v589 = vmax.f32 %v587, %v588
      %vm590 = vcmp.eq.f32.partialorder %v443, %v568
      %vm591 = vcmp.eq.f32.partialorder %v492, %v589
      %vm592 = vcmp.eq.f32.partialorder %v445, %v568
      %vm593 = vcmp.eq.f32.partialorder %v494, %v589
      %vm594 = vcmp.eq.f32.partialorder %v448, %v568
      %vm595 = vcmp.eq.f32.partialorder %v497, %v589
      %vm596 = vcmp.eq.f32.partialorder %v450, %v568
      %vm597 = vcmp.eq.f32.partialorder %v499, %v589
      %vm598 = vcmp.eq.f32.partialorder %v453, %v568
      %vm599 = vcmp.eq.f32.partialorder %v502, %v589
      %vm600 = vcmp.eq.f32.partialorder %v455, %v568
      %vm601 = vcmp.eq.f32.partialorder %v504, %v589
      %vm602 = vcmp.eq.f32.partialorder %v458, %v568
      %vm603 = vcmp.eq.f32.partialorder %v507, %v589
      %vm604 = vcmp.eq.f32.partialorder %v460, %v568
      %vm605 = vcmp.eq.f32.partialorder %v509, %v589
      %vm606 = vcmp.eq.f32.partialorder %v463, %v568
      %vm607 = vcmp.eq.f32.partialorder %v512, %v589
      %vm608 = vcmp.eq.f32.partialorder %v465, %v568
      %vm609 = vcmp.eq.f32.partialorder %v514, %v589
      %vm610 = vcmp.eq.f32.partialorder %v468, %v568
      %vm611 = vcmp.eq.f32.partialorder %v517, %v589
      %vm612 = vcmp.eq.f32.partialorder %v470, %v568
      %vm613 = vcmp.eq.f32.partialorder %v519, %v589
      %vm614 = vcmp.eq.f32.partialorder %v473, %v568
      %vm615 = vcmp.eq.f32.partialorder %v522, %v589
      %vm616 = vcmp.eq.f32.partialorder %v475, %v568
      %vm617 = vcmp.eq.f32.partialorder %v524, %v589
      %vm618 = vcmp.eq.f32.partialorder %v478, %v568
      %vm619 = vcmp.eq.f32.partialorder %v527, %v589
      %vm620 = vcmp.eq.f32.partialorder %v480, %v568
      %vm621 = vcmp.eq.f32.partialorder %v529, %v589
      %v622 = vsel %vm590, %v532, 128
      %v623 = vsel %vm591, %v532, 128
      %v624 = vsel %vm592, %v533, 128
      %v625 = vsel %vm593, %v533, 128
      %v626 = vsel %vm594, %v534, 128
      %v627 = vsel %vm595, %v534, 128
      %v628 = vsel %vm596, %v535, 128
      %v629 = vsel %vm597, %v535, 128
      %v630 = vsel %vm598, %v536, 128
      %v631 = vsel %vm599, %v536, 128
      %v632 = vsel %vm600, %v537, 128
      %v633 = vsel %vm601, %v537, 128
      %v634 = vsel %vm602, %v538, 128
      %v635 = vsel %vm603, %v538, 128
      %v636 = vsel %vm604, %v539, 128
      %v637 = vsel %vm605, %v539, 128
      %v638 = vsel %vm606, %v540, 128
      %v639 = vsel %vm607, %v540, 128
      %v640 = vsel %vm608, %v541, 128
      %v641 = vsel %vm609, %v541, 128
      %v642 = vsel %vm610, %v542, 128
      %v643 = vsel %vm611, %v542, 128
      %v644 = vsel %vm612, %v543, 128
      %v645 = vsel %vm613, %v543, 128
      %v646 = vsel %vm614, %v544, 128
      %v647 = vsel %vm615, %v544, 128
      %v648 = vsel %vm616, %v545, 128
      %v649 = vsel %vm617, %v545, 128
      %v650 = vsel %vm618, %v546, 128
      %v651 = vsel %vm619, %v546, 128
      %v652 = vsel %vm620, %v547, 128
      %v653 = vsel %vm621, %v547, 128
      %vm654 = vcmp.lt.s32.totalorder %v622, %v626
      %v655 = vsel %vm654, %v622, %v626
      %vm656 = vcmp.lt.s32.totalorder %v624, %v628
      %v657 = vsel %vm656, %v624, %v628
      %vm658 = vcmp.lt.s32.totalorder %v655, %v630
      %v659 = vsel %vm658, %v655, %v630
      %vm660 = vcmp.lt.s32.totalorder %v657, %v632
      %v661 = vsel %vm660, %v657, %v632
      %vm662 = vcmp.lt.s32.totalorder %v659, %v634
      %v663 = vsel %vm662, %v659, %v634
      %vm664 = vcmp.lt.s32.totalorder %v661, %v636
      %v665 = vsel %vm664, %v661, %v636
      %vm666 = vcmp.lt.s32.totalorder %v663, %v638
      %v667 = vsel %vm666, %v663, %v638
      %vm668 = vcmp.lt.s32.totalorder %v665, %v640
      %v669 = vsel %vm668, %v665, %v640
      %vm670 = vcmp.lt.s32.totalorder %v667, %v642
      %v671 = vsel %vm670, %v667, %v642
      %vm672 = vcmp.lt.s32.totalorder %v669, %v644
      %v673 = vsel %vm672, %v669, %v644
      %vm674 = vcmp.lt.s32.totalorder %v671, %v646
      %v675 = vsel %vm674, %v671, %v646
      %vm676 = vcmp.lt.s32.totalorder %v673, %v648
      %v677 = vsel %vm676, %v673, %v648
      %vm678 = vcmp.lt.s32.totalorder %v675, %v650
      %v679 = vsel %vm678, %v675, %v650
      %vm680 = vcmp.lt.s32.totalorder %v677, %v652
      %v681 = vsel %vm680, %v677, %v652
      %vm682 = vcmp.lt.s32.totalorder %v679, %v681
      %v683 = vsel %vm682, %v679, %v681
      %v684 = vrot.slane %v683, 4
      %vm685 = vcmp.lt.s32.totalorder %v683, %v684
      %v686 = vsel %vm685, %v683, %v684
      %v687 = vrot.slane %v686, 2
      %vm688 = vcmp.lt.s32.totalorder %v686, %v687
      %v689 = vsel %vm688, %v686, %v687
      %v690 = vrot.slane %v689, 1
      %vm691 = vcmp.lt.s32.totalorder %v689, %v690
      %v692 = vsel %vm691, %v689, %v690
      %vm693 = vcmp.lt.s32.totalorder %v623, %v627
      %v694 = vsel %vm693, %v623, %v627
      %vm695 = vcmp.lt.s32.totalorder %v625, %v629
      %v696 = vsel %vm695, %v625, %v629
      %vm697 = vcmp.lt.s32.totalorder %v694, %v631
      %v698 = vsel %vm697, %v694, %v631
      %vm699 = vcmp.lt.s32.totalorder %v696, %v633
      %v700 = vsel %vm699, %v696, %v633
      %vm701 = vcmp.lt.s32.totalorder %v698, %v635
      %v702 = vsel %vm701, %v698, %v635
      %vm703 = vcmp.lt.s32.totalorder %v700, %v637
      %v704 = vsel %vm703, %v700, %v637
      %vm705 = vcmp.lt.s32.totalorder %v702, %v639
      %v706 = vsel %vm705, %v702, %v639
      %vm707 = vcmp.lt.s32.totalorder %v704, %v641
      %v708 = vsel %vm707, %v704, %v641
      %vm709 = vcmp.lt.s32.totalorder %v706, %v643
      %v710 = vsel %vm709, %v706, %v643
      %vm711 = vcmp.lt.s32.totalorder %v708, %v645
      %v712 = vsel %vm711, %v708, %v645
      %vm713 = vcmp.lt.s32.totalorder %v710, %v647
      %v714 = vsel %vm713, %v710, %v647
      %vm715 = vcmp.lt.s32.totalorder %v712, %v649
      %v716 = vsel %vm715, %v712, %v649
      %vm717 = vcmp.lt.s32.totalorder %v714, %v651
      %v718 = vsel %vm717, %v714, %v651
      %vm719 = vcmp.lt.s32.totalorder %v716, %v653
      %v720 = vsel %vm719, %v716, %v653
      %vm721 = vcmp.lt.s32.totalorder %v718, %v720
      %v722 = vsel %vm721, %v718, %v720
      %v723 = vrot.slane %v722, 4
      %vm724 = vcmp.lt.s32.totalorder %v722, %v723
      %v725 = vsel %vm724, %v722, %v723
      %v726 = vrot.slane %v725, 2
      %vm727 = vcmp.lt.s32.totalorder %v725, %v726
      %v728 = vsel %vm727, %v725, %v726
      %v729 = vrot.slane %v728, 1
      %vm730 = vcmp.lt.s32.totalorder %v728, %v729
      %v731 = vsel %vm730, %v728, %v729
      %s732 = smul.u32 %s22, 128
      %v733 = vstv %s732
      %v734 = vadd.s32 %v692, %v733
      %v735 = vadd.s32 %v731, %v733
      %p736 = scmp.eq.s32.totalorder %s22, 0
      // Predicated region
      $region29: #{search_transfer.2} parent=27 // pred_check
        %p737 = pneg %p736
      $region30: #{search_transfer.2} parent=27 // pred_check_branch
        %739 = sbr.rel (%p737) target = $region32
      $region31: #{search_transfer.2} parent=27 // pred_region
        %v742 = vrot.slane %v589, 7
        %vm743 = vcmask 1040384
        %v744 = vsel %vm743, %v568, %v742
        %v746 = vlaneseq
        %vm747 = vcmp.ge.s32.totalorder %v746, 0
        %vm748 = vcmp.lt.s32.totalorder %v746, 256
        %vm749 = vmand %vm747, %vm748
        %750 = vst.msk [vmem:[%s262] sm:$0x3] %vm749, %v744
        %v751 = vrot.slane %v735, 7
        %v752 = vsel %vm743, %v734, %v751
        %753 = vst.msk [vmem:[%s271] sm:$0x3] %vm749, %v752
      $region32: #{search_transfer.2} parent=27 // pred_fallthru
        _
      %p754 = scmp.gt.s32.totalorder %s22, 0
      // Predicated region
      $region33: #{search_transfer.2} parent=27 // pred_check
        %p755 = pneg %p754
      $region34: #{search_transfer.2} parent=27 // pred_check_branch
        %757 = sbr.rel (%p755) target = $region36
      $region35: #{search_transfer.2} parent=27 // pred_region
        %v758 = vld [vmem:[%s262] sm:$0x3]
        %v760 = vperm.slane %v758, 0
        %v761 = vperm.slane %v758, 1
        %vm764 = vcmp.gt.f32.partialorder %v568, %v760
        %vm765 = vcmp.gt.f32.partialorder %v589, %v761
        %v766 = vsel %vm764, %v568, %v760
        %v767 = vsel %vm765, %v589, %v761
        %v770 = vrot.slane %v767, 7
        %vm771 = vcmask 1040384
        %v772 = vsel %vm771, %v766, %v770
        %v774 = vlaneseq
        %vm775 = vcmp.ge.s32.totalorder %v774, 0
        %vm776 = vcmp.lt.s32.totalorder %v774, 256
        %vm777 = vmand %vm775, %vm776
        %778 = vst.msk [vmem:[%s262] sm:$0x3] %vm777, %v772
        %v779 = vld [vmem:[%s271] sm:$0x3]
        %v780 = vperm.slane %v779, 0
        %v781 = vperm.slane %v779, 1
        %v782 = vsel %vm764, %v734, %v780
        %v783 = vsel %vm765, %v735, %v781
        %v784 = vrot.slane %v783, 7
        %v785 = vsel %vm771, %v782, %v784
        %786 = vst.msk [vmem:[%s271] sm:$0x3] %vm777, %v785
      $region36: #{search_transfer.2} parent=27 // pred_fallthru
        _
      %s787 = smul.u32 2, %s21
      %p788 = scmp.lt.s32.totalorder %s20, 1
      %s789 = scalar_select %p788, %s20, 1
      %p790 = scmp.lt.s32.totalorder %s787, 1
      %s791 = scalar_select %p790, %s787, 1
      %s792 = smul.addr %s789, 2
      %s793 = sadd.s32 %s791, %s792
      %s794 = scalar_lea.vmem %s2, %s793
      %s795 = smul.u32 2, %s21
      %p796 = scmp.lt.s32.totalorder %s20, 1
      %s797 = scalar_select %p796, %s20, 1
      %p798 = scmp.lt.s32.totalorder %s795, 1
      %s799 = scalar_select %p798, %s795, 1
      %s800 = smul.addr %s797, 2
      %s801 = sadd.s32 %s799, %s800
      %s802 = scalar_lea.vmem %s3, %s801
      // Predicated region
      $region37: #{search_transfer.2} parent=27 // pred_check
        %p803 = pneg %p110
      $region38: #{search_transfer.2} parent=27 // pred_check_branch
        %805 = sbr.rel (%p803) target = $region40
      $region39: #{search_transfer.2} parent=27 // pred_region
        %s806 = smul.u32 2, %s21
      $region40: #{search_transfer.2} parent=27 // pred_fallthru
        _
      // Predicated region
      $region41: #{search_transfer.2} parent=27 // pred_check
        %p807 = pneg %p138
      $region42: #{search_transfer.2} parent=27 // pred_check_branch
        %809 = sbr.rel (%p807) target = $region44
      $region43: #{search_transfer.2} parent=27 // pred_region
        %s810 = smul.u32 2, %s21
      $region44: #{search_transfer.2} parent=27 // pred_fallthru
        _
    $region28: #{search_transfer.2} parent=5 // pred_fallthru
      _
    %p811 = scmp.le.s32.totalorder 2, %s10
    // Predicated region
    $region45: #{search_transfer.2} parent=5 // pred_check
      %p812 = pneg %p811
    $region46: #{search_transfer.2} parent=5 // pred_check_branch
      %814 = sbr.rel (%p812) target = $region48
    $region47: #{search_transfer.2} parent=5 // pred_region
      %s815 = ssub.s32 %s10, 2
      // Predicated region
      $region49: #{search_transfer.2} parent=47 // pred_check
        %p816 = pneg %p116
      $region50: #{search_transfer.2} parent=47 // pred_check_branch
        %818 = sbr.rel (%p816) target = $region52
      $region51: #{search_transfer.2} parent=47 // pred_region
        %s819 = smul.u32 2, %s24
        %p820 = scmp.lt.s32.totalorder %s23, 1
        %s821 = scalar_select %p820, %s23, 1
        %p822 = scmp.lt.s32.totalorder %s819, 1
        %s823 = scalar_select %p822, %s819, 1
        %s824 = smul.addr %s821, 2
        %s825 = sadd.s32 %s823, %s824
        %s826 = scalar_lea.vmem %s2, %s825
      $region52: #{search_transfer.2} parent=47 // pred_fallthru
        _
      // Predicated region
      $region53: #{search_transfer.2} parent=47 // pred_check
        %p827 = pneg %p144
      $region54: #{search_transfer.2} parent=47 // pred_check_branch
        %829 = sbr.rel (%p827) target = $region56
      $region55: #{search_transfer.2} parent=47 // pred_region
        %s830 = smul.u32 2, %s24
        %p831 = scmp.lt.s32.totalorder %s23, 1
        %s832 = scalar_select %p831, %s23, 1
        %p833 = scmp.lt.s32.totalorder %s830, 1
        %s834 = scalar_select %p833, %s830, 1
        %s835 = smul.addr %s832, 2
        %s836 = sadd.s32 %s834, %s835
        %s837 = scalar_lea.vmem %s3, %s836
      $region56: #{search_transfer.2} parent=47 // pred_fallthru
        _
    $region48: #{search_transfer.2} parent=5 // pred_fallthru
      _
  $region6: #{search_transfer.2} parent=0 // loop_footer
    %s14 = sadd.s32 1, %s10
  $region7: #{search_transfer.2} parent=0 // loop_footer_branch
    %9 = sbr.rel target = $region3
  $region8: #{search_transfer.2} parent=0 // loop_exit
    _

// kernel: search_transfer.3
$region0: #{search_transfer.3}
  #allocation0 [shape = 'u32[]', space=smem, size = 0x4, offset = 0x4, fixed_abs, tag = 'smem constant byte address 0x4 - core index']
  #allocation1 [shape = 'u32[72,128]{1,0:T(1,128)}', space=vmem, size = 0x9000, scoped, tag = 'internal scratch']
  #allocation2 [shape = 's32[3]{0}', space=sflag, size = 0xc, scoped, tag = 'scratch operand']
  #allocation3 [shape = 's32[1]{0}', space=sflag, size = 0x4, scoped, tag = 'scoped memory for search_transfer.3']
  #allocation4 [shape = 'u8[2048]{0}', space=smem, size = 0x800, scoped, tag = 'prefetched SMEM operand 0']
  #allocation5 [shape = 's32[]', space=sflag, size = 0x4, offset = 0, fixed_abs, tag = 'sflag constant byte address 0x0 - dummy sync flag']
  #allocation6 [shape = 's32[]', space=sflag, size = 0x4, offset = 0, fixed_abs, tag = 'sflag constant byte address 0x0 - dummy sync flag']
  #allocation7 [shape = 's32[]', space=sflag, size = 0x4, offset = 0, fixed_abs, tag = 'sflag constant byte address 0x0 - dummy sync flag']
  #allocation8 [shape = 's32[]', space=sflag, size = 0x4, offset = 0, fixed_abs, tag = 'sflag constant byte address 0x0 - dummy sync flag']
  #allocation9 [shape = 's32[]', space=sflag, size = 0x4, offset = 0, fixed_abs, tag = 'sflag constant byte address 0x0 - dummy sync flag']
  #allocation10 [shape = 's32[]', space=sflag, size = 0x4, offset = 0, fixed_abs, tag = 'sflag constant byte address 0x0 - dummy sync flag']
  #allocation11 [shape = 's32[]', space=sflag, size = 0x4, offset = 0, fixed_abs, tag = 'sflag constant byte address 0x0 - dummy sync flag']
  #allocation12 [shape = 's32[]', space=sflag, size = 0x4, offset = 0, fixed_abs, tag = 'sflag constant byte address 0x0 - dummy sync flag']
  #allocation13 [shape = 's32[]', space=sflag, size = 0x4, offset = 0, fixed_abs, tag = 'sflag constant byte address 0x0 - dummy sync flag']
  #allocation14 [shape = 's32[]', space=sflag, size = 0x4, offset = 0, fixed_abs, tag = 'sflag constant byte address 0x0 - dummy sync flag']
  #allocation15 [shape = 's32[]', space=sflag, size = 0x4, offset = 0, fixed_abs, tag = 'sflag constant byte address 0x0 - dummy sync flag']
  #allocation16 [shape = 's32[]', space=sflag, size = 0x4, offset = 0, fixed_abs, tag = 'sflag constant byte address 0x0 - dummy sync flag']
  #allocation17 [shape = 's32[]', space=sflag, size = 0x4, offset = 0, fixed_abs, tag = 'sflag constant byte address 0x0 - dummy sync flag']
  #allocation18 [shape = 's32[]', space=sflag, size = 0x4, offset = 0, fixed_abs, tag = 'sflag constant byte address 0x0 - dummy sync flag']
  #allocation19 [shape = 's32[]', space=sflag, size = 0x4, offset = 0, fixed_abs, tag = 'sflag constant byte address 0x0 - dummy sync flag']
  #allocation20 [shape = 's32[]', space=sflag, size = 0x4, offset = 0, fixed_abs, tag = 'sflag constant byte address 0x0 - dummy sync flag']
  #allocation21 [shape = 's32[]', space=sflag, size = 0x4, offset = 0, fixed_abs, tag = 'sflag constant byte address 0x0 - dummy sync flag']
  #allocation22 [shape = 's32[]', space=sflag, size = 0x4, offset = 0, fixed_abs, tag = 'sflag constant byte address 0x0 - dummy sync flag']
  #allocation23 [shape = 's32[]', space=sflag, size = 0x4, offset = 0, fixed_abs, tag = 'sflag constant byte address 0x0 - dummy sync flag']
  #allocation24 [shape = 's32[]', space=sflag, size = 0x4, offset = 0, fixed_abs, tag = 'sflag constant byte address 0x0 - dummy sync flag']
  #allocation25 [shape = 's32[]', space=sflag, size = 0x4, offset = 0, fixed_abs, tag = 'sflag constant byte address 0x0 - dummy sync flag']
  #allocation26 [shape = 's32[]', space=sflag, size = 0x4, offset = 0, fixed_abs, tag = 'sflag constant byte address 0x0 - dummy sync flag']
  #allocation27 [shape = 's32[]', space=sflag, size = 0x4, offset = 0, fixed_abs, tag = 'sflag constant byte address 0x0 - dummy sync flag']
  #allocation28 [shape = 's32[]', space=sflag, size = 0x4, offset = 0, fixed_abs, tag = 'sflag constant byte address 0x0 - dummy sync flag']
  #allocation29 [shape = 's32[]', space=sflag, size = 0x4, offset = 0, fixed_abs, tag = 'sflag constant byte address 0x0 - dummy sync flag']
  #allocation30 [shape = 's32[]', space=sflag, size = 0x4, offset = 0, fixed_abs, tag = 'sflag constant byte address 0x0 - dummy sync flag']
  #allocation31 [shape = 's32[]', space=sflag, size = 0x4, offset = 0, fixed_abs, tag = 'sflag constant byte address 0x0 - dummy sync flag']
  #allocation32 [shape = 's32[]', space=sflag, size = 0x4, offset = 0, fixed_abs, tag = 'sflag constant byte address 0x0 - dummy sync flag']
  #allocation33 [shape = 's32[]', space=sflag, size = 0x4, offset = 0, fixed_abs, tag = 'sflag constant byte address 0x0 - dummy sync flag']
  #allocation34 [shape = 's32[]', space=sflag, size = 0x4, offset = 0, fixed_abs, tag = 'sflag constant byte address 0x0 - dummy sync flag']
  #allocation35 [shape = 's32[]', space=sflag, size = 0x4, offset = 0, fixed_abs, tag = 'sflag constant byte address 0x0 - dummy sync flag']
  #allocation36 [shape = 's32[]', space=sflag, size = 0x4, offset = 0, fixed_abs, tag = 'sflag constant byte address 0x0 - dummy sync flag']
  #allocation37 [shape = 's32[]', space=sflag, size = 0x4, offset = 0, fixed_abs, tag = 'sflag constant byte address 0x0 - dummy sync flag']
  #allocation38 [shape = 's32[]', space=sflag, size = 0x4, offset = 0, fixed_abs, tag = 'sflag constant byte address 0x0 - dummy sync flag']
  #allocation39 [shape = 's32[]', space=sflag, size = 0x4, offset = 0, fixed_abs, tag = 'sflag constant byte address 0x0 - dummy sync flag']
  #allocation40 [shape = 's32[]', space=sflag, size = 0x4, offset = 0, fixed_abs, tag = 'sflag constant byte address 0x0 - dummy sync flag']
  #allocation41 [shape = 's32[]', space=sflag, size = 0x4, offset = 0, fixed_abs, tag = 'sflag constant byte address 0x0 - dummy sync flag']
  #allocation42 [shape = 's32[]', space=sflag, size = 0x4, offset = 0, fixed_abs, tag = 'sflag constant byte address 0x0 - dummy sync flag']
  #allocation43 [shape = 's32[]', space=sflag, size = 0x4, offset = 0, fixed_abs, tag = 'sflag constant byte address 0x0 - dummy sync flag']
  #allocation44 [shape = 's32[]', space=sflag, size = 0x4, offset = 0, fixed_abs, tag = 'sflag constant byte address 0x0 - dummy sync flag']
  #allocation45 [shape = 's32[]', space=sflag, size = 0x4, offset = 0, fixed_abs, tag = 'sflag constant byte address 0x0 - dummy sync flag']
  #allocation46 [shape = 's32[]', space=sflag, size = 0x4, offset = 0, fixed_abs, tag = 'sflag constant byte address 0x0 - dummy sync flag']
  #allocation47 [shape = 's32[]', space=sflag, size = 0x4, offset = 0, fixed_abs, tag = 'sflag constant byte address 0x0 - dummy sync flag']
  #allocation48 [shape = 's32[]', space=sflag, size = 0x4, offset = 0, fixed_abs, tag = 'sflag constant byte address 0x0 - dummy sync flag']
  #allocation49 [shape = 's32[]', space=sflag, size = 0x4, offset = 0, fixed_abs, tag = 'sflag constant byte address 0x0 - dummy sync flag']
  #allocation50 [shape = 's32[]', space=sflag, size = 0x4, offset = 0, fixed_abs, tag = 'sflag constant byte address 0x0 - dummy sync flag']
  #allocation51 [shape = 's32[]', space=sflag, size = 0x4, offset = 0, fixed_abs, tag = 'sflag constant byte address 0x0 - dummy sync flag']
  #allocation52 [shape = 's32[]', space=sflag, size = 0x4, offset = 0, fixed_abs, tag = 'sflag constant byte address 0x0 - dummy sync flag']
  %s0 = inlined_call_operand.vmem [shape: s32[512], index: 0, kind: input, shape index: {}]
  %s1 = inlined_call_operand.vmem [shape: f32[512,36], index: 1, kind: input, shape index: {}]
  %s2 = inlined_call_operand.vmem [shape: f32[512,144], index: 2, kind: input, shape index: {}]
  %s3 = inlined_call_operand.vmem [shape: f32[512,576], index: 3, kind: input, shape index: {}]
  %s4 = inlined_call_operand.vmem [shape: f32[512,36], index: 4, kind: output, shape index: {0}]
  %s5 = inlined_call_operand.vmem [shape: f32[512,144], index: 5, kind: output, shape index: {1}]
  %s6 = inlined_call_operand.vmem [shape: f32[512,576], index: 6, kind: output, shape index: {2}]
  %7 = xla_tuple %s4, %s5, %s6
  %s8 = sld [smem:[#allocation0]]
  $region1449: #{search_transfer.3} parent=0
    _
  %s10 = ssub.s32 1, %s8
  %s11 = scalar_select 0, %s10, %s8
  %s13 = sshll.u32 %s0, 4
  %s14 = int_to_ptr.vmem [resolvable:$true] %s13
  %16 = dma.vmem_to_smem %s14, 64, [#allocation4], [#allocation3]
  %18 = dma.done [#allocation3], 64
  %19 = sfence
  loop: start=0, step=1, limit=32
  $region2: #{search_transfer.3} parent=0 // loop_pre_header
    _
  $region3: #{search_transfer.3} parent=0 // loop_header
    %s21 = sphi 0, %s25
    %p22 = scmp.ge.s32.totalorder %s21, 32
  $region4: #{search_transfer.3} parent=0 // loop_header_branch
    %24 = sbr.rel (%p22) target = $region8
  $region5: #{search_transfer.3} parent=0 // loop_body
    %s26 = sadd.s32 %s21, 1
    %s27 = smul.u32 %s21, 16
    %s28 = sld [smem:[#allocation4 + %s27]]
    %s29 = scalar_lea.vmem %s1, %s28
    %s30 = scalar_lea.vmem %s4, %s27
    // Predicated region
    $region9: #{search_transfer.3} parent=5 // pred_check
      _
    $region10: #{search_transfer.3} parent=5 // pred_check_branch
      %32 = sbr.rel target = $region12
    $region11: #{search_transfer.3} parent=5 // pred_region
      // Predicated region
      $region24: #{search_transfer.3} parent=11 // pred_check
        _
      $region25: #{search_transfer.3} parent=11 // pred_check_branch
        %48 = sbr.rel (0) target = $region27
      $region26: #{search_transfer.3} parent=11 // pred_region
        %s50 = ssub.s32 2, 1
        loop: start=0, step=1, limit=1
        $region28: #{search_transfer.3} parent=26 // loop_pre_header
          _
        $region29: #{search_transfer.3} parent=26 // loop_header
          %s52 = sphi 0, %s56
          %p53 = scmp.ge.s32.totalorder %s52, 1
          %s57 = sphi %s29, %s29
          %s58 = sphi %s30, %s30
        $region30: #{search_transfer.3} parent=26 // loop_header_branch
          %55 = sbr.rel (%p53) target = $region34
        $region31: #{search_transfer.3} parent=26 // loop_body
          %v59 = vld [vmem:[%s57] sm:%s50]
          %60 = vst [vmem:[%s58] sm:%s50] %v59
        $region32: #{search_transfer.3} parent=26 // loop_footer
          %s56 = sadd.s32 1, %s52
        $region33: #{search_transfer.3} parent=26 // loop_footer_branch
          %51 = sbr.rel target = $region29
        $region34: #{search_transfer.3} parent=26 // loop_exit
          _
      $region27: #{search_transfer.3} parent=11 // pred_fallthru
        _
    $region12: #{search_transfer.3} parent=5 // pred_fallthru
      _
    // Predicated region
    $region13: #{search_transfer.3} parent=5 // pred_check
      _
    $region14: #{search_transfer.3} parent=5 // pred_check_branch
      %34 = sbr.rel (0) target = $region16
    $region15: #{search_transfer.3} parent=5 // pred_region
      %s36 = ssub.s32 2, 1
      loop: start=0, step=1, limit=1
      $region17: #{search_transfer.3} parent=15 // loop_pre_header
        _
      $region18: #{search_transfer.3} parent=15 // loop_header
        %s38 = sphi 0, %s42
        %p39 = scmp.ge.s32.totalorder %s38, 1
        %s43 = sphi %s29, %s29
        %s44 = sphi %s30, %s30
      $region19: #{search_transfer.3} parent=15 // loop_header_branch
        %41 = sbr.rel (%p39) target = $region23
      $region20: #{search_transfer.3} parent=15 // loop_body
        %v45 = vld [vmem:[%s43] sm:%s36]
        %46 = vst [vmem:[%s44] sm:%s36] %v45
      $region21: #{search_transfer.3} parent=15 // loop_footer
        %s42 = sadd.s32 1, %s38
      $region22: #{search_transfer.3} parent=15 // loop_footer_branch
        %37 = sbr.rel target = $region18
      $region23: #{search_transfer.3} parent=15 // loop_exit
        _
    $region16: #{search_transfer.3} parent=5 // pred_fallthru
      _
    // Predicated region
    $region35: #{search_transfer.3} parent=5 // pred_check
      _
    $region36: #{search_transfer.3} parent=5 // pred_check_branch
      %63 = sbr.rel (0) target = $region38
    $region37: #{search_transfer.3} parent=5 // pred_region
      %64 = vsyncadd [#allocation2], 16
    $region38: #{search_transfer.3} parent=5 // pred_fallthru
      _
    %s65 = sshrl.u32 %s28, 3
    %s66 = sand.u32 %s28, 7
    %s67 = smul.u32 %s65, 16
    %s68 = sadd.s32 %s66, %s67
    %s69 = scalar_lea.vmem %s2, %s68
    %s70 = sshrl.u32 %s27, 3
    %s71 = sand.u32 %s27, 7
    %s72 = smul.u32 %s70, 16
    %s73 = sadd.s32 %s71, %s72
    %s74 = scalar_lea.vmem %s5, %s73
    %s75 = scalar_lea.sflag [#allocation2], 1
    // Predicated region
    $region39: #{search_transfer.3} parent=5 // pred_check
      _
    $region40: #{search_transfer.3} parent=5 // pred_check_branch
      %77 = sbr.rel target = $region42
    $region41: #{search_transfer.3} parent=5 // pred_region
      // Predicated region
      $region54: #{search_transfer.3} parent=41 // pred_check
        _
      $region55: #{search_transfer.3} parent=41 // pred_check_branch
        %95 = sbr.rel (0) target = $region57
      $region56: #{search_transfer.3} parent=41 // pred_region
        %s97 = ssub.s32 2, 1
        loop: start=0, step=1, limit=1
        $region58: #{search_transfer.3} parent=56 // loop_pre_header
          _
        $region59: #{search_transfer.3} parent=56 // loop_header
          %s99 = sphi 0, %s103
          %p100 = scmp.ge.s32.totalorder %s99, 1
          %s104 = sphi %s69, %s69
          %s105 = sphi %s74, %s74
        $region60: #{search_transfer.3} parent=56 // loop_header_branch
          %102 = sbr.rel (%p100) target = $region64
        $region61: #{search_transfer.3} parent=56 // loop_body
          %v106 = vld [vmem:[%s104] sm:%s97]
          %107 = vst [vmem:[%s105] sm:%s97] %v106
          %v108 = vld [vmem:[%s104 + $0x8] sm:%s97]
          %109 = vst [vmem:[%s105 + $0x8] sm:%s97] %v108
        $region62: #{search_transfer.3} parent=56 // loop_footer
          %s103 = sadd.s32 1, %s99
        $region63: #{search_transfer.3} parent=56 // loop_footer_branch
          %98 = sbr.rel target = $region59
        $region64: #{search_transfer.3} parent=56 // loop_exit
          _
      $region57: #{search_transfer.3} parent=41 // pred_fallthru
        _
    $region42: #{search_transfer.3} parent=5 // pred_fallthru
      _
    // Predicated region
    $region43: #{search_transfer.3} parent=5 // pred_check
      _
    $region44: #{search_transfer.3} parent=5 // pred_check_branch
      %79 = sbr.rel (0) target = $region46
    $region45: #{search_transfer.3} parent=5 // pred_region
      %s81 = ssub.s32 2, 1
      loop: start=0, step=1, limit=1
      $region47: #{search_transfer.3} parent=45 // loop_pre_header
        _
      $region48: #{search_transfer.3} parent=45 // loop_header
        %s83 = sphi 0, %s87
        %p84 = scmp.ge.s32.totalorder %s83, 1
        %s88 = sphi %s69, %s69
        %s89 = sphi %s74, %s74
      $region49: #{search_transfer.3} parent=45 // loop_header_branch
        %86 = sbr.rel (%p84) target = $region53
      $region50: #{search_transfer.3} parent=45 // loop_body
        %v90 = vld [vmem:[%s88] sm:%s81]
        %91 = vst [vmem:[%s89] sm:%s81] %v90
        %v92 = vld [vmem:[%s88 + $0x8] sm:%s81]
        %93 = vst [vmem:[%s89 + $0x8] sm:%s81] %v92
      $region51: #{search_transfer.3} parent=45 // loop_footer
        %s87 = sadd.s32 1, %s83
      $region52: #{search_transfer.3} parent=45 // loop_footer_branch
        %82 = sbr.rel target = $region48
      $region53: #{search_transfer.3} parent=45 // loop_exit
        _
    $region46: #{search_transfer.3} parent=5 // pred_fallthru
      _
    // Predicated region
    $region65: #{search_transfer.3} parent=5 // pred_check
      _
    $region66: #{search_transfer.3} parent=5 // pred_check_branch
      %112 = sbr.rel (0) target = $region68
    $region67: #{search_transfer.3} parent=5 // pred_region
      %113 = vsyncadd %s75, 32
    $region68: #{search_transfer.3} parent=5 // pred_fallthru
      _
    %s114 = smul.u32 %s65, 40
    %s115 = sadd.s32 %s66, %s114
    %s116 = scalar_lea.vmem %s3, %s115
    %s117 = smul.u32 %s70, 40
    %s118 = sadd.s32 %s71, %s117
    %s119 = scalar_lea.vmem %s6, %s118
    %s120 = scalar_lea.sflag [#allocation2], 2
    // Predicated region
    $region69: #{search_transfer.3} parent=5 // pred_check
      _
    $region70: #{search_transfer.3} parent=5 // pred_check_branch
      %122 = sbr.rel target = $region72
    $region71: #{search_transfer.3} parent=5 // pred_region
      // Predicated region
      $region84: #{search_transfer.3} parent=71 // pred_check
        _
      $region85: #{search_transfer.3} parent=71 // pred_check_branch
        %146 = sbr.rel (0) target = $region87
      $region86: #{search_transfer.3} parent=71 // pred_region
        %s148 = ssub.s32 2, 1
        loop: start=0, step=1, limit=1
        $region88: #{search_transfer.3} parent=86 // loop_pre_header
          _
        $region89: #{search_transfer.3} parent=86 // loop_header
          %s150 = sphi 0, %s154
          %p151 = scmp.ge.s32.totalorder %s150, 1
          %s155 = sphi %s116, %s116
          %s156 = sphi %s119, %s119
        $region90: #{search_transfer.3} parent=86 // loop_header_branch
          %153 = sbr.rel (%p151) target = $region94
        $region91: #{search_transfer.3} parent=86 // loop_body
          %v157 = vld [vmem:[%s155] sm:%s148]
          %158 = vst [vmem:[%s156] sm:%s148] %v157
          %v159 = vld [vmem:[%s155 + $0x8] sm:%s148]
          %160 = vst [vmem:[%s156 + $0x8] sm:%s148] %v159
          %v161 = vld [vmem:[%s155 + $0x10] sm:%s148]
          %162 = vst [vmem:[%s156 + $0x10] sm:%s148] %v161
          %v163 = vld [vmem:[%s155 + $0x18] sm:%s148]
          %164 = vst [vmem:[%s156 + $0x18] sm:%s148] %v163
          %v165 = vld [vmem:[%s155 + $0x20] sm:%s148]
          %166 = vst [vmem:[%s156 + $0x20] sm:%s148] %v165
        $region92: #{search_transfer.3} parent=86 // loop_footer
          %s154 = sadd.s32 1, %s150
        $region93: #{search_transfer.3} parent=86 // loop_footer_branch
          %149 = sbr.rel target = $region89
        $region94: #{search_transfer.3} parent=86 // loop_exit
          _
      $region87: #{search_transfer.3} parent=71 // pred_fallthru
        _
    $region72: #{search_transfer.3} parent=5 // pred_fallthru
      _
    // Predicated region
    $region73: #{search_transfer.3} parent=5 // pred_check
      _
    $region74: #{search_transfer.3} parent=5 // pred_check_branch
      %124 = sbr.rel (0) target = $region76
    $region75: #{search_transfer.3} parent=5 // pred_region
      %s126 = ssub.s32 2, 1
      loop: start=0, step=1, limit=1
      $region77: #{search_transfer.3} parent=75 // loop_pre_header
        _
      $region78: #{search_transfer.3} parent=75 // loop_header
        %s128 = sphi 0, %s132
        %p129 = scmp.ge.s32.totalorder %s128, 1
        %s133 = sphi %s116, %s116
        %s134 = sphi %s119, %s119
      $region79: #{search_transfer.3} parent=75 // loop_header_branch
        %131 = sbr.rel (%p129) target = $region83
      $region80: #{search_transfer.3} parent=75 // loop_body
        %v135 = vld [vmem:[%s133] sm:%s126]
        %136 = vst [vmem:[%s134] sm:%s126] %v135
        %v137 = vld [vmem:[%s133 + $0x8] sm:%s126]
        %138 = vst [vmem:[%s134 + $0x8] sm:%s126] %v137
        %v139 = vld [vmem:[%s133 + $0x10] sm:%s126]
        %140 = vst [vmem:[%s134 + $0x10] sm:%s126] %v139
        %v141 = vld [vmem:[%s133 + $0x18] sm:%s126]
        %142 = vst [vmem:[%s134 + $0x18] sm:%s126] %v141
        %v143 = vld [vmem:[%s133 + $0x20] sm:%s126]
        %144 = vst [vmem:[%s134 + $0x20] sm:%s126] %v143
      $region81: #{search_transfer.3} parent=75 // loop_footer
        %s132 = sadd.s32 1, %s128
      $region82: #{search_transfer.3} parent=75 // loop_footer_branch
        %127 = sbr.rel target = $region78
      $region83: #{search_transfer.3} parent=75 // loop_exit
        _
    $region76: #{search_transfer.3} parent=5 // pred_fallthru
      _
    // Predicated region
    $region95: #{search_transfer.3} parent=5 // pred_check
      _
    $region96: #{search_transfer.3} parent=5 // pred_check_branch
      %169 = sbr.rel (0) target = $region98
    $region97: #{search_transfer.3} parent=5 // pred_region
      %170 = vsyncadd %s120, 80
    $region98: #{search_transfer.3} parent=5 // pred_fallthru
      _
    %s171 = sadd.s32 %s27, 1
    %s172 = sld [smem:[#allocation4 + %s171]]
    %s173 = scalar_lea.vmem %s1, %s172
    %s174 = scalar_lea.vmem %s4, %s171
    // Predicated region
    $region99: #{search_transfer.3} parent=5 // pred_check
      _
    $region100: #{search_transfer.3} parent=5 // pred_check_branch
      %176 = sbr.rel target = $region102
    $region101: #{search_transfer.3} parent=5 // pred_region
      // Predicated region
      $region114: #{search_transfer.3} parent=101 // pred_check
        _
      $region115: #{search_transfer.3} parent=101 // pred_check_branch
        %192 = sbr.rel (0) target = $region117
      $region116: #{search_transfer.3} parent=101 // pred_region
        %s194 = ssub.s32 2, 1
        loop: start=0, step=1, limit=1
        $region118: #{search_transfer.3} parent=116 // loop_pre_header
          _
        $region119: #{search_transfer.3} parent=116 // loop_header
          %s196 = sphi 0, %s200
          %p197 = scmp.ge.s32.totalorder %s196, 1
          %s201 = sphi %s173, %s173
          %s202 = sphi %s174, %s174
        $region120: #{search_transfer.3} parent=116 // loop_header_branch
          %199 = sbr.rel (%p197) target = $region124
        $region121: #{search_transfer.3} parent=116 // loop_body
          %v203 = vld [vmem:[%s201] sm:%s194]
          %204 = vst [vmem:[%s202] sm:%s194] %v203
        $region122: #{search_transfer.3} parent=116 // loop_footer
          %s200 = sadd.s32 1, %s196
        $region123: #{search_transfer.3} parent=116 // loop_footer_branch
          %195 = sbr.rel target = $region119
        $region124: #{search_transfer.3} parent=116 // loop_exit
          _
      $region117: #{search_transfer.3} parent=101 // pred_fallthru
        _
    $region102: #{search_transfer.3} parent=5 // pred_fallthru
      _
    // Predicated region
    $region103: #{search_transfer.3} parent=5 // pred_check
      _
    $region104: #{search_transfer.3} parent=5 // pred_check_branch
      %178 = sbr.rel (0) target = $region106
    $region105: #{search_transfer.3} parent=5 // pred_region
      %s180 = ssub.s32 2, 1
      loop: start=0, step=1, limit=1
      $region107: #{search_transfer.3} parent=105 // loop_pre_header
        _
      $region108: #{search_transfer.3} parent=105 // loop_header
        %s182 = sphi 0, %s186
        %p183 = scmp.ge.s32.totalorder %s182, 1
        %s187 = sphi %s173, %s173
        %s188 = sphi %s174, %s174
      $region109: #{search_transfer.3} parent=105 // loop_header_branch
        %185 = sbr.rel (%p183) target = $region113
      $region110: #{search_transfer.3} parent=105 // loop_body
        %v189 = vld [vmem:[%s187] sm:%s180]
        %190 = vst [vmem:[%s188] sm:%s180] %v189
      $region111: #{search_transfer.3} parent=105 // loop_footer
        %s186 = sadd.s32 1, %s182
      $region112: #{search_transfer.3} parent=105 // loop_footer_branch
        %181 = sbr.rel target = $region108
      $region113: #{search_transfer.3} parent=105 // loop_exit
        _
    $region106: #{search_transfer.3} parent=5 // pred_fallthru
      _
    // Predicated region
    $region125: #{search_transfer.3} parent=5 // pred_check
      _
    $region126: #{search_transfer.3} parent=5 // pred_check_branch
      %207 = sbr.rel (0) target = $region128
    $region127: #{search_transfer.3} parent=5 // pred_region
      %208 = vsyncadd [#allocation2], 16
    $region128: #{search_transfer.3} parent=5 // pred_fallthru
      _
    %s209 = sshrl.u32 %s172, 3
    %s210 = sand.u32 %s172, 7
    %s211 = smul.u32 %s209, 16
    %s212 = sadd.s32 %s210, %s211
    %s213 = scalar_lea.vmem %s2, %s212
    %s214 = sshrl.u32 %s171, 3
    %s215 = sand.u32 %s171, 7
    %s216 = smul.u32 %s214, 16
    %s217 = sadd.s32 %s215, %s216
    %s218 = scalar_lea.vmem %s5, %s217
    // Predicated region
    $region129: #{search_transfer.3} parent=5 // pred_check
      _
    $region130: #{search_transfer.3} parent=5 // pred_check_branch
      %220 = sbr.rel target = $region132
    $region131: #{search_transfer.3} parent=5 // pred_region
      // Predicated region
      $region144: #{search_transfer.3} parent=131 // pred_check
        _
      $region145: #{search_transfer.3} parent=131 // pred_check_branch
        %238 = sbr.rel (0) target = $region147
      $region146: #{search_transfer.3} parent=131 // pred_region
        %s240 = ssub.s32 2, 1
        loop: start=0, step=1, limit=1
        $region148: #{search_transfer.3} parent=146 // loop_pre_header
          _
        $region149: #{search_transfer.3} parent=146 // loop_header
          %s242 = sphi 0, %s246
          %p243 = scmp.ge.s32.totalorder %s242, 1
          %s247 = sphi %s213, %s213
          %s248 = sphi %s218, %s218
        $region150: #{search_transfer.3} parent=146 // loop_header_branch
          %245 = sbr.rel (%p243) target = $region154
        $region151: #{search_transfer.3} parent=146 // loop_body
          %v249 = vld [vmem:[%s247] sm:%s240]
          %250 = vst [vmem:[%s248] sm:%s240] %v249
          %v251 = vld [vmem:[%s247 + $0x8] sm:%s240]
          %252 = vst [vmem:[%s248 + $0x8] sm:%s240] %v251
        $region152: #{search_transfer.3} parent=146 // loop_footer
          %s246 = sadd.s32 1, %s242
        $region153: #{search_transfer.3} parent=146 // loop_footer_branch
          %241 = sbr.rel target = $region149
        $region154: #{search_transfer.3} parent=146 // loop_exit
          _
      $region147: #{search_transfer.3} parent=131 // pred_fallthru
        _
    $region132: #{search_transfer.3} parent=5 // pred_fallthru
      _
    // Predicated region
    $region133: #{search_transfer.3} parent=5 // pred_check
      _
    $region134: #{search_transfer.3} parent=5 // pred_check_branch
      %222 = sbr.rel (0) target = $region136
    $region135: #{search_transfer.3} parent=5 // pred_region
      %s224 = ssub.s32 2, 1
      loop: start=0, step=1, limit=1
      $region137: #{search_transfer.3} parent=135 // loop_pre_header
        _
      $region138: #{search_transfer.3} parent=135 // loop_header
        %s226 = sphi 0, %s230
        %p227 = scmp.ge.s32.totalorder %s226, 1
        %s231 = sphi %s213, %s213
        %s232 = sphi %s218, %s218
      $region139: #{search_transfer.3} parent=135 // loop_header_branch
        %229 = sbr.rel (%p227) target = $region143
      $region140: #{search_transfer.3} parent=135 // loop_body
        %v233 = vld [vmem:[%s231] sm:%s224]
        %234 = vst [vmem:[%s232] sm:%s224] %v233
        %v235 = vld [vmem:[%s231 + $0x8] sm:%s224]
        %236 = vst [vmem:[%s232 + $0x8] sm:%s224] %v235
      $region141: #{search_transfer.3} parent=135 // loop_footer
        %s230 = sadd.s32 1, %s226
      $region142: #{search_transfer.3} parent=135 // loop_footer_branch
        %225 = sbr.rel target = $region138
      $region143: #{search_transfer.3} parent=135 // loop_exit
        _
    $region136: #{search_transfer.3} parent=5 // pred_fallthru
      _
    // Predicated region
    $region155: #{search_transfer.3} parent=5 // pred_check
      _
    $region156: #{search_transfer.3} parent=5 // pred_check_branch
      %255 = sbr.rel (0) target = $region158
    $region157: #{search_transfer.3} parent=5 // pred_region
      %256 = vsyncadd %s75, 32
    $region158: #{search_transfer.3} parent=5 // pred_fallthru
      _
    %s257 = smul.u32 %s209, 40
    %s258 = sadd.s32 %s210, %s257
    %s259 = scalar_lea.vmem %s3, %s258
    %s260 = smul.u32 %s214, 40
    %s261 = sadd.s32 %s215, %s260
    %s262 = scalar_lea.vmem %s6, %s261
    // Predicated region
    $region159: #{search_transfer.3} parent=5 // pred_check
      _
    $region160: #{search_transfer.3} parent=5 // pred_check_branch
      %264 = sbr.rel target = $region162
    $region161: #{search_transfer.3} parent=5 // pred_region
      // Predicated region
      $region174: #{search_transfer.3} parent=161 // pred_check
        _
      $region175: #{search_transfer.3} parent=161 // pred_check_branch
        %288 = sbr.rel (0) target = $region177
      $region176: #{search_transfer.3} parent=161 // pred_region
        %s290 = ssub.s32 2, 1
        loop: start=0, step=1, limit=1
        $region178: #{search_transfer.3} parent=176 // loop_pre_header
          _
        $region179: #{search_transfer.3} parent=176 // loop_header
          %s292 = sphi 0, %s296
          %p293 = scmp.ge.s32.totalorder %s292, 1
          %s297 = sphi %s259, %s259
          %s298 = sphi %s262, %s262
        $region180: #{search_transfer.3} parent=176 // loop_header_branch
          %295 = sbr.rel (%p293) target = $region184
        $region181: #{search_transfer.3} parent=176 // loop_body
          %v299 = vld [vmem:[%s297] sm:%s290]
          %300 = vst [vmem:[%s298] sm:%s290] %v299
          %v301 = vld [vmem:[%s297 + $0x8] sm:%s290]
          %302 = vst [vmem:[%s298 + $0x8] sm:%s290] %v301
          %v303 = vld [vmem:[%s297 + $0x10] sm:%s290]
          %304 = vst [vmem:[%s298 + $0x10] sm:%s290] %v303
          %v305 = vld [vmem:[%s297 + $0x18] sm:%s290]
          %306 = vst [vmem:[%s298 + $0x18] sm:%s290] %v305
          %v307 = vld [vmem:[%s297 + $0x20] sm:%s290]
          %308 = vst [vmem:[%s298 + $0x20] sm:%s290] %v307
        $region182: #{search_transfer.3} parent=176 // loop_footer
          %s296 = sadd.s32 1, %s292
        $region183: #{search_transfer.3} parent=176 // loop_footer_branch
          %291 = sbr.rel target = $region179
        $region184: #{search_transfer.3} parent=176 // loop_exit
          _
      $region177: #{search_transfer.3} parent=161 // pred_fallthru
        _
    $region162: #{search_transfer.3} parent=5 // pred_fallthru
      _
    // Predicated region
    $region163: #{search_transfer.3} parent=5 // pred_check
      _
    $region164: #{search_transfer.3} parent=5 // pred_check_branch
      %266 = sbr.rel (0) target = $region166
    $region165: #{search_transfer.3} parent=5 // pred_region
      %s268 = ssub.s32 2, 1
      loop: start=0, step=1, limit=1
      $region167: #{search_transfer.3} parent=165 // loop_pre_header
        _
      $region168: #{search_transfer.3} parent=165 // loop_header
        %s270 = sphi 0, %s274
        %p271 = scmp.ge.s32.totalorder %s270, 1
        %s275 = sphi %s259, %s259
        %s276 = sphi %s262, %s262
      $region169: #{search_transfer.3} parent=165 // loop_header_branch
        %273 = sbr.rel (%p271) target = $region173
      $region170: #{search_transfer.3} parent=165 // loop_body
        %v277 = vld [vmem:[%s275] sm:%s268]
        %278 = vst [vmem:[%s276] sm:%s268] %v277
        %v279 = vld [vmem:[%s275 + $0x8] sm:%s268]
        %280 = vst [vmem:[%s276 + $0x8] sm:%s268] %v279
        %v281 = vld [vmem:[%s275 + $0x10] sm:%s268]
        %282 = vst [vmem:[%s276 + $0x10] sm:%s268] %v281
        %v283 = vld [vmem:[%s275 + $0x18] sm:%s268]
        %284 = vst [vmem:[%s276 + $0x18] sm:%s268] %v283
        %v285 = vld [vmem:[%s275 + $0x20] sm:%s268]
        %286 = vst [vmem:[%s276 + $0x20] sm:%s268] %v285
      $region171: #{search_transfer.3} parent=165 // loop_footer
        %s274 = sadd.s32 1, %s270
      $region172: #{search_transfer.3} parent=165 // loop_footer_branch
        %269 = sbr.rel target = $region168
      $region173: #{search_transfer.3} parent=165 // loop_exit
        _
    $region166: #{search_transfer.3} parent=5 // pred_fallthru
      _
    // Predicated region
    $region185: #{search_transfer.3} parent=5 // pred_check
      _
    $region186: #{search_transfer.3} parent=5 // pred_check_branch
      %311 = sbr.rel (0) target = $region188
    $region187: #{search_transfer.3} parent=5 // pred_region
      %312 = vsyncadd %s120, 80
    $region188: #{search_transfer.3} parent=5 // pred_fallthru
      _
    %s313 = sadd.s32 %s27, 2
    %s314 = sld [smem:[#allocation4 + %s313]]
    %s315 = scalar_lea.vmem %s1, %s314
    %s316 = scalar_lea.vmem %s4, %s313
    // Predicated region
    $region189: #{search_transfer.3} parent=5 // pred_check
      _
    $region190: #{search_transfer.3} parent=5 // pred_check_branch
      %318 = sbr.rel target = $region192
    $region191: #{search_transfer.3} parent=5 // pred_region
      // Predicated region
      $region204: #{search_transfer.3} parent=191 // pred_check
        _
      $region205: #{search_transfer.3} parent=191 // pred_check_branch
        %334 = sbr.rel (0) target = $region207
      $region206: #{search_transfer.3} parent=191 // pred_region
        %s336 = ssub.s32 2, 1
        loop: start=0, step=1, limit=1
        $region208: #{search_transfer.3} parent=206 // loop_pre_header
          _
        $region209: #{search_transfer.3} parent=206 // loop_header
          %s338 = sphi 0, %s342
          %p339 = scmp.ge.s32.totalorder %s338, 1
          %s343 = sphi %s315, %s315
          %s344 = sphi %s316, %s316
        $region210: #{search_transfer.3} parent=206 // loop_header_branch
          %341 = sbr.rel (%p339) target = $region214
        $region211: #{search_transfer.3} parent=206 // loop_body
          %v345 = vld [vmem:[%s343] sm:%s336]
          %346 = vst [vmem:[%s344] sm:%s336] %v345
        $region212: #{search_transfer.3} parent=206 // loop_footer
          %s342 = sadd.s32 1, %s338
        $region213: #{search_transfer.3} parent=206 // loop_footer_branch
          %337 = sbr.rel target = $region209
        $region214: #{search_transfer.3} parent=206 // loop_exit
          _
      $region207: #{search_transfer.3} parent=191 // pred_fallthru
        _
    $region192: #{search_transfer.3} parent=5 // pred_fallthru
      _
    // Predicated region
    $region193: #{search_transfer.3} parent=5 // pred_check
      _
    $region194: #{search_transfer.3} parent=5 // pred_check_branch
      %320 = sbr.rel (0) target = $region196
    $region195: #{search_transfer.3} parent=5 // pred_region
      %s322 = ssub.s32 2, 1
      loop: start=0, step=1, limit=1
      $region197: #{search_transfer.3} parent=195 // loop_pre_header
        _
      $region198: #{search_transfer.3} parent=195 // loop_header
        %s324 = sphi 0, %s328
        %p325 = scmp.ge.s32.totalorder %s324, 1
        %s329 = sphi %s315, %s315
        %s330 = sphi %s316, %s316
      $region199: #{search_transfer.3} parent=195 // loop_header_branch
        %327 = sbr.rel (%p325) target = $region203
      $region200: #{search_transfer.3} parent=195 // loop_body
        %v331 = vld [vmem:[%s329] sm:%s322]
        %332 = vst [vmem:[%s330] sm:%s322] %v331
      $region201: #{search_transfer.3} parent=195 // loop_footer
        %s328 = sadd.s32 1, %s324
      $region202: #{search_transfer.3} parent=195 // loop_footer_branch
        %323 = sbr.rel target = $region198
      $region203: #{search_transfer.3} parent=195 // loop_exit
        _
    $region196: #{search_transfer.3} parent=5 // pred_fallthru
      _
    // Predicated region
    $region215: #{search_transfer.3} parent=5 // pred_check
      _
    $region216: #{search_transfer.3} parent=5 // pred_check_branch
      %349 = sbr.rel (0) target = $region218
    $region217: #{search_transfer.3} parent=5 // pred_region
      %350 = vsyncadd [#allocation2], 16
    $region218: #{search_transfer.3} parent=5 // pred_fallthru
      _
    %s351 = sshrl.u32 %s314, 3
    %s352 = sand.u32 %s314, 7
    %s353 = smul.u32 %s351, 16
    %s354 = sadd.s32 %s352, %s353
    %s355 = scalar_lea.vmem %s2, %s354
    %s356 = sshrl.u32 %s313, 3
    %s357 = sand.u32 %s313, 7
    %s358 = smul.u32 %s356, 16
    %s359 = sadd.s32 %s357, %s358
    %s360 = scalar_lea.vmem %s5, %s359
    // Predicated region
    $region219: #{search_transfer.3} parent=5 // pred_check
      _
    $region220: #{search_transfer.3} parent=5 // pred_check_branch
      %362 = sbr.rel target = $region222
    $region221: #{search_transfer.3} parent=5 // pred_region
      // Predicated region
      $region234: #{search_transfer.3} parent=221 // pred_check
        _
      $region235: #{search_transfer.3} parent=221 // pred_check_branch
        %380 = sbr.rel (0) target = $region237
      $region236: #{search_transfer.3} parent=221 // pred_region
        %s382 = ssub.s32 2, 1
        loop: start=0, step=1, limit=1
        $region238: #{search_transfer.3} parent=236 // loop_pre_header
          _
        $region239: #{search_transfer.3} parent=236 // loop_header
          %s384 = sphi 0, %s388
          %p385 = scmp.ge.s32.totalorder %s384, 1
          %s389 = sphi %s355, %s355
          %s390 = sphi %s360, %s360
        $region240: #{search_transfer.3} parent=236 // loop_header_branch
          %387 = sbr.rel (%p385) target = $region244
        $region241: #{search_transfer.3} parent=236 // loop_body
          %v391 = vld [vmem:[%s389] sm:%s382]
          %392 = vst [vmem:[%s390] sm:%s382] %v391
          %v393 = vld [vmem:[%s389 + $0x8] sm:%s382]
          %394 = vst [vmem:[%s390 + $0x8] sm:%s382] %v393
        $region242: #{search_transfer.3} parent=236 // loop_footer
          %s388 = sadd.s32 1, %s384
        $region243: #{search_transfer.3} parent=236 // loop_footer_branch
          %383 = sbr.rel target = $region239
        $region244: #{search_transfer.3} parent=236 // loop_exit
          _
      $region237: #{search_transfer.3} parent=221 // pred_fallthru
        _
    $region222: #{search_transfer.3} parent=5 // pred_fallthru
      _
    // Predicated region
    $region223: #{search_transfer.3} parent=5 // pred_check
      _
    $region224: #{search_transfer.3} parent=5 // pred_check_branch
      %364 = sbr.rel (0) target = $region226
    $region225: #{search_transfer.3} parent=5 // pred_region
      %s366 = ssub.s32 2, 1
      loop: start=0, step=1, limit=1
      $region227: #{search_transfer.3} parent=225 // loop_pre_header
        _
      $region228: #{search_transfer.3} parent=225 // loop_header
        %s368 = sphi 0, %s372
        %p369 = scmp.ge.s32.totalorder %s368, 1
        %s373 = sphi %s355, %s355
        %s374 = sphi %s360, %s360
      $region229: #{search_transfer.3} parent=225 // loop_header_branch
        %371 = sbr.rel (%p369) target = $region233
      $region230: #{search_transfer.3} parent=225 // loop_body
        %v375 = vld [vmem:[%s373] sm:%s366]
        %376 = vst [vmem:[%s374] sm:%s366] %v375
        %v377 = vld [vmem:[%s373 + $0x8] sm:%s366]
        %378 = vst [vmem:[%s374 + $0x8] sm:%s366] %v377
      $region231: #{search_transfer.3} parent=225 // loop_footer
        %s372 = sadd.s32 1, %s368
      $region232: #{search_transfer.3} parent=225 // loop_footer_branch
        %367 = sbr.rel target = $region228
      $region233: #{search_transfer.3} parent=225 // loop_exit
        _
    $region226: #{search_transfer.3} parent=5 // pred_fallthru
      _
    // Predicated region
    $region245: #{search_transfer.3} parent=5 // pred_check
      _
    $region246: #{search_transfer.3} parent=5 // pred_check_branch
      %397 = sbr.rel (0) target = $region248
    $region247: #{search_transfer.3} parent=5 // pred_region
      %398 = vsyncadd %s75, 32
    $region248: #{search_transfer.3} parent=5 // pred_fallthru
      _
    %s399 = smul.u32 %s351, 40
    %s400 = sadd.s32 %s352, %s399
    %s401 = scalar_lea.vmem %s3, %s400
    %s402 = smul.u32 %s356, 40
    %s403 = sadd.s32 %s357, %s402
    %s404 = scalar_lea.vmem %s6, %s403
    // Predicated region
    $region249: #{search_transfer.3} parent=5 // pred_check
      _
    $region250: #{search_transfer.3} parent=5 // pred_check_branch
      %406 = sbr.rel target = $region252
    $region251: #{search_transfer.3} parent=5 // pred_region
      // Predicated region
      $region264: #{search_transfer.3} parent=251 // pred_check
        _
      $region265: #{search_transfer.3} parent=251 // pred_check_branch
        %430 = sbr.rel (0) target = $region267
      $region266: #{search_transfer.3} parent=251 // pred_region
        %s432 = ssub.s32 2, 1
        loop: start=0, step=1, limit=1
        $region268: #{search_transfer.3} parent=266 // loop_pre_header
          _
        $region269: #{search_transfer.3} parent=266 // loop_header
          %s434 = sphi 0, %s438
          %p435 = scmp.ge.s32.totalorder %s434, 1
          %s439 = sphi %s401, %s401
          %s440 = sphi %s404, %s404
        $region270: #{search_transfer.3} parent=266 // loop_header_branch
          %437 = sbr.rel (%p435) target = $region274
        $region271: #{search_transfer.3} parent=266 // loop_body
          %v441 = vld [vmem:[%s439] sm:%s432]
          %442 = vst [vmem:[%s440] sm:%s432] %v441
          %v443 = vld [vmem:[%s439 + $0x8] sm:%s432]
          %444 = vst [vmem:[%s440 + $0x8] sm:%s432] %v443
          %v445 = vld [vmem:[%s439 + $0x10] sm:%s432]
          %446 = vst [vmem:[%s440 + $0x10] sm:%s432] %v445
          %v447 = vld [vmem:[%s439 + $0x18] sm:%s432]
          %448 = vst [vmem:[%s440 + $0x18] sm:%s432] %v447
          %v449 = vld [vmem:[%s439 + $0x20] sm:%s432]
          %450 = vst [vmem:[%s440 + $0x20] sm:%s432] %v449
        $region272: #{search_transfer.3} parent=266 // loop_footer
          %s438 = sadd.s32 1, %s434
        $region273: #{search_transfer.3} parent=266 // loop_footer_branch
          %433 = sbr.rel target = $region269
        $region274: #{search_transfer.3} parent=266 // loop_exit
          _
      $region267: #{search_transfer.3} parent=251 // pred_fallthru
        _
    $region252: #{search_transfer.3} parent=5 // pred_fallthru
      _
    // Predicated region
    $region253: #{search_transfer.3} parent=5 // pred_check
      _
    $region254: #{search_transfer.3} parent=5 // pred_check_branch
      %408 = sbr.rel (0) target = $region256
    $region255: #{search_transfer.3} parent=5 // pred_region
      %s410 = ssub.s32 2, 1
      loop: start=0, step=1, limit=1
      $region257: #{search_transfer.3} parent=255 // loop_pre_header
        _
      $region258: #{search_transfer.3} parent=255 // loop_header
        %s412 = sphi 0, %s416
        %p413 = scmp.ge.s32.totalorder %s412, 1
        %s417 = sphi %s401, %s401
        %s418 = sphi %s404, %s404
      $region259: #{search_transfer.3} parent=255 // loop_header_branch
        %415 = sbr.rel (%p413) target = $region263
      $region260: #{search_transfer.3} parent=255 // loop_body
        %v419 = vld [vmem:[%s417] sm:%s410]
        %420 = vst [vmem:[%s418] sm:%s410] %v419
        %v421 = vld [vmem:[%s417 + $0x8] sm:%s410]
        %422 = vst [vmem:[%s418 + $0x8] sm:%s410] %v421
        %v423 = vld [vmem:[%s417 + $0x10] sm:%s410]
        %424 = vst [vmem:[%s418 + $0x10] sm:%s410] %v423
        %v425 = vld [vmem:[%s417 + $0x18] sm:%s410]
        %426 = vst [vmem:[%s418 + $0x18] sm:%s410] %v425
        %v427 = vld [vmem:[%s417 + $0x20] sm:%s410]
        %428 = vst [vmem:[%s418 + $0x20] sm:%s410] %v427
      $region261: #{search_transfer.3} parent=255 // loop_footer
        %s416 = sadd.s32 1, %s412
      $region262: #{search_transfer.3} parent=255 // loop_footer_branch
        %411 = sbr.rel target = $region258
      $region263: #{search_transfer.3} parent=255 // loop_exit
        _
    $region256: #{search_transfer.3} parent=5 // pred_fallthru
      _
    // Predicated region
    $region275: #{search_transfer.3} parent=5 // pred_check
      _
    $region276: #{search_transfer.3} parent=5 // pred_check_branch
      %453 = sbr.rel (0) target = $region278
    $region277: #{search_transfer.3} parent=5 // pred_region
      %454 = vsyncadd %s120, 80
    $region278: #{search_transfer.3} parent=5 // pred_fallthru
      _
    %s455 = sadd.s32 %s27, 3
    %s456 = sld [smem:[#allocation4 + %s455]]
    %s457 = scalar_lea.vmem %s1, %s456
    %s458 = scalar_lea.vmem %s4, %s455
    // Predicated region
    $region279: #{search_transfer.3} parent=5 // pred_check
      _
    $region280: #{search_transfer.3} parent=5 // pred_check_branch
      %460 = sbr.rel target = $region282
    $region281: #{search_transfer.3} parent=5 // pred_region
      // Predicated region
      $region294: #{search_transfer.3} parent=281 // pred_check
        _
      $region295: #{search_transfer.3} parent=281 // pred_check_branch
        %476 = sbr.rel (0) target = $region297
      $region296: #{search_transfer.3} parent=281 // pred_region
        %s478 = ssub.s32 2, 1
        loop: start=0, step=1, limit=1
        $region298: #{search_transfer.3} parent=296 // loop_pre_header
          _
        $region299: #{search_transfer.3} parent=296 // loop_header
          %s480 = sphi 0, %s484
          %p481 = scmp.ge.s32.totalorder %s480, 1
          %s485 = sphi %s457, %s457
          %s486 = sphi %s458, %s458
        $region300: #{search_transfer.3} parent=296 // loop_header_branch
          %483 = sbr.rel (%p481) target = $region304
        $region301: #{search_transfer.3} parent=296 // loop_body
          %v487 = vld [vmem:[%s485] sm:%s478]
          %488 = vst [vmem:[%s486] sm:%s478] %v487
        $region302: #{search_transfer.3} parent=296 // loop_footer
          %s484 = sadd.s32 1, %s480
        $region303: #{search_transfer.3} parent=296 // loop_footer_branch
          %479 = sbr.rel target = $region299
        $region304: #{search_transfer.3} parent=296 // loop_exit
          _
      $region297: #{search_transfer.3} parent=281 // pred_fallthru
        _
    $region282: #{search_transfer.3} parent=5 // pred_fallthru
      _
    // Predicated region
    $region283: #{search_transfer.3} parent=5 // pred_check
      _
    $region284: #{search_transfer.3} parent=5 // pred_check_branch
      %462 = sbr.rel (0) target = $region286
    $region285: #{search_transfer.3} parent=5 // pred_region
      %s464 = ssub.s32 2, 1
      loop: start=0, step=1, limit=1
      $region287: #{search_transfer.3} parent=285 // loop_pre_header
        _
      $region288: #{search_transfer.3} parent=285 // loop_header
        %s466 = sphi 0, %s470
        %p467 = scmp.ge.s32.totalorder %s466, 1
        %s471 = sphi %s457, %s457
        %s472 = sphi %s458, %s458
      $region289: #{search_transfer.3} parent=285 // loop_header_branch
        %469 = sbr.rel (%p467) target = $region293
      $region290: #{search_transfer.3} parent=285 // loop_body
        %v473 = vld [vmem:[%s471] sm:%s464]
        %474 = vst [vmem:[%s472] sm:%s464] %v473
      $region291: #{search_transfer.3} parent=285 // loop_footer
        %s470 = sadd.s32 1, %s466
      $region292: #{search_transfer.3} parent=285 // loop_footer_branch
        %465 = sbr.rel target = $region288
      $region293: #{search_transfer.3} parent=285 // loop_exit
        _
    $region286: #{search_transfer.3} parent=5 // pred_fallthru
      _
    // Predicated region
    $region305: #{search_transfer.3} parent=5 // pred_check
      _
    $region306: #{search_transfer.3} parent=5 // pred_check_branch
      %491 = sbr.rel (0) target = $region308
    $region307: #{search_transfer.3} parent=5 // pred_region
      %492 = vsyncadd [#allocation2], 16
    $region308: #{search_transfer.3} parent=5 // pred_fallthru
      _
    %s493 = sshrl.u32 %s456, 3
    %s494 = sand.u32 %s456, 7
    %s495 = smul.u32 %s493, 16
    %s496 = sadd.s32 %s494, %s495
    %s497 = scalar_lea.vmem %s2, %s496
    %s498 = sshrl.u32 %s455, 3
    %s499 = sand.u32 %s455, 7
    %s500 = smul.u32 %s498, 16
    %s501 = sadd.s32 %s499, %s500
    %s502 = scalar_lea.vmem %s5, %s501
    // Predicated region
    $region309: #{search_transfer.3} parent=5 // pred_check
      _
    $region310: #{search_transfer.3} parent=5 // pred_check_branch
      %504 = sbr.rel target = $region312
    $region311: #{search_transfer.3} parent=5 // pred_region
      // Predicated region
      $region324: #{search_transfer.3} parent=311 // pred_check
        _
      $region325: #{search_transfer.3} parent=311 // pred_check_branch
        %522 = sbr.rel (0) target = $region327
      $region326: #{search_transfer.3} parent=311 // pred_region
        %s524 = ssub.s32 2, 1
        loop: start=0, step=1, limit=1
        $region328: #{search_transfer.3} parent=326 // loop_pre_header
          _
        $region329: #{search_transfer.3} parent=326 // loop_header
          %s526 = sphi 0, %s530
          %p527 = scmp.ge.s32.totalorder %s526, 1
          %s531 = sphi %s497, %s497
          %s532 = sphi %s502, %s502
        $region330: #{search_transfer.3} parent=326 // loop_header_branch
          %529 = sbr.rel (%p527) target = $region334
        $region331: #{search_transfer.3} parent=326 // loop_body
          %v533 = vld [vmem:[%s531] sm:%s524]
          %534 = vst [vmem:[%s532] sm:%s524] %v533
          %v535 = vld [vmem:[%s531 + $0x8] sm:%s524]
          %536 = vst [vmem:[%s532 + $0x8] sm:%s524] %v535
        $region332: #{search_transfer.3} parent=326 // loop_footer
          %s530 = sadd.s32 1, %s526
        $region333: #{search_transfer.3} parent=326 // loop_footer_branch
          %525 = sbr.rel target = $region329
        $region334: #{search_transfer.3} parent=326 // loop_exit
          _
      $region327: #{search_transfer.3} parent=311 // pred_fallthru
        _
    $region312: #{search_transfer.3} parent=5 // pred_fallthru
      _
    // Predicated region
    $region313: #{search_transfer.3} parent=5 // pred_check
      _
    $region314: #{search_transfer.3} parent=5 // pred_check_branch
      %506 = sbr.rel (0) target = $region316
    $region315: #{search_transfer.3} parent=5 // pred_region
      %s508 = ssub.s32 2, 1
      loop: start=0, step=1, limit=1
      $region317: #{search_transfer.3} parent=315 // loop_pre_header
        _
      $region318: #{search_transfer.3} parent=315 // loop_header
        %s510 = sphi 0, %s514
        %p511 = scmp.ge.s32.totalorder %s510, 1
        %s515 = sphi %s497, %s497
        %s516 = sphi %s502, %s502
      $region319: #{search_transfer.3} parent=315 // loop_header_branch
        %513 = sbr.rel (%p511) target = $region323
      $region320: #{search_transfer.3} parent=315 // loop_body
        %v517 = vld [vmem:[%s515] sm:%s508]
        %518 = vst [vmem:[%s516] sm:%s508] %v517
        %v519 = vld [vmem:[%s515 + $0x8] sm:%s508]
        %520 = vst [vmem:[%s516 + $0x8] sm:%s508] %v519
      $region321: #{search_transfer.3} parent=315 // loop_footer
        %s514 = sadd.s32 1, %s510
      $region322: #{search_transfer.3} parent=315 // loop_footer_branch
        %509 = sbr.rel target = $region318
      $region323: #{search_transfer.3} parent=315 // loop_exit
        _
    $region316: #{search_transfer.3} parent=5 // pred_fallthru
      _
    // Predicated region
    $region335: #{search_transfer.3} parent=5 // pred_check
      _
    $region336: #{search_transfer.3} parent=5 // pred_check_branch
      %539 = sbr.rel (0) target = $region338
    $region337: #{search_transfer.3} parent=5 // pred_region
      %540 = vsyncadd %s75, 32
    $region338: #{search_transfer.3} parent=5 // pred_fallthru
      _
    %s541 = smul.u32 %s493, 40
    %s542 = sadd.s32 %s494, %s541
    %s543 = scalar_lea.vmem %s3, %s542
    %s544 = smul.u32 %s498, 40
    %s545 = sadd.s32 %s499, %s544
    %s546 = scalar_lea.vmem %s6, %s545
    // Predicated region
    $region339: #{search_transfer.3} parent=5 // pred_check
      _
    $region340: #{search_transfer.3} parent=5 // pred_check_branch
      %548 = sbr.rel target = $region342
    $region341: #{search_transfer.3} parent=5 // pred_region
      // Predicated region
      $region354: #{search_transfer.3} parent=341 // pred_check
        _
      $region355: #{search_transfer.3} parent=341 // pred_check_branch
        %572 = sbr.rel (0) target = $region357
      $region356: #{search_transfer.3} parent=341 // pred_region
        %s574 = ssub.s32 2, 1
        loop: start=0, step=1, limit=1
        $region358: #{search_transfer.3} parent=356 // loop_pre_header
          _
        $region359: #{search_transfer.3} parent=356 // loop_header
          %s576 = sphi 0, %s580
          %p577 = scmp.ge.s32.totalorder %s576, 1
          %s581 = sphi %s543, %s543
          %s582 = sphi %s546, %s546
        $region360: #{search_transfer.3} parent=356 // loop_header_branch
          %579 = sbr.rel (%p577) target = $region364
        $region361: #{search_transfer.3} parent=356 // loop_body
          %v583 = vld [vmem:[%s581] sm:%s574]
          %584 = vst [vmem:[%s582] sm:%s574] %v583
          %v585 = vld [vmem:[%s581 + $0x8] sm:%s574]
          %586 = vst [vmem:[%s582 + $0x8] sm:%s574] %v585
          %v587 = vld [vmem:[%s581 + $0x10] sm:%s574]
          %588 = vst [vmem:[%s582 + $0x10] sm:%s574] %v587
          %v589 = vld [vmem:[%s581 + $0x18] sm:%s574]
          %590 = vst [vmem:[%s582 + $0x18] sm:%s574] %v589
          %v591 = vld [vmem:[%s581 + $0x20] sm:%s574]
          %592 = vst [vmem:[%s582 + $0x20] sm:%s574] %v591
        $region362: #{search_transfer.3} parent=356 // loop_footer
          %s580 = sadd.s32 1, %s576
        $region363: #{search_transfer.3} parent=356 // loop_footer_branch
          %575 = sbr.rel target = $region359
        $region364: #{search_transfer.3} parent=356 // loop_exit
          _
      $region357: #{search_transfer.3} parent=341 // pred_fallthru
        _
    $region342: #{search_transfer.3} parent=5 // pred_fallthru
      _
    // Predicated region
    $region343: #{search_transfer.3} parent=5 // pred_check
      _
    $region344: #{search_transfer.3} parent=5 // pred_check_branch
      %550 = sbr.rel (0) target = $region346
    $region345: #{search_transfer.3} parent=5 // pred_region
      %s552 = ssub.s32 2, 1
      loop: start=0, step=1, limit=1
      $region347: #{search_transfer.3} parent=345 // loop_pre_header
        _
      $region348: #{search_transfer.3} parent=345 // loop_header
        %s554 = sphi 0, %s558
        %p555 = scmp.ge.s32.totalorder %s554, 1
        %s559 = sphi %s543, %s543
        %s560 = sphi %s546, %s546
      $region349: #{search_transfer.3} parent=345 // loop_header_branch
        %557 = sbr.rel (%p555) target = $region353
      $region350: #{search_transfer.3} parent=345 // loop_body
        %v561 = vld [vmem:[%s559] sm:%s552]
        %562 = vst [vmem:[%s560] sm:%s552] %v561
        %v563 = vld [vmem:[%s559 + $0x8] sm:%s552]
        %564 = vst [vmem:[%s560 + $0x8] sm:%s552] %v563
        %v565 = vld [vmem:[%s559 + $0x10] sm:%s552]
        %566 = vst [vmem:[%s560 + $0x10] sm:%s552] %v565
        %v567 = vld [vmem:[%s559 + $0x18] sm:%s552]
        %568 = vst [vmem:[%s560 + $0x18] sm:%s552] %v567
        %v569 = vld [vmem:[%s559 + $0x20] sm:%s552]
        %570 = vst [vmem:[%s560 + $0x20] sm:%s552] %v569
      $region351: #{search_transfer.3} parent=345 // loop_footer
        %s558 = sadd.s32 1, %s554
      $region352: #{search_transfer.3} parent=345 // loop_footer_branch
        %553 = sbr.rel target = $region348
      $region353: #{search_transfer.3} parent=345 // loop_exit
        _
    $region346: #{search_transfer.3} parent=5 // pred_fallthru
      _
    // Predicated region
    $region365: #{search_transfer.3} parent=5 // pred_check
      _
    $region366: #{search_transfer.3} parent=5 // pred_check_branch
      %595 = sbr.rel (0) target = $region368
    $region367: #{search_transfer.3} parent=5 // pred_region
      %596 = vsyncadd %s120, 80
    $region368: #{search_transfer.3} parent=5 // pred_fallthru
      _
    %s597 = sadd.s32 %s27, 4
    %s598 = sld [smem:[#allocation4 + %s597]]
    %s599 = scalar_lea.vmem %s1, %s598
    %s600 = scalar_lea.vmem %s4, %s597
    // Predicated region
    $region369: #{search_transfer.3} parent=5 // pred_check
      _
    $region370: #{search_transfer.3} parent=5 // pred_check_branch
      %602 = sbr.rel target = $region372
    $region371: #{search_transfer.3} parent=5 // pred_region
      // Predicated region
      $region384: #{search_transfer.3} parent=371 // pred_check
        _
      $region385: #{search_transfer.3} parent=371 // pred_check_branch
        %618 = sbr.rel (0) target = $region387
      $region386: #{search_transfer.3} parent=371 // pred_region
        %s620 = ssub.s32 2, 1
        loop: start=0, step=1, limit=1
        $region388: #{search_transfer.3} parent=386 // loop_pre_header
          _
        $region389: #{search_transfer.3} parent=386 // loop_header
          %s622 = sphi 0, %s626
          %p623 = scmp.ge.s32.totalorder %s622, 1
          %s627 = sphi %s599, %s599
          %s628 = sphi %s600, %s600
        $region390: #{search_transfer.3} parent=386 // loop_header_branch
          %625 = sbr.rel (%p623) target = $region394
        $region391: #{search_transfer.3} parent=386 // loop_body
          %v629 = vld [vmem:[%s627] sm:%s620]
          %630 = vst [vmem:[%s628] sm:%s620] %v629
        $region392: #{search_transfer.3} parent=386 // loop_footer
          %s626 = sadd.s32 1, %s622
        $region393: #{search_transfer.3} parent=386 // loop_footer_branch
          %621 = sbr.rel target = $region389
        $region394: #{search_transfer.3} parent=386 // loop_exit
          _
      $region387: #{search_transfer.3} parent=371 // pred_fallthru
        _
    $region372: #{search_transfer.3} parent=5 // pred_fallthru
      _
    // Predicated region
    $region373: #{search_transfer.3} parent=5 // pred_check
      _
    $region374: #{search_transfer.3} parent=5 // pred_check_branch
      %604 = sbr.rel (0) target = $region376
    $region375: #{search_transfer.3} parent=5 // pred_region
      %s606 = ssub.s32 2, 1
      loop: start=0, step=1, limit=1
      $region377: #{search_transfer.3} parent=375 // loop_pre_header
        _
      $region378: #{search_transfer.3} parent=375 // loop_header
        %s608 = sphi 0, %s612
        %p609 = scmp.ge.s32.totalorder %s608, 1
        %s613 = sphi %s599, %s599
        %s614 = sphi %s600, %s600
      $region379: #{search_transfer.3} parent=375 // loop_header_branch
        %611 = sbr.rel (%p609) target = $region383
      $region380: #{search_transfer.3} parent=375 // loop_body
        %v615 = vld [vmem:[%s613] sm:%s606]
        %616 = vst [vmem:[%s614] sm:%s606] %v615
      $region381: #{search_transfer.3} parent=375 // loop_footer
        %s612 = sadd.s32 1, %s608
      $region382: #{search_transfer.3} parent=375 // loop_footer_branch
        %607 = sbr.rel target = $region378
      $region383: #{search_transfer.3} parent=375 // loop_exit
        _
    $region376: #{search_transfer.3} parent=5 // pred_fallthru
      _
    // Predicated region
    $region395: #{search_transfer.3} parent=5 // pred_check
      _
    $region396: #{search_transfer.3} parent=5 // pred_check_branch
      %633 = sbr.rel (0) target = $region398
    $region397: #{search_transfer.3} parent=5 // pred_region
      %634 = vsyncadd [#allocation2], 16
    $region398: #{search_transfer.3} parent=5 // pred_fallthru
      _
    %s635 = sshrl.u32 %s598, 3
    %s636 = sand.u32 %s598, 7
    %s637 = smul.u32 %s635, 16
    %s638 = sadd.s32 %s636, %s637
    %s639 = scalar_lea.vmem %s2, %s638
    %s640 = sshrl.u32 %s597, 3
    %s641 = sand.u32 %s597, 7
    %s642 = smul.u32 %s640, 16
    %s643 = sadd.s32 %s641, %s642
    %s644 = scalar_lea.vmem %s5, %s643
    // Predicated region
    $region399: #{search_transfer.3} parent=5 // pred_check
      _
    $region400: #{search_transfer.3} parent=5 // pred_check_branch
      %646 = sbr.rel target = $region402
    $region401: #{search_transfer.3} parent=5 // pred_region
      // Predicated region
      $region414: #{search_transfer.3} parent=401 // pred_check
        _
      $region415: #{search_transfer.3} parent=401 // pred_check_branch
        %664 = sbr.rel (0) target = $region417
      $region416: #{search_transfer.3} parent=401 // pred_region
        %s666 = ssub.s32 2, 1
        loop: start=0, step=1, limit=1
        $region418: #{search_transfer.3} parent=416 // loop_pre_header
          _
        $region419: #{search_transfer.3} parent=416 // loop_header
          %s668 = sphi 0, %s672
          %p669 = scmp.ge.s32.totalorder %s668, 1
          %s673 = sphi %s639, %s639
          %s674 = sphi %s644, %s644
        $region420: #{search_transfer.3} parent=416 // loop_header_branch
          %671 = sbr.rel (%p669) target = $region424
        $region421: #{search_transfer.3} parent=416 // loop_body
          %v675 = vld [vmem:[%s673] sm:%s666]
          %676 = vst [vmem:[%s674] sm:%s666] %v675
          %v677 = vld [vmem:[%s673 + $0x8] sm:%s666]
          %678 = vst [vmem:[%s674 + $0x8] sm:%s666] %v677
        $region422: #{search_transfer.3} parent=416 // loop_footer
          %s672 = sadd.s32 1, %s668
        $region423: #{search_transfer.3} parent=416 // loop_footer_branch
          %667 = sbr.rel target = $region419
        $region424: #{search_transfer.3} parent=416 // loop_exit
          _
      $region417: #{search_transfer.3} parent=401 // pred_fallthru
        _
    $region402: #{search_transfer.3} parent=5 // pred_fallthru
      _
    // Predicated region
    $region403: #{search_transfer.3} parent=5 // pred_check
      _
    $region404: #{search_transfer.3} parent=5 // pred_check_branch
      %648 = sbr.rel (0) target = $region406
    $region405: #{search_transfer.3} parent=5 // pred_region
      %s650 = ssub.s32 2, 1
      loop: start=0, step=1, limit=1
      $region407: #{search_transfer.3} parent=405 // loop_pre_header
        _
      $region408: #{search_transfer.3} parent=405 // loop_header
        %s652 = sphi 0, %s656
        %p653 = scmp.ge.s32.totalorder %s652, 1
        %s657 = sphi %s639, %s639
        %s658 = sphi %s644, %s644
      $region409: #{search_transfer.3} parent=405 // loop_header_branch
        %655 = sbr.rel (%p653) target = $region413
      $region410: #{search_transfer.3} parent=405 // loop_body
        %v659 = vld [vmem:[%s657] sm:%s650]
        %660 = vst [vmem:[%s658] sm:%s650] %v659
        %v661 = vld [vmem:[%s657 + $0x8] sm:%s650]
        %662 = vst [vmem:[%s658 + $0x8] sm:%s650] %v661
      $region411: #{search_transfer.3} parent=405 // loop_footer
        %s656 = sadd.s32 1, %s652
      $region412: #{search_transfer.3} parent=405 // loop_footer_branch
        %651 = sbr.rel target = $region408
      $region413: #{search_transfer.3} parent=405 // loop_exit
        _
    $region406: #{search_transfer.3} parent=5 // pred_fallthru
      _
    // Predicated region
    $region425: #{search_transfer.3} parent=5 // pred_check
      _
    $region426: #{search_transfer.3} parent=5 // pred_check_branch
      %681 = sbr.rel (0) target = $region428
    $region427: #{search_transfer.3} parent=5 // pred_region
      %682 = vsyncadd %s75, 32
    $region428: #{search_transfer.3} parent=5 // pred_fallthru
      _
    %s683 = smul.u32 %s635, 40
    %s684 = sadd.s32 %s636, %s683
    %s685 = scalar_lea.vmem %s3, %s684
    %s686 = smul.u32 %s640, 40
    %s687 = sadd.s32 %s641, %s686
    %s688 = scalar_lea.vmem %s6, %s687
    // Predicated region
    $region429: #{search_transfer.3} parent=5 // pred_check
      _
    $region430: #{search_transfer.3} parent=5 // pred_check_branch
      %690 = sbr.rel target = $region432
    $region431: #{search_transfer.3} parent=5 // pred_region
      // Predicated region
      $region444: #{search_transfer.3} parent=431 // pred_check
        _
      $region445: #{search_transfer.3} parent=431 // pred_check_branch
        %714 = sbr.rel (0) target = $region447
      $region446: #{search_transfer.3} parent=431 // pred_region
        %s716 = ssub.s32 2, 1
        loop: start=0, step=1, limit=1
        $region448: #{search_transfer.3} parent=446 // loop_pre_header
          _
        $region449: #{search_transfer.3} parent=446 // loop_header
          %s718 = sphi 0, %s722
          %p719 = scmp.ge.s32.totalorder %s718, 1
          %s723 = sphi %s685, %s685
          %s724 = sphi %s688, %s688
        $region450: #{search_transfer.3} parent=446 // loop_header_branch
          %721 = sbr.rel (%p719) target = $region454
        $region451: #{search_transfer.3} parent=446 // loop_body
          %v725 = vld [vmem:[%s723] sm:%s716]
          %726 = vst [vmem:[%s724] sm:%s716] %v725
          %v727 = vld [vmem:[%s723 + $0x8] sm:%s716]
          %728 = vst [vmem:[%s724 + $0x8] sm:%s716] %v727
          %v729 = vld [vmem:[%s723 + $0x10] sm:%s716]
          %730 = vst [vmem:[%s724 + $0x10] sm:%s716] %v729
          %v731 = vld [vmem:[%s723 + $0x18] sm:%s716]
          %732 = vst [vmem:[%s724 + $0x18] sm:%s716] %v731
          %v733 = vld [vmem:[%s723 + $0x20] sm:%s716]
          %734 = vst [vmem:[%s724 + $0x20] sm:%s716] %v733
        $region452: #{search_transfer.3} parent=446 // loop_footer
          %s722 = sadd.s32 1, %s718
        $region453: #{search_transfer.3} parent=446 // loop_footer_branch
          %717 = sbr.rel target = $region449
        $region454: #{search_transfer.3} parent=446 // loop_exit
          _
      $region447: #{search_transfer.3} parent=431 // pred_fallthru
        _
    $region432: #{search_transfer.3} parent=5 // pred_fallthru
      _
    // Predicated region
    $region433: #{search_transfer.3} parent=5 // pred_check
      _
    $region434: #{search_transfer.3} parent=5 // pred_check_branch
      %692 = sbr.rel (0) target = $region436
    $region435: #{search_transfer.3} parent=5 // pred_region
      %s694 = ssub.s32 2, 1
      loop: start=0, step=1, limit=1
      $region437: #{search_transfer.3} parent=435 // loop_pre_header
        _
      $region438: #{search_transfer.3} parent=435 // loop_header
        %s696 = sphi 0, %s700
        %p697 = scmp.ge.s32.totalorder %s696, 1
        %s701 = sphi %s685, %s685
        %s702 = sphi %s688, %s688
      $region439: #{search_transfer.3} parent=435 // loop_header_branch
        %699 = sbr.rel (%p697) target = $region443
      $region440: #{search_transfer.3} parent=435 // loop_body
        %v703 = vld [vmem:[%s701] sm:%s694]
        %704 = vst [vmem:[%s702] sm:%s694] %v703
        %v705 = vld [vmem:[%s701 + $0x8] sm:%s694]
        %706 = vst [vmem:[%s702 + $0x8] sm:%s694] %v705
        %v707 = vld [vmem:[%s701 + $0x10] sm:%s694]
        %708 = vst [vmem:[%s702 + $0x10] sm:%s694] %v707
        %v709 = vld [vmem:[%s701 + $0x18] sm:%s694]
        %710 = vst [vmem:[%s702 + $0x18] sm:%s694] %v709
        %v711 = vld [vmem:[%s701 + $0x20] sm:%s694]
        %712 = vst [vmem:[%s702 + $0x20] sm:%s694] %v711
      $region441: #{search_transfer.3} parent=435 // loop_footer
        %s700 = sadd.s32 1, %s696
      $region442: #{search_transfer.3} parent=435 // loop_footer_branch
        %695 = sbr.rel target = $region438
      $region443: #{search_transfer.3} parent=435 // loop_exit
        _
    $region436: #{search_transfer.3} parent=5 // pred_fallthru
      _
    // Predicated region
    $region455: #{search_transfer.3} parent=5 // pred_check
      _
    $region456: #{search_transfer.3} parent=5 // pred_check_branch
      %737 = sbr.rel (0) target = $region458
    $region457: #{search_transfer.3} parent=5 // pred_region
      %738 = vsyncadd %s120, 80
    $region458: #{search_transfer.3} parent=5 // pred_fallthru
      _
    %s739 = sadd.s32 %s27, 5
    %s740 = sld [smem:[#allocation4 + %s739]]
    %s741 = scalar_lea.vmem %s1, %s740
    %s742 = scalar_lea.vmem %s4, %s739
    // Predicated region
    $region459: #{search_transfer.3} parent=5 // pred_check
      _
    $region460: #{search_transfer.3} parent=5 // pred_check_branch
      %744 = sbr.rel target = $region462
    $region461: #{search_transfer.3} parent=5 // pred_region
      // Predicated region
      $region474: #{search_transfer.3} parent=461 // pred_check
        _
      $region475: #{search_transfer.3} parent=461 // pred_check_branch
        %760 = sbr.rel (0) target = $region477
      $region476: #{search_transfer.3} parent=461 // pred_region
        %s762 = ssub.s32 2, 1
        loop: start=0, step=1, limit=1
        $region478: #{search_transfer.3} parent=476 // loop_pre_header
          _
        $region479: #{search_transfer.3} parent=476 // loop_header
          %s764 = sphi 0, %s768
          %p765 = scmp.ge.s32.totalorder %s764, 1
          %s769 = sphi %s741, %s741
          %s770 = sphi %s742, %s742
        $region480: #{search_transfer.3} parent=476 // loop_header_branch
          %767 = sbr.rel (%p765) target = $region484
        $region481: #{search_transfer.3} parent=476 // loop_body
          %v771 = vld [vmem:[%s769] sm:%s762]
          %772 = vst [vmem:[%s770] sm:%s762] %v771
        $region482: #{search_transfer.3} parent=476 // loop_footer
          %s768 = sadd.s32 1, %s764
        $region483: #{search_transfer.3} parent=476 // loop_footer_branch
          %763 = sbr.rel target = $region479
        $region484: #{search_transfer.3} parent=476 // loop_exit
          _
      $region477: #{search_transfer.3} parent=461 // pred_fallthru
        _
    $region462: #{search_transfer.3} parent=5 // pred_fallthru
      _
    // Predicated region
    $region463: #{search_transfer.3} parent=5 // pred_check
      _
    $region464: #{search_transfer.3} parent=5 // pred_check_branch
      %746 = sbr.rel (0) target = $region466
    $region465: #{search_transfer.3} parent=5 // pred_region
      %s748 = ssub.s32 2, 1
      loop: start=0, step=1, limit=1
      $region467: #{search_transfer.3} parent=465 // loop_pre_header
        _
      $region468: #{search_transfer.3} parent=465 // loop_header
        %s750 = sphi 0, %s754
        %p751 = scmp.ge.s32.totalorder %s750, 1
        %s755 = sphi %s741, %s741
        %s756 = sphi %s742, %s742
      $region469: #{search_transfer.3} parent=465 // loop_header_branch
        %753 = sbr.rel (%p751) target = $region473
      $region470: #{search_transfer.3} parent=465 // loop_body
        %v757 = vld [vmem:[%s755] sm:%s748]
        %758 = vst [vmem:[%s756] sm:%s748] %v757
      $region471: #{search_transfer.3} parent=465 // loop_footer
        %s754 = sadd.s32 1, %s750
      $region472: #{search_transfer.3} parent=465 // loop_footer_branch
        %749 = sbr.rel target = $region468
      $region473: #{search_transfer.3} parent=465 // loop_exit
        _
    $region466: #{search_transfer.3} parent=5 // pred_fallthru
      _
    // Predicated region
    $region485: #{search_transfer.3} parent=5 // pred_check
      _
    $region486: #{search_transfer.3} parent=5 // pred_check_branch
      %775 = sbr.rel (0) target = $region488
    $region487: #{search_transfer.3} parent=5 // pred_region
      %776 = vsyncadd [#allocation2], 16
    $region488: #{search_transfer.3} parent=5 // pred_fallthru
      _
    %s777 = sshrl.u32 %s740, 3
    %s778 = sand.u32 %s740, 7
    %s779 = smul.u32 %s777, 16
    %s780 = sadd.s32 %s778, %s779
    %s781 = scalar_lea.vmem %s2, %s780
    %s782 = sshrl.u32 %s739, 3
    %s783 = sand.u32 %s739, 7
    %s784 = smul.u32 %s782, 16
    %s785 = sadd.s32 %s783, %s784
    %s786 = scalar_lea.vmem %s5, %s785
    // Predicated region
    $region489: #{search_transfer.3} parent=5 // pred_check
      _
    $region490: #{search_transfer.3} parent=5 // pred_check_branch
      %788 = sbr.rel target = $region492
    $region491: #{search_transfer.3} parent=5 // pred_region
      // Predicated region
      $region504: #{search_transfer.3} parent=491 // pred_check
        _
      $region505: #{search_transfer.3} parent=491 // pred_check_branch
        %806 = sbr.rel (0) target = $region507
      $region506: #{search_transfer.3} parent=491 // pred_region
        %s808 = ssub.s32 2, 1
        loop: start=0, step=1, limit=1
        $region508: #{search_transfer.3} parent=506 // loop_pre_header
          _
        $region509: #{search_transfer.3} parent=506 // loop_header
          %s810 = sphi 0, %s814
          %p811 = scmp.ge.s32.totalorder %s810, 1
          %s815 = sphi %s781, %s781
          %s816 = sphi %s786, %s786
        $region510: #{search_transfer.3} parent=506 // loop_header_branch
          %813 = sbr.rel (%p811) target = $region514
        $region511: #{search_transfer.3} parent=506 // loop_body
          %v817 = vld [vmem:[%s815] sm:%s808]
          %818 = vst [vmem:[%s816] sm:%s808] %v817
          %v819 = vld [vmem:[%s815 + $0x8] sm:%s808]
          %820 = vst [vmem:[%s816 + $0x8] sm:%s808] %v819
        $region512: #{search_transfer.3} parent=506 // loop_footer
          %s814 = sadd.s32 1, %s810
        $region513: #{search_transfer.3} parent=506 // loop_footer_branch
          %809 = sbr.rel target = $region509
        $region514: #{search_transfer.3} parent=506 // loop_exit
          _
      $region507: #{search_transfer.3} parent=491 // pred_fallthru
        _
    $region492: #{search_transfer.3} parent=5 // pred_fallthru
      _
    // Predicated region
    $region493: #{search_transfer.3} parent=5 // pred_check
      _
    $region494: #{search_transfer.3} parent=5 // pred_check_branch
      %790 = sbr.rel (0) target = $region496
    $region495: #{search_transfer.3} parent=5 // pred_region
      %s792 = ssub.s32 2, 1
      loop: start=0, step=1, limit=1
      $region497: #{search_transfer.3} parent=495 // loop_pre_header
        _
      $region498: #{search_transfer.3} parent=495 // loop_header
        %s794 = sphi 0, %s798
        %p795 = scmp.ge.s32.totalorder %s794, 1
        %s799 = sphi %s781, %s781
        %s800 = sphi %s786, %s786
      $region499: #{search_transfer.3} parent=495 // loop_header_branch
        %797 = sbr.rel (%p795) target = $region503
      $region500: #{search_transfer.3} parent=495 // loop_body
        %v801 = vld [vmem:[%s799] sm:%s792]
        %802 = vst [vmem:[%s800] sm:%s792] %v801
        %v803 = vld [vmem:[%s799 + $0x8] sm:%s792]
        %804 = vst [vmem:[%s800 + $0x8] sm:%s792] %v803
      $region501: #{search_transfer.3} parent=495 // loop_footer
        %s798 = sadd.s32 1, %s794
      $region502: #{search_transfer.3} parent=495 // loop_footer_branch
        %793 = sbr.rel target = $region498
      $region503: #{search_transfer.3} parent=495 // loop_exit
        _
    $region496: #{search_transfer.3} parent=5 // pred_fallthru
      _
    // Predicated region
    $region515: #{search_transfer.3} parent=5 // pred_check
      _
    $region516: #{search_transfer.3} parent=5 // pred_check_branch
      %823 = sbr.rel (0) target = $region518
    $region517: #{search_transfer.3} parent=5 // pred_region
      %824 = vsyncadd %s75, 32
    $region518: #{search_transfer.3} parent=5 // pred_fallthru
      _
    %s825 = smul.u32 %s777, 40
    %s826 = sadd.s32 %s778, %s825
    %s827 = scalar_lea.vmem %s3, %s826
    %s828 = smul.u32 %s782, 40
    %s829 = sadd.s32 %s783, %s828
    %s830 = scalar_lea.vmem %s6, %s829
    // Predicated region
    $region519: #{search_transfer.3} parent=5 // pred_check
      _
    $region520: #{search_transfer.3} parent=5 // pred_check_branch
      %832 = sbr.rel target = $region522
    $region521: #{search_transfer.3} parent=5 // pred_region
      // Predicated region
      $region534: #{search_transfer.3} parent=521 // pred_check
        _
      $region535: #{search_transfer.3} parent=521 // pred_check_branch
        %856 = sbr.rel (0) target = $region537
      $region536: #{search_transfer.3} parent=521 // pred_region
        %s858 = ssub.s32 2, 1
        loop: start=0, step=1, limit=1
        $region538: #{search_transfer.3} parent=536 // loop_pre_header
          _
        $region539: #{search_transfer.3} parent=536 // loop_header
          %s860 = sphi 0, %s864
          %p861 = scmp.ge.s32.totalorder %s860, 1
          %s865 = sphi %s827, %s827
          %s866 = sphi %s830, %s830
        $region540: #{search_transfer.3} parent=536 // loop_header_branch
          %863 = sbr.rel (%p861) target = $region544
        $region541: #{search_transfer.3} parent=536 // loop_body
          %v867 = vld [vmem:[%s865] sm:%s858]
          %868 = vst [vmem:[%s866] sm:%s858] %v867
          %v869 = vld [vmem:[%s865 + $0x8] sm:%s858]
          %870 = vst [vmem:[%s866 + $0x8] sm:%s858] %v869
          %v871 = vld [vmem:[%s865 + $0x10] sm:%s858]
          %872 = vst [vmem:[%s866 + $0x10] sm:%s858] %v871
          %v873 = vld [vmem:[%s865 + $0x18] sm:%s858]
          %874 = vst [vmem:[%s866 + $0x18] sm:%s858] %v873
          %v875 = vld [vmem:[%s865 + $0x20] sm:%s858]
          %876 = vst [vmem:[%s866 + $0x20] sm:%s858] %v875
        $region542: #{search_transfer.3} parent=536 // loop_footer
          %s864 = sadd.s32 1, %s860
        $region543: #{search_transfer.3} parent=536 // loop_footer_branch
          %859 = sbr.rel target = $region539
        $region544: #{search_transfer.3} parent=536 // loop_exit
          _
      $region537: #{search_transfer.3} parent=521 // pred_fallthru
        _
    $region522: #{search_transfer.3} parent=5 // pred_fallthru
      _
    // Predicated region
    $region523: #{search_transfer.3} parent=5 // pred_check
      _
    $region524: #{search_transfer.3} parent=5 // pred_check_branch
      %834 = sbr.rel (0) target = $region526
    $region525: #{search_transfer.3} parent=5 // pred_region
      %s836 = ssub.s32 2, 1
      loop: start=0, step=1, limit=1
      $region527: #{search_transfer.3} parent=525 // loop_pre_header
        _
      $region528: #{search_transfer.3} parent=525 // loop_header
        %s838 = sphi 0, %s842
        %p839 = scmp.ge.s32.totalorder %s838, 1
        %s843 = sphi %s827, %s827
        %s844 = sphi %s830, %s830
      $region529: #{search_transfer.3} parent=525 // loop_header_branch
        %841 = sbr.rel (%p839) target = $region533
      $region530: #{search_transfer.3} parent=525 // loop_body
        %v845 = vld [vmem:[%s843] sm:%s836]
        %846 = vst [vmem:[%s844] sm:%s836] %v845
        %v847 = vld [vmem:[%s843 + $0x8] sm:%s836]
        %848 = vst [vmem:[%s844 + $0x8] sm:%s836] %v847
        %v849 = vld [vmem:[%s843 + $0x10] sm:%s836]
        %850 = vst [vmem:[%s844 + $0x10] sm:%s836] %v849
        %v851 = vld [vmem:[%s843 + $0x18] sm:%s836]
        %852 = vst [vmem:[%s844 + $0x18] sm:%s836] %v851
        %v853 = vld [vmem:[%s843 + $0x20] sm:%s836]
        %854 = vst [vmem:[%s844 + $0x20] sm:%s836] %v853
      $region531: #{search_transfer.3} parent=525 // loop_footer
        %s842 = sadd.s32 1, %s838
      $region532: #{search_transfer.3} parent=525 // loop_footer_branch
        %837 = sbr.rel target = $region528
      $region533: #{search_transfer.3} parent=525 // loop_exit
        _
    $region526: #{search_transfer.3} parent=5 // pred_fallthru
      _
    // Predicated region
    $region545: #{search_transfer.3} parent=5 // pred_check
      _
    $region546: #{search_transfer.3} parent=5 // pred_check_branch
      %879 = sbr.rel (0) target = $region548
    $region547: #{search_transfer.3} parent=5 // pred_region
      %880 = vsyncadd %s120, 80
    $region548: #{search_transfer.3} parent=5 // pred_fallthru
      _
    %s881 = sadd.s32 %s27, 6
    %s882 = sld [smem:[#allocation4 + %s881]]
    %s883 = scalar_lea.vmem %s1, %s882
    %s884 = scalar_lea.vmem %s4, %s881
    // Predicated region
    $region549: #{search_transfer.3} parent=5 // pred_check
      _
    $region550: #{search_transfer.3} parent=5 // pred_check_branch
      %886 = sbr.rel target = $region552
    $region551: #{search_transfer.3} parent=5 // pred_region
      // Predicated region
      $region564: #{search_transfer.3} parent=551 // pred_check
        _
      $region565: #{search_transfer.3} parent=551 // pred_check_branch
        %902 = sbr.rel (0) target = $region567
      $region566: #{search_transfer.3} parent=551 // pred_region
        %s904 = ssub.s32 2, 1
        loop: start=0, step=1, limit=1
        $region568: #{search_transfer.3} parent=566 // loop_pre_header
          _
        $region569: #{search_transfer.3} parent=566 // loop_header
          %s906 = sphi 0, %s910
          %p907 = scmp.ge.s32.totalorder %s906, 1
          %s911 = sphi %s883, %s883
          %s912 = sphi %s884, %s884
        $region570: #{search_transfer.3} parent=566 // loop_header_branch
          %909 = sbr.rel (%p907) target = $region574
        $region571: #{search_transfer.3} parent=566 // loop_body
          %v913 = vld [vmem:[%s911] sm:%s904]
          %914 = vst [vmem:[%s912] sm:%s904] %v913
        $region572: #{search_transfer.3} parent=566 // loop_footer
          %s910 = sadd.s32 1, %s906
        $region573: #{search_transfer.3} parent=566 // loop_footer_branch
          %905 = sbr.rel target = $region569
        $region574: #{search_transfer.3} parent=566 // loop_exit
          _
      $region567: #{search_transfer.3} parent=551 // pred_fallthru
        _
    $region552: #{search_transfer.3} parent=5 // pred_fallthru
      _
    // Predicated region
    $region553: #{search_transfer.3} parent=5 // pred_check
      _
    $region554: #{search_transfer.3} parent=5 // pred_check_branch
      %888 = sbr.rel (0) target = $region556
    $region555: #{search_transfer.3} parent=5 // pred_region
      %s890 = ssub.s32 2, 1
      loop: start=0, step=1, limit=1
      $region557: #{search_transfer.3} parent=555 // loop_pre_header
        _
      $region558: #{search_transfer.3} parent=555 // loop_header
        %s892 = sphi 0, %s896
        %p893 = scmp.ge.s32.totalorder %s892, 1
        %s897 = sphi %s883, %s883
        %s898 = sphi %s884, %s884
      $region559: #{search_transfer.3} parent=555 // loop_header_branch
        %895 = sbr.rel (%p893) target = $region563
      $region560: #{search_transfer.3} parent=555 // loop_body
        %v899 = vld [vmem:[%s897] sm:%s890]
        %900 = vst [vmem:[%s898] sm:%s890] %v899
      $region561: #{search_transfer.3} parent=555 // loop_footer
        %s896 = sadd.s32 1, %s892
      $region562: #{search_transfer.3} parent=555 // loop_footer_branch
        %891 = sbr.rel target = $region558
      $region563: #{search_transfer.3} parent=555 // loop_exit
        _
    $region556: #{search_transfer.3} parent=5 // pred_fallthru
      _
    // Predicated region
    $region575: #{search_transfer.3} parent=5 // pred_check
      _
    $region576: #{search_transfer.3} parent=5 // pred_check_branch
      %917 = sbr.rel (0) target = $region578
    $region577: #{search_transfer.3} parent=5 // pred_region
      %918 = vsyncadd [#allocation2], 16
    $region578: #{search_transfer.3} parent=5 // pred_fallthru
      _
    %s919 = sshrl.u32 %s882, 3
    %s920 = sand.u32 %s882, 7
    %s921 = smul.u32 %s919, 16
    %s922 = sadd.s32 %s920, %s921
    %s923 = scalar_lea.vmem %s2, %s922
    %s924 = sshrl.u32 %s881, 3
    %s925 = sand.u32 %s881, 7
    %s926 = smul.u32 %s924, 16
    %s927 = sadd.s32 %s925, %s926
    %s928 = scalar_lea.vmem %s5, %s927
    // Predicated region
    $region579: #{search_transfer.3} parent=5 // pred_check
      _
    $region580: #{search_transfer.3} parent=5 // pred_check_branch
      %930 = sbr.rel target = $region582
    $region581: #{search_transfer.3} parent=5 // pred_region
      // Predicated region
      $region594: #{search_transfer.3} parent=581 // pred_check
        _
      $region595: #{search_transfer.3} parent=581 // pred_check_branch
        %948 = sbr.rel (0) target = $region597
      $region596: #{search_transfer.3} parent=581 // pred_region
        %s950 = ssub.s32 2, 1
        loop: start=0, step=1, limit=1
        $region598: #{search_transfer.3} parent=596 // loop_pre_header
          _
        $region599: #{search_transfer.3} parent=596 // loop_header
          %s952 = sphi 0, %s956
          %p953 = scmp.ge.s32.totalorder %s952, 1
          %s957 = sphi %s923, %s923
          %s958 = sphi %s928, %s928
        $region600: #{search_transfer.3} parent=596 // loop_header_branch
          %955 = sbr.rel (%p953) target = $region604
        $region601: #{search_transfer.3} parent=596 // loop_body
          %v959 = vld [vmem:[%s957] sm:%s950]
          %960 = vst [vmem:[%s958] sm:%s950] %v959
          %v961 = vld [vmem:[%s957 + $0x8] sm:%s950]
          %962 = vst [vmem:[%s958 + $0x8] sm:%s950] %v961
        $region602: #{search_transfer.3} parent=596 // loop_footer
          %s956 = sadd.s32 1, %s952
        $region603: #{search_transfer.3} parent=596 // loop_footer_branch
          %951 = sbr.rel target = $region599
        $region604: #{search_transfer.3} parent=596 // loop_exit
          _
      $region597: #{search_transfer.3} parent=581 // pred_fallthru
        _
    $region582: #{search_transfer.3} parent=5 // pred_fallthru
      _
    // Predicated region
    $region583: #{search_transfer.3} parent=5 // pred_check
      _
    $region584: #{search_transfer.3} parent=5 // pred_check_branch
      %932 = sbr.rel (0) target = $region586
    $region585: #{search_transfer.3} parent=5 // pred_region
      %s934 = ssub.s32 2, 1
      loop: start=0, step=1, limit=1
      $region587: #{search_transfer.3} parent=585 // loop_pre_header
        _
      $region588: #{search_transfer.3} parent=585 // loop_header
        %s936 = sphi 0, %s940
        %p937 = scmp.ge.s32.totalorder %s936, 1
        %s941 = sphi %s923, %s923
        %s942 = sphi %s928, %s928
      $region589: #{search_transfer.3} parent=585 // loop_header_branch
        %939 = sbr.rel (%p937) target = $region593
      $region590: #{search_transfer.3} parent=585 // loop_body
        %v943 = vld [vmem:[%s941] sm:%s934]
        %944 = vst [vmem:[%s942] sm:%s934] %v943
        %v945 = vld [vmem:[%s941 + $0x8] sm:%s934]
        %946 = vst [vmem:[%s942 + $0x8] sm:%s934] %v945
      $region591: #{search_transfer.3} parent=585 // loop_footer
        %s940 = sadd.s32 1, %s936
      $region592: #{search_transfer.3} parent=585 // loop_footer_branch
        %935 = sbr.rel target = $region588
      $region593: #{search_transfer.3} parent=585 // loop_exit
        _
    $region586: #{search_transfer.3} parent=5 // pred_fallthru
      _
    // Predicated region
    $region605: #{search_transfer.3} parent=5 // pred_check
      _
    $region606: #{search_transfer.3} parent=5 // pred_check_branch
      %965 = sbr.rel (0) target = $region608
    $region607: #{search_transfer.3} parent=5 // pred_region
      %966 = vsyncadd %s75, 32
    $region608: #{search_transfer.3} parent=5 // pred_fallthru
      _
    %s967 = smul.u32 %s919, 40
    %s968 = sadd.s32 %s920, %s967
    %s969 = scalar_lea.vmem %s3, %s968
    %s970 = smul.u32 %s924, 40
    %s971 = sadd.s32 %s925, %s970
    %s972 = scalar_lea.vmem %s6, %s971
    // Predicated region
    $region609: #{search_transfer.3} parent=5 // pred_check
      _
    $region610: #{search_transfer.3} parent=5 // pred_check_branch
      %974 = sbr.rel target = $region612
    $region611: #{search_transfer.3} parent=5 // pred_region
      // Predicated region
      $region624: #{search_transfer.3} parent=611 // pred_check
        _
      $region625: #{search_transfer.3} parent=611 // pred_check_branch
        %998 = sbr.rel (0) target = $region627
      $region626: #{search_transfer.3} parent=611 // pred_region
        %s1000 = ssub.s32 2, 1
        loop: start=0, step=1, limit=1
        $region628: #{search_transfer.3} parent=626 // loop_pre_header
          _
        $region629: #{search_transfer.3} parent=626 // loop_header
          %s1002 = sphi 0, %s1006
          %p1003 = scmp.ge.s32.totalorder %s1002, 1
          %s1007 = sphi %s969, %s969
          %s1008 = sphi %s972, %s972
        $region630: #{search_transfer.3} parent=626 // loop_header_branch
          %1005 = sbr.rel (%p1003) target = $region634
        $region631: #{search_transfer.3} parent=626 // loop_body
          %v1009 = vld [vmem:[%s1007] sm:%s1000]
          %1010 = vst [vmem:[%s1008] sm:%s1000] %v1009
          %v1011 = vld [vmem:[%s1007 + $0x8] sm:%s1000]
          %1012 = vst [vmem:[%s1008 + $0x8] sm:%s1000] %v1011
          %v1013 = vld [vmem:[%s1007 + $0x10] sm:%s1000]
          %1014 = vst [vmem:[%s1008 + $0x10] sm:%s1000] %v1013
          %v1015 = vld [vmem:[%s1007 + $0x18] sm:%s1000]
          %1016 = vst [vmem:[%s1008 + $0x18] sm:%s1000] %v1015
          %v1017 = vld [vmem:[%s1007 + $0x20] sm:%s1000]
          %1018 = vst [vmem:[%s1008 + $0x20] sm:%s1000] %v1017
        $region632: #{search_transfer.3} parent=626 // loop_footer
          %s1006 = sadd.s32 1, %s1002
        $region633: #{search_transfer.3} parent=626 // loop_footer_branch
          %1001 = sbr.rel target = $region629
        $region634: #{search_transfer.3} parent=626 // loop_exit
          _
      $region627: #{search_transfer.3} parent=611 // pred_fallthru
        _
    $region612: #{search_transfer.3} parent=5 // pred_fallthru
      _
    // Predicated region
    $region613: #{search_transfer.3} parent=5 // pred_check
      _
    $region614: #{search_transfer.3} parent=5 // pred_check_branch
      %976 = sbr.rel (0) target = $region616
    $region615: #{search_transfer.3} parent=5 // pred_region
      %s978 = ssub.s32 2, 1
      loop: start=0, step=1, limit=1
      $region617: #{search_transfer.3} parent=615 // loop_pre_header
        _
      $region618: #{search_transfer.3} parent=615 // loop_header
        %s980 = sphi 0, %s984
        %p981 = scmp.ge.s32.totalorder %s980, 1
        %s985 = sphi %s969, %s969
        %s986 = sphi %s972, %s972
      $region619: #{search_transfer.3} parent=615 // loop_header_branch
        %983 = sbr.rel (%p981) target = $region623
      $region620: #{search_transfer.3} parent=615 // loop_body
        %v987 = vld [vmem:[%s985] sm:%s978]
        %988 = vst [vmem:[%s986] sm:%s978] %v987
        %v989 = vld [vmem:[%s985 + $0x8] sm:%s978]
        %990 = vst [vmem:[%s986 + $0x8] sm:%s978] %v989
        %v991 = vld [vmem:[%s985 + $0x10] sm:%s978]
        %992 = vst [vmem:[%s986 + $0x10] sm:%s978] %v991
        %v993 = vld [vmem:[%s985 + $0x18] sm:%s978]
        %994 = vst [vmem:[%s986 + $0x18] sm:%s978] %v993
        %v995 = vld [vmem:[%s985 + $0x20] sm:%s978]
        %996 = vst [vmem:[%s986 + $0x20] sm:%s978] %v995
      $region621: #{search_transfer.3} parent=615 // loop_footer
        %s984 = sadd.s32 1, %s980
      $region622: #{search_transfer.3} parent=615 // loop_footer_branch
        %979 = sbr.rel target = $region618
      $region623: #{search_transfer.3} parent=615 // loop_exit
        _
    $region616: #{search_transfer.3} parent=5 // pred_fallthru
      _
    // Predicated region
    $region635: #{search_transfer.3} parent=5 // pred_check
      _
    $region636: #{search_transfer.3} parent=5 // pred_check_branch
      %1021 = sbr.rel (0) target = $region638
    $region637: #{search_transfer.3} parent=5 // pred_region
      %1022 = vsyncadd %s120, 80
    $region638: #{search_transfer.3} parent=5 // pred_fallthru
      _
    %s1023 = sadd.s32 %s27, 7
    %s1024 = sld [smem:[#allocation4 + %s1023]]
    %s1025 = scalar_lea.vmem %s1, %s1024
    %s1026 = scalar_lea.vmem %s4, %s1023
    // Predicated region
    $region639: #{search_transfer.3} parent=5 // pred_check
      _
    $region640: #{search_transfer.3} parent=5 // pred_check_branch
      %1028 = sbr.rel target = $region642
    $region641: #{search_transfer.3} parent=5 // pred_region
      // Predicated region
      $region654: #{search_transfer.3} parent=641 // pred_check
        _
      $region655: #{search_transfer.3} parent=641 // pred_check_branch
        %1044 = sbr.rel (0) target = $region657
      $region656: #{search_transfer.3} parent=641 // pred_region
        %s1046 = ssub.s32 2, 1
        loop: start=0, step=1, limit=1
        $region658: #{search_transfer.3} parent=656 // loop_pre_header
          _
        $region659: #{search_transfer.3} parent=656 // loop_header
          %s1048 = sphi 0, %s1052
          %p1049 = scmp.ge.s32.totalorder %s1048, 1
          %s1053 = sphi %s1025, %s1025
          %s1054 = sphi %s1026, %s1026
        $region660: #{search_transfer.3} parent=656 // loop_header_branch
          %1051 = sbr.rel (%p1049) target = $region664
        $region661: #{search_transfer.3} parent=656 // loop_body
          %v1055 = vld [vmem:[%s1053] sm:%s1046]
          %1056 = vst [vmem:[%s1054] sm:%s1046] %v1055
        $region662: #{search_transfer.3} parent=656 // loop_footer
          %s1052 = sadd.s32 1, %s1048
        $region663: #{search_transfer.3} parent=656 // loop_footer_branch
          %1047 = sbr.rel target = $region659
        $region664: #{search_transfer.3} parent=656 // loop_exit
          _
      $region657: #{search_transfer.3} parent=641 // pred_fallthru
        _
    $region642: #{search_transfer.3} parent=5 // pred_fallthru
      _
    // Predicated region
    $region643: #{search_transfer.3} parent=5 // pred_check
      _
    $region644: #{search_transfer.3} parent=5 // pred_check_branch
      %1030 = sbr.rel (0) target = $region646
    $region645: #{search_transfer.3} parent=5 // pred_region
      %s1032 = ssub.s32 2, 1
      loop: start=0, step=1, limit=1
      $region647: #{search_transfer.3} parent=645 // loop_pre_header
        _
      $region648: #{search_transfer.3} parent=645 // loop_header
        %s1034 = sphi 0, %s1038
        %p1035 = scmp.ge.s32.totalorder %s1034, 1
        %s1039 = sphi %s1025, %s1025
        %s1040 = sphi %s1026, %s1026
      $region649: #{search_transfer.3} parent=645 // loop_header_branch
        %1037 = sbr.rel (%p1035) target = $region653
      $region650: #{search_transfer.3} parent=645 // loop_body
        %v1041 = vld [vmem:[%s1039] sm:%s1032]
        %1042 = vst [vmem:[%s1040] sm:%s1032] %v1041
      $region651: #{search_transfer.3} parent=645 // loop_footer
        %s1038 = sadd.s32 1, %s1034
      $region652: #{search_transfer.3} parent=645 // loop_footer_branch
        %1033 = sbr.rel target = $region648
      $region653: #{search_transfer.3} parent=645 // loop_exit
        _
    $region646: #{search_transfer.3} parent=5 // pred_fallthru
      _
    // Predicated region
    $region665: #{search_transfer.3} parent=5 // pred_check
      _
    $region666: #{search_transfer.3} parent=5 // pred_check_branch
      %1059 = sbr.rel (0) target = $region668
    $region667: #{search_transfer.3} parent=5 // pred_region
      %1060 = vsyncadd [#allocation2], 16
    $region668: #{search_transfer.3} parent=5 // pred_fallthru
      _
    %s1061 = sshrl.u32 %s1024, 3
    %s1062 = sand.u32 %s1024, 7
    %s1063 = smul.u32 %s1061, 16
    %s1064 = sadd.s32 %s1062, %s1063
    %s1065 = scalar_lea.vmem %s2, %s1064
    %s1066 = sshrl.u32 %s1023, 3
    %s1067 = sand.u32 %s1023, 7
    %s1068 = smul.u32 %s1066, 16
    %s1069 = sadd.s32 %s1067, %s1068
    %s1070 = scalar_lea.vmem %s5, %s1069
    // Predicated region
    $region669: #{search_transfer.3} parent=5 // pred_check
      _
    $region670: #{search_transfer.3} parent=5 // pred_check_branch
      %1072 = sbr.rel target = $region672
    $region671: #{search_transfer.3} parent=5 // pred_region
      // Predicated region
      $region684: #{search_transfer.3} parent=671 // pred_check
        _
      $region685: #{search_transfer.3} parent=671 // pred_check_branch
        %1090 = sbr.rel (0) target = $region687
      $region686: #{search_transfer.3} parent=671 // pred_region
        %s1092 = ssub.s32 2, 1
        loop: start=0, step=1, limit=1
        $region688: #{search_transfer.3} parent=686 // loop_pre_header
          _
        $region689: #{search_transfer.3} parent=686 // loop_header
          %s1094 = sphi 0, %s1098
          %p1095 = scmp.ge.s32.totalorder %s1094, 1
          %s1099 = sphi %s1065, %s1065
          %s1100 = sphi %s1070, %s1070
        $region690: #{search_transfer.3} parent=686 // loop_header_branch
          %1097 = sbr.rel (%p1095) target = $region694
        $region691: #{search_transfer.3} parent=686 // loop_body
          %v1101 = vld [vmem:[%s1099] sm:%s1092]
          %1102 = vst [vmem:[%s1100] sm:%s1092] %v1101
          %v1103 = vld [vmem:[%s1099 + $0x8] sm:%s1092]
          %1104 = vst [vmem:[%s1100 + $0x8] sm:%s1092] %v1103
        $region692: #{search_transfer.3} parent=686 // loop_footer
          %s1098 = sadd.s32 1, %s1094
        $region693: #{search_transfer.3} parent=686 // loop_footer_branch
          %1093 = sbr.rel target = $region689
        $region694: #{search_transfer.3} parent=686 // loop_exit
          _
      $region687: #{search_transfer.3} parent=671 // pred_fallthru
        _
    $region672: #{search_transfer.3} parent=5 // pred_fallthru
      _
    // Predicated region
    $region673: #{search_transfer.3} parent=5 // pred_check
      _
    $region674: #{search_transfer.3} parent=5 // pred_check_branch
      %1074 = sbr.rel (0) target = $region676
    $region675: #{search_transfer.3} parent=5 // pred_region
      %s1076 = ssub.s32 2, 1
      loop: start=0, step=1, limit=1
      $region677: #{search_transfer.3} parent=675 // loop_pre_header
        _
      $region678: #{search_transfer.3} parent=675 // loop_header
        %s1078 = sphi 0, %s1082
        %p1079 = scmp.ge.s32.totalorder %s1078, 1
        %s1083 = sphi %s1065, %s1065
        %s1084 = sphi %s1070, %s1070
      $region679: #{search_transfer.3} parent=675 // loop_header_branch
        %1081 = sbr.rel (%p1079) target = $region683
      $region680: #{search_transfer.3} parent=675 // loop_body
        %v1085 = vld [vmem:[%s1083] sm:%s1076]
        %1086 = vst [vmem:[%s1084] sm:%s1076] %v1085
        %v1087 = vld [vmem:[%s1083 + $0x8] sm:%s1076]
        %1088 = vst [vmem:[%s1084 + $0x8] sm:%s1076] %v1087
      $region681: #{search_transfer.3} parent=675 // loop_footer
        %s1082 = sadd.s32 1, %s1078
      $region682: #{search_transfer.3} parent=675 // loop_footer_branch
        %1077 = sbr.rel target = $region678
      $region683: #{search_transfer.3} parent=675 // loop_exit
        _
    $region676: #{search_transfer.3} parent=5 // pred_fallthru
      _
    // Predicated region
    $region695: #{search_transfer.3} parent=5 // pred_check
      _
    $region696: #{search_transfer.3} parent=5 // pred_check_branch
      %1107 = sbr.rel (0) target = $region698
    $region697: #{search_transfer.3} parent=5 // pred_region
      %1108 = vsyncadd %s75, 32
    $region698: #{search_transfer.3} parent=5 // pred_fallthru
      _
    %s1109 = smul.u32 %s1061, 40
    %s1110 = sadd.s32 %s1062, %s1109
    %s1111 = scalar_lea.vmem %s3, %s1110
    %s1112 = smul.u32 %s1066, 40
    %s1113 = sadd.s32 %s1067, %s1112
    %s1114 = scalar_lea.vmem %s6, %s1113
    // Predicated region
    $region699: #{search_transfer.3} parent=5 // pred_check
      _
    $region700: #{search_transfer.3} parent=5 // pred_check_branch
      %1116 = sbr.rel target = $region702
    $region701: #{search_transfer.3} parent=5 // pred_region
      // Predicated region
      $region714: #{search_transfer.3} parent=701 // pred_check
        _
      $region715: #{search_transfer.3} parent=701 // pred_check_branch
        %1140 = sbr.rel (0) target = $region717
      $region716: #{search_transfer.3} parent=701 // pred_region
        %s1142 = ssub.s32 2, 1
        loop: start=0, step=1, limit=1
        $region718: #{search_transfer.3} parent=716 // loop_pre_header
          _
        $region719: #{search_transfer.3} parent=716 // loop_header
          %s1144 = sphi 0, %s1148
          %p1145 = scmp.ge.s32.totalorder %s1144, 1
          %s1149 = sphi %s1111, %s1111
          %s1150 = sphi %s1114, %s1114
        $region720: #{search_transfer.3} parent=716 // loop_header_branch
          %1147 = sbr.rel (%p1145) target = $region724
        $region721: #{search_transfer.3} parent=716 // loop_body
          %v1151 = vld [vmem:[%s1149] sm:%s1142]
          %1152 = vst [vmem:[%s1150] sm:%s1142] %v1151
          %v1153 = vld [vmem:[%s1149 + $0x8] sm:%s1142]
          %1154 = vst [vmem:[%s1150 + $0x8] sm:%s1142] %v1153
          %v1155 = vld [vmem:[%s1149 + $0x10] sm:%s1142]
          %1156 = vst [vmem:[%s1150 + $0x10] sm:%s1142] %v1155
          %v1157 = vld [vmem:[%s1149 + $0x18] sm:%s1142]
          %1158 = vst [vmem:[%s1150 + $0x18] sm:%s1142] %v1157
          %v1159 = vld [vmem:[%s1149 + $0x20] sm:%s1142]
          %1160 = vst [vmem:[%s1150 + $0x20] sm:%s1142] %v1159
        $region722: #{search_transfer.3} parent=716 // loop_footer
          %s1148 = sadd.s32 1, %s1144
        $region723: #{search_transfer.3} parent=716 // loop_footer_branch
          %1143 = sbr.rel target = $region719
        $region724: #{search_transfer.3} parent=716 // loop_exit
          _
      $region717: #{search_transfer.3} parent=701 // pred_fallthru
        _
    $region702: #{search_transfer.3} parent=5 // pred_fallthru
      _
    // Predicated region
    $region703: #{search_transfer.3} parent=5 // pred_check
      _
    $region704: #{search_transfer.3} parent=5 // pred_check_branch
      %1118 = sbr.rel (0) target = $region706
    $region705: #{search_transfer.3} parent=5 // pred_region
      %s1120 = ssub.s32 2, 1
      loop: start=0, step=1, limit=1
      $region707: #{search_transfer.3} parent=705 // loop_pre_header
        _
      $region708: #{search_transfer.3} parent=705 // loop_header
        %s1122 = sphi 0, %s1126
        %p1123 = scmp.ge.s32.totalorder %s1122, 1
        %s1127 = sphi %s1111, %s1111
        %s1128 = sphi %s1114, %s1114
      $region709: #{search_transfer.3} parent=705 // loop_header_branch
        %1125 = sbr.rel (%p1123) target = $region713
      $region710: #{search_transfer.3} parent=705 // loop_body
        %v1129 = vld [vmem:[%s1127] sm:%s1120]
        %1130 = vst [vmem:[%s1128] sm:%s1120] %v1129
        %v1131 = vld [vmem:[%s1127 + $0x8] sm:%s1120]
        %1132 = vst [vmem:[%s1128 + $0x8] sm:%s1120] %v1131
        %v1133 = vld [vmem:[%s1127 + $0x10] sm:%s1120]
        %1134 = vst [vmem:[%s1128 + $0x10] sm:%s1120] %v1133
        %v1135 = vld [vmem:[%s1127 + $0x18] sm:%s1120]
        %1136 = vst [vmem:[%s1128 + $0x18] sm:%s1120] %v1135
        %v1137 = vld [vmem:[%s1127 + $0x20] sm:%s1120]
        %1138 = vst [vmem:[%s1128 + $0x20] sm:%s1120] %v1137
      $region711: #{search_transfer.3} parent=705 // loop_footer
        %s1126 = sadd.s32 1, %s1122
      $region712: #{search_transfer.3} parent=705 // loop_footer_branch
        %1121 = sbr.rel target = $region708
      $region713: #{search_transfer.3} parent=705 // loop_exit
        _
    $region706: #{search_transfer.3} parent=5 // pred_fallthru
      _
    // Predicated region
    $region725: #{search_transfer.3} parent=5 // pred_check
      _
    $region726: #{search_transfer.3} parent=5 // pred_check_branch
      %1163 = sbr.rel (0) target = $region728
    $region727: #{search_transfer.3} parent=5 // pred_region
      %1164 = vsyncadd %s120, 80
    $region728: #{search_transfer.3} parent=5 // pred_fallthru
      _
    %s1165 = sadd.s32 %s27, 8
    %s1166 = sld [smem:[#allocation4 + %s1165]]
    %s1167 = scalar_lea.vmem %s1, %s1166
    %s1168 = scalar_lea.vmem %s4, %s1165
    // Predicated region
    $region729: #{search_transfer.3} parent=5 // pred_check
      _
    $region730: #{search_transfer.3} parent=5 // pred_check_branch
      %1170 = sbr.rel target = $region732
    $region731: #{search_transfer.3} parent=5 // pred_region
      // Predicated region
      $region744: #{search_transfer.3} parent=731 // pred_check
        _
      $region745: #{search_transfer.3} parent=731 // pred_check_branch
        %1186 = sbr.rel (0) target = $region747
      $region746: #{search_transfer.3} parent=731 // pred_region
        %s1188 = ssub.s32 2, 1
        loop: start=0, step=1, limit=1
        $region748: #{search_transfer.3} parent=746 // loop_pre_header
          _
        $region749: #{search_transfer.3} parent=746 // loop_header
          %s1190 = sphi 0, %s1194
          %p1191 = scmp.ge.s32.totalorder %s1190, 1
          %s1195 = sphi %s1167, %s1167
          %s1196 = sphi %s1168, %s1168
        $region750: #{search_transfer.3} parent=746 // loop_header_branch
          %1193 = sbr.rel (%p1191) target = $region754
        $region751: #{search_transfer.3} parent=746 // loop_body
          %v1197 = vld [vmem:[%s1195] sm:%s1188]
          %1198 = vst [vmem:[%s1196] sm:%s1188] %v1197
        $region752: #{search_transfer.3} parent=746 // loop_footer
          %s1194 = sadd.s32 1, %s1190
        $region753: #{search_transfer.3} parent=746 // loop_footer_branch
          %1189 = sbr.rel target = $region749
        $region754: #{search_transfer.3} parent=746 // loop_exit
          _
      $region747: #{search_transfer.3} parent=731 // pred_fallthru
        _
    $region732: #{search_transfer.3} parent=5 // pred_fallthru
      _
    // Predicated region
    $region733: #{search_transfer.3} parent=5 // pred_check
      _
    $region734: #{search_transfer.3} parent=5 // pred_check_branch
      %1172 = sbr.rel (0) target = $region736
    $region735: #{search_transfer.3} parent=5 // pred_region
      %s1174 = ssub.s32 2, 1
      loop: start=0, step=1, limit=1
      $region737: #{search_transfer.3} parent=735 // loop_pre_header
        _
      $region738: #{search_transfer.3} parent=735 // loop_header
        %s1176 = sphi 0, %s1180
        %p1177 = scmp.ge.s32.totalorder %s1176, 1
        %s1181 = sphi %s1167, %s1167
        %s1182 = sphi %s1168, %s1168
      $region739: #{search_transfer.3} parent=735 // loop_header_branch
        %1179 = sbr.rel (%p1177) target = $region743
      $region740: #{search_transfer.3} parent=735 // loop_body
        %v1183 = vld [vmem:[%s1181] sm:%s1174]
        %1184 = vst [vmem:[%s1182] sm:%s1174] %v1183
      $region741: #{search_transfer.3} parent=735 // loop_footer
        %s1180 = sadd.s32 1, %s1176
      $region742: #{search_transfer.3} parent=735 // loop_footer_branch
        %1175 = sbr.rel target = $region738
      $region743: #{search_transfer.3} parent=735 // loop_exit
        _
    $region736: #{search_transfer.3} parent=5 // pred_fallthru
      _
    // Predicated region
    $region755: #{search_transfer.3} parent=5 // pred_check
      _
    $region756: #{search_transfer.3} parent=5 // pred_check_branch
      %1201 = sbr.rel (0) target = $region758
    $region757: #{search_transfer.3} parent=5 // pred_region
      %1202 = vsyncadd [#allocation2], 16
    $region758: #{search_transfer.3} parent=5 // pred_fallthru
      _
    %s1203 = sshrl.u32 %s1166, 3
    %s1204 = sand.u32 %s1166, 7
    %s1205 = smul.u32 %s1203, 16
    %s1206 = sadd.s32 %s1204, %s1205
    %s1207 = scalar_lea.vmem %s2, %s1206
    %s1208 = sshrl.u32 %s1165, 3
    %s1209 = sand.u32 %s1165, 7
    %s1210 = smul.u32 %s1208, 16
    %s1211 = sadd.s32 %s1209, %s1210
    %s1212 = scalar_lea.vmem %s5, %s1211
    // Predicated region
    $region759: #{search_transfer.3} parent=5 // pred_check
      _
    $region760: #{search_transfer.3} parent=5 // pred_check_branch
      %1214 = sbr.rel target = $region762
    $region761: #{search_transfer.3} parent=5 // pred_region
      // Predicated region
      $region774: #{search_transfer.3} parent=761 // pred_check
        _
      $region775: #{search_transfer.3} parent=761 // pred_check_branch
        %1232 = sbr.rel (0) target = $region777
      $region776: #{search_transfer.3} parent=761 // pred_region
        %s1234 = ssub.s32 2, 1
        loop: start=0, step=1, limit=1
        $region778: #{search_transfer.3} parent=776 // loop_pre_header
          _
        $region779: #{search_transfer.3} parent=776 // loop_header
          %s1236 = sphi 0, %s1240
          %p1237 = scmp.ge.s32.totalorder %s1236, 1
          %s1241 = sphi %s1207, %s1207
          %s1242 = sphi %s1212, %s1212
        $region780: #{search_transfer.3} parent=776 // loop_header_branch
          %1239 = sbr.rel (%p1237) target = $region784
        $region781: #{search_transfer.3} parent=776 // loop_body
          %v1243 = vld [vmem:[%s1241] sm:%s1234]
          %1244 = vst [vmem:[%s1242] sm:%s1234] %v1243
          %v1245 = vld [vmem:[%s1241 + $0x8] sm:%s1234]
          %1246 = vst [vmem:[%s1242 + $0x8] sm:%s1234] %v1245
        $region782: #{search_transfer.3} parent=776 // loop_footer
          %s1240 = sadd.s32 1, %s1236
        $region783: #{search_transfer.3} parent=776 // loop_footer_branch
          %1235 = sbr.rel target = $region779
        $region784: #{search_transfer.3} parent=776 // loop_exit
          _
      $region777: #{search_transfer.3} parent=761 // pred_fallthru
        _
    $region762: #{search_transfer.3} parent=5 // pred_fallthru
      _
    // Predicated region
    $region763: #{search_transfer.3} parent=5 // pred_check
      _
    $region764: #{search_transfer.3} parent=5 // pred_check_branch
      %1216 = sbr.rel (0) target = $region766
    $region765: #{search_transfer.3} parent=5 // pred_region
      %s1218 = ssub.s32 2, 1
      loop: start=0, step=1, limit=1
      $region767: #{search_transfer.3} parent=765 // loop_pre_header
        _
      $region768: #{search_transfer.3} parent=765 // loop_header
        %s1220 = sphi 0, %s1224
        %p1221 = scmp.ge.s32.totalorder %s1220, 1
        %s1225 = sphi %s1207, %s1207
        %s1226 = sphi %s1212, %s1212
      $region769: #{search_transfer.3} parent=765 // loop_header_branch
        %1223 = sbr.rel (%p1221) target = $region773
      $region770: #{search_transfer.3} parent=765 // loop_body
        %v1227 = vld [vmem:[%s1225] sm:%s1218]
        %1228 = vst [vmem:[%s1226] sm:%s1218] %v1227
        %v1229 = vld [vmem:[%s1225 + $0x8] sm:%s1218]
        %1230 = vst [vmem:[%s1226 + $0x8] sm:%s1218] %v1229
      $region771: #{search_transfer.3} parent=765 // loop_footer
        %s1224 = sadd.s32 1, %s1220
      $region772: #{search_transfer.3} parent=765 // loop_footer_branch
        %1219 = sbr.rel target = $region768
      $region773: #{search_transfer.3} parent=765 // loop_exit
        _
    $region766: #{search_transfer.3} parent=5 // pred_fallthru
      _
    // Predicated region
    $region785: #{search_transfer.3} parent=5 // pred_check
      _
    $region786: #{search_transfer.3} parent=5 // pred_check_branch
      %1249 = sbr.rel (0) target = $region788
    $region787: #{search_transfer.3} parent=5 // pred_region
      %1250 = vsyncadd %s75, 32
    $region788: #{search_transfer.3} parent=5 // pred_fallthru
      _
    %s1251 = smul.u32 %s1203, 40
    %s1252 = sadd.s32 %s1204, %s1251
    %s1253 = scalar_lea.vmem %s3, %s1252
    %s1254 = smul.u32 %s1208, 40
    %s1255 = sadd.s32 %s1209, %s1254
    %s1256 = scalar_lea.vmem %s6, %s1255
    // Predicated region
    $region789: #{search_transfer.3} parent=5 // pred_check
      _
    $region790: #{search_transfer.3} parent=5 // pred_check_branch
      %1258 = sbr.rel target = $region792
    $region791: #{search_transfer.3} parent=5 // pred_region
      // Predicated region
      $region804: #{search_transfer.3} parent=791 // pred_check
        _
      $region805: #{search_transfer.3} parent=791 // pred_check_branch
        %1282 = sbr.rel (0) target = $region807
      $region806: #{search_transfer.3} parent=791 // pred_region
        %s1284 = ssub.s32 2, 1
        loop: start=0, step=1, limit=1
        $region808: #{search_transfer.3} parent=806 // loop_pre_header
          _
        $region809: #{search_transfer.3} parent=806 // loop_header
          %s1286 = sphi 0, %s1290
          %p1287 = scmp.ge.s32.totalorder %s1286, 1
          %s1291 = sphi %s1253, %s1253
          %s1292 = sphi %s1256, %s1256
        $region810: #{search_transfer.3} parent=806 // loop_header_branch
          %1289 = sbr.rel (%p1287) target = $region814
        $region811: #{search_transfer.3} parent=806 // loop_body
          %v1293 = vld [vmem:[%s1291] sm:%s1284]
          %1294 = vst [vmem:[%s1292] sm:%s1284] %v1293
          %v1295 = vld [vmem:[%s1291 + $0x8] sm:%s1284]
          %1296 = vst [vmem:[%s1292 + $0x8] sm:%s1284] %v1295
          %v1297 = vld [vmem:[%s1291 + $0x10] sm:%s1284]
          %1298 = vst [vmem:[%s1292 + $0x10] sm:%s1284] %v1297
          %v1299 = vld [vmem:[%s1291 + $0x18] sm:%s1284]
          %1300 = vst [vmem:[%s1292 + $0x18] sm:%s1284] %v1299
          %v1301 = vld [vmem:[%s1291 + $0x20] sm:%s1284]
          %1302 = vst [vmem:[%s1292 + $0x20] sm:%s1284] %v1301
        $region812: #{search_transfer.3} parent=806 // loop_footer
          %s1290 = sadd.s32 1, %s1286
        $region813: #{search_transfer.3} parent=806 // loop_footer_branch
          %1285 = sbr.rel target = $region809
        $region814: #{search_transfer.3} parent=806 // loop_exit
          _
      $region807: #{search_transfer.3} parent=791 // pred_fallthru
        _
    $region792: #{search_transfer.3} parent=5 // pred_fallthru
      _
    // Predicated region
    $region793: #{search_transfer.3} parent=5 // pred_check
      _
    $region794: #{search_transfer.3} parent=5 // pred_check_branch
      %1260 = sbr.rel (0) target = $region796
    $region795: #{search_transfer.3} parent=5 // pred_region
      %s1262 = ssub.s32 2, 1
      loop: start=0, step=1, limit=1
      $region797: #{search_transfer.3} parent=795 // loop_pre_header
        _
      $region798: #{search_transfer.3} parent=795 // loop_header
        %s1264 = sphi 0, %s1268
        %p1265 = scmp.ge.s32.totalorder %s1264, 1
        %s1269 = sphi %s1253, %s1253
        %s1270 = sphi %s1256, %s1256
      $region799: #{search_transfer.3} parent=795 // loop_header_branch
        %1267 = sbr.rel (%p1265) target = $region803
      $region800: #{search_transfer.3} parent=795 // loop_body
        %v1271 = vld [vmem:[%s1269] sm:%s1262]
        %1272 = vst [vmem:[%s1270] sm:%s1262] %v1271
        %v1273 = vld [vmem:[%s1269 + $0x8] sm:%s1262]
        %1274 = vst [vmem:[%s1270 + $0x8] sm:%s1262] %v1273
        %v1275 = vld [vmem:[%s1269 + $0x10] sm:%s1262]
        %1276 = vst [vmem:[%s1270 + $0x10] sm:%s1262] %v1275
        %v1277 = vld [vmem:[%s1269 + $0x18] sm:%s1262]
        %1278 = vst [vmem:[%s1270 + $0x18] sm:%s1262] %v1277
        %v1279 = vld [vmem:[%s1269 + $0x20] sm:%s1262]
        %1280 = vst [vmem:[%s1270 + $0x20] sm:%s1262] %v1279
      $region801: #{search_transfer.3} parent=795 // loop_footer
        %s1268 = sadd.s32 1, %s1264
      $region802: #{search_transfer.3} parent=795 // loop_footer_branch
        %1263 = sbr.rel target = $region798
      $region803: #{search_transfer.3} parent=795 // loop_exit
        _
    $region796: #{search_transfer.3} parent=5 // pred_fallthru
      _
    // Predicated region
    $region815: #{search_transfer.3} parent=5 // pred_check
      _
    $region816: #{search_transfer.3} parent=5 // pred_check_branch
      %1305 = sbr.rel (0) target = $region818
    $region817: #{search_transfer.3} parent=5 // pred_region
      %1306 = vsyncadd %s120, 80
    $region818: #{search_transfer.3} parent=5 // pred_fallthru
      _
    %s1307 = sadd.s32 %s27, 9
    %s1308 = sld [smem:[#allocation4 + %s1307]]
    %s1309 = scalar_lea.vmem %s1, %s1308
    %s1310 = scalar_lea.vmem %s4, %s1307
    // Predicated region
    $region819: #{search_transfer.3} parent=5 // pred_check
      _
    $region820: #{search_transfer.3} parent=5 // pred_check_branch
      %1312 = sbr.rel target = $region822
    $region821: #{search_transfer.3} parent=5 // pred_region
      // Predicated region
      $region834: #{search_transfer.3} parent=821 // pred_check
        _
      $region835: #{search_transfer.3} parent=821 // pred_check_branch
        %1328 = sbr.rel (0) target = $region837
      $region836: #{search_transfer.3} parent=821 // pred_region
        %s1330 = ssub.s32 2, 1
        loop: start=0, step=1, limit=1
        $region838: #{search_transfer.3} parent=836 // loop_pre_header
          _
        $region839: #{search_transfer.3} parent=836 // loop_header
          %s1332 = sphi 0, %s1336
          %p1333 = scmp.ge.s32.totalorder %s1332, 1
          %s1337 = sphi %s1309, %s1309
          %s1338 = sphi %s1310, %s1310
        $region840: #{search_transfer.3} parent=836 // loop_header_branch
          %1335 = sbr.rel (%p1333) target = $region844
        $region841: #{search_transfer.3} parent=836 // loop_body
          %v1339 = vld [vmem:[%s1337] sm:%s1330]
          %1340 = vst [vmem:[%s1338] sm:%s1330] %v1339
        $region842: #{search_transfer.3} parent=836 // loop_footer
          %s1336 = sadd.s32 1, %s1332
        $region843: #{search_transfer.3} parent=836 // loop_footer_branch
          %1331 = sbr.rel target = $region839
        $region844: #{search_transfer.3} parent=836 // loop_exit
          _
      $region837: #{search_transfer.3} parent=821 // pred_fallthru
        _
    $region822: #{search_transfer.3} parent=5 // pred_fallthru
      _
    // Predicated region
    $region823: #{search_transfer.3} parent=5 // pred_check
      _
    $region824: #{search_transfer.3} parent=5 // pred_check_branch
      %1314 = sbr.rel (0) target = $region826
    $region825: #{search_transfer.3} parent=5 // pred_region
      %s1316 = ssub.s32 2, 1
      loop: start=0, step=1, limit=1
      $region827: #{search_transfer.3} parent=825 // loop_pre_header
        _
      $region828: #{search_transfer.3} parent=825 // loop_header
        %s1318 = sphi 0, %s1322
        %p1319 = scmp.ge.s32.totalorder %s1318, 1
        %s1323 = sphi %s1309, %s1309
        %s1324 = sphi %s1310, %s1310
      $region829: #{search_transfer.3} parent=825 // loop_header_branch
        %1321 = sbr.rel (%p1319) target = $region833
      $region830: #{search_transfer.3} parent=825 // loop_body
        %v1325 = vld [vmem:[%s1323] sm:%s1316]
        %1326 = vst [vmem:[%s1324] sm:%s1316] %v1325
      $region831: #{search_transfer.3} parent=825 // loop_footer
        %s1322 = sadd.s32 1, %s1318
      $region832: #{search_transfer.3} parent=825 // loop_footer_branch
        %1317 = sbr.rel target = $region828
      $region833: #{search_transfer.3} parent=825 // loop_exit
        _
    $region826: #{search_transfer.3} parent=5 // pred_fallthru
      _
    // Predicated region
    $region845: #{search_transfer.3} parent=5 // pred_check
      _
    $region846: #{search_transfer.3} parent=5 // pred_check_branch
      %1343 = sbr.rel (0) target = $region848
    $region847: #{search_transfer.3} parent=5 // pred_region
      %1344 = vsyncadd [#allocation2], 16
    $region848: #{search_transfer.3} parent=5 // pred_fallthru
      _
    %s1345 = sshrl.u32 %s1308, 3
    %s1346 = sand.u32 %s1308, 7
    %s1347 = smul.u32 %s1345, 16
    %s1348 = sadd.s32 %s1346, %s1347
    %s1349 = scalar_lea.vmem %s2, %s1348
    %s1350 = sshrl.u32 %s1307, 3
    %s1351 = sand.u32 %s1307, 7
    %s1352 = smul.u32 %s1350, 16
    %s1353 = sadd.s32 %s1351, %s1352
    %s1354 = scalar_lea.vmem %s5, %s1353
    // Predicated region
    $region849: #{search_transfer.3} parent=5 // pred_check
      _
    $region850: #{search_transfer.3} parent=5 // pred_check_branch
      %1356 = sbr.rel target = $region852
    $region851: #{search_transfer.3} parent=5 // pred_region
      // Predicated region
      $region864: #{search_transfer.3} parent=851 // pred_check
        _
      $region865: #{search_transfer.3} parent=851 // pred_check_branch
        %1374 = sbr.rel (0) target = $region867
      $region866: #{search_transfer.3} parent=851 // pred_region
        %s1376 = ssub.s32 2, 1
        loop: start=0, step=1, limit=1
        $region868: #{search_transfer.3} parent=866 // loop_pre_header
          _
        $region869: #{search_transfer.3} parent=866 // loop_header
          %s1378 = sphi 0, %s1382
          %p1379 = scmp.ge.s32.totalorder %s1378, 1
          %s1383 = sphi %s1349, %s1349
          %s1384 = sphi %s1354, %s1354
        $region870: #{search_transfer.3} parent=866 // loop_header_branch
          %1381 = sbr.rel (%p1379) target = $region874
        $region871: #{search_transfer.3} parent=866 // loop_body
          %v1385 = vld [vmem:[%s1383] sm:%s1376]
          %1386 = vst [vmem:[%s1384] sm:%s1376] %v1385
          %v1387 = vld [vmem:[%s1383 + $0x8] sm:%s1376]
          %1388 = vst [vmem:[%s1384 + $0x8] sm:%s1376] %v1387
        $region872: #{search_transfer.3} parent=866 // loop_footer
          %s1382 = sadd.s32 1, %s1378
        $region873: #{search_transfer.3} parent=866 // loop_footer_branch
          %1377 = sbr.rel target = $region869
        $region874: #{search_transfer.3} parent=866 // loop_exit
          _
      $region867: #{search_transfer.3} parent=851 // pred_fallthru
        _
    $region852: #{search_transfer.3} parent=5 // pred_fallthru
      _
    // Predicated region
    $region853: #{search_transfer.3} parent=5 // pred_check
      _
    $region854: #{search_transfer.3} parent=5 // pred_check_branch
      %1358 = sbr.rel (0) target = $region856
    $region855: #{search_transfer.3} parent=5 // pred_region
      %s1360 = ssub.s32 2, 1
      loop: start=0, step=1, limit=1
      $region857: #{search_transfer.3} parent=855 // loop_pre_header
        _
      $region858: #{search_transfer.3} parent=855 // loop_header
        %s1362 = sphi 0, %s1366
        %p1363 = scmp.ge.s32.totalorder %s1362, 1
        %s1367 = sphi %s1349, %s1349
        %s1368 = sphi %s1354, %s1354
      $region859: #{search_transfer.3} parent=855 // loop_header_branch
        %1365 = sbr.rel (%p1363) target = $region863
      $region860: #{search_transfer.3} parent=855 // loop_body
        %v1369 = vld [vmem:[%s1367] sm:%s1360]
        %1370 = vst [vmem:[%s1368] sm:%s1360] %v1369
        %v1371 = vld [vmem:[%s1367 + $0x8] sm:%s1360]
        %1372 = vst [vmem:[%s1368 + $0x8] sm:%s1360] %v1371
      $region861: #{search_transfer.3} parent=855 // loop_footer
        %s1366 = sadd.s32 1, %s1362
      $region862: #{search_transfer.3} parent=855 // loop_footer_branch
        %1361 = sbr.rel target = $region858
      $region863: #{search_transfer.3} parent=855 // loop_exit
        _
    $region856: #{search_transfer.3} parent=5 // pred_fallthru
      _
    // Predicated region
    $region875: #{search_transfer.3} parent=5 // pred_check
      _
    $region876: #{search_transfer.3} parent=5 // pred_check_branch
      %1391 = sbr.rel (0) target = $region878
    $region877: #{search_transfer.3} parent=5 // pred_region
      %1392 = vsyncadd %s75, 32
    $region878: #{search_transfer.3} parent=5 // pred_fallthru
      _
    %s1393 = smul.u32 %s1345, 40
    %s1394 = sadd.s32 %s1346, %s1393
    %s1395 = scalar_lea.vmem %s3, %s1394
    %s1396 = smul.u32 %s1350, 40
    %s1397 = sadd.s32 %s1351, %s1396
    %s1398 = scalar_lea.vmem %s6, %s1397
    // Predicated region
    $region879: #{search_transfer.3} parent=5 // pred_check
      _
    $region880: #{search_transfer.3} parent=5 // pred_check_branch
      %1400 = sbr.rel target = $region882
    $region881: #{search_transfer.3} parent=5 // pred_region
      // Predicated region
      $region894: #{search_transfer.3} parent=881 // pred_check
        _
      $region895: #{search_transfer.3} parent=881 // pred_check_branch
        %1424 = sbr.rel (0) target = $region897
      $region896: #{search_transfer.3} parent=881 // pred_region
        %s1426 = ssub.s32 2, 1
        loop: start=0, step=1, limit=1
        $region898: #{search_transfer.3} parent=896 // loop_pre_header
          _
        $region899: #{search_transfer.3} parent=896 // loop_header
          %s1428 = sphi 0, %s1432
          %p1429 = scmp.ge.s32.totalorder %s1428, 1
          %s1433 = sphi %s1395, %s1395
          %s1434 = sphi %s1398, %s1398
        $region900: #{search_transfer.3} parent=896 // loop_header_branch
          %1431 = sbr.rel (%p1429) target = $region904
        $region901: #{search_transfer.3} parent=896 // loop_body
          %v1435 = vld [vmem:[%s1433] sm:%s1426]
          %1436 = vst [vmem:[%s1434] sm:%s1426] %v1435
          %v1437 = vld [vmem:[%s1433 + $0x8] sm:%s1426]
          %1438 = vst [vmem:[%s1434 + $0x8] sm:%s1426] %v1437
          %v1439 = vld [vmem:[%s1433 + $0x10] sm:%s1426]
          %1440 = vst [vmem:[%s1434 + $0x10] sm:%s1426] %v1439
          %v1441 = vld [vmem:[%s1433 + $0x18] sm:%s1426]
          %1442 = vst [vmem:[%s1434 + $0x18] sm:%s1426] %v1441
          %v1443 = vld [vmem:[%s1433 + $0x20] sm:%s1426]
          %1444 = vst [vmem:[%s1434 + $0x20] sm:%s1426] %v1443
        $region902: #{search_transfer.3} parent=896 // loop_footer
          %s1432 = sadd.s32 1, %s1428
        $region903: #{search_transfer.3} parent=896 // loop_footer_branch
          %1427 = sbr.rel target = $region899
        $region904: #{search_transfer.3} parent=896 // loop_exit
          _
      $region897: #{search_transfer.3} parent=881 // pred_fallthru
        _
    $region882: #{search_transfer.3} parent=5 // pred_fallthru
      _
    // Predicated region
    $region883: #{search_transfer.3} parent=5 // pred_check
      _
    $region884: #{search_transfer.3} parent=5 // pred_check_branch
      %1402 = sbr.rel (0) target = $region886
    $region885: #{search_transfer.3} parent=5 // pred_region
      %s1404 = ssub.s32 2, 1
      loop: start=0, step=1, limit=1
      $region887: #{search_transfer.3} parent=885 // loop_pre_header
        _
      $region888: #{search_transfer.3} parent=885 // loop_header
        %s1406 = sphi 0, %s1410
        %p1407 = scmp.ge.s32.totalorder %s1406, 1
        %s1411 = sphi %s1395, %s1395
        %s1412 = sphi %s1398, %s1398
      $region889: #{search_transfer.3} parent=885 // loop_header_branch
        %1409 = sbr.rel (%p1407) target = $region893
      $region890: #{search_transfer.3} parent=885 // loop_body
        %v1413 = vld [vmem:[%s1411] sm:%s1404]
        %1414 = vst [vmem:[%s1412] sm:%s1404] %v1413
        %v1415 = vld [vmem:[%s1411 + $0x8] sm:%s1404]
        %1416 = vst [vmem:[%s1412 + $0x8] sm:%s1404] %v1415
        %v1417 = vld [vmem:[%s1411 + $0x10] sm:%s1404]
        %1418 = vst [vmem:[%s1412 + $0x10] sm:%s1404] %v1417
        %v1419 = vld [vmem:[%s1411 + $0x18] sm:%s1404]
        %1420 = vst [vmem:[%s1412 + $0x18] sm:%s1404] %v1419
        %v1421 = vld [vmem:[%s1411 + $0x20] sm:%s1404]
        %1422 = vst [vmem:[%s1412 + $0x20] sm:%s1404] %v1421
      $region891: #{search_transfer.3} parent=885 // loop_footer
        %s1410 = sadd.s32 1, %s1406
      $region892: #{search_transfer.3} parent=885 // loop_footer_branch
        %1405 = sbr.rel target = $region888
      $region893: #{search_transfer.3} parent=885 // loop_exit
        _
    $region886: #{search_transfer.3} parent=5 // pred_fallthru
      _
    // Predicated region
    $region905: #{search_transfer.3} parent=5 // pred_check
      _
    $region906: #{search_transfer.3} parent=5 // pred_check_branch
      %1447 = sbr.rel (0) target = $region908
    $region907: #{search_transfer.3} parent=5 // pred_region
      %1448 = vsyncadd %s120, 80
    $region908: #{search_transfer.3} parent=5 // pred_fallthru
      _
    %s1449 = sadd.s32 %s27, 10
    %s1450 = sld [smem:[#allocation4 + %s1449]]
    %s1451 = scalar_lea.vmem %s1, %s1450
    %s1452 = scalar_lea.vmem %s4, %s1449
    // Predicated region
    $region909: #{search_transfer.3} parent=5 // pred_check
      _
    $region910: #{search_transfer.3} parent=5 // pred_check_branch
      %1454 = sbr.rel target = $region912
    $region911: #{search_transfer.3} parent=5 // pred_region
      // Predicated region
      $region924: #{search_transfer.3} parent=911 // pred_check
        _
      $region925: #{search_transfer.3} parent=911 // pred_check_branch
        %1470 = sbr.rel (0) target = $region927
      $region926: #{search_transfer.3} parent=911 // pred_region
        %s1472 = ssub.s32 2, 1
        loop: start=0, step=1, limit=1
        $region928: #{search_transfer.3} parent=926 // loop_pre_header
          _
        $region929: #{search_transfer.3} parent=926 // loop_header
          %s1474 = sphi 0, %s1478
          %p1475 = scmp.ge.s32.totalorder %s1474, 1
          %s1479 = sphi %s1451, %s1451
          %s1480 = sphi %s1452, %s1452
        $region930: #{search_transfer.3} parent=926 // loop_header_branch
          %1477 = sbr.rel (%p1475) target = $region934
        $region931: #{search_transfer.3} parent=926 // loop_body
          %v1481 = vld [vmem:[%s1479] sm:%s1472]
          %1482 = vst [vmem:[%s1480] sm:%s1472] %v1481
        $region932: #{search_transfer.3} parent=926 // loop_footer
          %s1478 = sadd.s32 1, %s1474
        $region933: #{search_transfer.3} parent=926 // loop_footer_branch
          %1473 = sbr.rel target = $region929
        $region934: #{search_transfer.3} parent=926 // loop_exit
          _
      $region927: #{search_transfer.3} parent=911 // pred_fallthru
        _
    $region912: #{search_transfer.3} parent=5 // pred_fallthru
      _
    // Predicated region
    $region913: #{search_transfer.3} parent=5 // pred_check
      _
    $region914: #{search_transfer.3} parent=5 // pred_check_branch
      %1456 = sbr.rel (0) target = $region916
    $region915: #{search_transfer.3} parent=5 // pred_region
      %s1458 = ssub.s32 2, 1
      loop: start=0, step=1, limit=1
      $region917: #{search_transfer.3} parent=915 // loop_pre_header
        _
      $region918: #{search_transfer.3} parent=915 // loop_header
        %s1460 = sphi 0, %s1464
        %p1461 = scmp.ge.s32.totalorder %s1460, 1
        %s1465 = sphi %s1451, %s1451
        %s1466 = sphi %s1452, %s1452
      $region919: #{search_transfer.3} parent=915 // loop_header_branch
        %1463 = sbr.rel (%p1461) target = $region923
      $region920: #{search_transfer.3} parent=915 // loop_body
        %v1467 = vld [vmem:[%s1465] sm:%s1458]
        %1468 = vst [vmem:[%s1466] sm:%s1458] %v1467
      $region921: #{search_transfer.3} parent=915 // loop_footer
        %s1464 = sadd.s32 1, %s1460
      $region922: #{search_transfer.3} parent=915 // loop_footer_branch
        %1459 = sbr.rel target = $region918
      $region923: #{search_transfer.3} parent=915 // loop_exit
        _
    $region916: #{search_transfer.3} parent=5 // pred_fallthru
      _
    // Predicated region
    $region935: #{search_transfer.3} parent=5 // pred_check
      _
    $region936: #{search_transfer.3} parent=5 // pred_check_branch
      %1485 = sbr.rel (0) target = $region938
    $region937: #{search_transfer.3} parent=5 // pred_region
      %1486 = vsyncadd [#allocation2], 16
    $region938: #{search_transfer.3} parent=5 // pred_fallthru
      _
    %s1487 = sshrl.u32 %s1450, 3
    %s1488 = sand.u32 %s1450, 7
    %s1489 = smul.u32 %s1487, 16
    %s1490 = sadd.s32 %s1488, %s1489
    %s1491 = scalar_lea.vmem %s2, %s1490
    %s1492 = sshrl.u32 %s1449, 3
    %s1493 = sand.u32 %s1449, 7
    %s1494 = smul.u32 %s1492, 16
    %s1495 = sadd.s32 %s1493, %s1494
    %s1496 = scalar_lea.vmem %s5, %s1495
    // Predicated region
    $region939: #{search_transfer.3} parent=5 // pred_check
      _
    $region940: #{search_transfer.3} parent=5 // pred_check_branch
      %1498 = sbr.rel target = $region942
    $region941: #{search_transfer.3} parent=5 // pred_region
      // Predicated region
      $region954: #{search_transfer.3} parent=941 // pred_check
        _
      $region955: #{search_transfer.3} parent=941 // pred_check_branch
        %1516 = sbr.rel (0) target = $region957
      $region956: #{search_transfer.3} parent=941 // pred_region
        %s1518 = ssub.s32 2, 1
        loop: start=0, step=1, limit=1
        $region958: #{search_transfer.3} parent=956 // loop_pre_header
          _
        $region959: #{search_transfer.3} parent=956 // loop_header
          %s1520 = sphi 0, %s1524
          %p1521 = scmp.ge.s32.totalorder %s1520, 1
          %s1525 = sphi %s1491, %s1491
          %s1526 = sphi %s1496, %s1496
        $region960: #{search_transfer.3} parent=956 // loop_header_branch
          %1523 = sbr.rel (%p1521) target = $region964
        $region961: #{search_transfer.3} parent=956 // loop_body
          %v1527 = vld [vmem:[%s1525] sm:%s1518]
          %1528 = vst [vmem:[%s1526] sm:%s1518] %v1527
          %v1529 = vld [vmem:[%s1525 + $0x8] sm:%s1518]
          %1530 = vst [vmem:[%s1526 + $0x8] sm:%s1518] %v1529
        $region962: #{search_transfer.3} parent=956 // loop_footer
          %s1524 = sadd.s32 1, %s1520
        $region963: #{search_transfer.3} parent=956 // loop_footer_branch
          %1519 = sbr.rel target = $region959
        $region964: #{search_transfer.3} parent=956 // loop_exit
          _
      $region957: #{search_transfer.3} parent=941 // pred_fallthru
        _
    $region942: #{search_transfer.3} parent=5 // pred_fallthru
      _
    // Predicated region
    $region943: #{search_transfer.3} parent=5 // pred_check
      _
    $region944: #{search_transfer.3} parent=5 // pred_check_branch
      %1500 = sbr.rel (0) target = $region946
    $region945: #{search_transfer.3} parent=5 // pred_region
      %s1502 = ssub.s32 2, 1
      loop: start=0, step=1, limit=1
      $region947: #{search_transfer.3} parent=945 // loop_pre_header
        _
      $region948: #{search_transfer.3} parent=945 // loop_header
        %s1504 = sphi 0, %s1508
        %p1505 = scmp.ge.s32.totalorder %s1504, 1
        %s1509 = sphi %s1491, %s1491
        %s1510 = sphi %s1496, %s1496
      $region949: #{search_transfer.3} parent=945 // loop_header_branch
        %1507 = sbr.rel (%p1505) target = $region953
      $region950: #{search_transfer.3} parent=945 // loop_body
        %v1511 = vld [vmem:[%s1509] sm:%s1502]
        %1512 = vst [vmem:[%s1510] sm:%s1502] %v1511
        %v1513 = vld [vmem:[%s1509 + $0x8] sm:%s1502]
        %1514 = vst [vmem:[%s1510 + $0x8] sm:%s1502] %v1513
      $region951: #{search_transfer.3} parent=945 // loop_footer
        %s1508 = sadd.s32 1, %s1504
      $region952: #{search_transfer.3} parent=945 // loop_footer_branch
        %1503 = sbr.rel target = $region948
      $region953: #{search_transfer.3} parent=945 // loop_exit
        _
    $region946: #{search_transfer.3} parent=5 // pred_fallthru
      _
    // Predicated region
    $region965: #{search_transfer.3} parent=5 // pred_check
      _
    $region966: #{search_transfer.3} parent=5 // pred_check_branch
      %1533 = sbr.rel (0) target = $region968
    $region967: #{search_transfer.3} parent=5 // pred_region
      %1534 = vsyncadd %s75, 32
    $region968: #{search_transfer.3} parent=5 // pred_fallthru
      _
    %s1535 = smul.u32 %s1487, 40
    %s1536 = sadd.s32 %s1488, %s1535
    %s1537 = scalar_lea.vmem %s3, %s1536
    %s1538 = smul.u32 %s1492, 40
    %s1539 = sadd.s32 %s1493, %s1538
    %s1540 = scalar_lea.vmem %s6, %s1539
    // Predicated region
    $region969: #{search_transfer.3} parent=5 // pred_check
      _
    $region970: #{search_transfer.3} parent=5 // pred_check_branch
      %1542 = sbr.rel target = $region972
    $region971: #{search_transfer.3} parent=5 // pred_region
      // Predicated region
      $region984: #{search_transfer.3} parent=971 // pred_check
        _
      $region985: #{search_transfer.3} parent=971 // pred_check_branch
        %1566 = sbr.rel (0) target = $region987
      $region986: #{search_transfer.3} parent=971 // pred_region
        %s1568 = ssub.s32 2, 1
        loop: start=0, step=1, limit=1
        $region988: #{search_transfer.3} parent=986 // loop_pre_header
          _
        $region989: #{search_transfer.3} parent=986 // loop_header
          %s1570 = sphi 0, %s1574
          %p1571 = scmp.ge.s32.totalorder %s1570, 1
          %s1575 = sphi %s1537, %s1537
          %s1576 = sphi %s1540, %s1540
        $region990: #{search_transfer.3} parent=986 // loop_header_branch
          %1573 = sbr.rel (%p1571) target = $region994
        $region991: #{search_transfer.3} parent=986 // loop_body
          %v1577 = vld [vmem:[%s1575] sm:%s1568]
          %1578 = vst [vmem:[%s1576] sm:%s1568] %v1577
          %v1579 = vld [vmem:[%s1575 + $0x8] sm:%s1568]
          %1580 = vst [vmem:[%s1576 + $0x8] sm:%s1568] %v1579
          %v1581 = vld [vmem:[%s1575 + $0x10] sm:%s1568]
          %1582 = vst [vmem:[%s1576 + $0x10] sm:%s1568] %v1581
          %v1583 = vld [vmem:[%s1575 + $0x18] sm:%s1568]
          %1584 = vst [vmem:[%s1576 + $0x18] sm:%s1568] %v1583
          %v1585 = vld [vmem:[%s1575 + $0x20] sm:%s1568]
          %1586 = vst [vmem:[%s1576 + $0x20] sm:%s1568] %v1585
        $region992: #{search_transfer.3} parent=986 // loop_footer
          %s1574 = sadd.s32 1, %s1570
        $region993: #{search_transfer.3} parent=986 // loop_footer_branch
          %1569 = sbr.rel target = $region989
        $region994: #{search_transfer.3} parent=986 // loop_exit
          _
      $region987: #{search_transfer.3} parent=971 // pred_fallthru
        _
    $region972: #{search_transfer.3} parent=5 // pred_fallthru
      _
    // Predicated region
    $region973: #{search_transfer.3} parent=5 // pred_check
      _
    $region974: #{search_transfer.3} parent=5 // pred_check_branch
      %1544 = sbr.rel (0) target = $region976
    $region975: #{search_transfer.3} parent=5 // pred_region
      %s1546 = ssub.s32 2, 1
      loop: start=0, step=1, limit=1
      $region977: #{search_transfer.3} parent=975 // loop_pre_header
        _
      $region978: #{search_transfer.3} parent=975 // loop_header
        %s1548 = sphi 0, %s1552
        %p1549 = scmp.ge.s32.totalorder %s1548, 1
        %s1553 = sphi %s1537, %s1537
        %s1554 = sphi %s1540, %s1540
      $region979: #{search_transfer.3} parent=975 // loop_header_branch
        %1551 = sbr.rel (%p1549) target = $region983
      $region980: #{search_transfer.3} parent=975 // loop_body
        %v1555 = vld [vmem:[%s1553] sm:%s1546]
        %1556 = vst [vmem:[%s1554] sm:%s1546] %v1555
        %v1557 = vld [vmem:[%s1553 + $0x8] sm:%s1546]
        %1558 = vst [vmem:[%s1554 + $0x8] sm:%s1546] %v1557
        %v1559 = vld [vmem:[%s1553 + $0x10] sm:%s1546]
        %1560 = vst [vmem:[%s1554 + $0x10] sm:%s1546] %v1559
        %v1561 = vld [vmem:[%s1553 + $0x18] sm:%s1546]
        %1562 = vst [vmem:[%s1554 + $0x18] sm:%s1546] %v1561
        %v1563 = vld [vmem:[%s1553 + $0x20] sm:%s1546]
        %1564 = vst [vmem:[%s1554 + $0x20] sm:%s1546] %v1563
      $region981: #{search_transfer.3} parent=975 // loop_footer
        %s1552 = sadd.s32 1, %s1548
      $region982: #{search_transfer.3} parent=975 // loop_footer_branch
        %1547 = sbr.rel target = $region978
      $region983: #{search_transfer.3} parent=975 // loop_exit
        _
    $region976: #{search_transfer.3} parent=5 // pred_fallthru
      _
    // Predicated region
    $region995: #{search_transfer.3} parent=5 // pred_check
      _
    $region996: #{search_transfer.3} parent=5 // pred_check_branch
      %1589 = sbr.rel (0) target = $region998
    $region997: #{search_transfer.3} parent=5 // pred_region
      %1590 = vsyncadd %s120, 80
    $region998: #{search_transfer.3} parent=5 // pred_fallthru
      _
    %s1591 = sadd.s32 %s27, 11
    %s1592 = sld [smem:[#allocation4 + %s1591]]
    %s1593 = scalar_lea.vmem %s1, %s1592
    %s1594 = scalar_lea.vmem %s4, %s1591
    // Predicated region
    $region999: #{search_transfer.3} parent=5 // pred_check
      _
    $region1000: #{search_transfer.3} parent=5 // pred_check_branch
      %1596 = sbr.rel target = $region1002
    $region1001: #{search_transfer.3} parent=5 // pred_region
      // Predicated region
      $region1014: #{search_transfer.3} parent=1001 // pred_check
        _
      $region1015: #{search_transfer.3} parent=1001 // pred_check_branch
        %1612 = sbr.rel (0) target = $region1017
      $region1016: #{search_transfer.3} parent=1001 // pred_region
        %s1614 = ssub.s32 2, 1
        loop: start=0, step=1, limit=1
        $region1018: #{search_transfer.3} parent=1016 // loop_pre_header
          _
        $region1019: #{search_transfer.3} parent=1016 // loop_header
          %s1616 = sphi 0, %s1620
          %p1617 = scmp.ge.s32.totalorder %s1616, 1
          %s1621 = sphi %s1593, %s1593
          %s1622 = sphi %s1594, %s1594
        $region1020: #{search_transfer.3} parent=1016 // loop_header_branch
          %1619 = sbr.rel (%p1617) target = $region1024
        $region1021: #{search_transfer.3} parent=1016 // loop_body
          %v1623 = vld [vmem:[%s1621] sm:%s1614]
          %1624 = vst [vmem:[%s1622] sm:%s1614] %v1623
        $region1022: #{search_transfer.3} parent=1016 // loop_footer
          %s1620 = sadd.s32 1, %s1616
        $region1023: #{search_transfer.3} parent=1016 // loop_footer_branch
          %1615 = sbr.rel target = $region1019
        $region1024: #{search_transfer.3} parent=1016 // loop_exit
          _
      $region1017: #{search_transfer.3} parent=1001 // pred_fallthru
        _
    $region1002: #{search_transfer.3} parent=5 // pred_fallthru
      _
    // Predicated region
    $region1003: #{search_transfer.3} parent=5 // pred_check
      _
    $region1004: #{search_transfer.3} parent=5 // pred_check_branch
      %1598 = sbr.rel (0) target = $region1006
    $region1005: #{search_transfer.3} parent=5 // pred_region
      %s1600 = ssub.s32 2, 1
      loop: start=0, step=1, limit=1
      $region1007: #{search_transfer.3} parent=1005 // loop_pre_header
        _
      $region1008: #{search_transfer.3} parent=1005 // loop_header
        %s1602 = sphi 0, %s1606
        %p1603 = scmp.ge.s32.totalorder %s1602, 1
        %s1607 = sphi %s1593, %s1593
        %s1608 = sphi %s1594, %s1594
      $region1009: #{search_transfer.3} parent=1005 // loop_header_branch
        %1605 = sbr.rel (%p1603) target = $region1013
      $region1010: #{search_transfer.3} parent=1005 // loop_body
        %v1609 = vld [vmem:[%s1607] sm:%s1600]
        %1610 = vst [vmem:[%s1608] sm:%s1600] %v1609
      $region1011: #{search_transfer.3} parent=1005 // loop_footer
        %s1606 = sadd.s32 1, %s1602
      $region1012: #{search_transfer.3} parent=1005 // loop_footer_branch
        %1601 = sbr.rel target = $region1008
      $region1013: #{search_transfer.3} parent=1005 // loop_exit
        _
    $region1006: #{search_transfer.3} parent=5 // pred_fallthru
      _
    // Predicated region
    $region1025: #{search_transfer.3} parent=5 // pred_check
      _
    $region1026: #{search_transfer.3} parent=5 // pred_check_branch
      %1627 = sbr.rel (0) target = $region1028
    $region1027: #{search_transfer.3} parent=5 // pred_region
      %1628 = vsyncadd [#allocation2], 16
    $region1028: #{search_transfer.3} parent=5 // pred_fallthru
      _
    %s1629 = sshrl.u32 %s1592, 3
    %s1630 = sand.u32 %s1592, 7
    %s1631 = smul.u32 %s1629, 16
    %s1632 = sadd.s32 %s1630, %s1631
    %s1633 = scalar_lea.vmem %s2, %s1632
    %s1634 = sshrl.u32 %s1591, 3
    %s1635 = sand.u32 %s1591, 7
    %s1636 = smul.u32 %s1634, 16
    %s1637 = sadd.s32 %s1635, %s1636
    %s1638 = scalar_lea.vmem %s5, %s1637
    // Predicated region
    $region1029: #{search_transfer.3} parent=5 // pred_check
      _
    $region1030: #{search_transfer.3} parent=5 // pred_check_branch
      %1640 = sbr.rel target = $region1032
    $region1031: #{search_transfer.3} parent=5 // pred_region
      // Predicated region
      $region1044: #{search_transfer.3} parent=1031 // pred_check
        _
      $region1045: #{search_transfer.3} parent=1031 // pred_check_branch
        %1658 = sbr.rel (0) target = $region1047
      $region1046: #{search_transfer.3} parent=1031 // pred_region
        %s1660 = ssub.s32 2, 1
        loop: start=0, step=1, limit=1
        $region1048: #{search_transfer.3} parent=1046 // loop_pre_header
          _
        $region1049: #{search_transfer.3} parent=1046 // loop_header
          %s1662 = sphi 0, %s1666
          %p1663 = scmp.ge.s32.totalorder %s1662, 1
          %s1667 = sphi %s1633, %s1633
          %s1668 = sphi %s1638, %s1638
        $region1050: #{search_transfer.3} parent=1046 // loop_header_branch
          %1665 = sbr.rel (%p1663) target = $region1054
        $region1051: #{search_transfer.3} parent=1046 // loop_body
          %v1669 = vld [vmem:[%s1667] sm:%s1660]
          %1670 = vst [vmem:[%s1668] sm:%s1660] %v1669
          %v1671 = vld [vmem:[%s1667 + $0x8] sm:%s1660]
          %1672 = vst [vmem:[%s1668 + $0x8] sm:%s1660] %v1671
        $region1052: #{search_transfer.3} parent=1046 // loop_footer
          %s1666 = sadd.s32 1, %s1662
        $region1053: #{search_transfer.3} parent=1046 // loop_footer_branch
          %1661 = sbr.rel target = $region1049
        $region1054: #{search_transfer.3} parent=1046 // loop_exit
          _
      $region1047: #{search_transfer.3} parent=1031 // pred_fallthru
        _
    $region1032: #{search_transfer.3} parent=5 // pred_fallthru
      _
    // Predicated region
    $region1033: #{search_transfer.3} parent=5 // pred_check
      _
    $region1034: #{search_transfer.3} parent=5 // pred_check_branch
      %1642 = sbr.rel (0) target = $region1036
    $region1035: #{search_transfer.3} parent=5 // pred_region
      %s1644 = ssub.s32 2, 1
      loop: start=0, step=1, limit=1
      $region1037: #{search_transfer.3} parent=1035 // loop_pre_header
        _
      $region1038: #{search_transfer.3} parent=1035 // loop_header
        %s1646 = sphi 0, %s1650
        %p1647 = scmp.ge.s32.totalorder %s1646, 1
        %s1651 = sphi %s1633, %s1633
        %s1652 = sphi %s1638, %s1638
      $region1039: #{search_transfer.3} parent=1035 // loop_header_branch
        %1649 = sbr.rel (%p1647) target = $region1043
      $region1040: #{search_transfer.3} parent=1035 // loop_body
        %v1653 = vld [vmem:[%s1651] sm:%s1644]
        %1654 = vst [vmem:[%s1652] sm:%s1644] %v1653
        %v1655 = vld [vmem:[%s1651 + $0x8] sm:%s1644]
        %1656 = vst [vmem:[%s1652 + $0x8] sm:%s1644] %v1655
      $region1041: #{search_transfer.3} parent=1035 // loop_footer
        %s1650 = sadd.s32 1, %s1646
      $region1042: #{search_transfer.3} parent=1035 // loop_footer_branch
        %1645 = sbr.rel target = $region1038
      $region1043: #{search_transfer.3} parent=1035 // loop_exit
        _
    $region1036: #{search_transfer.3} parent=5 // pred_fallthru
      _
    // Predicated region
    $region1055: #{search_transfer.3} parent=5 // pred_check
      _
    $region1056: #{search_transfer.3} parent=5 // pred_check_branch
      %1675 = sbr.rel (0) target = $region1058
    $region1057: #{search_transfer.3} parent=5 // pred_region
      %1676 = vsyncadd %s75, 32
    $region1058: #{search_transfer.3} parent=5 // pred_fallthru
      _
    %s1677 = smul.u32 %s1629, 40
    %s1678 = sadd.s32 %s1630, %s1677
    %s1679 = scalar_lea.vmem %s3, %s1678
    %s1680 = smul.u32 %s1634, 40
    %s1681 = sadd.s32 %s1635, %s1680
    %s1682 = scalar_lea.vmem %s6, %s1681
    // Predicated region
    $region1059: #{search_transfer.3} parent=5 // pred_check
      _
    $region1060: #{search_transfer.3} parent=5 // pred_check_branch
      %1684 = sbr.rel target = $region1062
    $region1061: #{search_transfer.3} parent=5 // pred_region
      // Predicated region
      $region1074: #{search_transfer.3} parent=1061 // pred_check
        _
      $region1075: #{search_transfer.3} parent=1061 // pred_check_branch
        %1708 = sbr.rel (0) target = $region1077
      $region1076: #{search_transfer.3} parent=1061 // pred_region
        %s1710 = ssub.s32 2, 1
        loop: start=0, step=1, limit=1
        $region1078: #{search_transfer.3} parent=1076 // loop_pre_header
          _
        $region1079: #{search_transfer.3} parent=1076 // loop_header
          %s1712 = sphi 0, %s1716
          %p1713 = scmp.ge.s32.totalorder %s1712, 1
          %s1717 = sphi %s1679, %s1679
          %s1718 = sphi %s1682, %s1682
        $region1080: #{search_transfer.3} parent=1076 // loop_header_branch
          %1715 = sbr.rel (%p1713) target = $region1084
        $region1081: #{search_transfer.3} parent=1076 // loop_body
          %v1719 = vld [vmem:[%s1717] sm:%s1710]
          %1720 = vst [vmem:[%s1718] sm:%s1710] %v1719
          %v1721 = vld [vmem:[%s1717 + $0x8] sm:%s1710]
          %1722 = vst [vmem:[%s1718 + $0x8] sm:%s1710] %v1721
          %v1723 = vld [vmem:[%s1717 + $0x10] sm:%s1710]
          %1724 = vst [vmem:[%s1718 + $0x10] sm:%s1710] %v1723
          %v1725 = vld [vmem:[%s1717 + $0x18] sm:%s1710]
          %1726 = vst [vmem:[%s1718 + $0x18] sm:%s1710] %v1725
          %v1727 = vld [vmem:[%s1717 + $0x20] sm:%s1710]
          %1728 = vst [vmem:[%s1718 + $0x20] sm:%s1710] %v1727
        $region1082: #{search_transfer.3} parent=1076 // loop_footer
          %s1716 = sadd.s32 1, %s1712
        $region1083: #{search_transfer.3} parent=1076 // loop_footer_branch
          %1711 = sbr.rel target = $region1079
        $region1084: #{search_transfer.3} parent=1076 // loop_exit
          _
      $region1077: #{search_transfer.3} parent=1061 // pred_fallthru
        _
    $region1062: #{search_transfer.3} parent=5 // pred_fallthru
      _
    // Predicated region
    $region1063: #{search_transfer.3} parent=5 // pred_check
      _
    $region1064: #{search_transfer.3} parent=5 // pred_check_branch
      %1686 = sbr.rel (0) target = $region1066
    $region1065: #{search_transfer.3} parent=5 // pred_region
      %s1688 = ssub.s32 2, 1
      loop: start=0, step=1, limit=1
      $region1067: #{search_transfer.3} parent=1065 // loop_pre_header
        _
      $region1068: #{search_transfer.3} parent=1065 // loop_header
        %s1690 = sphi 0, %s1694
        %p1691 = scmp.ge.s32.totalorder %s1690, 1
        %s1695 = sphi %s1679, %s1679
        %s1696 = sphi %s1682, %s1682
      $region1069: #{search_transfer.3} parent=1065 // loop_header_branch
        %1693 = sbr.rel (%p1691) target = $region1073
      $region1070: #{search_transfer.3} parent=1065 // loop_body
        %v1697 = vld [vmem:[%s1695] sm:%s1688]
        %1698 = vst [vmem:[%s1696] sm:%s1688] %v1697
        %v1699 = vld [vmem:[%s1695 + $0x8] sm:%s1688]
        %1700 = vst [vmem:[%s1696 + $0x8] sm:%s1688] %v1699
        %v1701 = vld [vmem:[%s1695 + $0x10] sm:%s1688]
        %1702 = vst [vmem:[%s1696 + $0x10] sm:%s1688] %v1701
        %v1703 = vld [vmem:[%s1695 + $0x18] sm:%s1688]
        %1704 = vst [vmem:[%s1696 + $0x18] sm:%s1688] %v1703
        %v1705 = vld [vmem:[%s1695 + $0x20] sm:%s1688]
        %1706 = vst [vmem:[%s1696 + $0x20] sm:%s1688] %v1705
      $region1071: #{search_transfer.3} parent=1065 // loop_footer
        %s1694 = sadd.s32 1, %s1690
      $region1072: #{search_transfer.3} parent=1065 // loop_footer_branch
        %1689 = sbr.rel target = $region1068
      $region1073: #{search_transfer.3} parent=1065 // loop_exit
        _
    $region1066: #{search_transfer.3} parent=5 // pred_fallthru
      _
    // Predicated region
    $region1085: #{search_transfer.3} parent=5 // pred_check
      _
    $region1086: #{search_transfer.3} parent=5 // pred_check_branch
      %1731 = sbr.rel (0) target = $region1088
    $region1087: #{search_transfer.3} parent=5 // pred_region
      %1732 = vsyncadd %s120, 80
    $region1088: #{search_transfer.3} parent=5 // pred_fallthru
      _
    %s1733 = sadd.s32 %s27, 12
    %s1734 = sld [smem:[#allocation4 + %s1733]]
    %s1735 = scalar_lea.vmem %s1, %s1734
    %s1736 = scalar_lea.vmem %s4, %s1733
    // Predicated region
    $region1089: #{search_transfer.3} parent=5 // pred_check
      _
    $region1090: #{search_transfer.3} parent=5 // pred_check_branch
      %1738 = sbr.rel target = $region1092
    $region1091: #{search_transfer.3} parent=5 // pred_region
      // Predicated region
      $region1104: #{search_transfer.3} parent=1091 // pred_check
        _
      $region1105: #{search_transfer.3} parent=1091 // pred_check_branch
        %1754 = sbr.rel (0) target = $region1107
      $region1106: #{search_transfer.3} parent=1091 // pred_region
        %s1756 = ssub.s32 2, 1
        loop: start=0, step=1, limit=1
        $region1108: #{search_transfer.3} parent=1106 // loop_pre_header
          _
        $region1109: #{search_transfer.3} parent=1106 // loop_header
          %s1758 = sphi 0, %s1762
          %p1759 = scmp.ge.s32.totalorder %s1758, 1
          %s1763 = sphi %s1735, %s1735
          %s1764 = sphi %s1736, %s1736
        $region1110: #{search_transfer.3} parent=1106 // loop_header_branch
          %1761 = sbr.rel (%p1759) target = $region1114
        $region1111: #{search_transfer.3} parent=1106 // loop_body
          %v1765 = vld [vmem:[%s1763] sm:%s1756]
          %1766 = vst [vmem:[%s1764] sm:%s1756] %v1765
        $region1112: #{search_transfer.3} parent=1106 // loop_footer
          %s1762 = sadd.s32 1, %s1758
        $region1113: #{search_transfer.3} parent=1106 // loop_footer_branch
          %1757 = sbr.rel target = $region1109
        $region1114: #{search_transfer.3} parent=1106 // loop_exit
          _
      $region1107: #{search_transfer.3} parent=1091 // pred_fallthru
        _
    $region1092: #{search_transfer.3} parent=5 // pred_fallthru
      _
    // Predicated region
    $region1093: #{search_transfer.3} parent=5 // pred_check
      _
    $region1094: #{search_transfer.3} parent=5 // pred_check_branch
      %1740 = sbr.rel (0) target = $region1096
    $region1095: #{search_transfer.3} parent=5 // pred_region
      %s1742 = ssub.s32 2, 1
      loop: start=0, step=1, limit=1
      $region1097: #{search_transfer.3} parent=1095 // loop_pre_header
        _
      $region1098: #{search_transfer.3} parent=1095 // loop_header
        %s1744 = sphi 0, %s1748
        %p1745 = scmp.ge.s32.totalorder %s1744, 1
        %s1749 = sphi %s1735, %s1735
        %s1750 = sphi %s1736, %s1736
      $region1099: #{search_transfer.3} parent=1095 // loop_header_branch
        %1747 = sbr.rel (%p1745) target = $region1103
      $region1100: #{search_transfer.3} parent=1095 // loop_body
        %v1751 = vld [vmem:[%s1749] sm:%s1742]
        %1752 = vst [vmem:[%s1750] sm:%s1742] %v1751
      $region1101: #{search_transfer.3} parent=1095 // loop_footer
        %s1748 = sadd.s32 1, %s1744
      $region1102: #{search_transfer.3} parent=1095 // loop_footer_branch
        %1743 = sbr.rel target = $region1098
      $region1103: #{search_transfer.3} parent=1095 // loop_exit
        _
    $region1096: #{search_transfer.3} parent=5 // pred_fallthru
      _
    // Predicated region
    $region1115: #{search_transfer.3} parent=5 // pred_check
      _
    $region1116: #{search_transfer.3} parent=5 // pred_check_branch
      %1769 = sbr.rel (0) target = $region1118
    $region1117: #{search_transfer.3} parent=5 // pred_region
      %1770 = vsyncadd [#allocation2], 16
    $region1118: #{search_transfer.3} parent=5 // pred_fallthru
      _
    %s1771 = sshrl.u32 %s1734, 3
    %s1772 = sand.u32 %s1734, 7
    %s1773 = smul.u32 %s1771, 16
    %s1774 = sadd.s32 %s1772, %s1773
    %s1775 = scalar_lea.vmem %s2, %s1774
    %s1776 = sshrl.u32 %s1733, 3
    %s1777 = sand.u32 %s1733, 7
    %s1778 = smul.u32 %s1776, 16
    %s1779 = sadd.s32 %s1777, %s1778
    %s1780 = scalar_lea.vmem %s5, %s1779
    // Predicated region
    $region1119: #{search_transfer.3} parent=5 // pred_check
      _
    $region1120: #{search_transfer.3} parent=5 // pred_check_branch
      %1782 = sbr.rel target = $region1122
    $region1121: #{search_transfer.3} parent=5 // pred_region
      // Predicated region
      $region1134: #{search_transfer.3} parent=1121 // pred_check
        _
      $region1135: #{search_transfer.3} parent=1121 // pred_check_branch
        %1800 = sbr.rel (0) target = $region1137
      $region1136: #{search_transfer.3} parent=1121 // pred_region
        %s1802 = ssub.s32 2, 1
        loop: start=0, step=1, limit=1
        $region1138: #{search_transfer.3} parent=1136 // loop_pre_header
          _
        $region1139: #{search_transfer.3} parent=1136 // loop_header
          %s1804 = sphi 0, %s1808
          %p1805 = scmp.ge.s32.totalorder %s1804, 1
          %s1809 = sphi %s1775, %s1775
          %s1810 = sphi %s1780, %s1780
        $region1140: #{search_transfer.3} parent=1136 // loop_header_branch
          %1807 = sbr.rel (%p1805) target = $region1144
        $region1141: #{search_transfer.3} parent=1136 // loop_body
          %v1811 = vld [vmem:[%s1809] sm:%s1802]
          %1812 = vst [vmem:[%s1810] sm:%s1802] %v1811
          %v1813 = vld [vmem:[%s1809 + $0x8] sm:%s1802]
          %1814 = vst [vmem:[%s1810 + $0x8] sm:%s1802] %v1813
        $region1142: #{search_transfer.3} parent=1136 // loop_footer
          %s1808 = sadd.s32 1, %s1804
        $region1143: #{search_transfer.3} parent=1136 // loop_footer_branch
          %1803 = sbr.rel target = $region1139
        $region1144: #{search_transfer.3} parent=1136 // loop_exit
          _
      $region1137: #{search_transfer.3} parent=1121 // pred_fallthru
        _
    $region1122: #{search_transfer.3} parent=5 // pred_fallthru
      _
    // Predicated region
    $region1123: #{search_transfer.3} parent=5 // pred_check
      _
    $region1124: #{search_transfer.3} parent=5 // pred_check_branch
      %1784 = sbr.rel (0) target = $region1126
    $region1125: #{search_transfer.3} parent=5 // pred_region
      %s1786 = ssub.s32 2, 1
      loop: start=0, step=1, limit=1
      $region1127: #{search_transfer.3} parent=1125 // loop_pre_header
        _
      $region1128: #{search_transfer.3} parent=1125 // loop_header
        %s1788 = sphi 0, %s1792
        %p1789 = scmp.ge.s32.totalorder %s1788, 1
        %s1793 = sphi %s1775, %s1775
        %s1794 = sphi %s1780, %s1780
      $region1129: #{search_transfer.3} parent=1125 // loop_header_branch
        %1791 = sbr.rel (%p1789) target = $region1133
      $region1130: #{search_transfer.3} parent=1125 // loop_body
        %v1795 = vld [vmem:[%s1793] sm:%s1786]
        %1796 = vst [vmem:[%s1794] sm:%s1786] %v1795
        %v1797 = vld [vmem:[%s1793 + $0x8] sm:%s1786]
        %1798 = vst [vmem:[%s1794 + $0x8] sm:%s1786] %v1797
      $region1131: #{search_transfer.3} parent=1125 // loop_footer
        %s1792 = sadd.s32 1, %s1788
      $region1132: #{search_transfer.3} parent=1125 // loop_footer_branch
        %1787 = sbr.rel target = $region1128
      $region1133: #{search_transfer.3} parent=1125 // loop_exit
        _
    $region1126: #{search_transfer.3} parent=5 // pred_fallthru
      _
    // Predicated region
    $region1145: #{search_transfer.3} parent=5 // pred_check
      _
    $region1146: #{search_transfer.3} parent=5 // pred_check_branch
      %1817 = sbr.rel (0) target = $region1148
    $region1147: #{search_transfer.3} parent=5 // pred_region
      %1818 = vsyncadd %s75, 32
    $region1148: #{search_transfer.3} parent=5 // pred_fallthru
      _
    %s1819 = smul.u32 %s1771, 40
    %s1820 = sadd.s32 %s1772, %s1819
    %s1821 = scalar_lea.vmem %s3, %s1820
    %s1822 = smul.u32 %s1776, 40
    %s1823 = sadd.s32 %s1777, %s1822
    %s1824 = scalar_lea.vmem %s6, %s1823
    // Predicated region
    $region1149: #{search_transfer.3} parent=5 // pred_check
      _
    $region1150: #{search_transfer.3} parent=5 // pred_check_branch
      %1826 = sbr.rel target = $region1152
    $region1151: #{search_transfer.3} parent=5 // pred_region
      // Predicated region
      $region1164: #{search_transfer.3} parent=1151 // pred_check
        _
      $region1165: #{search_transfer.3} parent=1151 // pred_check_branch
        %1850 = sbr.rel (0) target = $region1167
      $region1166: #{search_transfer.3} parent=1151 // pred_region
        %s1852 = ssub.s32 2, 1
        loop: start=0, step=1, limit=1
        $region1168: #{search_transfer.3} parent=1166 // loop_pre_header
          _
        $region1169: #{search_transfer.3} parent=1166 // loop_header
          %s1854 = sphi 0, %s1858
          %p1855 = scmp.ge.s32.totalorder %s1854, 1
          %s1859 = sphi %s1821, %s1821
          %s1860 = sphi %s1824, %s1824
        $region1170: #{search_transfer.3} parent=1166 // loop_header_branch
          %1857 = sbr.rel (%p1855) target = $region1174
        $region1171: #{search_transfer.3} parent=1166 // loop_body
          %v1861 = vld [vmem:[%s1859] sm:%s1852]
          %1862 = vst [vmem:[%s1860] sm:%s1852] %v1861
          %v1863 = vld [vmem:[%s1859 + $0x8] sm:%s1852]
          %1864 = vst [vmem:[%s1860 + $0x8] sm:%s1852] %v1863
          %v1865 = vld [vmem:[%s1859 + $0x10] sm:%s1852]
          %1866 = vst [vmem:[%s1860 + $0x10] sm:%s1852] %v1865
          %v1867 = vld [vmem:[%s1859 + $0x18] sm:%s1852]
          %1868 = vst [vmem:[%s1860 + $0x18] sm:%s1852] %v1867
          %v1869 = vld [vmem:[%s1859 + $0x20] sm:%s1852]
          %1870 = vst [vmem:[%s1860 + $0x20] sm:%s1852] %v1869
        $region1172: #{search_transfer.3} parent=1166 // loop_footer
          %s1858 = sadd.s32 1, %s1854
        $region1173: #{search_transfer.3} parent=1166 // loop_footer_branch
          %1853 = sbr.rel target = $region1169
        $region1174: #{search_transfer.3} parent=1166 // loop_exit
          _
      $region1167: #{search_transfer.3} parent=1151 // pred_fallthru
        _
    $region1152: #{search_transfer.3} parent=5 // pred_fallthru
      _
    // Predicated region
    $region1153: #{search_transfer.3} parent=5 // pred_check
      _
    $region1154: #{search_transfer.3} parent=5 // pred_check_branch
      %1828 = sbr.rel (0) target = $region1156
    $region1155: #{search_transfer.3} parent=5 // pred_region
      %s1830 = ssub.s32 2, 1
      loop: start=0, step=1, limit=1
      $region1157: #{search_transfer.3} parent=1155 // loop_pre_header
        _
      $region1158: #{search_transfer.3} parent=1155 // loop_header
        %s1832 = sphi 0, %s1836
        %p1833 = scmp.ge.s32.totalorder %s1832, 1
        %s1837 = sphi %s1821, %s1821
        %s1838 = sphi %s1824, %s1824
      $region1159: #{search_transfer.3} parent=1155 // loop_header_branch
        %1835 = sbr.rel (%p1833) target = $region1163
      $region1160: #{search_transfer.3} parent=1155 // loop_body
        %v1839 = vld [vmem:[%s1837] sm:%s1830]
        %1840 = vst [vmem:[%s1838] sm:%s1830] %v1839
        %v1841 = vld [vmem:[%s1837 + $0x8] sm:%s1830]
        %1842 = vst [vmem:[%s1838 + $0x8] sm:%s1830] %v1841
        %v1843 = vld [vmem:[%s1837 + $0x10] sm:%s1830]
        %1844 = vst [vmem:[%s1838 + $0x10] sm:%s1830] %v1843
        %v1845 = vld [vmem:[%s1837 + $0x18] sm:%s1830]
        %1846 = vst [vmem:[%s1838 + $0x18] sm:%s1830] %v1845
        %v1847 = vld [vmem:[%s1837 + $0x20] sm:%s1830]
        %1848 = vst [vmem:[%s1838 + $0x20] sm:%s1830] %v1847
      $region1161: #{search_transfer.3} parent=1155 // loop_footer
        %s1836 = sadd.s32 1, %s1832
      $region1162: #{search_transfer.3} parent=1155 // loop_footer_branch
        %1831 = sbr.rel target = $region1158
      $region1163: #{search_transfer.3} parent=1155 // loop_exit
        _
    $region1156: #{search_transfer.3} parent=5 // pred_fallthru
      _
    // Predicated region
    $region1175: #{search_transfer.3} parent=5 // pred_check
      _
    $region1176: #{search_transfer.3} parent=5 // pred_check_branch
      %1873 = sbr.rel (0) target = $region1178
    $region1177: #{search_transfer.3} parent=5 // pred_region
      %1874 = vsyncadd %s120, 80
    $region1178: #{search_transfer.3} parent=5 // pred_fallthru
      _
    %s1875 = sadd.s32 %s27, 13
    %s1876 = sld [smem:[#allocation4 + %s1875]]
    %s1877 = scalar_lea.vmem %s1, %s1876
    %s1878 = scalar_lea.vmem %s4, %s1875
    // Predicated region
    $region1179: #{search_transfer.3} parent=5 // pred_check
      _
    $region1180: #{search_transfer.3} parent=5 // pred_check_branch
      %1880 = sbr.rel target = $region1182
    $region1181: #{search_transfer.3} parent=5 // pred_region
      // Predicated region
      $region1194: #{search_transfer.3} parent=1181 // pred_check
        _
      $region1195: #{search_transfer.3} parent=1181 // pred_check_branch
        %1896 = sbr.rel (0) target = $region1197
      $region1196: #{search_transfer.3} parent=1181 // pred_region
        %s1898 = ssub.s32 2, 1
        loop: start=0, step=1, limit=1
        $region1198: #{search_transfer.3} parent=1196 // loop_pre_header
          _
        $region1199: #{search_transfer.3} parent=1196 // loop_header
          %s1900 = sphi 0, %s1904
          %p1901 = scmp.ge.s32.totalorder %s1900, 1
          %s1905 = sphi %s1877, %s1877
          %s1906 = sphi %s1878, %s1878
        $region1200: #{search_transfer.3} parent=1196 // loop_header_branch
          %1903 = sbr.rel (%p1901) target = $region1204
        $region1201: #{search_transfer.3} parent=1196 // loop_body
          %v1907 = vld [vmem:[%s1905] sm:%s1898]
          %1908 = vst [vmem:[%s1906] sm:%s1898] %v1907
        $region1202: #{search_transfer.3} parent=1196 // loop_footer
          %s1904 = sadd.s32 1, %s1900
        $region1203: #{search_transfer.3} parent=1196 // loop_footer_branch
          %1899 = sbr.rel target = $region1199
        $region1204: #{search_transfer.3} parent=1196 // loop_exit
          _
      $region1197: #{search_transfer.3} parent=1181 // pred_fallthru
        _
    $region1182: #{search_transfer.3} parent=5 // pred_fallthru
      _
    // Predicated region
    $region1183: #{search_transfer.3} parent=5 // pred_check
      _
    $region1184: #{search_transfer.3} parent=5 // pred_check_branch
      %1882 = sbr.rel (0) target = $region1186
    $region1185: #{search_transfer.3} parent=5 // pred_region
      %s1884 = ssub.s32 2, 1
      loop: start=0, step=1, limit=1
      $region1187: #{search_transfer.3} parent=1185 // loop_pre_header
        _
      $region1188: #{search_transfer.3} parent=1185 // loop_header
        %s1886 = sphi 0, %s1890
        %p1887 = scmp.ge.s32.totalorder %s1886, 1
        %s1891 = sphi %s1877, %s1877
        %s1892 = sphi %s1878, %s1878
      $region1189: #{search_transfer.3} parent=1185 // loop_header_branch
        %1889 = sbr.rel (%p1887) target = $region1193
      $region1190: #{search_transfer.3} parent=1185 // loop_body
        %v1893 = vld [vmem:[%s1891] sm:%s1884]
        %1894 = vst [vmem:[%s1892] sm:%s1884] %v1893
      $region1191: #{search_transfer.3} parent=1185 // loop_footer
        %s1890 = sadd.s32 1, %s1886
      $region1192: #{search_transfer.3} parent=1185 // loop_footer_branch
        %1885 = sbr.rel target = $region1188
      $region1193: #{search_transfer.3} parent=1185 // loop_exit
        _
    $region1186: #{search_transfer.3} parent=5 // pred_fallthru
      _
    // Predicated region
    $region1205: #{search_transfer.3} parent=5 // pred_check
      _
    $region1206: #{search_transfer.3} parent=5 // pred_check_branch
      %1911 = sbr.rel (0) target = $region1208
    $region1207: #{search_transfer.3} parent=5 // pred_region
      %1912 = vsyncadd [#allocation2], 16
    $region1208: #{search_transfer.3} parent=5 // pred_fallthru
      _
    %s1913 = sshrl.u32 %s1876, 3
    %s1914 = sand.u32 %s1876, 7
    %s1915 = smul.u32 %s1913, 16
    %s1916 = sadd.s32 %s1914, %s1915
    %s1917 = scalar_lea.vmem %s2, %s1916
    %s1918 = sshrl.u32 %s1875, 3
    %s1919 = sand.u32 %s1875, 7
    %s1920 = smul.u32 %s1918, 16
    %s1921 = sadd.s32 %s1919, %s1920
    %s1922 = scalar_lea.vmem %s5, %s1921
    // Predicated region
    $region1209: #{search_transfer.3} parent=5 // pred_check
      _
    $region1210: #{search_transfer.3} parent=5 // pred_check_branch
      %1924 = sbr.rel target = $region1212
    $region1211: #{search_transfer.3} parent=5 // pred_region
      // Predicated region
      $region1224: #{search_transfer.3} parent=1211 // pred_check
        _
      $region1225: #{search_transfer.3} parent=1211 // pred_check_branch
        %1942 = sbr.rel (0) target = $region1227
      $region1226: #{search_transfer.3} parent=1211 // pred_region
        %s1944 = ssub.s32 2, 1
        loop: start=0, step=1, limit=1
        $region1228: #{search_transfer.3} parent=1226 // loop_pre_header
          _
        $region1229: #{search_transfer.3} parent=1226 // loop_header
          %s1946 = sphi 0, %s1950
          %p1947 = scmp.ge.s32.totalorder %s1946, 1
          %s1951 = sphi %s1917, %s1917
          %s1952 = sphi %s1922, %s1922
        $region1230: #{search_transfer.3} parent=1226 // loop_header_branch
          %1949 = sbr.rel (%p1947) target = $region1234
        $region1231: #{search_transfer.3} parent=1226 // loop_body
          %v1953 = vld [vmem:[%s1951] sm:%s1944]
          %1954 = vst [vmem:[%s1952] sm:%s1944] %v1953
          %v1955 = vld [vmem:[%s1951 + $0x8] sm:%s1944]
          %1956 = vst [vmem:[%s1952 + $0x8] sm:%s1944] %v1955
        $region1232: #{search_transfer.3} parent=1226 // loop_footer
          %s1950 = sadd.s32 1, %s1946
        $region1233: #{search_transfer.3} parent=1226 // loop_footer_branch
          %1945 = sbr.rel target = $region1229
        $region1234: #{search_transfer.3} parent=1226 // loop_exit
          _
      $region1227: #{search_transfer.3} parent=1211 // pred_fallthru
        _
    $region1212: #{search_transfer.3} parent=5 // pred_fallthru
      _
    // Predicated region
    $region1213: #{search_transfer.3} parent=5 // pred_check
      _
    $region1214: #{search_transfer.3} parent=5 // pred_check_branch
      %1926 = sbr.rel (0) target = $region1216
    $region1215: #{search_transfer.3} parent=5 // pred_region
      %s1928 = ssub.s32 2, 1
      loop: start=0, step=1, limit=1
      $region1217: #{search_transfer.3} parent=1215 // loop_pre_header
        _
      $region1218: #{search_transfer.3} parent=1215 // loop_header
        %s1930 = sphi 0, %s1934
        %p1931 = scmp.ge.s32.totalorder %s1930, 1
        %s1935 = sphi %s1917, %s1917
        %s1936 = sphi %s1922, %s1922
      $region1219: #{search_transfer.3} parent=1215 // loop_header_branch
        %1933 = sbr.rel (%p1931) target = $region1223
      $region1220: #{search_transfer.3} parent=1215 // loop_body
        %v1937 = vld [vmem:[%s1935] sm:%s1928]
        %1938 = vst [vmem:[%s1936] sm:%s1928] %v1937
        %v1939 = vld [vmem:[%s1935 + $0x8] sm:%s1928]
        %1940 = vst [vmem:[%s1936 + $0x8] sm:%s1928] %v1939
      $region1221: #{search_transfer.3} parent=1215 // loop_footer
        %s1934 = sadd.s32 1, %s1930
      $region1222: #{search_transfer.3} parent=1215 // loop_footer_branch
        %1929 = sbr.rel target = $region1218
      $region1223: #{search_transfer.3} parent=1215 // loop_exit
        _
    $region1216: #{search_transfer.3} parent=5 // pred_fallthru
      _
    // Predicated region
    $region1235: #{search_transfer.3} parent=5 // pred_check
      _
    $region1236: #{search_transfer.3} parent=5 // pred_check_branch
      %1959 = sbr.rel (0) target = $region1238
    $region1237: #{search_transfer.3} parent=5 // pred_region
      %1960 = vsyncadd %s75, 32
    $region1238: #{search_transfer.3} parent=5 // pred_fallthru
      _
    %s1961 = smul.u32 %s1913, 40
    %s1962 = sadd.s32 %s1914, %s1961
    %s1963 = scalar_lea.vmem %s3, %s1962
    %s1964 = smul.u32 %s1918, 40
    %s1965 = sadd.s32 %s1919, %s1964
    %s1966 = scalar_lea.vmem %s6, %s1965
    // Predicated region
    $region1239: #{search_transfer.3} parent=5 // pred_check
      _
    $region1240: #{search_transfer.3} parent=5 // pred_check_branch
      %1968 = sbr.rel target = $region1242
    $region1241: #{search_transfer.3} parent=5 // pred_region
      // Predicated region
      $region1254: #{search_transfer.3} parent=1241 // pred_check
        _
      $region1255: #{search_transfer.3} parent=1241 // pred_check_branch
        %1992 = sbr.rel (0) target = $region1257
      $region1256: #{search_transfer.3} parent=1241 // pred_region
        %s1994 = ssub.s32 2, 1
        loop: start=0, step=1, limit=1
        $region1258: #{search_transfer.3} parent=1256 // loop_pre_header
          _
        $region1259: #{search_transfer.3} parent=1256 // loop_header
          %s1996 = sphi 0, %s2000
          %p1997 = scmp.ge.s32.totalorder %s1996, 1
          %s2001 = sphi %s1963, %s1963
          %s2002 = sphi %s1966, %s1966
        $region1260: #{search_transfer.3} parent=1256 // loop_header_branch
          %1999 = sbr.rel (%p1997) target = $region1264
        $region1261: #{search_transfer.3} parent=1256 // loop_body
          %v2003 = vld [vmem:[%s2001] sm:%s1994]
          %2004 = vst [vmem:[%s2002] sm:%s1994] %v2003
          %v2005 = vld [vmem:[%s2001 + $0x8] sm:%s1994]
          %2006 = vst [vmem:[%s2002 + $0x8] sm:%s1994] %v2005
          %v2007 = vld [vmem:[%s2001 + $0x10] sm:%s1994]
          %2008 = vst [vmem:[%s2002 + $0x10] sm:%s1994] %v2007
          %v2009 = vld [vmem:[%s2001 + $0x18] sm:%s1994]
          %2010 = vst [vmem:[%s2002 + $0x18] sm:%s1994] %v2009
          %v2011 = vld [vmem:[%s2001 + $0x20] sm:%s1994]
          %2012 = vst [vmem:[%s2002 + $0x20] sm:%s1994] %v2011
        $region1262: #{search_transfer.3} parent=1256 // loop_footer
          %s2000 = sadd.s32 1, %s1996
        $region1263: #{search_transfer.3} parent=1256 // loop_footer_branch
          %1995 = sbr.rel target = $region1259
        $region1264: #{search_transfer.3} parent=1256 // loop_exit
          _
      $region1257: #{search_transfer.3} parent=1241 // pred_fallthru
        _
    $region1242: #{search_transfer.3} parent=5 // pred_fallthru
      _
    // Predicated region
    $region1243: #{search_transfer.3} parent=5 // pred_check
      _
    $region1244: #{search_transfer.3} parent=5 // pred_check_branch
      %1970 = sbr.rel (0) target = $region1246
    $region1245: #{search_transfer.3} parent=5 // pred_region
      %s1972 = ssub.s32 2, 1
      loop: start=0, step=1, limit=1
      $region1247: #{search_transfer.3} parent=1245 // loop_pre_header
        _
      $region1248: #{search_transfer.3} parent=1245 // loop_header
        %s1974 = sphi 0, %s1978
        %p1975 = scmp.ge.s32.totalorder %s1974, 1
        %s1979 = sphi %s1963, %s1963
        %s1980 = sphi %s1966, %s1966
      $region1249: #{search_transfer.3} parent=1245 // loop_header_branch
        %1977 = sbr.rel (%p1975) target = $region1253
      $region1250: #{search_transfer.3} parent=1245 // loop_body
        %v1981 = vld [vmem:[%s1979] sm:%s1972]
        %1982 = vst [vmem:[%s1980] sm:%s1972] %v1981
        %v1983 = vld [vmem:[%s1979 + $0x8] sm:%s1972]
        %1984 = vst [vmem:[%s1980 + $0x8] sm:%s1972] %v1983
        %v1985 = vld [vmem:[%s1979 + $0x10] sm:%s1972]
        %1986 = vst [vmem:[%s1980 + $0x10] sm:%s1972] %v1985
        %v1987 = vld [vmem:[%s1979 + $0x18] sm:%s1972]
        %1988 = vst [vmem:[%s1980 + $0x18] sm:%s1972] %v1987
        %v1989 = vld [vmem:[%s1979 + $0x20] sm:%s1972]
        %1990 = vst [vmem:[%s1980 + $0x20] sm:%s1972] %v1989
      $region1251: #{search_transfer.3} parent=1245 // loop_footer
        %s1978 = sadd.s32 1, %s1974
      $region1252: #{search_transfer.3} parent=1245 // loop_footer_branch
        %1973 = sbr.rel target = $region1248
      $region1253: #{search_transfer.3} parent=1245 // loop_exit
        _
    $region1246: #{search_transfer.3} parent=5 // pred_fallthru
      _
    // Predicated region
    $region1265: #{search_transfer.3} parent=5 // pred_check
      _
    $region1266: #{search_transfer.3} parent=5 // pred_check_branch
      %2015 = sbr.rel (0) target = $region1268
    $region1267: #{search_transfer.3} parent=5 // pred_region
      %2016 = vsyncadd %s120, 80
    $region1268: #{search_transfer.3} parent=5 // pred_fallthru
      _
    %s2017 = sadd.s32 %s27, 14
    %s2018 = sld [smem:[#allocation4 + %s2017]]
    %s2019 = scalar_lea.vmem %s1, %s2018
    %s2020 = scalar_lea.vmem %s4, %s2017
    // Predicated region
    $region1269: #{search_transfer.3} parent=5 // pred_check
      _
    $region1270: #{search_transfer.3} parent=5 // pred_check_branch
      %2022 = sbr.rel target = $region1272
    $region1271: #{search_transfer.3} parent=5 // pred_region
      // Predicated region
      $region1284: #{search_transfer.3} parent=1271 // pred_check
        _
      $region1285: #{search_transfer.3} parent=1271 // pred_check_branch
        %2038 = sbr.rel (0) target = $region1287
      $region1286: #{search_transfer.3} parent=1271 // pred_region
        %s2040 = ssub.s32 2, 1
        loop: start=0, step=1, limit=1
        $region1288: #{search_transfer.3} parent=1286 // loop_pre_header
          _
        $region1289: #{search_transfer.3} parent=1286 // loop_header
          %s2042 = sphi 0, %s2046
          %p2043 = scmp.ge.s32.totalorder %s2042, 1
          %s2047 = sphi %s2019, %s2019
          %s2048 = sphi %s2020, %s2020
        $region1290: #{search_transfer.3} parent=1286 // loop_header_branch
          %2045 = sbr.rel (%p2043) target = $region1294
        $region1291: #{search_transfer.3} parent=1286 // loop_body
          %v2049 = vld [vmem:[%s2047] sm:%s2040]
          %2050 = vst [vmem:[%s2048] sm:%s2040] %v2049
        $region1292: #{search_transfer.3} parent=1286 // loop_footer
          %s2046 = sadd.s32 1, %s2042
        $region1293: #{search_transfer.3} parent=1286 // loop_footer_branch
          %2041 = sbr.rel target = $region1289
        $region1294: #{search_transfer.3} parent=1286 // loop_exit
          _
      $region1287: #{search_transfer.3} parent=1271 // pred_fallthru
        _
    $region1272: #{search_transfer.3} parent=5 // pred_fallthru
      _
    // Predicated region
    $region1273: #{search_transfer.3} parent=5 // pred_check
      _
    $region1274: #{search_transfer.3} parent=5 // pred_check_branch
      %2024 = sbr.rel (0) target = $region1276
    $region1275: #{search_transfer.3} parent=5 // pred_region
      %s2026 = ssub.s32 2, 1
      loop: start=0, step=1, limit=1
      $region1277: #{search_transfer.3} parent=1275 // loop_pre_header
        _
      $region1278: #{search_transfer.3} parent=1275 // loop_header
        %s2028 = sphi 0, %s2032
        %p2029 = scmp.ge.s32.totalorder %s2028, 1
        %s2033 = sphi %s2019, %s2019
        %s2034 = sphi %s2020, %s2020
      $region1279: #{search_transfer.3} parent=1275 // loop_header_branch
        %2031 = sbr.rel (%p2029) target = $region1283
      $region1280: #{search_transfer.3} parent=1275 // loop_body
        %v2035 = vld [vmem:[%s2033] sm:%s2026]
        %2036 = vst [vmem:[%s2034] sm:%s2026] %v2035
      $region1281: #{search_transfer.3} parent=1275 // loop_footer
        %s2032 = sadd.s32 1, %s2028
      $region1282: #{search_transfer.3} parent=1275 // loop_footer_branch
        %2027 = sbr.rel target = $region1278
      $region1283: #{search_transfer.3} parent=1275 // loop_exit
        _
    $region1276: #{search_transfer.3} parent=5 // pred_fallthru
      _
    // Predicated region
    $region1295: #{search_transfer.3} parent=5 // pred_check
      _
    $region1296: #{search_transfer.3} parent=5 // pred_check_branch
      %2053 = sbr.rel (0) target = $region1298
    $region1297: #{search_transfer.3} parent=5 // pred_region
      %2054 = vsyncadd [#allocation2], 16
    $region1298: #{search_transfer.3} parent=5 // pred_fallthru
      _
    %s2055 = sshrl.u32 %s2018, 3
    %s2056 = sand.u32 %s2018, 7
    %s2057 = smul.u32 %s2055, 16
    %s2058 = sadd.s32 %s2056, %s2057
    %s2059 = scalar_lea.vmem %s2, %s2058
    %s2060 = sshrl.u32 %s2017, 3
    %s2061 = sand.u32 %s2017, 7
    %s2062 = smul.u32 %s2060, 16
    %s2063 = sadd.s32 %s2061, %s2062
    %s2064 = scalar_lea.vmem %s5, %s2063
    // Predicated region
    $region1299: #{search_transfer.3} parent=5 // pred_check
      _
    $region1300: #{search_transfer.3} parent=5 // pred_check_branch
      %2066 = sbr.rel target = $region1302
    $region1301: #{search_transfer.3} parent=5 // pred_region
      // Predicated region
      $region1314: #{search_transfer.3} parent=1301 // pred_check
        _
      $region1315: #{search_transfer.3} parent=1301 // pred_check_branch
        %2084 = sbr.rel (0) target = $region1317
      $region1316: #{search_transfer.3} parent=1301 // pred_region
        %s2086 = ssub.s32 2, 1
        loop: start=0, step=1, limit=1
        $region1318: #{search_transfer.3} parent=1316 // loop_pre_header
          _
        $region1319: #{search_transfer.3} parent=1316 // loop_header
          %s2088 = sphi 0, %s2092
          %p2089 = scmp.ge.s32.totalorder %s2088, 1
          %s2093 = sphi %s2059, %s2059
          %s2094 = sphi %s2064, %s2064
        $region1320: #{search_transfer.3} parent=1316 // loop_header_branch
          %2091 = sbr.rel (%p2089) target = $region1324
        $region1321: #{search_transfer.3} parent=1316 // loop_body
          %v2095 = vld [vmem:[%s2093] sm:%s2086]
          %2096 = vst [vmem:[%s2094] sm:%s2086] %v2095
          %v2097 = vld [vmem:[%s2093 + $0x8] sm:%s2086]
          %2098 = vst [vmem:[%s2094 + $0x8] sm:%s2086] %v2097
        $region1322: #{search_transfer.3} parent=1316 // loop_footer
          %s2092 = sadd.s32 1, %s2088
        $region1323: #{search_transfer.3} parent=1316 // loop_footer_branch
          %2087 = sbr.rel target = $region1319
        $region1324: #{search_transfer.3} parent=1316 // loop_exit
          _
      $region1317: #{search_transfer.3} parent=1301 // pred_fallthru
        _
    $region1302: #{search_transfer.3} parent=5 // pred_fallthru
      _
    // Predicated region
    $region1303: #{search_transfer.3} parent=5 // pred_check
      _
    $region1304: #{search_transfer.3} parent=5 // pred_check_branch
      %2068 = sbr.rel (0) target = $region1306
    $region1305: #{search_transfer.3} parent=5 // pred_region
      %s2070 = ssub.s32 2, 1
      loop: start=0, step=1, limit=1
      $region1307: #{search_transfer.3} parent=1305 // loop_pre_header
        _
      $region1308: #{search_transfer.3} parent=1305 // loop_header
        %s2072 = sphi 0, %s2076
        %p2073 = scmp.ge.s32.totalorder %s2072, 1
        %s2077 = sphi %s2059, %s2059
        %s2078 = sphi %s2064, %s2064
      $region1309: #{search_transfer.3} parent=1305 // loop_header_branch
        %2075 = sbr.rel (%p2073) target = $region1313
      $region1310: #{search_transfer.3} parent=1305 // loop_body
        %v2079 = vld [vmem:[%s2077] sm:%s2070]
        %2080 = vst [vmem:[%s2078] sm:%s2070] %v2079
        %v2081 = vld [vmem:[%s2077 + $0x8] sm:%s2070]
        %2082 = vst [vmem:[%s2078 + $0x8] sm:%s2070] %v2081
      $region1311: #{search_transfer.3} parent=1305 // loop_footer
        %s2076 = sadd.s32 1, %s2072
      $region1312: #{search_transfer.3} parent=1305 // loop_footer_branch
        %2071 = sbr.rel target = $region1308
      $region1313: #{search_transfer.3} parent=1305 // loop_exit
        _
    $region1306: #{search_transfer.3} parent=5 // pred_fallthru
      _
    // Predicated region
    $region1325: #{search_transfer.3} parent=5 // pred_check
      _
    $region1326: #{search_transfer.3} parent=5 // pred_check_branch
      %2101 = sbr.rel (0) target = $region1328
    $region1327: #{search_transfer.3} parent=5 // pred_region
      %2102 = vsyncadd %s75, 32
    $region1328: #{search_transfer.3} parent=5 // pred_fallthru
      _
    %s2103 = smul.u32 %s2055, 40
    %s2104 = sadd.s32 %s2056, %s2103
    %s2105 = scalar_lea.vmem %s3, %s2104
    %s2106 = smul.u32 %s2060, 40
    %s2107 = sadd.s32 %s2061, %s2106
    %s2108 = scalar_lea.vmem %s6, %s2107
    // Predicated region
    $region1329: #{search_transfer.3} parent=5 // pred_check
      _
    $region1330: #{search_transfer.3} parent=5 // pred_check_branch
      %2110 = sbr.rel target = $region1332
    $region1331: #{search_transfer.3} parent=5 // pred_region
      // Predicated region
      $region1344: #{search_transfer.3} parent=1331 // pred_check
        _
      $region1345: #{search_transfer.3} parent=1331 // pred_check_branch
        %2134 = sbr.rel (0) target = $region1347
      $region1346: #{search_transfer.3} parent=1331 // pred_region
        %s2136 = ssub.s32 2, 1
        loop: start=0, step=1, limit=1
        $region1348: #{search_transfer.3} parent=1346 // loop_pre_header
          _
        $region1349: #{search_transfer.3} parent=1346 // loop_header
          %s2138 = sphi 0, %s2142
          %p2139 = scmp.ge.s32.totalorder %s2138, 1
          %s2143 = sphi %s2105, %s2105
          %s2144 = sphi %s2108, %s2108
        $region1350: #{search_transfer.3} parent=1346 // loop_header_branch
          %2141 = sbr.rel (%p2139) target = $region1354
        $region1351: #{search_transfer.3} parent=1346 // loop_body
          %v2145 = vld [vmem:[%s2143] sm:%s2136]
          %2146 = vst [vmem:[%s2144] sm:%s2136] %v2145
          %v2147 = vld [vmem:[%s2143 + $0x8] sm:%s2136]
          %2148 = vst [vmem:[%s2144 + $0x8] sm:%s2136] %v2147
          %v2149 = vld [vmem:[%s2143 + $0x10] sm:%s2136]
          %2150 = vst [vmem:[%s2144 + $0x10] sm:%s2136] %v2149
          %v2151 = vld [vmem:[%s2143 + $0x18] sm:%s2136]
          %2152 = vst [vmem:[%s2144 + $0x18] sm:%s2136] %v2151
          %v2153 = vld [vmem:[%s2143 + $0x20] sm:%s2136]
          %2154 = vst [vmem:[%s2144 + $0x20] sm:%s2136] %v2153
        $region1352: #{search_transfer.3} parent=1346 // loop_footer
          %s2142 = sadd.s32 1, %s2138
        $region1353: #{search_transfer.3} parent=1346 // loop_footer_branch
          %2137 = sbr.rel target = $region1349
        $region1354: #{search_transfer.3} parent=1346 // loop_exit
          _
      $region1347: #{search_transfer.3} parent=1331 // pred_fallthru
        _
    $region1332: #{search_transfer.3} parent=5 // pred_fallthru
      _
    // Predicated region
    $region1333: #{search_transfer.3} parent=5 // pred_check
      _
    $region1334: #{search_transfer.3} parent=5 // pred_check_branch
      %2112 = sbr.rel (0) target = $region1336
    $region1335: #{search_transfer.3} parent=5 // pred_region
      %s2114 = ssub.s32 2, 1
      loop: start=0, step=1, limit=1
      $region1337: #{search_transfer.3} parent=1335 // loop_pre_header
        _
      $region1338: #{search_transfer.3} parent=1335 // loop_header
        %s2116 = sphi 0, %s2120
        %p2117 = scmp.ge.s32.totalorder %s2116, 1
        %s2121 = sphi %s2105, %s2105
        %s2122 = sphi %s2108, %s2108
      $region1339: #{search_transfer.3} parent=1335 // loop_header_branch
        %2119 = sbr.rel (%p2117) target = $region1343
      $region1340: #{search_transfer.3} parent=1335 // loop_body
        %v2123 = vld [vmem:[%s2121] sm:%s2114]
        %2124 = vst [vmem:[%s2122] sm:%s2114] %v2123
        %v2125 = vld [vmem:[%s2121 + $0x8] sm:%s2114]
        %2126 = vst [vmem:[%s2122 + $0x8] sm:%s2114] %v2125
        %v2127 = vld [vmem:[%s2121 + $0x10] sm:%s2114]
        %2128 = vst [vmem:[%s2122 + $0x10] sm:%s2114] %v2127
        %v2129 = vld [vmem:[%s2121 + $0x18] sm:%s2114]
        %2130 = vst [vmem:[%s2122 + $0x18] sm:%s2114] %v2129
        %v2131 = vld [vmem:[%s2121 + $0x20] sm:%s2114]
        %2132 = vst [vmem:[%s2122 + $0x20] sm:%s2114] %v2131
      $region1341: #{search_transfer.3} parent=1335 // loop_footer
        %s2120 = sadd.s32 1, %s2116
      $region1342: #{search_transfer.3} parent=1335 // loop_footer_branch
        %2115 = sbr.rel target = $region1338
      $region1343: #{search_transfer.3} parent=1335 // loop_exit
        _
    $region1336: #{search_transfer.3} parent=5 // pred_fallthru
      _
    // Predicated region
    $region1355: #{search_transfer.3} parent=5 // pred_check
      _
    $region1356: #{search_transfer.3} parent=5 // pred_check_branch
      %2157 = sbr.rel (0) target = $region1358
    $region1357: #{search_transfer.3} parent=5 // pred_region
      %2158 = vsyncadd %s120, 80
    $region1358: #{search_transfer.3} parent=5 // pred_fallthru
      _
    %s2159 = sadd.s32 %s27, 15
    %s2160 = sld [smem:[#allocation4 + %s2159]]
    %s2161 = scalar_lea.vmem %s1, %s2160
    %s2162 = scalar_lea.vmem %s4, %s2159
    // Predicated region
    $region1359: #{search_transfer.3} parent=5 // pred_check
      _
    $region1360: #{search_transfer.3} parent=5 // pred_check_branch
      %2164 = sbr.rel target = $region1362
    $region1361: #{search_transfer.3} parent=5 // pred_region
      // Predicated region
      $region1374: #{search_transfer.3} parent=1361 // pred_check
        _
      $region1375: #{search_transfer.3} parent=1361 // pred_check_branch
        %2180 = sbr.rel (0) target = $region1377
      $region1376: #{search_transfer.3} parent=1361 // pred_region
        %s2182 = ssub.s32 2, 1
        loop: start=0, step=1, limit=1
        $region1378: #{search_transfer.3} parent=1376 // loop_pre_header
          _
        $region1379: #{search_transfer.3} parent=1376 // loop_header
          %s2184 = sphi 0, %s2188
          %p2185 = scmp.ge.s32.totalorder %s2184, 1
          %s2189 = sphi %s2161, %s2161
          %s2190 = sphi %s2162, %s2162
        $region1380: #{search_transfer.3} parent=1376 // loop_header_branch
          %2187 = sbr.rel (%p2185) target = $region1384
        $region1381: #{search_transfer.3} parent=1376 // loop_body
          %v2191 = vld [vmem:[%s2189] sm:%s2182]
          %2192 = vst [vmem:[%s2190] sm:%s2182] %v2191
        $region1382: #{search_transfer.3} parent=1376 // loop_footer
          %s2188 = sadd.s32 1, %s2184
        $region1383: #{search_transfer.3} parent=1376 // loop_footer_branch
          %2183 = sbr.rel target = $region1379
        $region1384: #{search_transfer.3} parent=1376 // loop_exit
          _
      $region1377: #{search_transfer.3} parent=1361 // pred_fallthru
        _
    $region1362: #{search_transfer.3} parent=5 // pred_fallthru
      _
    // Predicated region
    $region1363: #{search_transfer.3} parent=5 // pred_check
      _
    $region1364: #{search_transfer.3} parent=5 // pred_check_branch
      %2166 = sbr.rel (0) target = $region1366
    $region1365: #{search_transfer.3} parent=5 // pred_region
      %s2168 = ssub.s32 2, 1
      loop: start=0, step=1, limit=1
      $region1367: #{search_transfer.3} parent=1365 // loop_pre_header
        _
      $region1368: #{search_transfer.3} parent=1365 // loop_header
        %s2170 = sphi 0, %s2174
        %p2171 = scmp.ge.s32.totalorder %s2170, 1
        %s2175 = sphi %s2161, %s2161
        %s2176 = sphi %s2162, %s2162
      $region1369: #{search_transfer.3} parent=1365 // loop_header_branch
        %2173 = sbr.rel (%p2171) target = $region1373
      $region1370: #{search_transfer.3} parent=1365 // loop_body
        %v2177 = vld [vmem:[%s2175] sm:%s2168]
        %2178 = vst [vmem:[%s2176] sm:%s2168] %v2177
      $region1371: #{search_transfer.3} parent=1365 // loop_footer
        %s2174 = sadd.s32 1, %s2170
      $region1372: #{search_transfer.3} parent=1365 // loop_footer_branch
        %2169 = sbr.rel target = $region1368
      $region1373: #{search_transfer.3} parent=1365 // loop_exit
        _
    $region1366: #{search_transfer.3} parent=5 // pred_fallthru
      _
    // Predicated region
    $region1385: #{search_transfer.3} parent=5 // pred_check
      _
    $region1386: #{search_transfer.3} parent=5 // pred_check_branch
      %2195 = sbr.rel (0) target = $region1388
    $region1387: #{search_transfer.3} parent=5 // pred_region
      %2196 = vsyncadd [#allocation2], 16
    $region1388: #{search_transfer.3} parent=5 // pred_fallthru
      _
    %s2197 = sshrl.u32 %s2160, 3
    %s2198 = sand.u32 %s2160, 7
    %s2199 = smul.u32 %s2197, 16
    %s2200 = sadd.s32 %s2198, %s2199
    %s2201 = scalar_lea.vmem %s2, %s2200
    %s2202 = sshrl.u32 %s2159, 3
    %s2203 = sand.u32 %s2159, 7
    %s2204 = smul.u32 %s2202, 16
    %s2205 = sadd.s32 %s2203, %s2204
    %s2206 = scalar_lea.vmem %s5, %s2205
    // Predicated region
    $region1389: #{search_transfer.3} parent=5 // pred_check
      _
    $region1390: #{search_transfer.3} parent=5 // pred_check_branch
      %2208 = sbr.rel target = $region1392
    $region1391: #{search_transfer.3} parent=5 // pred_region
      // Predicated region
      $region1404: #{search_transfer.3} parent=1391 // pred_check
        _
      $region1405: #{search_transfer.3} parent=1391 // pred_check_branch
        %2226 = sbr.rel (0) target = $region1407
      $region1406: #{search_transfer.3} parent=1391 // pred_region
        %s2228 = ssub.s32 2, 1
        loop: start=0, step=1, limit=1
        $region1408: #{search_transfer.3} parent=1406 // loop_pre_header
          _
        $region1409: #{search_transfer.3} parent=1406 // loop_header
          %s2230 = sphi 0, %s2234
          %p2231 = scmp.ge.s32.totalorder %s2230, 1
          %s2235 = sphi %s2201, %s2201
          %s2236 = sphi %s2206, %s2206
        $region1410: #{search_transfer.3} parent=1406 // loop_header_branch
          %2233 = sbr.rel (%p2231) target = $region1414
        $region1411: #{search_transfer.3} parent=1406 // loop_body
          %v2237 = vld [vmem:[%s2235] sm:%s2228]
          %2238 = vst [vmem:[%s2236] sm:%s2228] %v2237
          %v2239 = vld [vmem:[%s2235 + $0x8] sm:%s2228]
          %2240 = vst [vmem:[%s2236 + $0x8] sm:%s2228] %v2239
        $region1412: #{search_transfer.3} parent=1406 // loop_footer
          %s2234 = sadd.s32 1, %s2230
        $region1413: #{search_transfer.3} parent=1406 // loop_footer_branch
          %2229 = sbr.rel target = $region1409
        $region1414: #{search_transfer.3} parent=1406 // loop_exit
          _
      $region1407: #{search_transfer.3} parent=1391 // pred_fallthru
        _
    $region1392: #{search_transfer.3} parent=5 // pred_fallthru
      _
    // Predicated region
    $region1393: #{search_transfer.3} parent=5 // pred_check
      _
    $region1394: #{search_transfer.3} parent=5 // pred_check_branch
      %2210 = sbr.rel (0) target = $region1396
    $region1395: #{search_transfer.3} parent=5 // pred_region
      %s2212 = ssub.s32 2, 1
      loop: start=0, step=1, limit=1
      $region1397: #{search_transfer.3} parent=1395 // loop_pre_header
        _
      $region1398: #{search_transfer.3} parent=1395 // loop_header
        %s2214 = sphi 0, %s2218
        %p2215 = scmp.ge.s32.totalorder %s2214, 1
        %s2219 = sphi %s2201, %s2201
        %s2220 = sphi %s2206, %s2206
      $region1399: #{search_transfer.3} parent=1395 // loop_header_branch
        %2217 = sbr.rel (%p2215) target = $region1403
      $region1400: #{search_transfer.3} parent=1395 // loop_body
        %v2221 = vld [vmem:[%s2219] sm:%s2212]
        %2222 = vst [vmem:[%s2220] sm:%s2212] %v2221
        %v2223 = vld [vmem:[%s2219 + $0x8] sm:%s2212]
        %2224 = vst [vmem:[%s2220 + $0x8] sm:%s2212] %v2223
      $region1401: #{search_transfer.3} parent=1395 // loop_footer
        %s2218 = sadd.s32 1, %s2214
      $region1402: #{search_transfer.3} parent=1395 // loop_footer_branch
        %2213 = sbr.rel target = $region1398
      $region1403: #{search_transfer.3} parent=1395 // loop_exit
        _
    $region1396: #{search_transfer.3} parent=5 // pred_fallthru
      _
    // Predicated region
    $region1415: #{search_transfer.3} parent=5 // pred_check
      _
    $region1416: #{search_transfer.3} parent=5 // pred_check_branch
      %2243 = sbr.rel (0) target = $region1418
    $region1417: #{search_transfer.3} parent=5 // pred_region
      %2244 = vsyncadd %s75, 32
    $region1418: #{search_transfer.3} parent=5 // pred_fallthru
      _
    %s2245 = smul.u32 %s2197, 40
    %s2246 = sadd.s32 %s2198, %s2245
    %s2247 = scalar_lea.vmem %s3, %s2246
    %s2248 = smul.u32 %s2202, 40
    %s2249 = sadd.s32 %s2203, %s2248
    %s2250 = scalar_lea.vmem %s6, %s2249
    // Predicated region
    $region1419: #{search_transfer.3} parent=5 // pred_check
      _
    $region1420: #{search_transfer.3} parent=5 // pred_check_branch
      %2252 = sbr.rel target = $region1422
    $region1421: #{search_transfer.3} parent=5 // pred_region
      // Predicated region
      $region1434: #{search_transfer.3} parent=1421 // pred_check
        _
      $region1435: #{search_transfer.3} parent=1421 // pred_check_branch
        %2276 = sbr.rel (0) target = $region1437
      $region1436: #{search_transfer.3} parent=1421 // pred_region
        %s2278 = ssub.s32 2, 1
        loop: start=0, step=1, limit=1
        $region1438: #{search_transfer.3} parent=1436 // loop_pre_header
          _
        $region1439: #{search_transfer.3} parent=1436 // loop_header
          %s2280 = sphi 0, %s2284
          %p2281 = scmp.ge.s32.totalorder %s2280, 1
          %s2285 = sphi %s2247, %s2247
          %s2286 = sphi %s2250, %s2250
        $region1440: #{search_transfer.3} parent=1436 // loop_header_branch
          %2283 = sbr.rel (%p2281) target = $region1444
        $region1441: #{search_transfer.3} parent=1436 // loop_body
          %v2287 = vld [vmem:[%s2285] sm:%s2278]
          %2288 = vst [vmem:[%s2286] sm:%s2278] %v2287
          %v2289 = vld [vmem:[%s2285 + $0x8] sm:%s2278]
          %2290 = vst [vmem:[%s2286 + $0x8] sm:%s2278] %v2289
          %v2291 = vld [vmem:[%s2285 + $0x10] sm:%s2278]
          %2292 = vst [vmem:[%s2286 + $0x10] sm:%s2278] %v2291
          %v2293 = vld [vmem:[%s2285 + $0x18] sm:%s2278]
          %2294 = vst [vmem:[%s2286 + $0x18] sm:%s2278] %v2293
          %v2295 = vld [vmem:[%s2285 + $0x20] sm:%s2278]
          %2296 = vst [vmem:[%s2286 + $0x20] sm:%s2278] %v2295
        $region1442: #{search_transfer.3} parent=1436 // loop_footer
          %s2284 = sadd.s32 1, %s2280
        $region1443: #{search_transfer.3} parent=1436 // loop_footer_branch
          %2279 = sbr.rel target = $region1439
        $region1444: #{search_transfer.3} parent=1436 // loop_exit
          _
      $region1437: #{search_transfer.3} parent=1421 // pred_fallthru
        _
    $region1422: #{search_transfer.3} parent=5 // pred_fallthru
      _
    // Predicated region
    $region1423: #{search_transfer.3} parent=5 // pred_check
      _
    $region1424: #{search_transfer.3} parent=5 // pred_check_branch
      %2254 = sbr.rel (0) target = $region1426
    $region1425: #{search_transfer.3} parent=5 // pred_region
      %s2256 = ssub.s32 2, 1
      loop: start=0, step=1, limit=1
      $region1427: #{search_transfer.3} parent=1425 // loop_pre_header
        _
      $region1428: #{search_transfer.3} parent=1425 // loop_header
        %s2258 = sphi 0, %s2262
        %p2259 = scmp.ge.s32.totalorder %s2258, 1
        %s2263 = sphi %s2247, %s2247
        %s2264 = sphi %s2250, %s2250
      $region1429: #{search_transfer.3} parent=1425 // loop_header_branch
        %2261 = sbr.rel (%p2259) target = $region1433
      $region1430: #{search_transfer.3} parent=1425 // loop_body
        %v2265 = vld [vmem:[%s2263] sm:%s2256]
        %2266 = vst [vmem:[%s2264] sm:%s2256] %v2265
        %v2267 = vld [vmem:[%s2263 + $0x8] sm:%s2256]
        %2268 = vst [vmem:[%s2264 + $0x8] sm:%s2256] %v2267
        %v2269 = vld [vmem:[%s2263 + $0x10] sm:%s2256]
        %2270 = vst [vmem:[%s2264 + $0x10] sm:%s2256] %v2269
        %v2271 = vld [vmem:[%s2263 + $0x18] sm:%s2256]
        %2272 = vst [vmem:[%s2264 + $0x18] sm:%s2256] %v2271
        %v2273 = vld [vmem:[%s2263 + $0x20] sm:%s2256]
        %2274 = vst [vmem:[%s2264 + $0x20] sm:%s2256] %v2273
      $region1431: #{search_transfer.3} parent=1425 // loop_footer
        %s2262 = sadd.s32 1, %s2258
      $region1432: #{search_transfer.3} parent=1425 // loop_footer_branch
        %2257 = sbr.rel target = $region1428
      $region1433: #{search_transfer.3} parent=1425 // loop_exit
        _
    $region1426: #{search_transfer.3} parent=5 // pred_fallthru
      _
    // Predicated region
    $region1445: #{search_transfer.3} parent=5 // pred_check
      _
    $region1446: #{search_transfer.3} parent=5 // pred_check_branch
      %2299 = sbr.rel (0) target = $region1448
    $region1447: #{search_transfer.3} parent=5 // pred_region
      %2300 = vsyncadd %s120, 80
    $region1448: #{search_transfer.3} parent=5 // pred_fallthru
      _
    %2302 = dma.done [#allocation2], 16
    %2304 = dma.done %s75, 32
    %2306 = dma.done %s120, 80
    %2308 = dma.done [#allocation2], 16
    %2310 = dma.done %s75, 32
    %2312 = dma.done %s120, 80
    %2314 = dma.done [#allocation2], 16
    %2316 = dma.done %s75, 32
    %2318 = dma.done %s120, 80
    %2320 = dma.done [#allocation2], 16
    %2322 = dma.done %s75, 32
    %2324 = dma.done %s120, 80
    %2326 = dma.done [#allocation2], 16
    %2328 = dma.done %s75, 32
    %2330 = dma.done %s120, 80
    %2332 = dma.done [#allocation2], 16
    %2334 = dma.done %s75, 32
    %2336 = dma.done %s120, 80
    %2338 = dma.done [#allocation2], 16
    %2340 = dma.done %s75, 32
    %2342 = dma.done %s120, 80
    %2344 = dma.done [#allocation2], 16
    %2346 = dma.done %s75, 32
    %2348 = dma.done %s120, 80
    %2350 = dma.done [#allocation2], 16
    %2352 = dma.done %s75, 32
    %2354 = dma.done %s120, 80
    %2356 = dma.done [#allocation2], 16
    %2358 = dma.done %s75, 32
    %2360 = dma.done %s120, 80
    %2362 = dma.done [#allocation2], 16
    %2364 = dma.done %s75, 32
    %2366 = dma.done %s120, 80
    %2368 = dma.done [#allocation2], 16
    %2370 = dma.done %s75, 32
    %2372 = dma.done %s120, 80
    %2374 = dma.done [#allocation2], 16
    %2376 = dma.done %s75, 32
    %2378 = dma.done %s120, 80
    %2380 = dma.done [#allocation2], 16
    %2382 = dma.done %s75, 32
    %2384 = dma.done %s120, 80
    %2386 = dma.done [#allocation2], 16
    %2388 = dma.done %s75, 32
    %2390 = dma.done %s120, 80
    %2392 = dma.done [#allocation2], 16
    %2394 = dma.done %s75, 32
    %2396 = dma.done %s120, 80
  $region6: #{search_transfer.3} parent=0 // loop_footer
    %s25 = sadd.s32 1, %s21
  $region7: #{search_transfer.3} parent=0 // loop_footer_branch
    %20 = sbr.rel target = $region3
  $region8: #{search_transfer.3} parent=0 // loop_exit
    _
  %2397 = vsyncmov [#allocation2]
  %s2398 = vpop.sfrf %2397
  %p2399 = scmp.eq.s32.totalorder %s2398, 0
  %p2400 = pneg %p2399
  %2402 = shalt.err (%p2400)
  %s2403 = scalar_lea.sflag [#allocation2], 1
  %2404 = vsyncmov %s2403
  %s2405 = vpop.sfrf %2404
  %p2406 = scmp.eq.s32.totalorder %s2405, 0
  %p2407 = pneg %p2406
  %2409 = shalt.err (%p2407)
  %s2410 = scalar_lea.sflag [#allocation2], 2
  %2411 = vsyncmov %s2410
  %s2412 = vpop.sfrf %2411
  %p2413 = scmp.eq.s32.totalorder %s2412, 0
  %p2414 = pneg %p2413
  %2416 = shalt.err (%p2414)

</llo_original>
